<compile_context>
chip_gen: v7x
topology: tpu7x:2x2x1
jax: 0.10.0
libtpu: 0.0.40
codegen_flags: <defaults>
</compile_context>

<pallas_src>
import functools

import numpy as np

import jax
import jax.numpy as jnp
from jax.experimental import pallas as pl
from jax.experimental.pallas import tpu as pltpu


CFG = dict(
    num_in_ch=3, num_out_ch=3, num_feat=32, num_block=2, res_scale=1.0,
    img_range=255.0, rgb_mean=(0.4488, 0.4371, 0.404),
    sk_kernel_size=3, implicit_dim=64, latent_layers=2, geo_ensemble=False,
)
_CIN_PAD = 8          # conv_first input channels zero-padded 3 -> 8 (aligned contraction dim)
_LANE = 128


# --------------------------------------------------------------------------- #
# VMEM budget / strip sizing (generation dependent)
# --------------------------------------------------------------------------- #
def _vmem_budget_bytes():
    cap = 64 * 1024 * 1024
    try:
        cap = int(getattr(pltpu.get_tpu_info(), "vmem_capacity_bytes", cap))
    except Exception:
        pass
    if cap >= 96 * 1024 * 1024:           # v5e / v6e: 128 MiB physical -> use ~108 MiB
        return cap - 20 * 1024 * 1024
    return int(cap * 0.72)                # v7x: 64 MiB per TensorCore  -> use ~46 MiB


def _round_up(v, m):
    return ((v + m - 1) // m) * m


def _pick_strip_rows(H, W, C, budget):
    """Largest strip height (multiple of 8, divisor of H) whose VMEM footprint fits `budget`."""
    c_pad = _round_up(C, _LANE)
    k_pad = _round_up(9 * C, _LANE)
    per_row = W * (
        4 * c_pad * 2        # in + out activation blocks, double-buffered, bf16, lane-padded
        + 2 * k_pad * 2      # two im2col patch tensors (fused residual block), bf16
        + 3 * c_pad * 4      # f32 matmul outputs / residual / temporaries
    )
    per_row = int(per_row * 1.3)          # headroom for relayout temporaries
    th = max(8, int(budget) // max(per_row, 1))
    th = min((th // 8) * 8, H)
    th = max(th, min(8, H))
    while th > 8 and H % th:
        th -= 8
    if H % th:
        th = H                            # TODO(synk): remainder strips
    return th


# --------------------------------------------------------------------------- #
# Halo gather (wrapper-side, cheap: only 2*pad rows per strip are touched)
# --------------------------------------------------------------------------- #
def _build_halo(x, strip_rows, pad):
    """Gather the `pad` rows above/below every H-strip of x (N,H,W,C); zeros outside the image."""
    N, H, W, C = x.shape
    S = H // strip_rows
    rows, valid = [], []
    for i in range(S):
        lo, hi = i * strip_rows, (i + 1) * strip_rows
        for r in list(range(lo - pad, lo)) + list(range(hi, hi + pad)):
            rows.append(min(max(r, 0), H - 1))
            valid.append(1.0 if 0 <= r < H else 0.0)
    idx = jnp.asarray(np.asarray(rows, np.int32))
    msk = jnp.asarray(np.asarray(valid, np.float32)).reshape(1, len(rows), 1, 1)
    halo = jnp.take(x, idx, axis=1) * msk.astype(x.dtype)
    return halo.reshape(N, S, 2 * pad, W, C)


# --------------------------------------------------------------------------- #
# In-kernel helpers (all bf16 on the patch path)
# --------------------------------------------------------------------------- #
def _im2col(xpad, ho, wo):
    """(ho+2, wo+2, Cin) bf16 halo-padded tile -> (ho*wo, 9*Cin) bf16 patch matrix."""
    cin = xpad.shape[-1]
    taps = [xpad[dy:dy + ho, dx:dx + wo, :] for dy in range(3) for dx in range(3)]
    return jnp.concatenate(taps, axis=-1).reshape(ho * wo, 9 * cin)


def _pad_w1(x):
    """Zero-pad an (R, W, C) bf16 tile by 1 column on each side (same-conv W halo)."""
    rows, _, c = x.shape
    z = jnp.zeros((rows, 1, c), x.dtype)
    return jnp.concatenate([z, x, z], axis=1)


# --------------------------------------------------------------------------- #
# Pallas kernels (one H-strip per grid step)
# --------------------------------------------------------------------------- #
def _conv_kernel(x_ref, halo_ref, w_ref, b_ref, o_ref, *, TH, W, relu):
    x = x_ref[0]                                            # (TH, W, Cin) bf16
    halo = halo_ref[0, 0]                                   # (2, W, Cin)  bf16 (row -1, row TH)
    xe = jnp.concatenate([halo[0:1], x, halo[1:2]], axis=0)
    p = _im2col(_pad_w1(xe), TH, W)                         # bf16 patches
    acc = jnp.dot(p, w_ref[...], preferred_element_type=jnp.float32) + b_ref[...]
    if relu:
        acc = jnp.maximum(acc, 0.0)
    cout = o_ref.shape[-1]
    o_ref[...] = acc.reshape(1, TH, W, cout).astype(o_ref.dtype)


def _conv_residual_kernel(x_ref, halo_ref, w_ref, b_ref, r_ref, o_ref, *, TH, W, res_scale):
    """conv_after_body fused with the global skip connection."""
    x = x_ref[0]
    halo = halo_ref[0, 0]
    xe = jnp.concatenate([halo[0:1], x, halo[1:2]], axis=0)
    p = _im2col(_pad_w1(xe), TH, W)
    acc = jnp.dot(p, w_ref[...], preferred_element_type=jnp.float32) + b_ref[...]
    cout = o_ref.shape[-1]
    out = r_ref[0].astype(jnp.float32).reshape(TH * W, cout) + res_scale * acc
    o_ref[...] = out.reshape(1, TH, W, cout).astype(o_ref.dtype)


def _resblock_kernel(x_ref, halo_ref, w1_ref, b1_ref, w2_ref, b2_ref, o_ref, *,
                     TH, W, res_scale):
    """Fused ResidualBlockNoBN on one strip: conv -> ReLU -> conv -> x + res_scale * out.

    Uses a 2-row input halo: conv1 is evaluated on TH+2 rows so conv2's row halo stays in VMEM.
    conv1 rows outside the image are zeroed (conv2 sees true zero padding at image borders).
    """
    i = pl.program_id(1)
    ns = pl.num_programs(1)
    C = x_ref.shape[-1]
    He = TH + 2

    x = x_ref[0]                                            # (TH, W, C) bf16
    halo = halo_ref[0, 0]                                   # (4, W, C)  rows -2,-1, TH, TH+1
    xe = jnp.concatenate([halo[0:2], x, halo[2:4]], axis=0)  # (TH+4, W, C)

    h = jnp.dot(_im2col(_pad_w1(xe), He, W), w1_ref[...],
                preferred_element_type=jnp.float32) + b1_ref[...]
    h = jnp.maximum(h, 0.0).reshape(He, W, C)

    row = jax.lax.broadcasted_iota(jnp.int32, (He, 1, 1), 0)
    valid = ((i > 0) | (row > 0)) & ((i < ns - 1) | (row < He - 1))
    h = jnp.where(valid, h, 0.0).astype(jnp.bfloat16)       # conv1 halo rows, on-chip

    acc = jnp.dot(_im2col(_pad_w1(h), TH, W), w2_ref[...],
                  preferred_element_type=jnp.float32) + b2_ref[...]
    out = x.astype(jnp.float32).reshape(TH * W, C) + res_scale * acc
    o_ref[...] = out.reshape(1, TH, W, C).astype(o_ref.dtype)


# --------------------------------------------------------------------------- #
# pallas_call wrappers
# --------------------------------------------------------------------------- #
def _common_specs(TH, W, Cin, Cout, P, KKC):
    x_spec = pl.BlockSpec((1, TH, W, Cin), lambda n, i: (n, i, 0, 0))
    h_spec = pl.BlockSpec((1, 1, 2 * P, W, Cin), lambda n, i: (n, i, 0, 0, 0))
    w_spec = pl.BlockSpec((KKC, Cout), lambda n, i: (0, 0))
    b_spec = pl.BlockSpec((1, Cout), lambda n, i: (0, 0))
    o_spec = pl.BlockSpec((1, TH, W, Cout), lambda n, i: (n, i, 0, 0))
    return x_spec, h_spec, w_spec, b_spec, o_spec


def pallas_conv(x, halo, w_mat, b_row, *, strip_rows, compiler_params,
                relu=False, residual=None, res_scale=1.0, out_dtype=jnp.bfloat16):
    """Same-padded 3x3 conv over H-strips; x: (N,H,W,Cin) bf16, w_mat: (9*Cin,Cout) bf16."""
    N, H, W, Cin = x.shape
    KKC, Cout = w_mat.shape
    assert KKC == 9 * Cin and H % strip_rows == 0
    TH = strip_rows
    S = H // TH
    x_spec, h_spec, w_spec, b_spec, o_spec = _common_specs(TH, W, Cin, Cout, 1, KKC)
    out_shape = jax.ShapeDtypeStruct((N, H, W, Cout), out_dtype)

    if residual is None:
        kern = functools.partial(_conv_kernel, TH=TH, W=W, relu=relu)
        return pl.pallas_call(
            kern, out_shape=out_shape, grid=(N, S),
            in_specs=[x_spec, h_spec, w_spec, b_spec], out_specs=o_spec,
            compiler_params=compiler_params,
        )(x, halo, w_mat, b_row)

    kern = functools.partial(_conv_residual_kernel, TH=TH, W=W, res_scale=float(res_scale))
    r_spec = pl.BlockSpec((1, TH, W, Cout), lambda n, i: (n, i, 0, 0))
    return pl.pallas_call(
        kern, out_shape=out_shape, grid=(N, S),
        in_specs=[x_spec, h_spec, w_spec, b_spec, r_spec], out_specs=o_spec,
        compiler_params=compiler_params,
    )(x, halo, w_mat, b_row, residual)


def pallas_resblock(x, halo, w1_mat, b1_row, w2_mat, b2_row, *, strip_rows,
                    compiler_params, res_scale=1.0):
    """Fused EDSR residual block over H-strips; x: (N,H,W,C) bf16, halo: (N,S,4,W,C) bf16."""
    N, H, W, C = x.shape
    KKC, Cout = w1_mat.shape
    assert Cout == C and KKC == 9 * C and H % strip_rows == 0
    TH = strip_rows
    S = H // TH
    x_spec, h_spec, w_spec, b_spec, o_spec = _common_specs(TH, W, C, C, 2, KKC)
    kern = functools.partial(_resblock_kernel, TH=TH, W=W, res_scale=float(res_scale))
    return pl.pallas_call(
        kern, out_shape=jax.ShapeDtypeStruct((N, H, W, C), jnp.bfloat16),
        grid=(N, S),
        in_specs=[x_spec, h_spec, w_spec, b_spec, w_spec, b_spec], out_specs=o_spec,
        compiler_params=compiler_params,
    )(x, halo, w1_mat, b1_row, w2_mat, b2_row)


# --------------------------------------------------------------------------- #
# IGConv hypernetwork (weight generation; plain JAX, runs once per scale)
# --------------------------------------------------------------------------- #
def igconv_make_weights(p, scale, num_feat, sk):
    """Generate the scale-conditioned upsampling conv weight (3*s*s, C, k, k) and bias (3*s*s,)."""
    s = scale
    idx = (jnp.arange(s, dtype=jnp.float32) + 0.5) / s
    rel = 2.0 * idx - 1.0
    gy, gx = jnp.meshgrid(rel, rel, indexing="ij")
    coords = jnp.stack([gy.ravel(), gx.ravel()], axis=-1)            # (s*s, 2)
    cell = jnp.full((s * s, 2), 2.0 / s, jnp.float32)
    h = jnp.concatenate([coords, cell], axis=-1)                     # (s*s, 4)
    h = jax.nn.relu(h @ p["w_in"] + p["b_in"])
    for wl, bl in zip(p["w_hidden"], p["b_hidden"]):
        h = jax.nn.relu(h @ wl + bl)
    out = h @ p["w_out"] + p["b_out"]                                # (s*s, C*k*k*3 + 3)
    ksz = num_feat * sk * sk * 3
    kpart = out[:, :ksz].reshape(s * s, sk, sk, num_feat, 3)
    bpart = out[:, ksz:]                                             # (s*s, 3)
    # channel ordering c*s*s + (iy*s + ix)  -> matches F.pixel_shuffle
    w = jnp.transpose(kpart, (4, 0, 3, 1, 2)).reshape(3 * s * s, num_feat, sk, sk)
    b = jnp.transpose(bpart, (1, 0)).reshape(3 * s * s)
    return w, b


# --------------------------------------------------------------------------- #
# One-time weight preprocessing
# --------------------------------------------------------------------------- #
def _prep_conv(w_oikk, b):
    """(Cout,Cin,K,K) PyTorch conv weight -> (K*K*Cin, Cout) bf16 im2col matrix + (1,Cout) f32 bias."""
    Cout, Cin, K, _ = w_oikk.shape
    w_mat = jnp.transpose(w_oikk, (2, 3, 1, 0)).reshape(K * K * Cin, Cout)
    return w_mat.astype(jnp.bfloat16), b.reshape(1, Cout).astype(jnp.float32)


def prepare_weights(params, scale):
    img_range = CFG["img_range"]
    mean = jnp.asarray(CFG["rgb_mean"], jnp.float32)

    # conv_first: zero-pad Cin 3 -> _CIN_PAD
    w_first = jnp.pad(params["conv_first_w"],
                      ((0, 0), (0, _CIN_PAD - CFG["num_in_ch"]), (0, 0), (0, 0)))
    first = _prep_conv(w_first, params["conv_first_b"])

    body = [(*_prep_conv(blk["w1"], blk["b1"]), *_prep_conv(blk["w2"], blk["b2"]))
            for blk in params["body"]]

    after = _prep_conv(params["conv_after_body_w"], params["conv_after_body_b"])

    s = scale
    w_up, b_up = igconv_make_weights(params["igconv"], s, CFG["num_feat"],
                                     CFG["sk_kernel_size"])
    # Fold the final `y / img_range + mean` de-normalization into the generated conv.
    w_up = w_up / img_range
    b_up = b_up / img_range + jnp.repeat(mean, s * s)
    up = _prep_conv(w_up, b_up)

    return dict(first=first, body=body, after=after, up=up)


def _normalize_input(x_nchw):
    mean = jnp.asarray(CFG["rgb_mean"], jnp.float32).reshape(1, 1, 1, 3)
    x = jnp.transpose(x_nchw, (0, 2, 3, 1))                  # NCHW -> NHWC
    x = (x - mean) * CFG["img_range"]
    x = jnp.pad(x, ((0, 0), (0, 0), (0, 0), (0, _CIN_PAD - CFG["num_in_ch"])))
    return x.astype(jnp.bfloat16)


# --------------------------------------------------------------------------- #
# EDSRIG forward (Pallas)
# --------------------------------------------------------------------------- #
def edsr_ig_forward(prepped, x_nchw, scale, strip_rows=None):
    x = _normalize_input(x_nchw)                             # (N, H, W, 8) bf16
    N, H, W, _ = x.shape
    nf = CFG["num_feat"]

    budget = _vmem_budget_bytes()
    TH = strip_rows if strip_rows is not None else _pick_strip_rows(H, W, nf, budget)
    assert H % TH == 0 and (TH % 8 == 0 or TH == H), (H, TH)
    cp = pltpu.CompilerParams(
        dimension_semantics=("parallel", "parallel"),        # batch x H-strip (megacore on v7x)
        vmem_limit_bytes=int(budget),
    )

    x = pallas_conv(x, _build_halo(x, TH, 1), *prepped["first"],
                    strip_rows=TH, compiler_params=cp)       # conv_first -> (N,H,W,nf) bf16

    feat = x
    for (w1, b1, w2, b2) in prepped["body"]:                 # fused residual blocks
        feat = pallas_resblock(feat, _build_halo(feat, TH, 2), w1, b1, w2, b2,
                               strip_rows=TH, compiler_params=cp,
                               res_scale=CFG["res_scale"])

    # conv_after_body fused with the global skip connection
    res = pallas_conv(feat, _build_halo(feat, TH, 1), *prepped["after"],
                      residual=x, strip_rows=TH, compiler_params=cp)

    # IGConv dynamic upsampling conv (de-normalization folded into its weights)
    y = pallas_conv(res, _build_halo(res, TH, 1), *prepped["up"],
                    strip_rows=TH, compiler_params=cp, out_dtype=jnp.float32)

    # pixel shuffle + NHWC->NCHW as ONE composed transpose pass over the hi-res output
    s = scale
    y = y.reshape(N, H, W, 3, s, s)
    return jnp.transpose(y, (0, 3, 1, 4, 2, 5)).reshape(N, 3, H * s, W * s)


# --------------------------------------------------------------------------- #
# Pure-JAX reference (same numerics, no tiling) for correctness checking
# --------------------------------------------------------------------------- #
def _ref_conv(x, w_mat, b_row, relu=False):
    N, H, W, Cin = x.shape
    xp = jnp.pad(x, ((0, 0), (1, 1), (1, 1), (0, 0)))
    taps = [xp[:, dy:dy + H, dx:dx + W, :] for dy in range(3) for dx in range(3)]
    p = jnp.concatenate(taps, axis=-1).astype(jnp.bfloat16).reshape(N * H * W, 9 * Cin)
    acc = jnp.dot(p, w_mat, preferred_element_type=jnp.float32) + b_row
    if relu:
        acc = jnp.maximum(acc, 0.0)
    return acc.reshape(N, H, W, w_mat.shape[1])


def reference_forward(prepped, x_nchw, scale):
    x = _normalize_input(x_nchw)
    x = _ref_conv(x, *prepped["first"]).astype(jnp.bfloat16)
    feat = x
    for (w1, b1, w2, b2) in prepped["body"]:
        h = _ref_conv(feat, w1, b1, relu=True).astype(jnp.bfloat16)
        acc = _ref_conv(h, w2, b2)
        feat = (feat.astype(jnp.float32) + CFG["res_scale"] * acc).astype(jnp.bfloat16)
    res = (_ref_conv(feat, *prepped["after"]) + x.astype(jnp.float32)).astype(jnp.bfloat16)
    y = _ref_conv(res, *prepped["up"])
    N, H, W, _ = y.shape
    s = scale
    y = y.reshape(N, H, W, 3, s, s)
    y = jnp.transpose(y, (0, 1, 4, 2, 5, 3)).reshape(N, H * s, W * s, 3)
    return jnp.transpose(y, (0, 3, 1, 2))


# --------------------------------------------------------------------------- #
# Deterministic parameter init (synthetic; shapes follow the module's __init__)
# --------------------------------------------------------------------------- #
def init_params(key):
    c_in = CFG["num_in_ch"]
    nf = CFG["num_feat"]
    nb = CFG["num_block"]
    sk = CFG["sk_kernel_size"]
    idim = CFG["implicit_dim"]
    nlat = CFG["latent_layers"]

    keys = iter(jax.random.split(key, 8 + 4 * nb + 2 * (nlat + 2)))

    def conv_init(cout, cin, ksz):
        kw, kb = next(keys), next(keys)
        fan_in = cin * ksz * ksz
        w = jax.random.normal(kw, (cout, cin, ksz, ksz), jnp.float32) / jnp.sqrt(fan_in)
        b = jax.random.normal(kb, (cout,), jnp.float32) * 0.01
        return w, b

    def lin_init(din, dout, scale=1.0):
        kw, kb = next(keys), next(keys)
        w = jax.random.normal(kw, (din, dout), jnp.float32) * (scale / jnp.sqrt(din))
        b = jax.random.normal(kb, (dout,), jnp.float32) * 0.01
        return w, b

    params = {}
    params["conv_first_w"], params["conv_first_b"] = conv_init(nf, c_in, 3)

    body = []
    for _ in range(nb):
        w1, b1 = conv_init(nf, nf, 3)
        w2, b2 = conv_init(nf, nf, 3)
        body.append(dict(w1=w1, b1=b1, w2=w2, b2=b2))
    params["body"] = body

    params["conv_after_body_w"], params["conv_after_body_b"] = conv_init(nf, nf, 3)

    ig = {}
    ig["w_in"], ig["b_in"] = lin_init(4, idim)
    ig["w_hidden"], ig["b_hidden"] = [], []
    for _ in range(nlat):
        w, b = lin_init(idim, idim)
        ig["w_hidden"].append(w)
        ig["b_hidden"].append(b)
    ig["w_out"], ig["b_out"] = lin_init(idim, nf * sk * sk * 3 + 3, scale=0.1)
    params["igconv"] = ig
    return params


# --------------------------------------------------------------------------- #
if __name__ == "__main__":
    key = jax.random.PRNGKey(0)
    pkey, xkey = jax.random.split(key)
    params = init_params(pkey)

    # small input consistent with the module: N=2, C=3 (RGB), H=W=24, scale=2.
    # strip_rows=8 -> 3 H-strips per image, exercising the tiled / halo path.
    x = jax.random.uniform(xkey, (2, 3, 24, 24), jnp.float32)
    scale = 2

    prepped = prepare_weights(params, scale)     # one-time weight prep (outside the hot forward)
    fwd = jax.jit(functools.partial(edsr_ig_forward, scale=scale, strip_rows=8))
    y = fwd(prepped, x)
    jax.block_until_ready(y)

    assert y.shape == (2, 3, 24 * scale, 24 * scale), y.shape

    y_ref = jax.jit(functools.partial(reference_forward, scale=scale))(prepped, x)
    err = float(jnp.max(jnp.abs(y - y_ref)))
    assert bool(jnp.all(jnp.isfinite(y))) and err < 5e-2, err
    print("KERNEL_OK")
</pallas_src>

<mosaic_0001>
module attributes {stable_mosaic.version = 11 : i64} {
  func.func @_conv_kernel(%arg0: i32, %arg1: i32, %arg2: memref<1x8x24x32xbf16, #tpu.memory_space<vmem>>, %arg3: memref<1x1x2x24x32xbf16, #tpu.memory_space<vmem>>, %arg4: memref<288x12xbf16, #tpu.memory_space<vmem>>, %arg5: memref<1x12xf32, #tpu.memory_space<vmem>>, %arg6: memref<1x8x24x12xf32, #tpu.memory_space<vmem>>) attributes {dimension_semantics = [#tpu.dimension_semantics<parallel>, #tpu.dimension_semantics<parallel>], iteration_bounds = array<i64: 2, 3>, scalar_prefetch = 0 : i64, scratch_operands = 0 : i64, tpu.core_type = #tpu.core_type<tc>, window_params = [{transform_indices = @transform_0, window_bounds = array<i64: 1, 8, 24, 32>}, {transform_indices = @transform_1, window_bounds = array<i64: 1, 1, 2, 24, 32>}, {pipeline_mode = #tpu.pipeline_mode<synchronous>, transform_indices = @transform_2, window_bounds = array<i64: 288, 12>}, {pipeline_mode = #tpu.pipeline_mode<synchronous>, transform_indices = @transform_3, window_bounds = array<i64: 1, 12>}, {transform_indices = @transform_4, window_bounds = array<i64: 1, 8, 24, 12>}]} {
    %c0 = arith.constant 0 : index
    %c0_0 = arith.constant 0 : index
    %c0_1 = arith.constant 0 : index
    %c0_2 = arith.constant 0 : index
    %0 = vector.load %arg2[%c0, %c0_0, %c0_1, %c0_2] : memref<1x8x24x32xbf16, #tpu.memory_space<vmem>>, vector<1x8x24x32xbf16>
    %1 = vector.shape_cast %0 : vector<1x8x24x32xbf16> to vector<8x24x32xbf16>
    %c0_3 = arith.constant 0 : index
    %c0_4 = arith.constant 0 : index
    %c0_5 = arith.constant 0 : index
    %c0_6 = arith.constant 0 : index
    %c0_7 = arith.constant 0 : index
    %2 = vector.load %arg3[%c0_3, %c0_4, %c0_5, %c0_6, %c0_7] : memref<1x1x2x24x32xbf16, #tpu.memory_space<vmem>>, vector<1x1x2x24x32xbf16>
    %3 = vector.shape_cast %2 : vector<1x1x2x24x32xbf16> to vector<2x24x32xbf16>
    %4 = vector.extract_strided_slice %3 {offsets = [0, 0, 0], sizes = [1, 24, 32], strides = [1, 1, 1]} : vector<2x24x32xbf16> to vector<1x24x32xbf16>
    %5 = vector.extract_strided_slice %3 {offsets = [1, 0, 0], sizes = [1, 24, 32], strides = [1, 1, 1]} : vector<2x24x32xbf16> to vector<1x24x32xbf16>
    %6 = tpu.concatenate %4, %1, %5 in 0 : vector<1x24x32xbf16>, vector<8x24x32xbf16>, vector<1x24x32xbf16> -> vector<10x24x32xbf16>
    %cst = arith.constant 0.000000e+00 : bf16
    %7 = vector.broadcast %cst : bf16 to vector<10x1x32xbf16>
    %8 = tpu.concatenate %7, %6, %7 in 1 : vector<10x1x32xbf16>, vector<10x24x32xbf16>, vector<10x1x32xbf16> -> vector<10x26x32xbf16>
    %9 = vector.extract_strided_slice %8 {offsets = [0, 0, 0], sizes = [8, 24, 32], strides = [1, 1, 1]} : vector<10x26x32xbf16> to vector<8x24x32xbf16>
    %10 = vector.extract_strided_slice %8 {offsets = [0, 1, 0], sizes = [8, 24, 32], strides = [1, 1, 1]} : vector<10x26x32xbf16> to vector<8x24x32xbf16>
    %11 = vector.extract_strided_slice %8 {offsets = [0, 2, 0], sizes = [8, 24, 32], strides = [1, 1, 1]} : vector<10x26x32xbf16> to vector<8x24x32xbf16>
    %12 = vector.extract_strided_slice %8 {offsets = [1, 0, 0], sizes = [8, 24, 32], strides = [1, 1, 1]} : vector<10x26x32xbf16> to vector<8x24x32xbf16>
    %13 = vector.extract_strided_slice %8 {offsets = [1, 1, 0], sizes = [8, 24, 32], strides = [1, 1, 1]} : vector<10x26x32xbf16> to vector<8x24x32xbf16>
    %14 = vector.extract_strided_slice %8 {offsets = [1, 2, 0], sizes = [8, 24, 32], strides = [1, 1, 1]} : vector<10x26x32xbf16> to vector<8x24x32xbf16>
    %15 = vector.extract_strided_slice %8 {offsets = [2, 0, 0], sizes = [8, 24, 32], strides = [1, 1, 1]} : vector<10x26x32xbf16> to vector<8x24x32xbf16>
    %16 = vector.extract_strided_slice %8 {offsets = [2, 1, 0], sizes = [8, 24, 32], strides = [1, 1, 1]} : vector<10x26x32xbf16> to vector<8x24x32xbf16>
    %17 = vector.extract_strided_slice %8 {offsets = [2, 2, 0], sizes = [8, 24, 32], strides = [1, 1, 1]} : vector<10x26x32xbf16> to vector<8x24x32xbf16>
    %18 = tpu.concatenate %9, %10, %11, %12, %13, %14, %15, %16, %17 in 2 : vector<8x24x32xbf16>, vector<8x24x32xbf16>, vector<8x24x32xbf16>, vector<8x24x32xbf16>, vector<8x24x32xbf16>, vector<8x24x32xbf16>, vector<8x24x32xbf16>, vector<8x24x32xbf16>, vector<8x24x32xbf16> -> vector<8x24x288xbf16>
    %19 = vector.shape_cast %18 : vector<8x24x288xbf16> to vector<192x288xbf16>
    %c0_8 = arith.constant 0 : index
    %c0_9 = arith.constant 0 : index
    %20 = vector.load %arg4[%c0_8, %c0_9] : memref<288x12xbf16, #tpu.memory_space<vmem>>, vector<288x12xbf16>
    %cst_10 = arith.constant dense<0.000000e+00> : vector<192x12xf32>
    %21 = tpu.matmul %19, %20, %cst_10 {dimension_numbers = #tpu.dot_dimension_numbers<[1], [0], [0], [1], [0, 0, 1, 1], [], []>} : vector<192x288xbf16>, vector<288x12xbf16>, vector<192x12xf32> -> vector<192x12xf32>
    %c0_11 = arith.constant 0 : index
    %c0_12 = arith.constant 0 : index
    %22 = vector.load %arg5[%c0_11, %c0_12] : memref<1x12xf32, #tpu.memory_space<vmem>>, vector<1x12xf32>
    %23 = vector.broadcast %22 : vector<1x12xf32> to vector<192x12xf32>
    %24 = arith.addf %21, %23 : vector<192x12xf32>
    %25 = vector.shape_cast %24 : vector<192x12xf32> to vector<1x8x24x12xf32>
    %c0_13 = arith.constant 0 : index
    %c0_14 = arith.constant 0 : index
    %c0_15 = arith.constant 0 : index
    %c0_16 = arith.constant 0 : index
    %26 = vector.load %arg6[%c0_13, %c0_14, %c0_15, %c0_16] : memref<1x8x24x12xf32, #tpu.memory_space<vmem>>, vector<1x8x24x12xf32>
    tpu.vector_store %arg6[%c0_13, %c0_14, %c0_15, %c0_16], %25 {strides = array<i32>} : memref<1x8x24x12xf32, #tpu.memory_space<vmem>>, vector<1x8x24x12xf32>,
    return
  }
  func.func @transform_0(%arg0: i32, %arg1: i32) -> (i32, i32, i32, i32) {
    %c0_i32 = arith.constant 0 : i32
    %c0_i32_0 = arith.constant 0 : i32
    %c0_i32_1 = arith.constant 0 : i32
    return %arg0, %arg1, %c0_i32, %c0_i32_0 : i32, i32, i32, i32
  }
  func.func @transform_1(%arg0: i32, %arg1: i32) -> (i32, i32, i32, i32, i32) {
    %c0_i32 = arith.constant 0 : i32
    %c0_i32_0 = arith.constant 0 : i32
    %c0_i32_1 = arith.constant 0 : i32
    %c0_i32_2 = arith.constant 0 : i32
    return %arg0, %arg1, %c0_i32, %c0_i32_0, %c0_i32_1 : i32, i32, i32, i32, i32
  }
  func.func @transform_2(%arg0: i32, %arg1: i32) -> (i32, i32) {
    %c0_i32 = arith.constant 0 : i32
    %c0_i32_0 = arith.constant 0 : i32
    %c0_i32_1 = arith.constant 0 : i32
    return %c0_i32, %c0_i32_0 : i32, i32
  }
  func.func @transform_3(%arg0: i32, %arg1: i32) -> (i32, i32) {
    %c0_i32 = arith.constant 0 : i32
    %c0_i32_0 = arith.constant 0 : i32
    %c0_i32_1 = arith.constant 0 : i32
    return %c0_i32, %c0_i32_0 : i32, i32
  }
  func.func @transform_4(%arg0: i32, %arg1: i32) -> (i32, i32, i32, i32) {
    %c0_i32 = arith.constant 0 : i32
    %c0_i32_0 = arith.constant 0 : i32
    %c0_i32_1 = arith.constant 0 : i32
    return %arg0, %arg1, %c0_i32, %c0_i32_0 : i32, i32, i32, i32
  }
}

module attributes {stable_mosaic.version = 11 : i64} {
  func.func @_conv_kernel(%arg0: i32, %arg1: i32, %arg2: memref<1x8x24x8xbf16, #tpu.memory_space<vmem>>, %arg3: memref<1x1x2x24x8xbf16, #tpu.memory_space<vmem>>, %arg4: memref<72x32xbf16, #tpu.memory_space<vmem>>, %arg5: memref<1x32xf32, #tpu.memory_space<vmem>>, %arg6: memref<1x8x24x32xbf16, #tpu.memory_space<vmem>>) attributes {dimension_semantics = [#tpu.dimension_semantics<parallel>, #tpu.dimension_semantics<parallel>], iteration_bounds = array<i64: 2, 3>, scalar_prefetch = 0 : i64, scratch_operands = 0 : i64, tpu.core_type = #tpu.core_type<tc>, window_params = [{transform_indices = @transform_0, window_bounds = array<i64: 1, 8, 24, 8>}, {transform_indices = @transform_1, window_bounds = array<i64: 1, 1, 2, 24, 8>}, {pipeline_mode = #tpu.pipeline_mode<synchronous>, transform_indices = @transform_2, window_bounds = array<i64: 72, 32>}, {pipeline_mode = #tpu.pipeline_mode<synchronous>, transform_indices = @transform_3, window_bounds = array<i64: 1, 32>}, {transform_indices = @transform_4, window_bounds = array<i64: 1, 8, 24, 32>}]} {
    %c0 = arith.constant 0 : index
    %c0_0 = arith.constant 0 : index
    %c0_1 = arith.constant 0 : index
    %c0_2 = arith.constant 0 : index
    %0 = vector.load %arg2[%c0, %c0_0, %c0_1, %c0_2] : memref<1x8x24x8xbf16, #tpu.memory_space<vmem>>, vector<1x8x24x8xbf16>
    %1 = vector.shape_cast %0 : vector<1x8x24x8xbf16> to vector<8x24x8xbf16>
    %c0_3 = arith.constant 0 : index
    %c0_4 = arith.constant 0 : index
    %c0_5 = arith.constant 0 : index
    %c0_6 = arith.constant 0 : index
    %c0_7 = arith.constant 0 : index
    %2 = vector.load %arg3[%c0_3, %c0_4, %c0_5, %c0_6, %c0_7] : memref<1x1x2x24x8xbf16, #tpu.memory_space<vmem>>, vector<1x1x2x24x8xbf16>
    %3 = vector.shape_cast %2 : vector<1x1x2x24x8xbf16> to vector<2x24x8xbf16>
    %4 = vector.extract_strided_slice %3 {offsets = [0, 0, 0], sizes = [1, 24, 8], strides = [1, 1, 1]} : vector<2x24x8xbf16> to vector<1x24x8xbf16>
    %5 = vector.extract_strided_slice %3 {offsets = [1, 0, 0], sizes = [1, 24, 8], strides = [1, 1, 1]} : vector<2x24x8xbf16> to vector<1x24x8xbf16>
    %6 = tpu.concatenate %4, %1, %5 in 0 : vector<1x24x8xbf16>, vector<8x24x8xbf16>, vector<1x24x8xbf16> -> vector<10x24x8xbf16>
    %cst = arith.constant 0.000000e+00 : bf16
    %7 = vector.broadcast %cst : bf16 to vector<10x1x8xbf16>
    %8 = tpu.concatenate %7, %6, %7 in 1 : vector<10x1x8xbf16>, vector<10x24x8xbf16>, vector<10x1x8xbf16> -> vector<10x26x8xbf16>
    %9 = vector.extract_strided_slice %8 {offsets = [0, 0, 0], sizes = [8, 24, 8], strides = [1, 1, 1]} : vector<10x26x8xbf16> to vector<8x24x8xbf16>
    %10 = vector.extract_strided_slice %8 {offsets = [0, 1, 0], sizes = [8, 24, 8], strides = [1, 1, 1]} : vector<10x26x8xbf16> to vector<8x24x8xbf16>
    %11 = vector.extract_strided_slice %8 {offsets = [0, 2, 0], sizes = [8, 24, 8], strides = [1, 1, 1]} : vector<10x26x8xbf16> to vector<8x24x8xbf16>
    %12 = vector.extract_strided_slice %8 {offsets = [1, 0, 0], sizes = [8, 24, 8], strides = [1, 1, 1]} : vector<10x26x8xbf16> to vector<8x24x8xbf16>
    %13 = vector.extract_strided_slice %8 {offsets = [1, 1, 0], sizes = [8, 24, 8], strides = [1, 1, 1]} : vector<10x26x8xbf16> to vector<8x24x8xbf16>
    %14 = vector.extract_strided_slice %8 {offsets = [1, 2, 0], sizes = [8, 24, 8], strides = [1, 1, 1]} : vector<10x26x8xbf16> to vector<8x24x8xbf16>
    %15 = vector.extract_strided_slice %8 {offsets = [2, 0, 0], sizes = [8, 24, 8], strides = [1, 1, 1]} : vector<10x26x8xbf16> to vector<8x24x8xbf16>
    %16 = vector.extract_strided_slice %8 {offsets = [2, 1, 0], sizes = [8, 24, 8], strides = [1, 1, 1]} : vector<10x26x8xbf16> to vector<8x24x8xbf16>
    %17 = vector.extract_strided_slice %8 {offsets = [2, 2, 0], sizes = [8, 24, 8], strides = [1, 1, 1]} : vector<10x26x8xbf16> to vector<8x24x8xbf16>
    %18 = tpu.concatenate %9, %10, %11, %12, %13, %14, %15, %16, %17 in 2 : vector<8x24x8xbf16>, vector<8x24x8xbf16>, vector<8x24x8xbf16>, vector<8x24x8xbf16>, vector<8x24x8xbf16>, vector<8x24x8xbf16>, vector<8x24x8xbf16>, vector<8x24x8xbf16>, vector<8x24x8xbf16> -> vector<8x24x72xbf16>
    %19 = vector.shape_cast %18 : vector<8x24x72xbf16> to vector<192x72xbf16>
    %c0_8 = arith.constant 0 : index
    %c0_9 = arith.constant 0 : index
    %20 = vector.load %arg4[%c0_8, %c0_9] : memref<72x32xbf16, #tpu.memory_space<vmem>>, vector<72x32xbf16>
    %cst_10 = arith.constant dense<0.000000e+00> : vector<192x32xf32>
    %21 = tpu.matmul %19, %20, %cst_10 {dimension_numbers = #tpu.dot_dimension_numbers<[1], [0], [0], [1], [0, 0, 1, 1], [], []>} : vector<192x72xbf16>, vector<72x32xbf16>, vector<192x32xf32> -> vector<192x32xf32>
    %c0_11 = arith.constant 0 : index
    %c0_12 = arith.constant 0 : index
    %22 = vector.load %arg5[%c0_11, %c0_12] : memref<1x32xf32, #tpu.memory_space<vmem>>, vector<1x32xf32>
    %23 = vector.broadcast %22 : vector<1x32xf32> to vector<192x32xf32>
    %24 = arith.addf %21, %23 : vector<192x32xf32>
    %25 = vector.shape_cast %24 : vector<192x32xf32> to vector<1x8x24x32xf32>
    %26 = arith.truncf %25 : vector<1x8x24x32xf32> to vector<1x8x24x32xbf16>
    %c0_13 = arith.constant 0 : index
    %c0_14 = arith.constant 0 : index
    %c0_15 = arith.constant 0 : index
    %c0_16 = arith.constant 0 : index
    %27 = vector.load %arg6[%c0_13, %c0_14, %c0_15, %c0_16] : memref<1x8x24x32xbf16, #tpu.memory_space<vmem>>, vector<1x8x24x32xbf16>
    tpu.vector_store %arg6[%c0_13, %c0_14, %c0_15, %c0_16], %26 {strides = array<i32>} : memref<1x8x24x32xbf16, #tpu.memory_space<vmem>>, vector<1x8x24x32xbf16>,
    return
  }
  func.func @transform_0(%arg0: i32, %arg1: i32) -> (i32, i32, i32, i32) {
    %c0_i32 = arith.constant 0 : i32
    %c0_i32_0 = arith.constant 0 : i32
    %c0_i32_1 = arith.constant 0 : i32
    return %arg0, %arg1, %c0_i32, %c0_i32_0 : i32, i32, i32, i32
  }
  func.func @transform_1(%arg0: i32, %arg1: i32) -> (i32, i32, i32, i32, i32) {
    %c0_i32 = arith.constant 0 : i32
    %c0_i32_0 = arith.constant 0 : i32
    %c0_i32_1 = arith.constant 0 : i32
    %c0_i32_2 = arith.constant 0 : i32
    return %arg0, %arg1, %c0_i32, %c0_i32_0, %c0_i32_1 : i32, i32, i32, i32, i32
  }
  func.func @transform_2(%arg0: i32, %arg1: i32) -> (i32, i32) {
    %c0_i32 = arith.constant 0 : i32
    %c0_i32_0 = arith.constant 0 : i32
    %c0_i32_1 = arith.constant 0 : i32
    return %c0_i32, %c0_i32_0 : i32, i32
  }
  func.func @transform_3(%arg0: i32, %arg1: i32) -> (i32, i32) {
    %c0_i32 = arith.constant 0 : i32
    %c0_i32_0 = arith.constant 0 : i32
    %c0_i32_1 = arith.constant 0 : i32
    return %c0_i32, %c0_i32_0 : i32, i32
  }
  func.func @transform_4(%arg0: i32, %arg1: i32) -> (i32, i32, i32, i32) {
    %c0_i32 = arith.constant 0 : i32
    %c0_i32_0 = arith.constant 0 : i32
    %c0_i32_1 = arith.constant 0 : i32
    return %arg0, %arg1, %c0_i32, %c0_i32_0 : i32, i32, i32, i32
  }
}

module attributes {stable_mosaic.version = 11 : i64} {
  func.func @_resblock_kernel(%arg0: i32, %arg1: i32, %arg2: memref<1x8x24x32xbf16, #tpu.memory_space<vmem>>, %arg3: memref<1x1x4x24x32xbf16, #tpu.memory_space<vmem>>, %arg4: memref<288x32xbf16, #tpu.memory_space<vmem>>, %arg5: memref<1x32xf32, #tpu.memory_space<vmem>>, %arg6: memref<288x32xbf16, #tpu.memory_space<vmem>>, %arg7: memref<1x32xf32, #tpu.memory_space<vmem>>, %arg8: memref<1x8x24x32xbf16, #tpu.memory_space<vmem>>) attributes {dimension_semantics = [#tpu.dimension_semantics<parallel>, #tpu.dimension_semantics<parallel>], iteration_bounds = array<i64: 2, 3>, scalar_prefetch = 0 : i64, scratch_operands = 0 : i64, tpu.core_type = #tpu.core_type<tc>, window_params = [{transform_indices = @transform_0, window_bounds = array<i64: 1, 8, 24, 32>}, {transform_indices = @transform_1, window_bounds = array<i64: 1, 1, 4, 24, 32>}, {pipeline_mode = #tpu.pipeline_mode<synchronous>, transform_indices = @transform_2, window_bounds = array<i64: 288, 32>}, {pipeline_mode = #tpu.pipeline_mode<synchronous>, transform_indices = @transform_3, window_bounds = array<i64: 1, 32>}, {pipeline_mode = #tpu.pipeline_mode<synchronous>, transform_indices = @transform_4, window_bounds = array<i64: 288, 32>}, {pipeline_mode = #tpu.pipeline_mode<synchronous>, transform_indices = @transform_5, window_bounds = array<i64: 1, 32>}, {transform_indices = @transform_6, window_bounds = array<i64: 1, 8, 24, 32>}]} {
    %c0 = arith.constant 0 : index
    %c0_0 = arith.constant 0 : index
    %c0_1 = arith.constant 0 : index
    %c0_2 = arith.constant 0 : index
    %0 = vector.load %arg2[%c0, %c0_0, %c0_1, %c0_2] : memref<1x8x24x32xbf16, #tpu.memory_space<vmem>>, vector<1x8x24x32xbf16>
    %1 = vector.shape_cast %0 : vector<1x8x24x32xbf16> to vector<8x24x32xbf16>
    %c0_3 = arith.constant 0 : index
    %c0_4 = arith.constant 0 : index
    %c0_5 = arith.constant 0 : index
    %c0_6 = arith.constant 0 : index
    %c0_7 = arith.constant 0 : index
    %2 = vector.load %arg3[%c0_3, %c0_4, %c0_5, %c0_6, %c0_7] : memref<1x1x4x24x32xbf16, #tpu.memory_space<vmem>>, vector<1x1x4x24x32xbf16>
    %3 = vector.shape_cast %2 : vector<1x1x4x24x32xbf16> to vector<4x24x32xbf16>
    %4 = vector.extract_strided_slice %3 {offsets = [0, 0, 0], sizes = [2, 24, 32], strides = [1, 1, 1]} : vector<4x24x32xbf16> to vector<2x24x32xbf16>
    %5 = vector.extract_strided_slice %3 {offsets = [2, 0, 0], sizes = [2, 24, 32], strides = [1, 1, 1]} : vector<4x24x32xbf16> to vector<2x24x32xbf16>
    %6 = tpu.concatenate %4, %1, %5 in 0 : vector<2x24x32xbf16>, vector<8x24x32xbf16>, vector<2x24x32xbf16> -> vector<12x24x32xbf16>
    %cst = arith.constant 0.000000e+00 : bf16
    %7 = vector.broadcast %cst : bf16 to vector<12x1x32xbf16>
    %8 = tpu.concatenate %7, %6, %7 in 1 : vector<12x1x32xbf16>, vector<12x24x32xbf16>, vector<12x1x32xbf16> -> vector<12x26x32xbf16>
    %9 = vector.extract_strided_slice %8 {offsets = [0, 0, 0], sizes = [10, 24, 32], strides = [1, 1, 1]} : vector<12x26x32xbf16> to vector<10x24x32xbf16>
    %10 = vector.extract_strided_slice %8 {offsets = [0, 1, 0], sizes = [10, 24, 32], strides = [1, 1, 1]} : vector<12x26x32xbf16> to vector<10x24x32xbf16>
    %11 = vector.extract_strided_slice %8 {offsets = [0, 2, 0], sizes = [10, 24, 32], strides = [1, 1, 1]} : vector<12x26x32xbf16> to vector<10x24x32xbf16>
    %12 = vector.extract_strided_slice %8 {offsets = [1, 0, 0], sizes = [10, 24, 32], strides = [1, 1, 1]} : vector<12x26x32xbf16> to vector<10x24x32xbf16>
    %13 = vector.extract_strided_slice %8 {offsets = [1, 1, 0], sizes = [10, 24, 32], strides = [1, 1, 1]} : vector<12x26x32xbf16> to vector<10x24x32xbf16>
    %14 = vector.extract_strided_slice %8 {offsets = [1, 2, 0], sizes = [10, 24, 32], strides = [1, 1, 1]} : vector<12x26x32xbf16> to vector<10x24x32xbf16>
    %15 = vector.extract_strided_slice %8 {offsets = [2, 0, 0], sizes = [10, 24, 32], strides = [1, 1, 1]} : vector<12x26x32xbf16> to vector<10x24x32xbf16>
    %16 = vector.extract_strided_slice %8 {offsets = [2, 1, 0], sizes = [10, 24, 32], strides = [1, 1, 1]} : vector<12x26x32xbf16> to vector<10x24x32xbf16>
    %17 = vector.extract_strided_slice %8 {offsets = [2, 2, 0], sizes = [10, 24, 32], strides = [1, 1, 1]} : vector<12x26x32xbf16> to vector<10x24x32xbf16>
    %18 = tpu.concatenate %9, %10, %11, %12, %13, %14, %15, %16, %17 in 2 : vector<10x24x32xbf16>, vector<10x24x32xbf16>, vector<10x24x32xbf16>, vector<10x24x32xbf16>, vector<10x24x32xbf16>, vector<10x24x32xbf16>, vector<10x24x32xbf16>, vector<10x24x32xbf16>, vector<10x24x32xbf16> -> vector<10x24x288xbf16>
    %19 = vector.shape_cast %18 : vector<10x24x288xbf16> to vector<240x288xbf16>
    %c0_8 = arith.constant 0 : index
    %c0_9 = arith.constant 0 : index
    %20 = vector.load %arg4[%c0_8, %c0_9] : memref<288x32xbf16, #tpu.memory_space<vmem>>, vector<288x32xbf16>
    %cst_10 = arith.constant dense<0.000000e+00> : vector<240x32xf32>
    %21 = tpu.matmul %19, %20, %cst_10 {dimension_numbers = #tpu.dot_dimension_numbers<[1], [0], [0], [1], [0, 0, 1, 1], [], []>} : vector<240x288xbf16>, vector<288x32xbf16>, vector<240x32xf32> -> vector<240x32xf32>
    %c0_11 = arith.constant 0 : index
    %c0_12 = arith.constant 0 : index
    %22 = vector.load %arg5[%c0_11, %c0_12] : memref<1x32xf32, #tpu.memory_space<vmem>>, vector<1x32xf32>
    %23 = vector.broadcast %22 : vector<1x32xf32> to vector<240x32xf32>
    %24 = arith.addf %21, %23 : vector<240x32xf32>
    %cst_13 = arith.constant 0.000000e+00 : f32
    %25 = vector.broadcast %cst_13 : f32 to vector<240x32xf32>
    %26 = arith.maximumf %24, %25 : vector<240x32xf32>
    %27 = vector.shape_cast %26 : vector<240x32xf32> to vector<10x24x32xf32>
    %28 = tpu.iota {dimensions = array<i32: 0>} : vector<10x1x1xi32>
    %c0_i32 = arith.constant 0 : i32
    %29 = arith.cmpi sgt, %arg1, %c0_i32 : i32
    %c0_i32_14 = arith.constant 0 : i32
    %30 = vector.broadcast %c0_i32_14 : i32 to vector<10x1x1xi32>
    %31 = arith.cmpi sgt, %28, %30 : vector<10x1x1xi32>
    %32 = vector.broadcast %29 : i1 to vector<10x1x1xi1>
    %33 = arith.ori %32, %31 : vector<10x1x1xi1>
    %c2_i32 = arith.constant 2 : i32
    %34 = arith.cmpi slt, %arg1, %c2_i32 : i32
    %c9_i32 = arith.constant 9 : i32
    %35 = vector.broadcast %c9_i32 : i32 to vector<10x1x1xi32>
    %36 = arith.cmpi slt, %28, %35 : vector<10x1x1xi32>
    %37 = vector.broadcast %34 : i1 to vector<10x1x1xi1>
    %38 = arith.ori %37, %36 : vector<10x1x1xi1>
    %39 = arith.andi %33, %38 : vector<10x1x1xi1>
    %cst_15 = arith.constant 0.000000e+00 : f32
    %40 = vector.shape_cast %39 : vector<10x1x1xi1> to vector<10x1x1xi1>
    %41 = vector.broadcast %40 : vector<10x1x1xi1> to vector<10x24x32xi1>
    %42 = vector.broadcast %cst_15 : f32 to vector<10x24x32xf32>
    %43 = arith.select %41, %27, %42 : vector<10x24x32xi1>, vector<10x24x32xf32>
    %44 = arith.truncf %43 : vector<10x24x32xf32> to vector<10x24x32xbf16>
    %cst_16 = arith.constant 0.000000e+00 : bf16
    %45 = vector.broadcast %cst_16 : bf16 to vector<10x1x32xbf16>
    %46 = tpu.concatenate %45, %44, %45 in 1 : vector<10x1x32xbf16>, vector<10x24x32xbf16>, vector<10x1x32xbf16> -> vector<10x26x32xbf16>
    %47 = vector.extract_strided_slice %46 {offsets = [0, 0, 0], sizes = [8, 24, 32], strides = [1, 1, 1]} : vector<10x26x32xbf16> to vector<8x24x32xbf16>
    %48 = vector.extract_strided_slice %46 {offsets = [0, 1, 0], sizes = [8, 24, 32], strides = [1, 1, 1]} : vector<10x26x32xbf16> to vector<8x24x32xbf16>
    %49 = vector.extract_strided_slice %46 {offsets = [0, 2, 0], sizes = [8, 24, 32], strides = [1, 1, 1]} : vector<10x26x32xbf16> to vector<8x24x32xbf16>
    %50 = vector.extract_strided_slice %46 {offsets = [1, 0, 0], sizes = [8, 24, 32], strides = [1, 1, 1]} : vector<10x26x32xbf16> to vector<8x24x32xbf16>
    %51 = vector.extract_strided_slice %46 {offsets = [1, 1, 0], sizes = [8, 24, 32], strides = [1, 1, 1]} : vector<10x26x32xbf16> to vector<8x24x32xbf16>
    %52 = vector.extract_strided_slice %46 {offsets = [1, 2, 0], sizes = [8, 24, 32], strides = [1, 1, 1]} : vector<10x26x32xbf16> to vector<8x24x32xbf16>
    %53 = vector.extract_strided_slice %46 {offsets = [2, 0, 0], sizes = [8, 24, 32], strides = [1, 1, 1]} : vector<10x26x32xbf16> to vector<8x24x32xbf16>
    %54 = vector.extract_strided_slice %46 {offsets = [2, 1, 0], sizes = [8, 24, 32], strides = [1, 1, 1]} : vector<10x26x32xbf16> to vector<8x24x32xbf16>
    %55 = vector.extract_strided_slice %46 {offsets = [2, 2, 0], sizes = [8, 24, 32], strides = [1, 1, 1]} : vector<10x26x32xbf16> to vector<8x24x32xbf16>
    %56 = tpu.concatenate %47, %48, %49, %50, %51, %52, %53, %54, %55 in 2 : vector<8x24x32xbf16>, vector<8x24x32xbf16>, vector<8x24x32xbf16>, vector<8x24x32xbf16>, vector<8x24x32xbf16>, vector<8x24x32xbf16>, vector<8x24x32xbf16>, vector<8x24x32xbf16>, vector<8x24x32xbf16> -> vector<8x24x288xbf16>
    %57 = vector.shape_cast %56 : vector<8x24x288xbf16> to vector<192x288xbf16>
    %c0_17 = arith.constant 0 : index
    %c0_18 = arith.constant 0 : index
    %58 = vector.load %arg6[%c0_17, %c0_18] : memref<288x32xbf16, #tpu.memory_space<vmem>>, vector<288x32xbf16>
    %cst_19 = arith.constant dense<0.000000e+00> : vector<192x32xf32>
    %59 = tpu.matmul %57, %58, %cst_19 {dimension_numbers = #tpu.dot_dimension_numbers<[1], [0], [0], [1], [0, 0, 1, 1], [], []>} : vector<192x288xbf16>, vector<288x32xbf16>, vector<192x32xf32> -> vector<192x32xf32>
    %c0_20 = arith.constant 0 : index
    %c0_21 = arith.constant 0 : index
    %60 = vector.load %arg7[%c0_20, %c0_21] : memref<1x32xf32, #tpu.memory_space<vmem>>, vector<1x32xf32>
    %61 = vector.broadcast %60 : vector<1x32xf32> to vector<192x32xf32>
    %62 = arith.addf %59, %61 : vector<192x32xf32>
    %63 = arith.extf %1 : vector<8x24x32xbf16> to vector<8x24x32xf32>
    %64 = vector.shape_cast %63 : vector<8x24x32xf32> to vector<192x32xf32>
    %cst_22 = arith.constant 1.000000e+00 : f32
    %65 = vector.broadcast %cst_22 : f32 to vector<192x32xf32>
    %66 = arith.mulf %65, %62 : vector<192x32xf32>
    %67 = arith.addf %64, %66 : vector<192x32xf32>
    %68 = vector.shape_cast %67 : vector<192x32xf32> to vector<1x8x24x32xf32>
    %69 = arith.truncf %68 : vector<1x8x24x32xf32> to vector<1x8x24x32xbf16>
    %c0_23 = arith.constant 0 : index
    %c0_24 = arith.constant 0 : index
    %c0_25 = arith.constant 0 : index
    %c0_26 = arith.constant 0 : index
    %70 = vector.load %arg8[%c0_23, %c0_24, %c0_25, %c0_26] : memref<1x8x24x32xbf16, #tpu.memory_space<vmem>>, vector<1x8x24x32xbf16>
    tpu.vector_store %arg8[%c0_23, %c0_24, %c0_25, %c0_26], %69 {strides = array<i32>} : memref<1x8x24x32xbf16, #tpu.memory_space<vmem>>, vector<1x8x24x32xbf16>,
    return
  }
  func.func @transform_0(%arg0: i32, %arg1: i32) -> (i32, i32, i32, i32) {
    %c0_i32 = arith.constant 0 : i32
    %c0_i32_0 = arith.constant 0 : i32
    %c0_i32_1 = arith.constant 0 : i32
    return %arg0, %arg1, %c0_i32, %c0_i32_0 : i32, i32, i32, i32
  }
  func.func @transform_1(%arg0: i32, %arg1: i32) -> (i32, i32, i32, i32, i32) {
    %c0_i32 = arith.constant 0 : i32
    %c0_i32_0 = arith.constant 0 : i32
    %c0_i32_1 = arith.constant 0 : i32
    %c0_i32_2 = arith.constant 0 : i32
    return %arg0, %arg1, %c0_i32, %c0_i32_0, %c0_i32_1 : i32, i32, i32, i32, i32
  }
  func.func @transform_2(%arg0: i32, %arg1: i32) -> (i32, i32) {
    %c0_i32 = arith.constant 0 : i32
    %c0_i32_0 = arith.constant 0 : i32
    %c0_i32_1 = arith.constant 0 : i32
    return %c0_i32, %c0_i32_0 : i32, i32
  }
  func.func @transform_3(%arg0: i32, %arg1: i32) -> (i32, i32) {
    %c0_i32 = arith.constant 0 : i32
    %c0_i32_0 = arith.constant 0 : i32
    %c0_i32_1 = arith.constant 0 : i32
    return %c0_i32, %c0_i32_0 : i32, i32
  }
  func.func @transform_4(%arg0: i32, %arg1: i32) -> (i32, i32) {
    %c0_i32 = arith.constant 0 : i32
    %c0_i32_0 = arith.constant 0 : i32
    %c0_i32_1 = arith.constant 0 : i32
    return %c0_i32, %c0_i32_0 : i32, i32
  }
  func.func @transform_5(%arg0: i32, %arg1: i32) -> (i32, i32) {
    %c0_i32 = arith.constant 0 : i32
    %c0_i32_0 = arith.constant 0 : i32
    %c0_i32_1 = arith.constant 0 : i32
    return %c0_i32, %c0_i32_0 : i32, i32
  }
  func.func @transform_6(%arg0: i32, %arg1: i32) -> (i32, i32, i32, i32) {
    %c0_i32 = arith.constant 0 : i32
    %c0_i32_0 = arith.constant 0 : i32
    %c0_i32_1 = arith.constant 0 : i32
    return %arg0, %arg1, %c0_i32, %c0_i32_0 : i32, i32, i32, i32
  }
}

module attributes {stable_mosaic.version = 11 : i64} {
  func.func @_conv_residual_kernel(%arg0: i32, %arg1: i32, %arg2: memref<1x8x24x32xbf16, #tpu.memory_space<vmem>>, %arg3: memref<1x1x2x24x32xbf16, #tpu.memory_space<vmem>>, %arg4: memref<288x32xbf16, #tpu.memory_space<vmem>>, %arg5: memref<1x32xf32, #tpu.memory_space<vmem>>, %arg6: memref<1x8x24x32xbf16, #tpu.memory_space<vmem>>, %arg7: memref<1x8x24x32xbf16, #tpu.memory_space<vmem>>) attributes {dimension_semantics = [#tpu.dimension_semantics<parallel>, #tpu.dimension_semantics<parallel>], iteration_bounds = array<i64: 2, 3>, scalar_prefetch = 0 : i64, scratch_operands = 0 : i64, tpu.core_type = #tpu.core_type<tc>, window_params = [{transform_indices = @transform_0, window_bounds = array<i64: 1, 8, 24, 32>}, {transform_indices = @transform_1, window_bounds = array<i64: 1, 1, 2, 24, 32>}, {pipeline_mode = #tpu.pipeline_mode<synchronous>, transform_indices = @transform_2, window_bounds = array<i64: 288, 32>}, {pipeline_mode = #tpu.pipeline_mode<synchronous>, transform_indices = @transform_3, window_bounds = array<i64: 1, 32>}, {transform_indices = @transform_4, window_bounds = array<i64: 1, 8, 24, 32>}, {transform_indices = @transform_5, window_bounds = array<i64: 1, 8, 24, 32>}]} {
    %c0 = arith.constant 0 : index
    %c0_0 = arith.constant 0 : index
    %c0_1 = arith.constant 0 : index
    %c0_2 = arith.constant 0 : index
    %0 = vector.load %arg2[%c0, %c0_0, %c0_1, %c0_2] : memref<1x8x24x32xbf16, #tpu.memory_space<vmem>>, vector<1x8x24x32xbf16>
    %1 = vector.shape_cast %0 : vector<1x8x24x32xbf16> to vector<8x24x32xbf16>
    %c0_3 = arith.constant 0 : index
    %c0_4 = arith.constant 0 : index
    %c0_5 = arith.constant 0 : index
    %c0_6 = arith.constant 0 : index
    %c0_7 = arith.constant 0 : index
    %2 = vector.load %arg3[%c0_3, %c0_4, %c0_5, %c0_6, %c0_7] : memref<1x1x2x24x32xbf16, #tpu.memory_space<vmem>>, vector<1x1x2x24x32xbf16>
    %3 = vector.shape_cast %2 : vector<1x1x2x24x32xbf16> to vector<2x24x32xbf16>
    %4 = vector.extract_strided_slice %3 {offsets = [0, 0, 0], sizes = [1, 24, 32], strides = [1, 1, 1]} : vector<2x24x32xbf16> to vector<1x24x32xbf16>
    %5 = vector.extract_strided_slice %3 {offsets = [1, 0, 0], sizes = [1, 24, 32], strides = [1, 1, 1]} : vector<2x24x32xbf16> to vector<1x24x32xbf16>
    %6 = tpu.concatenate %4, %1, %5 in 0 : vector<1x24x32xbf16>, vector<8x24x32xbf16>, vector<1x24x32xbf16> -> vector<10x24x32xbf16>
    %cst = arith.constant 0.000000e+00 : bf16
    %7 = vector.broadcast %cst : bf16 to vector<10x1x32xbf16>
    %8 = tpu.concatenate %7, %6, %7 in 1 : vector<10x1x32xbf16>, vector<10x24x32xbf16>, vector<10x1x32xbf16> -> vector<10x26x32xbf16>
    %9 = vector.extract_strided_slice %8 {offsets = [0, 0, 0], sizes = [8, 24, 32], strides = [1, 1, 1]} : vector<10x26x32xbf16> to vector<8x24x32xbf16>
    %10 = vector.extract_strided_slice %8 {offsets = [0, 1, 0], sizes = [8, 24, 32], strides = [1, 1, 1]} : vector<10x26x32xbf16> to vector<8x24x32xbf16>
    %11 = vector.extract_strided_slice %8 {offsets = [0, 2, 0], sizes = [8, 24, 32], strides = [1, 1, 1]} : vector<10x26x32xbf16> to vector<8x24x32xbf16>
    %12 = vector.extract_strided_slice %8 {offsets = [1, 0, 0], sizes = [8, 24, 32], strides = [1, 1, 1]} : vector<10x26x32xbf16> to vector<8x24x32xbf16>
    %13 = vector.extract_strided_slice %8 {offsets = [1, 1, 0], sizes = [8, 24, 32], strides = [1, 1, 1]} : vector<10x26x32xbf16> to vector<8x24x32xbf16>
    %14 = vector.extract_strided_slice %8 {offsets = [1, 2, 0], sizes = [8, 24, 32], strides = [1, 1, 1]} : vector<10x26x32xbf16> to vector<8x24x32xbf16>
    %15 = vector.extract_strided_slice %8 {offsets = [2, 0, 0], sizes = [8, 24, 32], strides = [1, 1, 1]} : vector<10x26x32xbf16> to vector<8x24x32xbf16>
    %16 = vector.extract_strided_slice %8 {offsets = [2, 1, 0], sizes = [8, 24, 32], strides = [1, 1, 1]} : vector<10x26x32xbf16> to vector<8x24x32xbf16>
    %17 = vector.extract_strided_slice %8 {offsets = [2, 2, 0], sizes = [8, 24, 32], strides = [1, 1, 1]} : vector<10x26x32xbf16> to vector<8x24x32xbf16>
    %18 = tpu.concatenate %9, %10, %11, %12, %13, %14, %15, %16, %17 in 2 : vector<8x24x32xbf16>, vector<8x24x32xbf16>, vector<8x24x32xbf16>, vector<8x24x32xbf16>, vector<8x24x32xbf16>, vector<8x24x32xbf16>, vector<8x24x32xbf16>, vector<8x24x32xbf16>, vector<8x24x32xbf16> -> vector<8x24x288xbf16>
    %19 = vector.shape_cast %18 : vector<8x24x288xbf16> to vector<192x288xbf16>
    %c0_8 = arith.constant 0 : index
    %c0_9 = arith.constant 0 : index
    %20 = vector.load %arg4[%c0_8, %c0_9] : memref<288x32xbf16, #tpu.memory_space<vmem>>, vector<288x32xbf16>
    %cst_10 = arith.constant dense<0.000000e+00> : vector<192x32xf32>
    %21 = tpu.matmul %19, %20, %cst_10 {dimension_numbers = #tpu.dot_dimension_numbers<[1], [0], [0], [1], [0, 0, 1, 1], [], []>} : vector<192x288xbf16>, vector<288x32xbf16>, vector<192x32xf32> -> vector<192x32xf32>
    %c0_11 = arith.constant 0 : index
    %c0_12 = arith.constant 0 : index
    %22 = vector.load %arg5[%c0_11, %c0_12] : memref<1x32xf32, #tpu.memory_space<vmem>>, vector<1x32xf32>
    %23 = vector.broadcast %22 : vector<1x32xf32> to vector<192x32xf32>
    %24 = arith.addf %21, %23 : vector<192x32xf32>
    %c0_13 = arith.constant 0 : index
    %c0_14 = arith.constant 0 : index
    %c0_15 = arith.constant 0 : index
    %c0_16 = arith.constant 0 : index
    %25 = vector.load %arg6[%c0_13, %c0_14, %c0_15, %c0_16] : memref<1x8x24x32xbf16, #tpu.memory_space<vmem>>, vector<1x8x24x32xbf16>
    %26 = vector.shape_cast %25 : vector<1x8x24x32xbf16> to vector<8x24x32xbf16>
    %27 = arith.extf %26 : vector<8x24x32xbf16> to vector<8x24x32xf32>
    %28 = vector.shape_cast %27 : vector<8x24x32xf32> to vector<192x32xf32>
    %cst_17 = arith.constant 1.000000e+00 : f32
    %29 = vector.broadcast %cst_17 : f32 to vector<192x32xf32>
    %30 = arith.mulf %29, %24 : vector<192x32xf32>
    %31 = arith.addf %28, %30 : vector<192x32xf32>
    %32 = vector.shape_cast %31 : vector<192x32xf32> to vector<1x8x24x32xf32>
    %33 = arith.truncf %32 : vector<1x8x24x32xf32> to vector<1x8x24x32xbf16>
    %c0_18 = arith.constant 0 : index
    %c0_19 = arith.constant 0 : index
    %c0_20 = arith.constant 0 : index
    %c0_21 = arith.constant 0 : index
    %34 = vector.load %arg7[%c0_18, %c0_19, %c0_20, %c0_21] : memref<1x8x24x32xbf16, #tpu.memory_space<vmem>>, vector<1x8x24x32xbf16>
    tpu.vector_store %arg7[%c0_18, %c0_19, %c0_20, %c0_21], %33 {strides = array<i32>} : memref<1x8x24x32xbf16, #tpu.memory_space<vmem>>, vector<1x8x24x32xbf16>,
    return
  }
  func.func @transform_0(%arg0: i32, %arg1: i32) -> (i32, i32, i32, i32) {
    %c0_i32 = arith.constant 0 : i32
    %c0_i32_0 = arith.constant 0 : i32
    %c0_i32_1 = arith.constant 0 : i32
    return %arg0, %arg1, %c0_i32, %c0_i32_0 : i32, i32, i32, i32
  }
  func.func @transform_1(%arg0: i32, %arg1: i32) -> (i32, i32, i32, i32, i32) {
    %c0_i32 = arith.constant 0 : i32
    %c0_i32_0 = arith.constant 0 : i32
    %c0_i32_1 = arith.constant 0 : i32
    %c0_i32_2 = arith.constant 0 : i32
    return %arg0, %arg1, %c0_i32, %c0_i32_0, %c0_i32_1 : i32, i32, i32, i32, i32
  }
  func.func @transform_2(%arg0: i32, %arg1: i32) -> (i32, i32) {
    %c0_i32 = arith.constant 0 : i32
    %c0_i32_0 = arith.constant 0 : i32
    %c0_i32_1 = arith.constant 0 : i32
    return %c0_i32, %c0_i32_0 : i32, i32
  }
  func.func @transform_3(%arg0: i32, %arg1: i32) -> (i32, i32) {
    %c0_i32 = arith.constant 0 : i32
    %c0_i32_0 = arith.constant 0 : i32
    %c0_i32_1 = arith.constant 0 : i32
    return %c0_i32, %c0_i32_0 : i32, i32
  }
  func.func @transform_4(%arg0: i32, %arg1: i32) -> (i32, i32, i32, i32) {
    %c0_i32 = arith.constant 0 : i32
    %c0_i32_0 = arith.constant 0 : i32
    %c0_i32_1 = arith.constant 0 : i32
    return %arg0, %arg1, %c0_i32, %c0_i32_0 : i32, i32, i32, i32
  }
  func.func @transform_5(%arg0: i32, %arg1: i32) -> (i32, i32, i32, i32) {
    %c0_i32 = arith.constant 0 : i32
    %c0_i32_0 = arith.constant 0 : i32
    %c0_i32_1 = arith.constant 0 : i32
    return %arg0, %arg1, %c0_i32, %c0_i32_0 : i32, i32, i32, i32
  }
}

</mosaic_0001>

<llo_original>
// kernel: edsr_ig_forward.9
$region0: #{edsr_ig_forward.9}
  #allocation0 [shape = 'u32[]', space=smem, size = 0x4, offset = 0x4, fixed_abs, tag = 'smem constant byte address 0x4 - core index']
  #allocation1 [shape = 'u32[144,128]{1,0:T(1,128)}', space=vmem, size = 0x12000, scoped, tag = 'internal scratch']
  %s0 = inlined_call_operand.vmem [shape: bf16[2,24,24,32], index: 0, kind: input, shape index: {}]
  %s1 = inlined_call_operand.vmem [shape: bf16[2,3,2,24,32], index: 1, kind: input, shape index: {}]
  %s2 = inlined_call_operand.vmem [shape: bf16[288,12], index: 2, kind: input, shape index: {}]
  %s3 = inlined_call_operand.vmem [shape: f32[1,12], index: 3, kind: input, shape index: {}]
  %s4 = inlined_call_operand.vmem [shape: f32[2,24,24,12], index: 4, kind: output, shape index: {}]
  %s5 = sld [smem:[#allocation0]]
  $region49: #{edsr_ig_forward.9} parent=0
    _
  %s7 = ssub.s32 1, %s5
  %s8 = scalar_select 0, %s7, %s5
  loop: start=0, step=1, limit=8
  $region2: #{edsr_ig_forward.9} parent=0 // loop_pre_header
    _
  $region3: #{edsr_ig_forward.9} parent=0 // loop_header
    %s10 = sphi 0, %s14
    %p11 = scmp.ge.s32.totalorder %s10, 8
    %s17 = sphi 0, %s29
    %s18 = sphi 0, %s25
    %s19 = sphi 0, %s17
    %s20 = sphi 0, %s18
    %s21 = sphi 0, %s19
    %s22 = sphi 0, %s20
    %s34 = sphi 0, %s36
    %s37 = sphi 0, %s34
    %s38 = sphi 0, %s37
    %s54 = sphi 0, %s38
    %s62 = sphi 0, %s64
    %s65 = sphi 0, %s62
    %s66 = sphi 0, %s65
    %s82 = sphi 0, %s66
    %s86 = sphi 0, %s86
    %s88 = sphi 0, %s86
    %s89 = sphi 0, %s88
    %s103 = sphi 0, %s89
    %s107 = sphi 0, %s107
    %s109 = sphi 0, %s107
    %s110 = sphi 0, %s109
    %s124 = sphi 0, %s110
    %s132 = sphi 0, %s134
    %s135 = sphi 0, %s132
    %s136 = sphi 0, %s135
    %s152 = sphi 0, %s136
  $region4: #{edsr_ig_forward.9} parent=0 // loop_header_branch
    %13 = sbr.rel (%p11) target = $region8
  $region5: #{edsr_ig_forward.9} parent=0 // loop_body
    %s15 = ssub.s32 %s10, 1
    %s16 = ssub.s32 %s10, 2
    %s23 = sadd.s32 1, %s18
    %p24 = scmp.ge.s32.totalorder %s23, 3
    %s25 = scalar_select %p24, 0, %s23
    %s26 = sadd.s32 1, %s17
    %s27 = scalar_select %p24, %s26, %s17
    %p28 = scmp.ge.s32.totalorder %s27, 2
    %s29 = scalar_select %p28, 0, %s27
    %s30 = ssub.s32 %s17, %s29
    %s31 = ssub.s32 %s18, %s25
    %s32 = sor.u32 %s30, %s31
    %p33 = scmp.eq.s32.totalorder %s32, 0
    %s35 = sadd.s32 %s34, 1
    %s36 = scalar_select %p33, %s34, %s35
    %p39 = pneg %p33
    %p40 = scmp.eq.s32.totalorder %s10, 5
    %p41 = por %p39, %p40
    %p42 = scmp.ne.s32.totalorder %s34, %s37
    %p43 = scmp.eq.s32.totalorder %s10, 0
    %p44 = por %p42, %p43
    %p45 = scmp.ne.s32.totalorder %s34, %s37
    %p46 = scmp.eq.s32.totalorder %s15, 5
    %p47 = por %p45, %p46
    %p48 = scmp.ne.s32.totalorder %s37, %s38
    %p49 = scmp.eq.s32.totalorder %s15, 0
    %p50 = por %p48, %p49
    %p51 = scmp.ne.s32.totalorder %s37, %s38
    %p52 = scmp.eq.s32.totalorder %s16, 5
    %p53 = por %p51, %p52
    %p55 = scmp.ne.s32.totalorder %s38, %s54
    %p56 = scmp.eq.s32.totalorder %s16, 0
    %p57 = por %p55, %p56
    %s58 = ssub.s32 %s17, %s29
    %s59 = ssub.s32 %s18, %s25
    %s60 = sor.u32 %s58, %s59
    %p61 = scmp.eq.s32.totalorder %s60, 0
    %s63 = sadd.s32 %s62, 1
    %s64 = scalar_select %p61, %s62, %s63
    %p67 = pneg %p61
    %p68 = scmp.eq.s32.totalorder %s10, 5
    %p69 = por %p67, %p68
    %p70 = scmp.ne.s32.totalorder %s62, %s65
    %p71 = scmp.eq.s32.totalorder %s10, 0
    %p72 = por %p70, %p71
    %p73 = scmp.ne.s32.totalorder %s62, %s65
    %p74 = scmp.eq.s32.totalorder %s15, 5
    %p75 = por %p73, %p74
    %p76 = scmp.ne.s32.totalorder %s65, %s66
    %p77 = scmp.eq.s32.totalorder %s15, 0
    %p78 = por %p76, %p77
    %p79 = scmp.ne.s32.totalorder %s65, %s66
    %p80 = scmp.eq.s32.totalorder %s16, 5
    %p81 = por %p79, %p80
    %p83 = scmp.ne.s32.totalorder %s66, %s82
    %p84 = scmp.eq.s32.totalorder %s16, 0
    %p85 = por %p83, %p84
    %s87 = sadd.s32 %s86, 1
    %p90 = scmp.eq.s32.totalorder %s10, 5
    %p91 = scmp.ne.s32.totalorder %s86, %s88
    %p92 = scmp.eq.s32.totalorder %s10, 0
    %p93 = por %p91, %p92
    %p94 = scmp.ne.s32.totalorder %s86, %s88
    %p95 = scmp.eq.s32.totalorder %s15, 5
    %p96 = por %p94, %p95
    %p97 = scmp.ne.s32.totalorder %s88, %s89
    %p98 = scmp.eq.s32.totalorder %s15, 0
    %p99 = por %p97, %p98
    %p100 = scmp.ne.s32.totalorder %s88, %s89
    %p101 = scmp.eq.s32.totalorder %s16, 5
    %p102 = por %p100, %p101
    %p104 = scmp.ne.s32.totalorder %s89, %s103
    %p105 = scmp.eq.s32.totalorder %s16, 0
    %p106 = por %p104, %p105
    %s108 = sadd.s32 %s107, 1
    %p111 = scmp.eq.s32.totalorder %s10, 5
    %p112 = scmp.ne.s32.totalorder %s107, %s109
    %p113 = scmp.eq.s32.totalorder %s10, 0
    %p114 = por %p112, %p113
    %p115 = scmp.ne.s32.totalorder %s107, %s109
    %p116 = scmp.eq.s32.totalorder %s15, 5
    %p117 = por %p115, %p116
    %p118 = scmp.ne.s32.totalorder %s109, %s110
    %p119 = scmp.eq.s32.totalorder %s15, 0
    %p120 = por %p118, %p119
    %p121 = scmp.ne.s32.totalorder %s109, %s110
    %p122 = scmp.eq.s32.totalorder %s16, 5
    %p123 = por %p121, %p122
    %p125 = scmp.ne.s32.totalorder %s110, %s124
    %p126 = scmp.eq.s32.totalorder %s16, 0
    %p127 = por %p125, %p126
    %s128 = ssub.s32 %s17, %s29
    %s129 = ssub.s32 %s18, %s25
    %s130 = sor.u32 %s128, %s129
    %p131 = scmp.eq.s32.totalorder %s130, 0
    %s133 = sadd.s32 %s132, 1
    %s134 = scalar_select %p131, %s132, %s133
    %p137 = pneg %p131
    %p138 = scmp.eq.s32.totalorder %s10, 5
    %p139 = por %p137, %p138
    %p140 = scmp.ne.s32.totalorder %s132, %s135
    %p141 = scmp.eq.s32.totalorder %s10, 0
    %p142 = por %p140, %p141
    %p143 = scmp.ne.s32.totalorder %s132, %s135
    %p144 = scmp.eq.s32.totalorder %s15, 5
    %p145 = por %p143, %p144
    %p146 = scmp.ne.s32.totalorder %s135, %s136
    %p147 = scmp.eq.s32.totalorder %s15, 0
    %p148 = por %p146, %p147
    %p149 = scmp.ne.s32.totalorder %s135, %s136
    %p150 = scmp.eq.s32.totalorder %s16, 5
    %p151 = por %p149, %p150
    %p153 = scmp.ne.s32.totalorder %s136, %s152
    %p154 = scmp.eq.s32.totalorder %s16, 0
    %p155 = por %p153, %p154
    %p156 = scmp.le.s32.totalorder 1, %s10
    %p157 = scmp.lt.s32.totalorder %s10, 7
    %p158 = pnand %p156, %p157
    %p159 = pneg %p158
    // Predicated region
    $region9: #{edsr_ig_forward.9} parent=5 // pred_check
      _
    $region10: #{edsr_ig_forward.9} parent=5 // pred_check_branch
      %161 = sbr.rel (%p158) target = $region12
    $region11: #{edsr_ig_forward.9} parent=5 // pred_region
      %s162 = ssub.s32 %s10, 1
      // Predicated region
      $region13: #{edsr_ig_forward.9} parent=11 // pred_check
        %p163 = pneg %p99
      $region14: #{edsr_ig_forward.9} parent=11 // pred_check_branch
        %165 = sbr.rel (%p163) target = $region16
      $region15: #{edsr_ig_forward.9} parent=11 // pred_region
        _
      $region16: #{edsr_ig_forward.9} parent=11 // pred_fallthru
        _
      // Predicated region
      $region17: #{edsr_ig_forward.9} parent=11 // pred_check
        %p166 = pneg %p120
      $region18: #{edsr_ig_forward.9} parent=11 // pred_check_branch
        %168 = sbr.rel (%p166) target = $region20
      $region19: #{edsr_ig_forward.9} parent=11 // pred_region
        _
      $region20: #{edsr_ig_forward.9} parent=11 // pred_fallthru
        _
    $region12: #{edsr_ig_forward.9} parent=5 // pred_fallthru
      _
    %p169 = scmp.lt.s32.totalorder %s10, 6
    // Predicated region
    $region21: #{edsr_ig_forward.9} parent=5 // pred_check
      %p170 = pneg %p169
    $region22: #{edsr_ig_forward.9} parent=5 // pred_check_branch
      %172 = sbr.rel (%p170) target = $region24
    $region23: #{edsr_ig_forward.9} parent=5 // pred_region
      // Predicated region
      $region25: #{edsr_ig_forward.9} parent=23 // pred_check
        %p173 = pneg %p44
      $region26: #{edsr_ig_forward.9} parent=23 // pred_check_branch
        %175 = sbr.rel (%p173) target = $region28
      $region27: #{edsr_ig_forward.9} parent=23 // pred_region
        %s176 = smul.u32 8, %s18
        %p177 = scmp.lt.s32.totalorder %s17, 1
        %s178 = scalar_select %p177, %s17, 1
        %p179 = scmp.lt.s32.totalorder %s176, 23
        %s180 = scalar_select %p179, %s176, 23
        %s181 = smul.addr %s180, 3
        %s182 = smul.addr %s178, 72
        %s183 = sadd.s32 %s181, %s182
        %s184 = smul.addr %s183, 4
        %s185 = scalar_lea.vmem %s0, %s184
        %s186 = smul.u32 8, %s18
      $region28: #{edsr_ig_forward.9} parent=23 // pred_fallthru
        _
      // Predicated region
      $region29: #{edsr_ig_forward.9} parent=23 // pred_check
        %p187 = pneg %p72
      $region30: #{edsr_ig_forward.9} parent=23 // pred_check_branch
        %189 = sbr.rel (%p187) target = $region32
      $region31: #{edsr_ig_forward.9} parent=23 // pred_region
        %p190 = scmp.lt.s32.totalorder %s17, 1
        %s191 = scalar_select %p190, %s17, 1
        %p192 = scmp.lt.s32.totalorder %s18, 2
        %s193 = scalar_select %p192, %s18, 2
        %s194 = smul.addr %s193, 6
        %s195 = smul.addr %s191, 18
        %s196 = sadd.s32 %s194, %s195
        %s197 = smul.addr %s196, 4
        %s198 = scalar_lea.vmem %s1, %s197
      $region32: #{edsr_ig_forward.9} parent=23 // pred_fallthru
        _
    $region24: #{edsr_ig_forward.9} parent=5 // pred_fallthru
      _
    %p199 = scmp.le.s32.totalorder 1, %s10
    %p200 = scmp.lt.s32.totalorder %s10, 7
    %p201 = pnand %p199, %p200
    %p202 = pneg %p201
    // Predicated region
    $region33: #{edsr_ig_forward.9} parent=5 // pred_check
      _
    $region34: #{edsr_ig_forward.9} parent=5 // pred_check_branch
      %204 = sbr.rel (%p201) target = $region36
    $region35: #{edsr_ig_forward.9} parent=5 // pred_region
      %s205 = ssub.s32 %s10, 1
      %s206 = smul.u32 8, %s20
      %p207 = scmp.lt.s32.totalorder %s19, 1
      %s208 = scalar_select %p207, %s19, 1
      %p209 = scmp.lt.s32.totalorder %s206, 23
      %s210 = scalar_select %p209, %s206, 23
      %s211 = smul.addr %s210, 3
      %s212 = smul.addr %s208, 72
      %s213 = sadd.s32 %s211, %s212
      %s214 = smul.addr %s213, 4
      %s215 = scalar_lea.vmem %s0, %s214
      %p216 = pneg %p50
      %p217 = pneg %p47
      %p218 = scmp.lt.s32.totalorder %s19, 1
      %s219 = scalar_select %p218, %s19, 1
      %p220 = scmp.lt.s32.totalorder %s20, 2
      %s221 = scalar_select %p220, %s20, 2
      %s222 = smul.addr %s221, 6
      %s223 = smul.addr %s219, 18
      %s224 = sadd.s32 %s222, %s223
      %s225 = smul.addr %s224, 4
      %s226 = scalar_lea.vmem %s1, %s225
      %p227 = pneg %p78
      %p228 = pneg %p75
      %p229 = pneg %p99
      %p230 = pneg %p96
      %p231 = pneg %p120
      %p232 = pneg %p117
      %p233 = pneg %p148
      %p234 = pneg %p145
      %s235 = smul.u32 8, %s20
      %p236 = scmp.lt.s32.totalorder %s19, 1
      %s237 = scalar_select %p236, %s19, 1
      %p238 = scmp.lt.s32.totalorder %s235, 23
      %s239 = scalar_select %p238, %s235, 23
      %s240 = smul.addr %s239, 3
      %s241 = smul.addr %s237, 72
      %s242 = sadd.s32 %s240, %s241
      %s243 = smul.addr %s242, 8
      %s244 = scalar_lea.vmem %s4, %s243
      %s245 = smul.u32 8, %s20
      %p246 = scmp.lt.s32.totalorder %s19, 1
      %s247 = scalar_select %p246, %s19, 1
      %p248 = scmp.lt.s32.totalorder %s245, 23
      %s249 = scalar_select %p248, %s245, 23
      %s250 = smul.addr %s249, 3
      %s251 = smul.addr %s247, 72
      %s252 = sadd.s32 %s250, %s251
      %s253 = smul.addr %s252, 4
      %s254 = scalar_lea.vmem %s0, %s253
      %s255 = smul.u32 8, %s20
      %p256 = scmp.lt.s32.totalorder %s19, 1
      %s257 = scalar_select %p256, %s19, 1
      %p258 = scmp.lt.s32.totalorder %s20, 2
      %s259 = scalar_select %p258, %s20, 2
      %s260 = smul.addr %s259, 6
      %s261 = smul.addr %s257, 18
      %s262 = sadd.s32 %s260, %s261
      %s263 = smul.addr %s262, 4
      %s264 = scalar_lea.vmem %s1, %s263
      %s265 = smul.u32 8, %s20
      %p266 = scmp.lt.s32.totalorder %s19, 1
      %s267 = scalar_select %p266, %s19, 1
      %p268 = scmp.lt.s32.totalorder %s265, 23
      %s269 = scalar_select %p268, %s265, 23
      %s270 = smul.addr %s269, 3
      %s271 = smul.addr %s267, 72
      %s272 = sadd.s32 %s270, %s271
      %s273 = smul.addr %s272, 8
      %s274 = scalar_lea.vmem %s4, %s273
      %s275 = smul.u32 8, %s20
      %v277 = vld [vmem:[%s254] sm:$0xf]
      %v278 = vld [vmem:[%s254 + $0x4] sm:$0xf]
      %v279 = vld [vmem:[%s254 + $0x8] sm:$0xf]
      %v280 = vld [vmem:[%s254 + $0xc] sm:$0xf]
      %v281 = vld [vmem:[%s254 + $0x10] sm:$0xf]
      %v282 = vld [vmem:[%s254 + $0x14] sm:$0xf]
      %v283 = vld [vmem:[%s254 + $0x18] sm:$0xf]
      %v284 = vld [vmem:[%s254 + $0x1c] sm:$0xf]
      %v285 = vld [vmem:[%s254 + $0x20] sm:$0xf]
      %v286 = vld [vmem:[%s254 + $0x24] sm:$0xf]
      %v287 = vld [vmem:[%s254 + $0x28] sm:$0xf]
      %v288 = vld [vmem:[%s254 + $0x2c] sm:$0xf]
      %v289 = vld [vmem:[%s254 + $0x30] sm:$0xf]
      %v290 = vld [vmem:[%s254 + $0x34] sm:$0xf]
      %v291 = vld [vmem:[%s254 + $0x38] sm:$0xf]
      %v292 = vld [vmem:[%s254 + $0x3c] sm:$0xf]
      %v293 = vld [vmem:[%s254 + $0x40] sm:$0xf]
      %v294 = vld [vmem:[%s254 + $0x44] sm:$0xf]
      %v295 = vld [vmem:[%s254 + $0x48] sm:$0xf]
      %v296 = vld [vmem:[%s254 + $0x4c] sm:$0xf]
      %v297 = vld [vmem:[%s254 + $0x50] sm:$0xf]
      %v298 = vld [vmem:[%s254 + $0x54] sm:$0xf]
      %v299 = vld [vmem:[%s254 + $0x58] sm:$0xf]
      %v300 = vld [vmem:[%s254 + $0x5c] sm:$0xf]
      %v301 = vld [vmem:[%s264] sm:$0xf]
      %v302 = vld [vmem:[%s264 + $0x4] sm:$0xf]
      %v303 = vld [vmem:[%s264 + $0x8] sm:$0xf]
      %v304 = vld [vmem:[%s264 + $0xc] sm:$0xf]
      %v305 = vld [vmem:[%s264 + $0x10] sm:$0xf]
      %v306 = vld [vmem:[%s264 + $0x14] sm:$0xf]
      %v337 = vunpack.c.l.b16 %v301
      %v338 = vunpack.c.l.b16 %v302
      %v339 = vunpack.c.l.b16 %v303
      %v340 = vunpack.c.l.b16 %v277
      %v341 = vunpack.c.l.b16 %v278
      %v342 = vunpack.c.l.b16 %v279
      %v343 = vunpack.c.l.b16 %v280
      %v344 = vunpack.c.l.b16 %v281
      %v345 = vunpack.c.l.b16 %v282
      %v346 = vunpack.c.l.b16 %v283
      %v347 = vunpack.c.l.b16 %v284
      %v348 = vunpack.c.l.b16 %v285
      %v349 = vunpack.c.l.b16 %v286
      %v350 = vunpack.c.l.b16 %v287
      %v351 = vunpack.c.l.b16 %v288
      %v352 = vunpack.c.l.b16 %v289
      %v353 = vunpack.c.l.b16 %v290
      %v354 = vunpack.c.l.b16 %v291
      %v355 = vunpack.c.l.b16 %v292
      %v356 = vunpack.c.l.b16 %v293
      %v357 = vunpack.c.l.b16 %v294
      %v358 = vunpack.c.l.b16 %v295
      %v359 = vunpack.c.l.b16 %v296
      %v360 = vunpack.c.l.b16 %v297
      %v361 = vunpack.c.l.b16 %v298
      %v362 = vunpack.c.l.b16 %v299
      %v363 = vunpack.c.l.b16 %v300
      %v364 = vunpack.c.l.b16 %v304
      %v365 = vunpack.c.l.b16 %v305
      %v366 = vunpack.c.l.b16 %v306
      %v367 = vpack.c.b16 %v338, %v337
      %v368 = vpack.c.b16 %v339, %v339
      %v369 = vpack.c.b16 %v341, %v340
      %v370 = vpack.c.b16 %v342, %v342
      %v371 = vpack.c.b16 %v344, %v343
      %v372 = vpack.c.b16 %v345, %v345
      %v373 = vpack.c.b16 %v347, %v346
      %v374 = vpack.c.b16 %v348, %v348
      %v375 = vpack.c.b16 %v350, %v349
      %v376 = vpack.c.b16 %v351, %v351
      %v377 = vpack.c.b16 %v353, %v352
      %v378 = vpack.c.b16 %v354, %v354
      %v379 = vpack.c.b16 %v356, %v355
      %v380 = vpack.c.b16 %v357, %v357
      %v381 = vpack.c.b16 %v359, %v358
      %v382 = vpack.c.b16 %v360, %v360
      %v383 = vpack.c.b16 %v362, %v361
      %v384 = vpack.c.b16 %v363, %v363
      %v385 = vpack.c.b16 %v365, %v364
      %v386 = vpack.c.b16 %v366, %v366
      %vm387 = vsmask.f32 256
      %v389 = vshrl.u32 %v367, 16
      %v391 = vrot.slane %v389, 7
      %v392 = vshll.u32 %v367, 16
      %v394 = vor.u32 %v391, %v392
      %v396 = vshrl.u32 %v368, 16
      %v398 = vrot.slane %v396, 7
      %v399 = vshll.u32 %v368, 16
      %v401 = vor.u32 %v398, %v399
      %v402 = vsel %vm387, %v391, %v401
      %v404 = vshrl.u32 %v369, 16
      %v406 = vrot.slane %v404, 7
      %v407 = vshll.u32 %v369, 16
      %v409 = vor.u32 %v406, %v407
      %v411 = vshrl.u32 %v370, 16
      %v413 = vrot.slane %v411, 7
      %v414 = vshll.u32 %v370, 16
      %v416 = vor.u32 %v413, %v414
      %v417 = vsel %vm387, %v406, %v416
      %v419 = vshrl.u32 %v371, 16
      %v421 = vrot.slane %v419, 7
      %v422 = vshll.u32 %v371, 16
      %v424 = vor.u32 %v421, %v422
      %v426 = vshrl.u32 %v372, 16
      %v428 = vrot.slane %v426, 7
      %v429 = vshll.u32 %v372, 16
      %v431 = vor.u32 %v428, %v429
      %v432 = vsel %vm387, %v421, %v431
      %v434 = vshrl.u32 %v373, 16
      %v436 = vrot.slane %v434, 7
      %v437 = vshll.u32 %v373, 16
      %v439 = vor.u32 %v436, %v437
      %v441 = vshrl.u32 %v374, 16
      %v443 = vrot.slane %v441, 7
      %v444 = vshll.u32 %v374, 16
      %v446 = vor.u32 %v443, %v444
      %v447 = vsel %vm387, %v436, %v446
      %v449 = vshrl.u32 %v375, 16
      %v451 = vrot.slane %v449, 7
      %v452 = vshll.u32 %v375, 16
      %v454 = vor.u32 %v451, %v452
      %v456 = vshrl.u32 %v376, 16
      %v458 = vrot.slane %v456, 7
      %v459 = vshll.u32 %v376, 16
      %v461 = vor.u32 %v458, %v459
      %v462 = vsel %vm387, %v451, %v461
      %v464 = vshrl.u32 %v377, 16
      %v466 = vrot.slane %v464, 7
      %v467 = vshll.u32 %v377, 16
      %v469 = vor.u32 %v466, %v467
      %v471 = vshrl.u32 %v378, 16
      %v473 = vrot.slane %v471, 7
      %v474 = vshll.u32 %v378, 16
      %v476 = vor.u32 %v473, %v474
      %v477 = vsel %vm387, %v466, %v476
      %v479 = vshrl.u32 %v379, 16
      %v481 = vrot.slane %v479, 7
      %v482 = vshll.u32 %v379, 16
      %v484 = vor.u32 %v481, %v482
      %v486 = vshrl.u32 %v380, 16
      %v488 = vrot.slane %v486, 7
      %v489 = vshll.u32 %v380, 16
      %v491 = vor.u32 %v488, %v489
      %v492 = vsel %vm387, %v481, %v491
      %v494 = vshrl.u32 %v381, 16
      %v496 = vrot.slane %v494, 7
      %v497 = vshll.u32 %v381, 16
      %v499 = vor.u32 %v496, %v497
      %v501 = vshrl.u32 %v382, 16
      %v503 = vrot.slane %v501, 7
      %v504 = vshll.u32 %v382, 16
      %v506 = vor.u32 %v503, %v504
      %v507 = vsel %vm387, %v496, %v506
      %v509 = vshrl.u32 %v383, 16
      %v511 = vrot.slane %v509, 7
      %v512 = vshll.u32 %v383, 16
      %v514 = vor.u32 %v511, %v512
      %v516 = vshrl.u32 %v384, 16
      %v518 = vrot.slane %v516, 7
      %v519 = vshll.u32 %v384, 16
      %v521 = vor.u32 %v518, %v519
      %v522 = vsel %vm387, %v511, %v521
      %v524 = vshrl.u32 %v385, 16
      %v526 = vrot.slane %v524, 7
      %v527 = vshll.u32 %v385, 16
      %v529 = vor.u32 %v526, %v527
      %v531 = vshrl.u32 %v386, 16
      %v533 = vrot.slane %v531, 7
      %v534 = vshll.u32 %v386, 16
      %v536 = vor.u32 %v533, %v534
      %v537 = vsel %vm387, %v526, %v536
      %vm558 = vcmask 1040384
      %vm559 = vmand %vm558, %vm387
      %v560 = vsel %vm559, 0, %v394
      %v561 = vsel %vm559, 0, %v409
      %v562 = vsel %vm559, 0, %v424
      %v563 = vsel %vm559, 0, %v439
      %v564 = vsel %vm559, 0, %v454
      %v565 = vsel %vm559, 0, %v469
      %v566 = vsel %vm559, 0, %v484
      %v567 = vsel %vm559, 0, %v499
      %v568 = vsel %vm559, 0, %v514
      %v569 = vsel %vm559, 0, %v529
      %vm570 = vcmask 1044480
      %vm571 = vsmask.f32 4352
      %vm572 = vmand %vm570, %vm571
      %v573 = vsel %vm572, %v402, 0
      %v574 = vsel %vm572, %v417, 0
      %v575 = vsel %vm572, %v432, 0
      %v576 = vsel %vm572, %v447, 0
      %v577 = vsel %vm572, %v462, 0
      %v578 = vsel %vm572, %v477, 0
      %v579 = vsel %vm572, %v492, 0
      %v580 = vsel %vm572, %v507, 0
      %v581 = vsel %vm572, %v522, 0
      %v582 = vsel %vm572, %v537, 0
      %vm583 = vsmask.f32 7424
      %v585 = vshrl.u32 %v560, 16
      %v587 = vshll.u32 %v560, 16
      %v589 = vrot.slane %v587, 1
      %v590 = vor.u32 %v585, %v589
      %v592 = vshll.u32 %v573, 16
      %v594 = vrot.slane %v592, 1
      %v595 = vsel %vm583, %v590, %v594
      %v596 = vshrl.u32 %v573, 16
      %v598 = vor.u32 %v596, %v594
      %v600 = vshrl.u32 %v561, 16
      %v602 = vshll.u32 %v561, 16
      %v604 = vrot.slane %v602, 1
      %v605 = vor.u32 %v600, %v604
      %v607 = vshll.u32 %v574, 16
      %v609 = vrot.slane %v607, 1
      %v610 = vsel %vm583, %v605, %v609
      %v611 = vshrl.u32 %v574, 16
      %v613 = vor.u32 %v611, %v609
      %v615 = vshrl.u32 %v562, 16
      %v617 = vshll.u32 %v562, 16
      %v619 = vrot.slane %v617, 1
      %v620 = vor.u32 %v615, %v619
      %v622 = vshll.u32 %v575, 16
      %v624 = vrot.slane %v622, 1
      %v625 = vsel %vm583, %v620, %v624
      %v626 = vshrl.u32 %v575, 16
      %v628 = vor.u32 %v626, %v624
      %v630 = vshrl.u32 %v563, 16
      %v632 = vshll.u32 %v563, 16
      %v634 = vrot.slane %v632, 1
      %v635 = vor.u32 %v630, %v634
      %v637 = vshll.u32 %v576, 16
      %v639 = vrot.slane %v637, 1
      %v640 = vsel %vm583, %v635, %v639
      %v641 = vshrl.u32 %v576, 16
      %v643 = vor.u32 %v641, %v639
      %v645 = vshrl.u32 %v564, 16
      %v647 = vshll.u32 %v564, 16
      %v649 = vrot.slane %v647, 1
      %v650 = vor.u32 %v645, %v649
      %v652 = vshll.u32 %v577, 16
      %v654 = vrot.slane %v652, 1
      %v655 = vsel %vm583, %v650, %v654
      %v656 = vshrl.u32 %v577, 16
      %v658 = vor.u32 %v656, %v654
      %v660 = vshrl.u32 %v565, 16
      %v662 = vshll.u32 %v565, 16
      %v664 = vrot.slane %v662, 1
      %v665 = vor.u32 %v660, %v664
      %v667 = vshll.u32 %v578, 16
      %v669 = vrot.slane %v667, 1
      %v670 = vsel %vm583, %v665, %v669
      %v671 = vshrl.u32 %v578, 16
      %v673 = vor.u32 %v671, %v669
      %v675 = vshrl.u32 %v566, 16
      %v677 = vshll.u32 %v566, 16
      %v679 = vrot.slane %v677, 1
      %v680 = vor.u32 %v675, %v679
      %v682 = vshll.u32 %v579, 16
      %v684 = vrot.slane %v682, 1
      %v685 = vsel %vm583, %v680, %v684
      %v686 = vshrl.u32 %v579, 16
      %v688 = vor.u32 %v686, %v684
      %v690 = vshrl.u32 %v567, 16
      %v692 = vshll.u32 %v567, 16
      %v694 = vrot.slane %v692, 1
      %v695 = vor.u32 %v690, %v694
      %v697 = vshll.u32 %v580, 16
      %v699 = vrot.slane %v697, 1
      %v700 = vsel %vm583, %v695, %v699
      %v701 = vshrl.u32 %v580, 16
      %v703 = vor.u32 %v701, %v699
      %704 = vrot.lane.b32.xlu0 %v595, 32
      %v705 = vpop.permute.xlu0 %704
      %706 = vrot.lane.b32.xlu0 %v598, 32
      %v707 = vpop.permute.xlu0 %706
      %708 = vrot.lane.b32.xlu0 %v610, 32
      %v709 = vpop.permute.xlu0 %708
      %710 = vrot.lane.b32.xlu0 %v613, 32
      %v711 = vpop.permute.xlu0 %710
      %712 = vrot.lane.b32.xlu0 %v625, 32
      %v713 = vpop.permute.xlu0 %712
      %714 = vrot.lane.b32.xlu0 %v628, 32
      %v715 = vpop.permute.xlu0 %714
      %716 = vrot.lane.b32.xlu0 %v640, 32
      %v717 = vpop.permute.xlu0 %716
      %718 = vrot.lane.b32.xlu0 %v643, 32
      %v719 = vpop.permute.xlu0 %718
      %720 = vrot.lane.b32.xlu0 %v655, 32
      %v721 = vpop.permute.xlu0 %720
      %722 = vrot.lane.b32.xlu0 %v658, 32
      %v723 = vpop.permute.xlu0 %722
      %724 = vrot.lane.b32.xlu0 %v670, 32
      %v725 = vpop.permute.xlu0 %724
      %726 = vrot.lane.b32.xlu0 %v673, 32
      %v727 = vpop.permute.xlu0 %726
      %728 = vrot.lane.b32.xlu0 %v685, 32
      %v729 = vpop.permute.xlu0 %728
      %730 = vrot.lane.b32.xlu0 %v688, 32
      %v731 = vpop.permute.xlu0 %730
      %732 = vrot.lane.b32.xlu0 %v700, 32
      %v733 = vpop.permute.xlu0 %732
      %734 = vrot.lane.b32.xlu0 %v703, 32
      %v735 = vpop.permute.xlu0 %734
      %vm752 = vcmask 1046528
      %v753 = vrot.slane %v560, 1
      %v754 = vrot.slane %v573, 1
      %v755 = vsel %vm752, %v753, %v754
      %v756 = vrot.slane %v561, 1
      %v757 = vrot.slane %v574, 1
      %v758 = vsel %vm752, %v756, %v757
      %v759 = vrot.slane %v562, 1
      %v760 = vrot.slane %v575, 1
      %v761 = vsel %vm752, %v759, %v760
      %v762 = vrot.slane %v563, 1
      %v763 = vrot.slane %v576, 1
      %v764 = vsel %vm752, %v762, %v763
      %v765 = vrot.slane %v564, 1
      %v766 = vrot.slane %v577, 1
      %v767 = vsel %vm752, %v765, %v766
      %v768 = vrot.slane %v565, 1
      %v769 = vrot.slane %v578, 1
      %v770 = vsel %vm752, %v768, %v769
      %v771 = vrot.slane %v566, 1
      %v772 = vrot.slane %v579, 1
      %v773 = vsel %vm752, %v771, %v772
      %v774 = vrot.slane %v567, 1
      %v775 = vrot.slane %v580, 1
      %v776 = vsel %vm752, %v774, %v775
      %777 = vrot.lane.b32.xlu0 %v755, 64
      %v778 = vpop.permute.xlu0 %777
      %779 = vrot.lane.b32.xlu0 %v754, 64
      %v780 = vpop.permute.xlu0 %779
      %781 = vrot.lane.b32.xlu0 %v758, 64
      %v782 = vpop.permute.xlu0 %781
      %783 = vrot.lane.b32.xlu0 %v757, 64
      %v784 = vpop.permute.xlu0 %783
      %785 = vrot.lane.b32.xlu0 %v761, 64
      %v786 = vpop.permute.xlu0 %785
      %787 = vrot.lane.b32.xlu0 %v760, 64
      %v788 = vpop.permute.xlu0 %787
      %789 = vrot.lane.b32.xlu0 %v764, 64
      %v790 = vpop.permute.xlu0 %789
      %791 = vrot.lane.b32.xlu0 %v763, 64
      %v792 = vpop.permute.xlu0 %791
      %793 = vrot.lane.b32.xlu0 %v767, 64
      %v794 = vpop.permute.xlu0 %793
      %795 = vrot.lane.b32.xlu0 %v766, 64
      %v796 = vpop.permute.xlu0 %795
      %797 = vrot.lane.b32.xlu0 %v770, 64
      %v798 = vpop.permute.xlu0 %797
      %799 = vrot.lane.b32.xlu0 %v769, 64
      %v800 = vpop.permute.xlu0 %799
      %801 = vrot.lane.b32.xlu0 %v773, 64
      %v802 = vpop.permute.xlu0 %801
      %803 = vrot.lane.b32.xlu0 %v772, 64
      %v804 = vpop.permute.xlu0 %803
      %805 = vrot.lane.b32.xlu0 %v776, 64
      %v806 = vpop.permute.xlu0 %805
      %807 = vrot.lane.b32.xlu0 %v775, 64
      %v808 = vpop.permute.xlu0 %807
      %811 = vrot.lane.b32.xlu0 %v561, 96
      %v812 = vpop.permute.xlu0 %811
      %813 = vrot.lane.b32.xlu0 %v574, 96
      %v814 = vpop.permute.xlu0 %813
      %815 = vrot.lane.b32.xlu0 %v562, 96
      %v816 = vpop.permute.xlu0 %815
      %817 = vrot.lane.b32.xlu0 %v575, 96
      %v818 = vpop.permute.xlu0 %817
      %819 = vrot.lane.b32.xlu0 %v563, 96
      %v820 = vpop.permute.xlu0 %819
      %821 = vrot.lane.b32.xlu0 %v576, 96
      %v822 = vpop.permute.xlu0 %821
      %823 = vrot.lane.b32.xlu0 %v564, 96
      %v824 = vpop.permute.xlu0 %823
      %825 = vrot.lane.b32.xlu0 %v577, 96
      %v826 = vpop.permute.xlu0 %825
      %827 = vrot.lane.b32.xlu0 %v565, 96
      %v828 = vpop.permute.xlu0 %827
      %829 = vrot.lane.b32.xlu0 %v578, 96
      %v830 = vpop.permute.xlu0 %829
      %831 = vrot.lane.b32.xlu0 %v566, 96
      %v832 = vpop.permute.xlu0 %831
      %833 = vrot.lane.b32.xlu0 %v579, 96
      %v834 = vpop.permute.xlu0 %833
      %835 = vrot.lane.b32.xlu0 %v567, 96
      %v836 = vpop.permute.xlu0 %835
      %837 = vrot.lane.b32.xlu0 %v580, 96
      %v838 = vpop.permute.xlu0 %837
      %839 = vrot.lane.b32.xlu0 %v568, 96
      %v840 = vpop.permute.xlu0 %839
      %841 = vrot.lane.b32.xlu0 %v581, 96
      %v842 = vpop.permute.xlu0 %841
      %v844 = vshrl.u32 %v568, 16
      %v846 = vshll.u32 %v568, 16
      %v848 = vrot.slane %v846, 1
      %v849 = vor.u32 %v844, %v848
      %v851 = vshll.u32 %v581, 16
      %v853 = vrot.slane %v851, 1
      %v854 = vsel %vm583, %v849, %v853
      %v855 = vshrl.u32 %v581, 16
      %v857 = vor.u32 %v855, %v853
      %v858 = vrot.slane %v568, 1
      %v859 = vrot.slane %v581, 1
      %v860 = vsel %vm752, %v858, %v859
      %861 = vrot.lane.b32.xlu0 %v758, 32
      %v862 = vpop.permute.xlu0 %861
      %863 = vrot.lane.b32.xlu0 %v757, 32
      %v864 = vpop.permute.xlu0 %863
      %865 = vrot.lane.b32.xlu0 %v761, 32
      %v866 = vpop.permute.xlu0 %865
      %867 = vrot.lane.b32.xlu0 %v760, 32
      %v868 = vpop.permute.xlu0 %867
      %869 = vrot.lane.b32.xlu0 %v764, 32
      %v870 = vpop.permute.xlu0 %869
      %871 = vrot.lane.b32.xlu0 %v763, 32
      %v872 = vpop.permute.xlu0 %871
      %873 = vrot.lane.b32.xlu0 %v767, 32
      %v874 = vpop.permute.xlu0 %873
      %875 = vrot.lane.b32.xlu0 %v766, 32
      %v876 = vpop.permute.xlu0 %875
      %877 = vrot.lane.b32.xlu0 %v770, 32
      %v878 = vpop.permute.xlu0 %877
      %879 = vrot.lane.b32.xlu0 %v769, 32
      %v880 = vpop.permute.xlu0 %879
      %881 = vrot.lane.b32.xlu0 %v773, 32
      %v882 = vpop.permute.xlu0 %881
      %883 = vrot.lane.b32.xlu0 %v772, 32
      %v884 = vpop.permute.xlu0 %883
      %885 = vrot.lane.b32.xlu0 %v776, 32
      %v886 = vpop.permute.xlu0 %885
      %887 = vrot.lane.b32.xlu0 %v775, 32
      %v888 = vpop.permute.xlu0 %887
      %889 = vrot.lane.b32.xlu0 %v860, 32
      %v890 = vpop.permute.xlu0 %889
      %891 = vrot.lane.b32.xlu0 %v859, 32
      %v892 = vpop.permute.xlu0 %891
      %895 = vrot.lane.b32.xlu0 %v562, 64
      %v896 = vpop.permute.xlu0 %895
      %897 = vrot.lane.b32.xlu0 %v575, 64
      %v898 = vpop.permute.xlu0 %897
      %899 = vrot.lane.b32.xlu0 %v563, 64
      %v900 = vpop.permute.xlu0 %899
      %901 = vrot.lane.b32.xlu0 %v576, 64
      %v902 = vpop.permute.xlu0 %901
      %903 = vrot.lane.b32.xlu0 %v564, 64
      %v904 = vpop.permute.xlu0 %903
      %905 = vrot.lane.b32.xlu0 %v577, 64
      %v906 = vpop.permute.xlu0 %905
      %907 = vrot.lane.b32.xlu0 %v565, 64
      %v908 = vpop.permute.xlu0 %907
      %909 = vrot.lane.b32.xlu0 %v578, 64
      %v910 = vpop.permute.xlu0 %909
      %911 = vrot.lane.b32.xlu0 %v566, 64
      %v912 = vpop.permute.xlu0 %911
      %913 = vrot.lane.b32.xlu0 %v579, 64
      %v914 = vpop.permute.xlu0 %913
      %915 = vrot.lane.b32.xlu0 %v567, 64
      %v916 = vpop.permute.xlu0 %915
      %917 = vrot.lane.b32.xlu0 %v580, 64
      %v918 = vpop.permute.xlu0 %917
      %919 = vrot.lane.b32.xlu0 %v568, 64
      %v920 = vpop.permute.xlu0 %919
      %921 = vrot.lane.b32.xlu0 %v581, 64
      %v922 = vpop.permute.xlu0 %921
      %923 = vrot.lane.b32.xlu0 %v569, 64
      %v924 = vpop.permute.xlu0 %923
      %925 = vrot.lane.b32.xlu0 %v582, 64
      %v926 = vpop.permute.xlu0 %925
      %v928 = vshrl.u32 %v569, 16
      %v930 = vshll.u32 %v569, 16
      %v932 = vrot.slane %v930, 1
      %v933 = vor.u32 %v928, %v932
      %v935 = vshll.u32 %v582, 16
      %v937 = vrot.slane %v935, 1
      %v938 = vsel %vm583, %v933, %v937
      %v939 = vshrl.u32 %v582, 16
      %v941 = vor.u32 %v939, %v937
      %942 = vrot.lane.b32.xlu0 %v625, 96
      %v943 = vpop.permute.xlu0 %942
      %944 = vrot.lane.b32.xlu0 %v628, 96
      %v945 = vpop.permute.xlu0 %944
      %946 = vrot.lane.b32.xlu0 %v640, 96
      %v947 = vpop.permute.xlu0 %946
      %948 = vrot.lane.b32.xlu0 %v643, 96
      %v949 = vpop.permute.xlu0 %948
      %950 = vrot.lane.b32.xlu0 %v655, 96
      %v951 = vpop.permute.xlu0 %950
      %952 = vrot.lane.b32.xlu0 %v658, 96
      %v953 = vpop.permute.xlu0 %952
      %954 = vrot.lane.b32.xlu0 %v670, 96
      %v955 = vpop.permute.xlu0 %954
      %956 = vrot.lane.b32.xlu0 %v673, 96
      %v957 = vpop.permute.xlu0 %956
      %958 = vrot.lane.b32.xlu0 %v685, 96
      %v959 = vpop.permute.xlu0 %958
      %960 = vrot.lane.b32.xlu0 %v688, 96
      %v961 = vpop.permute.xlu0 %960
      %962 = vrot.lane.b32.xlu0 %v700, 96
      %v963 = vpop.permute.xlu0 %962
      %964 = vrot.lane.b32.xlu0 %v703, 96
      %v965 = vpop.permute.xlu0 %964
      %966 = vrot.lane.b32.xlu0 %v854, 96
      %v967 = vpop.permute.xlu0 %966
      %968 = vrot.lane.b32.xlu0 %v857, 96
      %v969 = vpop.permute.xlu0 %968
      %970 = vrot.lane.b32.xlu0 %v938, 96
      %v971 = vpop.permute.xlu0 %970
      %972 = vrot.lane.b32.xlu0 %v941, 96
      %v973 = vpop.permute.xlu0 %972
      %v974 = vrot.slane %v569, 1
      %v975 = vrot.slane %v582, 1
      %v976 = vsel %vm752, %v974, %v975
      %vm977 = vcmask 261120
      %v979 = vsel %vm977, %v560, %v705
      %v981 = vsel %vm977, %v573, %v707
      %v983 = vsel %vm977, %v561, %v709
      %v985 = vsel %vm977, %v574, %v711
      %v987 = vsel %vm977, %v562, %v713
      %v989 = vsel %vm977, %v575, %v715
      %v991 = vsel %vm977, %v563, %v717
      %v993 = vsel %vm977, %v576, %v719
      %v995 = vsel %vm977, %v564, %v721
      %v997 = vsel %vm977, %v577, %v723
      %v999 = vsel %vm977, %v565, %v725
      %v1001 = vsel %vm977, %v578, %v727
      %v1003 = vsel %vm977, %v566, %v729
      %v1005 = vsel %vm977, %v579, %v731
      %v1007 = vsel %vm977, %v567, %v733
      %v1009 = vsel %vm977, %v580, %v735
      %vm1010 = vcmask 523264
      %v1012 = vsel %vm1010, %v979, %v778
      %v1014 = vsel %vm1010, %v981, %v780
      %v1016 = vsel %vm1010, %v983, %v782
      %v1018 = vsel %vm1010, %v985, %v784
      %v1020 = vsel %vm1010, %v987, %v786
      %v1022 = vsel %vm1010, %v989, %v788
      %v1024 = vsel %vm1010, %v991, %v790
      %v1026 = vsel %vm1010, %v993, %v792
      %v1028 = vsel %vm1010, %v995, %v794
      %v1030 = vsel %vm1010, %v997, %v796
      %v1032 = vsel %vm1010, %v999, %v798
      %v1034 = vsel %vm1010, %v1001, %v800
      %v1036 = vsel %vm1010, %v1003, %v802
      %v1038 = vsel %vm1010, %v1005, %v804
      %v1040 = vsel %vm1010, %v1007, %v806
      %v1042 = vsel %vm1010, %v1009, %v808
      %vm1043 = vcmask 785408
      %v1045 = vsel %vm1043, %v1012, %v812
      %v1047 = vsel %vm1043, %v1014, %v814
      %v1049 = vsel %vm1043, %v1016, %v816
      %v1051 = vsel %vm1043, %v1018, %v818
      %v1053 = vsel %vm1043, %v1020, %v820
      %v1055 = vsel %vm1043, %v1022, %v822
      %v1057 = vsel %vm1043, %v1024, %v824
      %v1059 = vsel %vm1043, %v1026, %v826
      %v1061 = vsel %vm1043, %v1028, %v828
      %v1063 = vsel %vm1043, %v1030, %v830
      %v1065 = vsel %vm1043, %v1032, %v832
      %v1067 = vsel %vm1043, %v1034, %v834
      %v1069 = vsel %vm1043, %v1036, %v836
      %v1071 = vsel %vm1043, %v1038, %v838
      %v1073 = vsel %vm1043, %v1040, %v840
      %v1075 = vsel %vm1043, %v1042, %v842
      %v1078 = vsel %vm977, %v610, %v862
      %v1081 = vsel %vm977, %v613, %v864
      %v1084 = vsel %vm977, %v625, %v866
      %v1087 = vsel %vm977, %v628, %v868
      %v1090 = vsel %vm977, %v640, %v870
      %v1093 = vsel %vm977, %v643, %v872
      %v1096 = vsel %vm977, %v655, %v874
      %v1099 = vsel %vm977, %v658, %v876
      %v1102 = vsel %vm977, %v670, %v878
      %v1105 = vsel %vm977, %v673, %v880
      %v1108 = vsel %vm977, %v685, %v882
      %v1111 = vsel %vm977, %v688, %v884
      %v1114 = vsel %vm977, %v700, %v886
      %v1117 = vsel %vm977, %v703, %v888
      %v1120 = vsel %vm977, %v854, %v890
      %v1123 = vsel %vm977, %v857, %v892
      %v1125 = vsel %vm1010, %v1078, %v896
      %v1127 = vsel %vm1010, %v1081, %v898
      %v1129 = vsel %vm1010, %v1084, %v900
      %v1131 = vsel %vm1010, %v1087, %v902
      %v1133 = vsel %vm1010, %v1090, %v904
      %v1135 = vsel %vm1010, %v1093, %v906
      %v1137 = vsel %vm1010, %v1096, %v908
      %v1139 = vsel %vm1010, %v1099, %v910
      %v1141 = vsel %vm1010, %v1102, %v912
      %v1143 = vsel %vm1010, %v1105, %v914
      %v1145 = vsel %vm1010, %v1108, %v916
      %v1147 = vsel %vm1010, %v1111, %v918
      %v1149 = vsel %vm1010, %v1114, %v920
      %v1151 = vsel %vm1010, %v1117, %v922
      %v1153 = vsel %vm1010, %v1120, %v924
      %v1155 = vsel %vm1010, %v1123, %v926
      %v1157 = vsel %vm1043, %v1125, %v943
      %v1159 = vsel %vm1043, %v1127, %v945
      %v1161 = vsel %vm1043, %v1129, %v947
      %v1163 = vsel %vm1043, %v1131, %v949
      %v1165 = vsel %vm1043, %v1133, %v951
      %v1167 = vsel %vm1043, %v1135, %v953
      %v1169 = vsel %vm1043, %v1137, %v955
      %v1171 = vsel %vm1043, %v1139, %v957
      %v1173 = vsel %vm1043, %v1141, %v959
      %v1175 = vsel %vm1043, %v1143, %v961
      %v1177 = vsel %vm1043, %v1145, %v963
      %v1179 = vsel %vm1043, %v1147, %v965
      %v1181 = vsel %vm1043, %v1149, %v967
      %v1183 = vsel %vm1043, %v1151, %v969
      %v1185 = vsel %vm1043, %v1153, %v971
      %v1187 = vsel %vm1043, %v1155, %v973
      %v1220 = vunpack.c.l.b16 %v1045
      %v1221 = vunpack.c.l.b16 %v1157
      %v1222 = vunpack.c.l.b16 %v761
      %v1223 = vunpack.c.h.b16 %v1045
      %v1224 = vunpack.c.h.b16 %v1157
      %v1225 = vunpack.c.h.b16 %v761
      %v1226 = vunpack.c.l.b16 %v1047
      %v1227 = vunpack.c.l.b16 %v1159
      %v1228 = vunpack.c.l.b16 %v760
      %v1229 = vunpack.c.l.b16 %v1049
      %v1230 = vunpack.c.l.b16 %v1161
      %v1231 = vunpack.c.l.b16 %v764
      %v1232 = vunpack.c.h.b16 %v1049
      %v1233 = vunpack.c.h.b16 %v1161
      %v1234 = vunpack.c.h.b16 %v764
      %v1235 = vunpack.c.l.b16 %v1051
      %v1236 = vunpack.c.l.b16 %v1163
      %v1237 = vunpack.c.l.b16 %v763
      %v1238 = vunpack.c.l.b16 %v1053
      %v1239 = vunpack.c.l.b16 %v1165
      %v1240 = vunpack.c.l.b16 %v767
      %v1241 = vunpack.c.h.b16 %v1053
      %v1242 = vunpack.c.h.b16 %v1165
      %v1243 = vunpack.c.h.b16 %v767
      %v1244 = vunpack.c.l.b16 %v1055
      %v1245 = vunpack.c.l.b16 %v1167
      %v1246 = vunpack.c.l.b16 %v766
      %v1247 = vunpack.c.l.b16 %v1057
      %v1248 = vunpack.c.l.b16 %v1169
      %v1249 = vunpack.c.l.b16 %v770
      %v1250 = vunpack.c.h.b16 %v1057
      %v1251 = vunpack.c.h.b16 %v1169
      %v1252 = vunpack.c.h.b16 %v770
      %v1253 = vunpack.c.l.b16 %v1059
      %v1254 = vunpack.c.l.b16 %v1171
      %v1255 = vunpack.c.l.b16 %v769
      %v1256 = vunpack.c.l.b16 %v1061
      %v1257 = vunpack.c.l.b16 %v1173
      %v1258 = vunpack.c.l.b16 %v773
      %v1259 = vunpack.c.h.b16 %v1061
      %v1260 = vunpack.c.h.b16 %v1173
      %v1261 = vunpack.c.h.b16 %v773
      %v1262 = vunpack.c.l.b16 %v1063
      %v1263 = vunpack.c.l.b16 %v1175
      %v1264 = vunpack.c.l.b16 %v772
      %v1265 = vunpack.c.l.b16 %v1065
      %v1266 = vunpack.c.l.b16 %v1177
      %v1267 = vunpack.c.l.b16 %v776
      %v1268 = vunpack.c.h.b16 %v1065
      %v1269 = vunpack.c.h.b16 %v1177
      %v1270 = vunpack.c.h.b16 %v776
      %v1271 = vunpack.c.l.b16 %v1067
      %v1272 = vunpack.c.l.b16 %v1179
      %v1273 = vunpack.c.l.b16 %v775
      %v1274 = vunpack.c.l.b16 %v1069
      %v1275 = vunpack.c.l.b16 %v1181
      %v1276 = vunpack.c.l.b16 %v860
      %v1277 = vunpack.c.h.b16 %v1069
      %v1278 = vunpack.c.h.b16 %v1181
      %v1279 = vunpack.c.h.b16 %v860
      %v1280 = vunpack.c.l.b16 %v1071
      %v1281 = vunpack.c.l.b16 %v1183
      %v1282 = vunpack.c.l.b16 %v859
      %v1283 = vunpack.c.l.b16 %v1073
      %v1284 = vunpack.c.l.b16 %v1185
      %v1285 = vunpack.c.l.b16 %v976
      %v1286 = vunpack.c.h.b16 %v1073
      %v1287 = vunpack.c.h.b16 %v1185
      %v1288 = vunpack.c.h.b16 %v976
      %v1289 = vunpack.c.l.b16 %v1075
      %v1290 = vunpack.c.l.b16 %v1187
      %v1291 = vunpack.c.l.b16 %v975
      %v1292 = vld [vmem:[%s2] sm:$0xf]
      %v1293 = vld [vmem:[%s2 + $0x4] sm:$0xf]
      %v1294 = vld [vmem:[%s2 + $0x8] sm:$0xf]
      %v1295 = vld [vmem:[%s2 + $0xc] sm:$0xf]
      %v1296 = vld [vmem:[%s2 + $0x10] sm:$0xf]
      %v1297 = vld [vmem:[%s2 + $0x14] sm:$0xf]
      %v1298 = vld [vmem:[%s2 + $0x18] sm:$0xf]
      %v1299 = vld [vmem:[%s2 + $0x1c] sm:$0xf]
      %v1300 = vld [vmem:[%s2 + $0x20] sm:$0xf]
      %v1301 = vld [vmem:[%s2 + $0x24] sm:$0xf]
      %v1302 = vld [vmem:[%s2 + $0x28] sm:$0xf]
      %v1303 = vld [vmem:[%s2 + $0x2c] sm:$0xf]
      %v1304 = vld [vmem:[%s2 + $0x30] sm:$0xf]
      %v1305 = vld [vmem:[%s2 + $0x34] sm:$0xf]
      %v1306 = vld [vmem:[%s2 + $0x38] sm:$0xf]
      %v1307 = vld [vmem:[%s2 + $0x3c] sm:$0xf]
      %v1308 = vld [vmem:[%s2 + $0x40] sm:$0xf]
      %v1309 = vld [vmem:[%s2 + $0x44] sm:$0xf]
      %v1310 = vld [vmem:[%s2 + $0x48] sm:$0xf]
      %v1311 = vld [vmem:[%s2 + $0x4c] sm:$0xf]
      %v1312 = vld [vmem:[%s2 + $0x50] sm:$0xf]
      %v1313 = vld [vmem:[%s2 + $0x54] sm:$0xf]
      %v1314 = vld [vmem:[%s2 + $0x58] sm:$0xf]
      %v1315 = vld [vmem:[%s2 + $0x5c] sm:$0xf]
      %v1316 = vld [vmem:[%s2 + $0x60] sm:$0xf]
      %v1317 = vld [vmem:[%s2 + $0x64] sm:$0xf]
      %v1318 = vld [vmem:[%s2 + $0x68] sm:$0xf]
      %v1319 = vld [vmem:[%s2 + $0x6c] sm:$0xf]
      %v1320 = vld [vmem:[%s2 + $0x70] sm:$0xf]
      %v1321 = vld [vmem:[%s2 + $0x74] sm:$0xf]
      %v1322 = vld [vmem:[%s2 + $0x78] sm:$0xf]
      %v1323 = vld [vmem:[%s2 + $0x7c] sm:$0xf]
      %v1324 = vld [vmem:[%s2 + $0x80] sm:$0xf]
      %v1325 = vld [vmem:[%s2 + $0x84] sm:$0xf]
      %v1326 = vld [vmem:[%s2 + $0x88] sm:$0xf]
      %v1327 = vld [vmem:[%s2 + $0x8c] sm:$0xf]
      %v1328 = vld [vmem:[%s3] sm:$0x1]
      %v1330 = vlaneseq
      %v1331 = vshrl.u32 %v1330, 7
      %v1332 = vsub.s32 0, %v1331
      %v1333 = vrot.slane %v1328, %v1332
      %v1335 = vpack.c.b16 %v1223, %v1220
      %v1336 = vpack.c.b16 %v1224, %v1221
      %v1337 = vpack.c.b16 %v1225, %v1222
      %v1338 = vpack.c.b16 %v1229, %v1226
      %v1339 = vpack.c.b16 %v1230, %v1227
      %v1340 = vpack.c.b16 %v1231, %v1228
      %v1341 = vpack.c.b16 %v1235, %v1232
      %v1342 = vpack.c.b16 %v1236, %v1233
      %v1343 = vpack.c.b16 %v1237, %v1234
      %v1344 = vpack.c.b16 %v1241, %v1238
      %v1345 = vpack.c.b16 %v1242, %v1239
      %v1346 = vpack.c.b16 %v1243, %v1240
      %v1347 = vpack.c.b16 %v1247, %v1244
      %v1348 = vpack.c.b16 %v1248, %v1245
      %v1349 = vpack.c.b16 %v1249, %v1246
      %v1350 = vpack.c.b16 %v1253, %v1250
      %v1351 = vpack.c.b16 %v1254, %v1251
      %v1352 = vpack.c.b16 %v1255, %v1252
      %v1353 = vpack.c.b16 %v1259, %v1256
      %v1354 = vpack.c.b16 %v1260, %v1257
      %v1355 = vpack.c.b16 %v1261, %v1258
      %v1356 = vpack.c.b16 %v1265, %v1262
      %v1357 = vpack.c.b16 %v1266, %v1263
      %v1358 = vpack.c.b16 %v1267, %v1264
      %v1359 = vpack.c.b16 %v1271, %v1268
      %v1360 = vpack.c.b16 %v1272, %v1269
      %v1361 = vpack.c.b16 %v1273, %v1270
      %v1362 = vpack.c.b16 %v1277, %v1274
      %v1363 = vpack.c.b16 %v1278, %v1275
      %v1364 = vpack.c.b16 %v1279, %v1276
      %v1365 = vpack.c.b16 %v1283, %v1280
      %v1366 = vpack.c.b16 %v1284, %v1281
      %v1367 = vpack.c.b16 %v1285, %v1282
      %v1368 = vpack.c.b16 %v1289, %v1286
      %v1369 = vpack.c.b16 %v1290, %v1287
      %v1370 = vpack.c.b16 %v1291, %v1288
      %v1431 = vunpack.c.l.b16 %v1292
      %v1432 = vunpack.c.l.b16 %v1293
      %v1433 = vunpack.c.l.b16 %v1294
      %v1434 = vunpack.c.l.b16 %v1295
      %v1435 = vunpack.c.l.b16 %v1296
      %v1436 = vunpack.c.l.b16 %v1297
      %v1437 = vunpack.c.l.b16 %v1298
      %v1438 = vunpack.c.l.b16 %v1299
      %v1439 = vunpack.c.l.b16 %v1300
      %v1440 = vunpack.c.l.b16 %v1301
      %v1441 = vunpack.c.l.b16 %v1302
      %v1442 = vunpack.c.l.b16 %v1303
      %v1443 = vunpack.c.l.b16 %v1304
      %v1444 = vunpack.c.l.b16 %v1305
      %v1445 = vunpack.c.l.b16 %v1306
      %v1446 = vunpack.c.l.b16 %v1307
      %v1447 = vunpack.c.l.b16 %v1308
      %v1448 = vunpack.c.l.b16 %v1309
      %v1449 = vunpack.c.l.b16 %v1310
      %v1450 = vunpack.c.l.b16 %v1311
      %v1451 = vunpack.c.l.b16 %v1312
      %v1452 = vunpack.c.l.b16 %v1313
      %v1453 = vunpack.c.l.b16 %v1314
      %v1454 = vunpack.c.l.b16 %v1315
      %v1455 = vunpack.c.l.b16 %v1316
      %v1456 = vunpack.c.l.b16 %v1317
      %v1457 = vunpack.c.l.b16 %v1318
      %v1458 = vunpack.c.l.b16 %v1319
      %v1459 = vunpack.c.l.b16 %v1320
      %v1460 = vunpack.c.l.b16 %v1321
      %v1461 = vunpack.c.l.b16 %v1322
      %v1462 = vunpack.c.l.b16 %v1323
      %v1463 = vunpack.c.l.b16 %v1324
      %v1464 = vunpack.c.l.b16 %v1325
      %v1465 = vunpack.c.l.b16 %v1326
      %v1466 = vunpack.c.l.b16 %v1327
      %v1467 = vpack.c.b16 %v1432, %v1431
      %v1468 = vpack.c.b16 %v1434, %v1433
      %v1469 = vpack.c.b16 %v1436, %v1435
      %v1470 = vpack.c.b16 %v1438, %v1437
      %v1471 = vpack.c.b16 %v1440, %v1439
      %v1472 = vpack.c.b16 %v1442, %v1441
      %v1473 = vpack.c.b16 %v1444, %v1443
      %v1474 = vpack.c.b16 %v1446, %v1445
      %v1475 = vpack.c.b16 %v1448, %v1447
      %v1476 = vpack.c.b16 %v1450, %v1449
      %v1477 = vpack.c.b16 %v1452, %v1451
      %v1478 = vpack.c.b16 %v1454, %v1453
      %v1479 = vpack.c.b16 %v1456, %v1455
      %v1480 = vpack.c.b16 %v1458, %v1457
      %v1481 = vpack.c.b16 %v1460, %v1459
      %v1482 = vpack.c.b16 %v1462, %v1461
      %v1483 = vpack.c.b16 %v1464, %v1463
      %v1484 = vpack.c.b16 %v1466, %v1465
      %v1504 = vsel %vm977, %v1337, 0
      %v1507 = vsel %vm977, %v1340, 0
      %v1510 = vsel %vm977, %v1343, 0
      %v1513 = vsel %vm977, %v1346, 0
      %v1516 = vsel %vm977, %v1349, 0
      %v1519 = vsel %vm977, %v1352, 0
      %v1522 = vsel %vm977, %v1355, 0
      %v1525 = vsel %vm977, %v1358, 0
      %v1528 = vsel %vm977, %v1361, 0
      %v1531 = vsel %vm977, %v1364, 0
      %v1534 = vsel %vm977, %v1367, 0
      %v1537 = vsel %vm977, %v1370, 0
      %1539 = vmatprep.subr.bf16.mxu0 0
      %1540 = vmatpush1.bf16.msra.mxu0 %v1467
      %1541 = vmatprep.subr.bf16.mxu0 0
      %1542 = vmatpush1.bf16.msra.mxu0 %v1468
      %1543 = vmatprep.subr.bf16.mxu0 0
      %1544 = vmatpush1.bf16.msra.mxu0 %v1469
      %1545 = vmatprep.subr.bf16.mxu0 0
      %1546 = vmatpush1.bf16.msra.mxu0 %v1470
      %1547 = vmatprep.subr.bf16.mxu0 0
      %1548 = vmatpush1.bf16.msra.mxu0 %v1471
      %1549 = vmatprep.subr.bf16.mxu0 0
      %1550 = vmatpush1.bf16.msra.mxu0 %v1472
      %1551 = vmatprep.subr.bf16.mxu0 0
      %1552 = vmatpush1.bf16.msra.mxu0 %v1473
      %1553 = vmatprep.subr.bf16.mxu0 0
      %1554 = vmatpush1.bf16.msra.mxu0 %v1474
      %1555 = vmatprep.subr.bf16.mxu0 0
      %1556 = vmatpush1.bf16.msra.mxu0 %v1475
      %1557 = vmatprep.subr.bf16.mxu0 0
      %1558 = vmatpush1.bf16.msra.mxu0 %v1476
      %1559 = vmatprep.subr.bf16.mxu0 0
      %1560 = vmatpush1.bf16.msra.mxu0 %v1477
      %1561 = vmatprep.subr.bf16.mxu0 0
      %1562 = vmatpush1.bf16.msra.mxu0 %v1478
      %1563 = vmatprep.subr.bf16.mxu0 0
      %1564 = vmatpush1.bf16.msra.mxu0 %v1479
      %1565 = vmatprep.subr.bf16.mxu0 0
      %1566 = vmatpush1.bf16.msra.mxu0 %v1480
      %1567 = vmatprep.subr.bf16.mxu0 0
      %1568 = vmatpush1.bf16.msra.mxu0 %v1481
      %1569 = vmatprep.subr.bf16.mxu0 0
      %1570 = vmatpush1.bf16.msra.mxu0 %v1482
      %1571 = vmatprep.mubr.bf16.mxu0 %v1336
      %1572 = vmatmul.mubr.bf16.gmra.mrb[0].mxu0 %v1335
      %v1573 = vpop.f32.mrb[0].mxu0
      %v1574 = vadd.f32 %v1333, %v1573
      %v1575 = vpop.f32.mrb[0].mxu0
      %v1576 = vpop.f32.mrb[0].mxu0
      %v1577 = vadd.f32 %v1333, %v1576
      %v1578 = vpop.f32.mrb[0].mxu0
      %1579 = vmatprep.mubr.bf16.mxu0 %v1339
      %1580 = vmatmul.mubr.bf16.gmra.mrb[0].mxu0 %v1338
      %v1581 = vpop.f32.mrb[0].mxu0
      %v1582 = vadd.f32 %v1333, %v1581
      %v1583 = vpop.f32.mrb[0].mxu0
      %v1584 = vpop.f32.mrb[0].mxu0
      %v1585 = vadd.f32 %v1333, %v1584
      %v1586 = vpop.f32.mrb[0].mxu0
      %1587 = vmatprep.mubr.bf16.mxu0 %v1342
      %1588 = vmatmul.mubr.bf16.gmra.mrb[0].mxu0 %v1341
      %v1589 = vpop.f32.mrb[0].mxu0
      %v1590 = vadd.f32 %v1333, %v1589
      %v1591 = vpop.f32.mrb[0].mxu0
      %v1592 = vpop.f32.mrb[0].mxu0
      %v1593 = vadd.f32 %v1333, %v1592
      %v1594 = vpop.f32.mrb[0].mxu0
      %1595 = vmatprep.mubr.bf16.mxu0 %v1345
      %1596 = vmatmul.mubr.bf16.gmra.mrb[0].mxu0 %v1344
      %v1597 = vpop.f32.mrb[0].mxu0
      %v1598 = vadd.f32 %v1333, %v1597
      %v1599 = vpop.f32.mrb[0].mxu0
      %v1600 = vpop.f32.mrb[0].mxu0
      %v1601 = vadd.f32 %v1333, %v1600
      %v1602 = vpop.f32.mrb[0].mxu0
      %1603 = vmatprep.mubr.bf16.mxu0 %v1348
      %1604 = vmatmul.mubr.bf16.gmra.mrb[0].mxu0 %v1347
      %v1605 = vpop.f32.mrb[0].mxu0
      %v1606 = vadd.f32 %v1333, %v1605
      %v1607 = vpop.f32.mrb[0].mxu0
      %v1608 = vpop.f32.mrb[0].mxu0
      %v1609 = vadd.f32 %v1333, %v1608
      %v1610 = vpop.f32.mrb[0].mxu0
      %1611 = vmatprep.mubr.bf16.mxu0 %v1351
      %1612 = vmatmul.mubr.bf16.gmra.mrb[0].mxu0 %v1350
      %v1613 = vpop.f32.mrb[0].mxu0
      %v1614 = vadd.f32 %v1333, %v1613
      %v1615 = vpop.f32.mrb[0].mxu0
      %v1616 = vpop.f32.mrb[0].mxu0
      %v1617 = vadd.f32 %v1333, %v1616
      %v1618 = vpop.f32.mrb[0].mxu0
      %1619 = vmatprep.mubr.bf16.mxu0 %v1354
      %1620 = vmatmul.mubr.bf16.gmra.mrb[0].mxu0 %v1353
      %v1621 = vpop.f32.mrb[0].mxu0
      %v1622 = vadd.f32 %v1333, %v1621
      %v1623 = vpop.f32.mrb[0].mxu0
      %v1624 = vpop.f32.mrb[0].mxu0
      %v1625 = vadd.f32 %v1333, %v1624
      %v1626 = vpop.f32.mrb[0].mxu0
      %1627 = vmatprep.mubr.bf16.mxu0 %v1357
      %1628 = vmatmul.mubr.bf16.gmra.mrb[0].mxu0 %v1356
      %v1629 = vpop.f32.mrb[0].mxu0
      %v1630 = vadd.f32 %v1333, %v1629
      %v1631 = vpop.f32.mrb[0].mxu0
      %v1632 = vpop.f32.mrb[0].mxu0
      %v1633 = vadd.f32 %v1333, %v1632
      %v1634 = vpop.f32.mrb[0].mxu0
      %1635 = vmatprep.mubr.bf16.mxu0 %v1360
      %1636 = vmatmul.mubr.bf16.gmra.mrb[0].mxu0 %v1359
      %v1637 = vpop.f32.mrb[0].mxu0
      %v1638 = vadd.f32 %v1333, %v1637
      %v1639 = vpop.f32.mrb[0].mxu0
      %v1640 = vpop.f32.mrb[0].mxu0
      %v1641 = vadd.f32 %v1333, %v1640
      %v1642 = vpop.f32.mrb[0].mxu0
      %1643 = vmatprep.mubr.bf16.mxu0 %v1363
      %1644 = vmatmul.mubr.bf16.gmra.mrb[0].mxu0 %v1362
      %v1645 = vpop.f32.mrb[0].mxu0
      %v1646 = vadd.f32 %v1333, %v1645
      %v1647 = vpop.f32.mrb[0].mxu0
      %v1648 = vpop.f32.mrb[0].mxu0
      %v1649 = vadd.f32 %v1333, %v1648
      %v1650 = vpop.f32.mrb[0].mxu0
      %1651 = vmatprep.mubr.bf16.mxu0 %v1366
      %1652 = vmatmul.mubr.bf16.gmra.mrb[0].mxu0 %v1365
      %v1653 = vpop.f32.mrb[0].mxu0
      %v1654 = vadd.f32 %v1333, %v1653
      %v1655 = vpop.f32.mrb[0].mxu0
      %v1656 = vpop.f32.mrb[0].mxu0
      %v1657 = vadd.f32 %v1333, %v1656
      %v1658 = vpop.f32.mrb[0].mxu0
      %1659 = vmatprep.mubr.bf16.mxu0 %v1369
      %1660 = vmatmul.mubr.bf16.gmra.mrb[0].mxu0 %v1368
      %v1661 = vpop.f32.mrb[0].mxu0
      %v1662 = vadd.f32 %v1333, %v1661
      %v1663 = vpop.f32.mrb[0].mxu0
      %v1664 = vpop.f32.mrb[0].mxu0
      %v1665 = vadd.f32 %v1333, %v1664
      %v1666 = vpop.f32.mrb[0].mxu0
      %1667 = vdwg.mxu0
      %1668 = vmatprep.subr.bf16.mxu0 0
      %1669 = vmatpush1.bf16.msra.mxu0 %v1483
      %1670 = vmatprep.subr.bf16.mxu0 0
      %1671 = vmatpush1.bf16.msra.mxu0 %v1484
      %1672 = vmatprep.subr.bf16.mxu0 0
      %1673 = vmatpush1.bf16.msra.mxu0 0
      %1674 = vmatprep.subr.bf16.mxu0 0
      %1675 = vmatpush1.bf16.msra.mxu0 0
      %1676 = vmatprep.subr.bf16.mxu0 0
      %1677 = vmatpush1.bf16.msra.mxu0 0
      %1678 = vmatprep.subr.bf16.mxu0 0
      %1679 = vmatpush1.bf16.msra.mxu0 0
      %1680 = vmatprep.subr.bf16.mxu0 0
      %1681 = vmatpush1.bf16.msra.mxu0 0
      %1682 = vmatprep.subr.bf16.mxu0 0
      %1683 = vmatpush1.bf16.msra.mxu0 0
      %1684 = vmatprep.subr.bf16.mxu0 0
      %1685 = vmatpush1.bf16.msra.mxu0 0
      %1686 = vmatprep.subr.bf16.mxu0 0
      %1687 = vmatpush1.bf16.msra.mxu0 0
      %1688 = vmatprep.subr.bf16.mxu0 0
      %1689 = vmatpush1.bf16.msra.mxu0 0
      %1690 = vmatprep.subr.bf16.mxu0 0
      %1691 = vmatpush1.bf16.msra.mxu0 0
      %1692 = vmatprep.subr.bf16.mxu0 0
      %1693 = vmatpush1.bf16.msra.mxu0 0
      %1694 = vmatprep.subr.bf16.mxu0 0
      %1695 = vmatpush1.bf16.msra.mxu0 0
      %1696 = vmatprep.subr.bf16.mxu0 0
      %1697 = vmatpush1.bf16.msra.mxu0 0
      %1698 = vmatprep.subr.bf16.mxu0 0
      %1699 = vmatpush1.bf16.msra.mxu0 0
      %1700 = vmatprep.mubr.bf16.mxu0 0
      %1701 = vmatmul.mubr.bf16.gmra.mrb[0].mxu0 %v1504
      %v1702 = vpop.f32.mrb[0].mxu0
      %v1703 = vadd.f32 %v1574, %v1702
      %v1704 = vpop.f32.mrb[0].mxu0
      %v1705 = vpop.f32.mrb[0].mxu0
      %v1706 = vadd.f32 %v1577, %v1705
      %v1707 = vpop.f32.mrb[0].mxu0
      %1708 = vmatprep.mubr.bf16.mxu0 0
      %1709 = vmatmul.mubr.bf16.gmra.mrb[0].mxu0 %v1507
      %v1710 = vpop.f32.mrb[0].mxu0
      %v1711 = vadd.f32 %v1582, %v1710
      %v1712 = vpop.f32.mrb[0].mxu0
      %v1713 = vpop.f32.mrb[0].mxu0
      %v1714 = vadd.f32 %v1585, %v1713
      %v1715 = vpop.f32.mrb[0].mxu0
      %1716 = vmatprep.mubr.bf16.mxu0 0
      %1717 = vmatmul.mubr.bf16.gmra.mrb[0].mxu0 %v1510
      %v1718 = vpop.f32.mrb[0].mxu0
      %v1719 = vadd.f32 %v1590, %v1718
      %v1720 = vpop.f32.mrb[0].mxu0
      %v1721 = vpop.f32.mrb[0].mxu0
      %v1722 = vadd.f32 %v1593, %v1721
      %v1723 = vpop.f32.mrb[0].mxu0
      %1724 = vmatprep.mubr.bf16.mxu0 0
      %1725 = vmatmul.mubr.bf16.gmra.mrb[0].mxu0 %v1513
      %v1726 = vpop.f32.mrb[0].mxu0
      %v1727 = vadd.f32 %v1598, %v1726
      %v1728 = vpop.f32.mrb[0].mxu0
      %v1729 = vpop.f32.mrb[0].mxu0
      %v1730 = vadd.f32 %v1601, %v1729
      %v1731 = vpop.f32.mrb[0].mxu0
      %1732 = vmatprep.mubr.bf16.mxu0 0
      %1733 = vmatmul.mubr.bf16.gmra.mrb[0].mxu0 %v1516
      %v1734 = vpop.f32.mrb[0].mxu0
      %v1735 = vadd.f32 %v1606, %v1734
      %v1736 = vpop.f32.mrb[0].mxu0
      %v1737 = vpop.f32.mrb[0].mxu0
      %v1738 = vadd.f32 %v1609, %v1737
      %v1739 = vpop.f32.mrb[0].mxu0
      %1740 = vmatprep.mubr.bf16.mxu0 0
      %1741 = vmatmul.mubr.bf16.gmra.mrb[0].mxu0 %v1519
      %v1742 = vpop.f32.mrb[0].mxu0
      %v1743 = vadd.f32 %v1614, %v1742
      %v1744 = vpop.f32.mrb[0].mxu0
      %v1745 = vpop.f32.mrb[0].mxu0
      %v1746 = vadd.f32 %v1617, %v1745
      %v1747 = vpop.f32.mrb[0].mxu0
      %1748 = vmatprep.mubr.bf16.mxu0 0
      %1749 = vmatmul.mubr.bf16.gmra.mrb[0].mxu0 %v1522
      %v1750 = vpop.f32.mrb[0].mxu0
      %v1751 = vadd.f32 %v1622, %v1750
      %v1752 = vpop.f32.mrb[0].mxu0
      %v1753 = vpop.f32.mrb[0].mxu0
      %v1754 = vadd.f32 %v1625, %v1753
      %v1755 = vpop.f32.mrb[0].mxu0
      %1756 = vmatprep.mubr.bf16.mxu0 0
      %1757 = vmatmul.mubr.bf16.gmra.mrb[0].mxu0 %v1525
      %v1758 = vpop.f32.mrb[0].mxu0
      %v1759 = vadd.f32 %v1630, %v1758
      %v1760 = vpop.f32.mrb[0].mxu0
      %v1761 = vpop.f32.mrb[0].mxu0
      %v1762 = vadd.f32 %v1633, %v1761
      %v1763 = vpop.f32.mrb[0].mxu0
      %1764 = vmatprep.mubr.bf16.mxu0 0
      %1765 = vmatmul.mubr.bf16.gmra.mrb[0].mxu0 %v1528
      %v1766 = vpop.f32.mrb[0].mxu0
      %v1767 = vadd.f32 %v1638, %v1766
      %v1768 = vpop.f32.mrb[0].mxu0
      %v1769 = vpop.f32.mrb[0].mxu0
      %v1770 = vadd.f32 %v1641, %v1769
      %v1771 = vpop.f32.mrb[0].mxu0
      %1772 = vmatprep.mubr.bf16.mxu0 0
      %1773 = vmatmul.mubr.bf16.gmra.mrb[0].mxu0 %v1531
      %v1774 = vpop.f32.mrb[0].mxu0
      %v1775 = vadd.f32 %v1646, %v1774
      %v1776 = vpop.f32.mrb[0].mxu0
      %v1777 = vpop.f32.mrb[0].mxu0
      %v1778 = vadd.f32 %v1649, %v1777
      %v1779 = vpop.f32.mrb[0].mxu0
      %1780 = vmatprep.mubr.bf16.mxu0 0
      %1781 = vmatmul.mubr.bf16.gmra.mrb[0].mxu0 %v1534
      %v1782 = vpop.f32.mrb[0].mxu0
      %v1783 = vadd.f32 %v1654, %v1782
      %v1784 = vpop.f32.mrb[0].mxu0
      %v1785 = vpop.f32.mrb[0].mxu0
      %v1786 = vadd.f32 %v1657, %v1785
      %v1787 = vpop.f32.mrb[0].mxu0
      %1788 = vmatprep.mubr.bf16.mxu0 0
      %1789 = vmatmul.mubr.bf16.gmra.mrb[0].mxu0 %v1537
      %v1790 = vpop.f32.mrb[0].mxu0
      %v1791 = vadd.f32 %v1662, %v1790
      %v1792 = vpop.f32.mrb[0].mxu0
      %v1793 = vpop.f32.mrb[0].mxu0
      %v1794 = vadd.f32 %v1665, %v1793
      %v1795 = vpop.f32.mrb[0].mxu0
      %1796 = vdwg.mxu0
      %vm1797 = vcmask 97280
      %1798 = vst.msk [vmem:[%s274] sm:$0xff] %vm1797, %v1703
      %1799 = vst.msk [vmem:[%s274 + $0x8] sm:$0xff] %vm1797, %v1706
      %1800 = vst.msk [vmem:[%s274 + $0x10] sm:$0xff] %vm1797, %v1711
      %1801 = vst.msk [vmem:[%s274 + $0x18] sm:$0xff] %vm1797, %v1714
      %1802 = vst.msk [vmem:[%s274 + $0x20] sm:$0xff] %vm1797, %v1719
      %1803 = vst.msk [vmem:[%s274 + $0x28] sm:$0xff] %vm1797, %v1722
      %1804 = vst.msk [vmem:[%s274 + $0x30] sm:$0xff] %vm1797, %v1727
      %1805 = vst.msk [vmem:[%s274 + $0x38] sm:$0xff] %vm1797, %v1730
      %1806 = vst.msk [vmem:[%s274 + $0x40] sm:$0xff] %vm1797, %v1735
      %1807 = vst.msk [vmem:[%s274 + $0x48] sm:$0xff] %vm1797, %v1738
      %1808 = vst.msk [vmem:[%s274 + $0x50] sm:$0xff] %vm1797, %v1743
      %1809 = vst.msk [vmem:[%s274 + $0x58] sm:$0xff] %vm1797, %v1746
      %1810 = vst.msk [vmem:[%s274 + $0x60] sm:$0xff] %vm1797, %v1751
      %1811 = vst.msk [vmem:[%s274 + $0x68] sm:$0xff] %vm1797, %v1754
      %1812 = vst.msk [vmem:[%s274 + $0x70] sm:$0xff] %vm1797, %v1759
      %1813 = vst.msk [vmem:[%s274 + $0x78] sm:$0xff] %vm1797, %v1762
      %1814 = vst.msk [vmem:[%s274 + $0x80] sm:$0xff] %vm1797, %v1767
      %1815 = vst.msk [vmem:[%s274 + $0x88] sm:$0xff] %vm1797, %v1770
      %1816 = vst.msk [vmem:[%s274 + $0x90] sm:$0xff] %vm1797, %v1775
      %1817 = vst.msk [vmem:[%s274 + $0x98] sm:$0xff] %vm1797, %v1778
      %1818 = vst.msk [vmem:[%s274 + $0xa0] sm:$0xff] %vm1797, %v1783
      %1819 = vst.msk [vmem:[%s274 + $0xa8] sm:$0xff] %vm1797, %v1786
      %1820 = vst.msk [vmem:[%s274 + $0xb0] sm:$0xff] %vm1797, %v1791
      %1821 = vst.msk [vmem:[%s274 + $0xb8] sm:$0xff] %vm1797, %v1794
      %s1822 = smul.u32 8, %s20
      %p1823 = scmp.lt.s32.totalorder %s19, 1
      %s1824 = scalar_select %p1823, %s19, 1
      %p1825 = scmp.lt.s32.totalorder %s1822, 23
      %s1826 = scalar_select %p1825, %s1822, 23
      %s1827 = smul.addr %s1826, 3
      %s1828 = smul.addr %s1824, 72
      %s1829 = sadd.s32 %s1827, %s1828
      %s1830 = smul.addr %s1829, 8
      %s1831 = scalar_lea.vmem %s4, %s1830
      // Predicated region
      $region37: #{edsr_ig_forward.9} parent=35 // pred_check
        %p1832 = pneg %p145
      $region38: #{edsr_ig_forward.9} parent=35 // pred_check_branch
        %1834 = sbr.rel (%p1832) target = $region40
      $region39: #{edsr_ig_forward.9} parent=35 // pred_region
        %s1835 = smul.u32 8, %s20
      $region40: #{edsr_ig_forward.9} parent=35 // pred_fallthru
        _
    $region36: #{edsr_ig_forward.9} parent=5 // pred_fallthru
      _
    %p1836 = scmp.le.s32.totalorder 2, %s10
    // Predicated region
    $region41: #{edsr_ig_forward.9} parent=5 // pred_check
      %p1837 = pneg %p1836
    $region42: #{edsr_ig_forward.9} parent=5 // pred_check_branch
      %1839 = sbr.rel (%p1837) target = $region44
    $region43: #{edsr_ig_forward.9} parent=5 // pred_region
      %s1840 = ssub.s32 %s10, 2
      // Predicated region
      $region45: #{edsr_ig_forward.9} parent=43 // pred_check
        %p1841 = pneg %p151
      $region46: #{edsr_ig_forward.9} parent=43 // pred_check_branch
        %1843 = sbr.rel (%p1841) target = $region48
      $region47: #{edsr_ig_forward.9} parent=43 // pred_region
        %s1844 = smul.u32 8, %s22
        %p1845 = scmp.lt.s32.totalorder %s21, 1
        %s1846 = scalar_select %p1845, %s21, 1
        %p1847 = scmp.lt.s32.totalorder %s1844, 23
        %s1848 = scalar_select %p1847, %s1844, 23
        %s1849 = smul.addr %s1848, 3
        %s1850 = smul.addr %s1846, 72
        %s1851 = sadd.s32 %s1849, %s1850
        %s1852 = smul.addr %s1851, 8
        %s1853 = scalar_lea.vmem %s4, %s1852
      $region48: #{edsr_ig_forward.9} parent=43 // pred_fallthru
        _
    $region44: #{edsr_ig_forward.9} parent=5 // pred_fallthru
      _
  $region6: #{edsr_ig_forward.9} parent=0 // loop_footer
    %s14 = sadd.s32 1, %s10
  $region7: #{edsr_ig_forward.9} parent=0 // loop_footer_branch
    %9 = sbr.rel target = $region3
  $region8: #{edsr_ig_forward.9} parent=0 // loop_exit
    _

// kernel: edsr_ig_forward.5
$region0: #{edsr_ig_forward.5}
  #allocation0 [shape = 'u32[]', space=smem, size = 0x4, offset = 0x4, fixed_abs, tag = 'smem constant byte address 0x4 - core index']
  #allocation1 [shape = 'u32[144,128]{1,0:T(1,128)}', space=vmem, size = 0x12000, scoped, tag = 'internal scratch']
  %s0 = inlined_call_operand.vmem [shape: bf16[2,24,24,8], index: 0, kind: input, shape index: {}]
  %s1 = inlined_call_operand.vmem [shape: bf16[2,3,2,24,8], index: 1, kind: input, shape index: {}]
  %s2 = inlined_call_operand.vmem [shape: bf16[72,32], index: 2, kind: input, shape index: {}]
  %s3 = inlined_call_operand.hbm [shape: f32[1,32], index: 3, kind: input, shape index: {}]
  %s4 = inlined_call_operand.vmem [shape: bf16[2,24,24,32], index: 4, kind: output, shape index: {}]
  %s5 = sld [smem:[#allocation0]]
  $region53: #{edsr_ig_forward.5} parent=0
    _
  %s7 = ssub.s32 1, %s5
  %s8 = scalar_select 0, %s7, %s5
  $region1: #{edsr_ig_forward.5} parent=0
    #allocation2 [shape = 'u8[512]{0}', space=vmem, size = 0x400, scoped, tag = 'input window, operand 3, single buffered']
    #allocation3 [shape = 's32[2]{0}', space=sflag, size = 0x8, scoped, tag = 'scoped memory for edsr_ig_forward.5']
    %9 = vsyncpa [#allocation3], 0
    loop: start=0, step=1, limit=8
    $region2: #{edsr_ig_forward.5} parent=1 // loop_pre_header
      _
    $region3: #{edsr_ig_forward.5} parent=1 // loop_header
      %s11 = sphi 0, %s15
      %p12 = scmp.ge.s32.totalorder %s11, 8
      %s18 = sphi 0, %s30
      %s19 = sphi 0, %s26
      %s20 = sphi 0, %s18
      %s21 = sphi 0, %s19
      %s22 = sphi 0, %s20
      %s23 = sphi 0, %s21
      %s35 = sphi 0, %s37
      %s38 = sphi 0, %s35
      %s39 = sphi 0, %s38
      %s55 = sphi 0, %s39
      %s63 = sphi 0, %s65
      %s66 = sphi 0, %s63
      %s67 = sphi 0, %s66
      %s83 = sphi 0, %s67
      %s87 = sphi 0, %s87
      %s89 = sphi 0, %s87
      %s90 = sphi 0, %s89
      %s104 = sphi 0, %s90
      %s108 = sphi 0, %s108
      %s110 = sphi 0, %s108
      %s111 = sphi 0, %s110
      %s125 = sphi 0, %s111
      %s133 = sphi 0, %s135
      %s136 = sphi 0, %s133
      %s137 = sphi 0, %s136
      %s153 = sphi 0, %s137
    $region4: #{edsr_ig_forward.5} parent=1 // loop_header_branch
      %14 = sbr.rel (%p12) target = $region8
    $region5: #{edsr_ig_forward.5} parent=1 // loop_body
      %s16 = ssub.s32 %s11, 1
      %s17 = ssub.s32 %s11, 2
      %s24 = sadd.s32 1, %s19
      %p25 = scmp.ge.s32.totalorder %s24, 3
      %s26 = scalar_select %p25, 0, %s24
      %s27 = sadd.s32 1, %s18
      %s28 = scalar_select %p25, %s27, %s18
      %p29 = scmp.ge.s32.totalorder %s28, 2
      %s30 = scalar_select %p29, 0, %s28
      %s31 = ssub.s32 %s18, %s30
      %s32 = ssub.s32 %s19, %s26
      %s33 = sor.u32 %s31, %s32
      %p34 = scmp.eq.s32.totalorder %s33, 0
      %s36 = sadd.s32 %s35, 1
      %s37 = scalar_select %p34, %s35, %s36
      %p40 = pneg %p34
      %p41 = scmp.eq.s32.totalorder %s11, 5
      %p42 = por %p40, %p41
      %p43 = scmp.ne.s32.totalorder %s35, %s38
      %p44 = scmp.eq.s32.totalorder %s11, 0
      %p45 = por %p43, %p44
      %p46 = scmp.ne.s32.totalorder %s35, %s38
      %p47 = scmp.eq.s32.totalorder %s16, 5
      %p48 = por %p46, %p47
      %p49 = scmp.ne.s32.totalorder %s38, %s39
      %p50 = scmp.eq.s32.totalorder %s16, 0
      %p51 = por %p49, %p50
      %p52 = scmp.ne.s32.totalorder %s38, %s39
      %p53 = scmp.eq.s32.totalorder %s17, 5
      %p54 = por %p52, %p53
      %p56 = scmp.ne.s32.totalorder %s39, %s55
      %p57 = scmp.eq.s32.totalorder %s17, 0
      %p58 = por %p56, %p57
      %s59 = ssub.s32 %s18, %s30
      %s60 = ssub.s32 %s19, %s26
      %s61 = sor.u32 %s59, %s60
      %p62 = scmp.eq.s32.totalorder %s61, 0
      %s64 = sadd.s32 %s63, 1
      %s65 = scalar_select %p62, %s63, %s64
      %p68 = pneg %p62
      %p69 = scmp.eq.s32.totalorder %s11, 5
      %p70 = por %p68, %p69
      %p71 = scmp.ne.s32.totalorder %s63, %s66
      %p72 = scmp.eq.s32.totalorder %s11, 0
      %p73 = por %p71, %p72
      %p74 = scmp.ne.s32.totalorder %s63, %s66
      %p75 = scmp.eq.s32.totalorder %s16, 5
      %p76 = por %p74, %p75
      %p77 = scmp.ne.s32.totalorder %s66, %s67
      %p78 = scmp.eq.s32.totalorder %s16, 0
      %p79 = por %p77, %p78
      %p80 = scmp.ne.s32.totalorder %s66, %s67
      %p81 = scmp.eq.s32.totalorder %s17, 5
      %p82 = por %p80, %p81
      %p84 = scmp.ne.s32.totalorder %s67, %s83
      %p85 = scmp.eq.s32.totalorder %s17, 0
      %p86 = por %p84, %p85
      %s88 = sadd.s32 %s87, 1
      %p91 = scmp.eq.s32.totalorder %s11, 5
      %p92 = scmp.ne.s32.totalorder %s87, %s89
      %p93 = scmp.eq.s32.totalorder %s11, 0
      %p94 = por %p92, %p93
      %p95 = scmp.ne.s32.totalorder %s87, %s89
      %p96 = scmp.eq.s32.totalorder %s16, 5
      %p97 = por %p95, %p96
      %p98 = scmp.ne.s32.totalorder %s89, %s90
      %p99 = scmp.eq.s32.totalorder %s16, 0
      %p100 = por %p98, %p99
      %p101 = scmp.ne.s32.totalorder %s89, %s90
      %p102 = scmp.eq.s32.totalorder %s17, 5
      %p103 = por %p101, %p102
      %p105 = scmp.ne.s32.totalorder %s90, %s104
      %p106 = scmp.eq.s32.totalorder %s17, 0
      %p107 = por %p105, %p106
      %s109 = sadd.s32 %s108, 1
      %p112 = scmp.eq.s32.totalorder %s11, 5
      %p113 = scmp.ne.s32.totalorder %s108, %s110
      %p114 = scmp.eq.s32.totalorder %s11, 0
      %p115 = por %p113, %p114
      %p116 = scmp.ne.s32.totalorder %s108, %s110
      %p117 = scmp.eq.s32.totalorder %s16, 5
      %p118 = por %p116, %p117
      %p119 = scmp.ne.s32.totalorder %s110, %s111
      %p120 = scmp.eq.s32.totalorder %s16, 0
      %p121 = por %p119, %p120
      %p122 = scmp.ne.s32.totalorder %s110, %s111
      %p123 = scmp.eq.s32.totalorder %s17, 5
      %p124 = por %p122, %p123
      %p126 = scmp.ne.s32.totalorder %s111, %s125
      %p127 = scmp.eq.s32.totalorder %s17, 0
      %p128 = por %p126, %p127
      %s129 = ssub.s32 %s18, %s30
      %s130 = ssub.s32 %s19, %s26
      %s131 = sor.u32 %s129, %s130
      %p132 = scmp.eq.s32.totalorder %s131, 0
      %s134 = sadd.s32 %s133, 1
      %s135 = scalar_select %p132, %s133, %s134
      %p138 = pneg %p132
      %p139 = scmp.eq.s32.totalorder %s11, 5
      %p140 = por %p138, %p139
      %p141 = scmp.ne.s32.totalorder %s133, %s136
      %p142 = scmp.eq.s32.totalorder %s11, 0
      %p143 = por %p141, %p142
      %p144 = scmp.ne.s32.totalorder %s133, %s136
      %p145 = scmp.eq.s32.totalorder %s16, 5
      %p146 = por %p144, %p145
      %p147 = scmp.ne.s32.totalorder %s136, %s137
      %p148 = scmp.eq.s32.totalorder %s16, 0
      %p149 = por %p147, %p148
      %p150 = scmp.ne.s32.totalorder %s136, %s137
      %p151 = scmp.eq.s32.totalorder %s17, 5
      %p152 = por %p150, %p151
      %p154 = scmp.ne.s32.totalorder %s137, %s153
      %p155 = scmp.eq.s32.totalorder %s17, 0
      %p156 = por %p154, %p155
      %p157 = scmp.le.s32.totalorder 1, %s11
      %p158 = scmp.lt.s32.totalorder %s11, 7
      %p159 = pnand %p157, %p158
      %p160 = pneg %p159
      // Predicated region
      $region9: #{edsr_ig_forward.5} parent=5 // pred_check
        _
      $region10: #{edsr_ig_forward.5} parent=5 // pred_check_branch
        %162 = sbr.rel (%p159) target = $region12
      $region11: #{edsr_ig_forward.5} parent=5 // pred_region
        %s163 = ssub.s32 %s11, 1
        // Predicated region
        $region13: #{edsr_ig_forward.5} parent=11 // pred_check
          %p164 = pneg %p100
        $region14: #{edsr_ig_forward.5} parent=11 // pred_check_branch
          %166 = sbr.rel (%p164) target = $region16
        $region15: #{edsr_ig_forward.5} parent=11 // pred_region
          _
        $region16: #{edsr_ig_forward.5} parent=11 // pred_fallthru
          _
        // Predicated region
        $region17: #{edsr_ig_forward.5} parent=11 // pred_check
          %p167 = pneg %p121
        $region18: #{edsr_ig_forward.5} parent=11 // pred_check_branch
          %169 = sbr.rel (%p167) target = $region20
        $region19: #{edsr_ig_forward.5} parent=11 // pred_region
          %s171 = ssub.s32 16, 16
          %172 = vsyncadd [#allocation3], %s171
          %s174 = sshll.u32 [#allocation2], 4
          %s175 = int_to_ptr.vmem [resolvable:$true] %s174
          %177 = dma.hbm_to_vmem [thread:$0]  %s3, 16, %s175, [#allocation3]
        $region20: #{edsr_ig_forward.5} parent=11 // pred_fallthru
          _
      $region12: #{edsr_ig_forward.5} parent=5 // pred_fallthru
        _
      %p178 = scmp.lt.s32.totalorder %s11, 6
      // Predicated region
      $region21: #{edsr_ig_forward.5} parent=5 // pred_check
        %p179 = pneg %p178
      $region22: #{edsr_ig_forward.5} parent=5 // pred_check_branch
        %181 = sbr.rel (%p179) target = $region24
      $region23: #{edsr_ig_forward.5} parent=5 // pred_region
        // Predicated region
        $region25: #{edsr_ig_forward.5} parent=23 // pred_check
          %p182 = pneg %p45
        $region26: #{edsr_ig_forward.5} parent=23 // pred_check_branch
          %184 = sbr.rel (%p182) target = $region28
        $region27: #{edsr_ig_forward.5} parent=23 // pred_region
          %s185 = smul.u32 8, %s19
          %p186 = scmp.lt.s32.totalorder %s18, 1
          %s187 = scalar_select %p186, %s18, 1
          %p188 = scmp.lt.s32.totalorder %s185, 23
          %s189 = scalar_select %p188, %s185, 23
          %s190 = smul.addr %s189, 3
          %s191 = smul.addr %s187, 72
          %s192 = sadd.s32 %s190, %s191
          %s193 = smul.addr %s192, 4
          %s194 = scalar_lea.vmem %s0, %s193
          %s195 = smul.u32 8, %s19
        $region28: #{edsr_ig_forward.5} parent=23 // pred_fallthru
          _
        // Predicated region
        $region29: #{edsr_ig_forward.5} parent=23 // pred_check
          %p196 = pneg %p73
        $region30: #{edsr_ig_forward.5} parent=23 // pred_check_branch
          %198 = sbr.rel (%p196) target = $region32
        $region31: #{edsr_ig_forward.5} parent=23 // pred_region
          %p199 = scmp.lt.s32.totalorder %s18, 1
          %s200 = scalar_select %p199, %s18, 1
          %p201 = scmp.lt.s32.totalorder %s19, 2
          %s202 = scalar_select %p201, %s19, 2
          %s203 = smul.addr %s202, 6
          %s204 = smul.addr %s200, 18
          %s205 = sadd.s32 %s203, %s204
          %s206 = smul.addr %s205, 4
          %s207 = scalar_lea.vmem %s1, %s206
        $region32: #{edsr_ig_forward.5} parent=23 // pred_fallthru
          _
      $region24: #{edsr_ig_forward.5} parent=5 // pred_fallthru
        _
      %p208 = scmp.le.s32.totalorder 1, %s11
      %p209 = scmp.lt.s32.totalorder %s11, 7
      %p210 = pnand %p208, %p209
      %p211 = pneg %p210
      // Predicated region
      $region33: #{edsr_ig_forward.5} parent=5 // pred_check
        _
      $region34: #{edsr_ig_forward.5} parent=5 // pred_check_branch
        %213 = sbr.rel (%p210) target = $region36
      $region35: #{edsr_ig_forward.5} parent=5 // pred_region
        %s214 = ssub.s32 %s11, 1
        // Predicated region
        $region37: #{edsr_ig_forward.5} parent=35 // pred_check
          %p215 = pneg %p121
        $region38: #{edsr_ig_forward.5} parent=35 // pred_check_branch
          %217 = sbr.rel (%p215) target = $region40
        $region39: #{edsr_ig_forward.5} parent=35 // pred_region
          %218 = dma.done [#allocation3], 16
        $region40: #{edsr_ig_forward.5} parent=35 // pred_fallthru
          _
        %s219 = smul.u32 8, %s21
        %p220 = scmp.lt.s32.totalorder %s20, 1
        %s221 = scalar_select %p220, %s20, 1
        %p222 = scmp.lt.s32.totalorder %s219, 23
        %s223 = scalar_select %p222, %s219, 23
        %s224 = smul.addr %s223, 3
        %s225 = smul.addr %s221, 72
        %s226 = sadd.s32 %s224, %s225
        %s227 = smul.addr %s226, 4
        %s228 = scalar_lea.vmem %s0, %s227
        %p229 = pneg %p51
        %p230 = pneg %p48
        %p231 = scmp.lt.s32.totalorder %s20, 1
        %s232 = scalar_select %p231, %s20, 1
        %p233 = scmp.lt.s32.totalorder %s21, 2
        %s234 = scalar_select %p233, %s21, 2
        %s235 = smul.addr %s234, 6
        %s236 = smul.addr %s232, 18
        %s237 = sadd.s32 %s235, %s236
        %s238 = smul.addr %s237, 4
        %s239 = scalar_lea.vmem %s1, %s238
        %p240 = pneg %p79
        %p241 = pneg %p76
        %p242 = pneg %p100
        %p243 = pneg %p97
        %p244 = pneg %p121
        %p245 = pneg %p118
        %p246 = pneg %p149
        %p247 = pneg %p146
        %s248 = smul.u32 8, %s21
        %p249 = scmp.lt.s32.totalorder %s20, 1
        %s250 = scalar_select %p249, %s20, 1
        %p251 = scmp.lt.s32.totalorder %s248, 23
        %s252 = scalar_select %p251, %s248, 23
        %s253 = smul.addr %s252, 3
        %s254 = smul.addr %s250, 72
        %s255 = sadd.s32 %s253, %s254
        %s256 = smul.addr %s255, 4
        %s257 = scalar_lea.vmem %s4, %s256
        %s258 = smul.u32 8, %s21
        %p259 = scmp.lt.s32.totalorder %s20, 1
        %s260 = scalar_select %p259, %s20, 1
        %p261 = scmp.lt.s32.totalorder %s258, 23
        %s262 = scalar_select %p261, %s258, 23
        %s263 = smul.addr %s262, 3
        %s264 = smul.addr %s260, 72
        %s265 = sadd.s32 %s263, %s264
        %s266 = smul.addr %s265, 4
        %s267 = scalar_lea.vmem %s0, %s266
        %s268 = smul.u32 8, %s21
        %p269 = scmp.lt.s32.totalorder %s20, 1
        %s270 = scalar_select %p269, %s20, 1
        %p271 = scmp.lt.s32.totalorder %s21, 2
        %s272 = scalar_select %p271, %s21, 2
        %s273 = smul.addr %s272, 6
        %s274 = smul.addr %s270, 18
        %s275 = sadd.s32 %s273, %s274
        %s276 = smul.addr %s275, 4
        %s277 = scalar_lea.vmem %s1, %s276
        %s278 = smul.u32 8, %s21
        %p279 = scmp.lt.s32.totalorder %s20, 1
        %s280 = scalar_select %p279, %s20, 1
        %p281 = scmp.lt.s32.totalorder %s278, 23
        %s282 = scalar_select %p281, %s278, 23
        %s283 = smul.addr %s282, 3
        %s284 = smul.addr %s280, 72
        %s285 = sadd.s32 %s283, %s284
        %s286 = smul.addr %s285, 4
        %s287 = scalar_lea.vmem %s4, %s286
        %s288 = smul.u32 8, %s21
        %v290 = vld [vmem:[%s267] sm:$0xf]
        %v291 = vld [vmem:[%s267 + $0x4] sm:$0xf]
        %v292 = vld [vmem:[%s267 + $0x8] sm:$0xf]
        %v293 = vld [vmem:[%s267 + $0xc] sm:$0xf]
        %v294 = vld [vmem:[%s267 + $0x10] sm:$0xf]
        %v295 = vld [vmem:[%s267 + $0x14] sm:$0xf]
        %v296 = vld [vmem:[%s267 + $0x18] sm:$0xf]
        %v297 = vld [vmem:[%s267 + $0x1c] sm:$0xf]
        %v298 = vld [vmem:[%s267 + $0x20] sm:$0xf]
        %v299 = vld [vmem:[%s267 + $0x24] sm:$0xf]
        %v300 = vld [vmem:[%s267 + $0x28] sm:$0xf]
        %v301 = vld [vmem:[%s267 + $0x2c] sm:$0xf]
        %v302 = vld [vmem:[%s267 + $0x30] sm:$0xf]
        %v303 = vld [vmem:[%s267 + $0x34] sm:$0xf]
        %v304 = vld [vmem:[%s267 + $0x38] sm:$0xf]
        %v305 = vld [vmem:[%s267 + $0x3c] sm:$0xf]
        %v306 = vld [vmem:[%s267 + $0x40] sm:$0xf]
        %v307 = vld [vmem:[%s267 + $0x44] sm:$0xf]
        %v308 = vld [vmem:[%s267 + $0x48] sm:$0xf]
        %v309 = vld [vmem:[%s267 + $0x4c] sm:$0xf]
        %v310 = vld [vmem:[%s267 + $0x50] sm:$0xf]
        %v311 = vld [vmem:[%s267 + $0x54] sm:$0xf]
        %v312 = vld [vmem:[%s267 + $0x58] sm:$0xf]
        %v313 = vld [vmem:[%s267 + $0x5c] sm:$0xf]
        %v314 = vld [vmem:[%s277] sm:$0xf]
        %v315 = vld [vmem:[%s277 + $0x4] sm:$0xf]
        %v316 = vld [vmem:[%s277 + $0x8] sm:$0xf]
        %v317 = vld [vmem:[%s277 + $0xc] sm:$0xf]
        %v318 = vld [vmem:[%s277 + $0x10] sm:$0xf]
        %v319 = vld [vmem:[%s277 + $0x14] sm:$0xf]
        %v350 = vunpack.c.l.b16 %v314
        %v351 = vunpack.c.l.b16 %v315
        %v352 = vunpack.c.l.b16 %v316
        %v353 = vunpack.c.l.b16 %v290
        %v354 = vunpack.c.l.b16 %v291
        %v355 = vunpack.c.l.b16 %v292
        %v356 = vunpack.c.l.b16 %v293
        %v357 = vunpack.c.l.b16 %v294
        %v358 = vunpack.c.l.b16 %v295
        %v359 = vunpack.c.l.b16 %v296
        %v360 = vunpack.c.l.b16 %v297
        %v361 = vunpack.c.l.b16 %v298
        %v362 = vunpack.c.l.b16 %v299
        %v363 = vunpack.c.l.b16 %v300
        %v364 = vunpack.c.l.b16 %v301
        %v365 = vunpack.c.l.b16 %v302
        %v366 = vunpack.c.l.b16 %v303
        %v367 = vunpack.c.l.b16 %v304
        %v368 = vunpack.c.l.b16 %v305
        %v369 = vunpack.c.l.b16 %v306
        %v370 = vunpack.c.l.b16 %v307
        %v371 = vunpack.c.l.b16 %v308
        %v372 = vunpack.c.l.b16 %v309
        %v373 = vunpack.c.l.b16 %v310
        %v374 = vunpack.c.l.b16 %v311
        %v375 = vunpack.c.l.b16 %v312
        %v376 = vunpack.c.l.b16 %v313
        %v377 = vunpack.c.l.b16 %v317
        %v378 = vunpack.c.l.b16 %v318
        %v379 = vunpack.c.l.b16 %v319
        %v380 = vpack.c.b16 %v351, %v350
        %v381 = vpack.c.b16 %v352, %v352
        %v382 = vpack.c.b16 %v354, %v353
        %v383 = vpack.c.b16 %v355, %v355
        %v384 = vpack.c.b16 %v357, %v356
        %v385 = vpack.c.b16 %v358, %v358
        %v386 = vpack.c.b16 %v360, %v359
        %v387 = vpack.c.b16 %v361, %v361
        %v388 = vpack.c.b16 %v363, %v362
        %v389 = vpack.c.b16 %v364, %v364
        %v390 = vpack.c.b16 %v366, %v365
        %v391 = vpack.c.b16 %v367, %v367
        %v392 = vpack.c.b16 %v369, %v368
        %v393 = vpack.c.b16 %v370, %v370
        %v394 = vpack.c.b16 %v372, %v371
        %v395 = vpack.c.b16 %v373, %v373
        %v396 = vpack.c.b16 %v375, %v374
        %v397 = vpack.c.b16 %v376, %v376
        %v398 = vpack.c.b16 %v378, %v377
        %v399 = vpack.c.b16 %v379, %v379
        %vm400 = vsmask.f32 256
        %v402 = vshrl.u32 %v380, 16
        %v404 = vrot.slane %v402, 7
        %v405 = vshll.u32 %v380, 16
        %v407 = vor.u32 %v404, %v405
        %v409 = vshrl.u32 %v381, 16
        %v411 = vrot.slane %v409, 7
        %v412 = vshll.u32 %v381, 16
        %v414 = vor.u32 %v411, %v412
        %v415 = vsel %vm400, %v404, %v414
        %v417 = vshrl.u32 %v382, 16
        %v419 = vrot.slane %v417, 7
        %v420 = vshll.u32 %v382, 16
        %v422 = vor.u32 %v419, %v420
        %v424 = vshrl.u32 %v383, 16
        %v426 = vrot.slane %v424, 7
        %v427 = vshll.u32 %v383, 16
        %v429 = vor.u32 %v426, %v427
        %v430 = vsel %vm400, %v419, %v429
        %v432 = vshrl.u32 %v384, 16
        %v434 = vrot.slane %v432, 7
        %v435 = vshll.u32 %v384, 16
        %v437 = vor.u32 %v434, %v435
        %v439 = vshrl.u32 %v385, 16
        %v441 = vrot.slane %v439, 7
        %v442 = vshll.u32 %v385, 16
        %v444 = vor.u32 %v441, %v442
        %v445 = vsel %vm400, %v434, %v444
        %v447 = vshrl.u32 %v386, 16
        %v449 = vrot.slane %v447, 7
        %v450 = vshll.u32 %v386, 16
        %v452 = vor.u32 %v449, %v450
        %v454 = vshrl.u32 %v387, 16
        %v456 = vrot.slane %v454, 7
        %v457 = vshll.u32 %v387, 16
        %v459 = vor.u32 %v456, %v457
        %v460 = vsel %vm400, %v449, %v459
        %v462 = vshrl.u32 %v388, 16
        %v464 = vrot.slane %v462, 7
        %v465 = vshll.u32 %v388, 16
        %v467 = vor.u32 %v464, %v465
        %v469 = vshrl.u32 %v389, 16
        %v471 = vrot.slane %v469, 7
        %v472 = vshll.u32 %v389, 16
        %v474 = vor.u32 %v471, %v472
        %v475 = vsel %vm400, %v464, %v474
        %v477 = vshrl.u32 %v390, 16
        %v479 = vrot.slane %v477, 7
        %v480 = vshll.u32 %v390, 16
        %v482 = vor.u32 %v479, %v480
        %v484 = vshrl.u32 %v391, 16
        %v486 = vrot.slane %v484, 7
        %v487 = vshll.u32 %v391, 16
        %v489 = vor.u32 %v486, %v487
        %v490 = vsel %vm400, %v479, %v489
        %v492 = vshrl.u32 %v392, 16
        %v494 = vrot.slane %v492, 7
        %v495 = vshll.u32 %v392, 16
        %v497 = vor.u32 %v494, %v495
        %v499 = vshrl.u32 %v393, 16
        %v501 = vrot.slane %v499, 7
        %v502 = vshll.u32 %v393, 16
        %v504 = vor.u32 %v501, %v502
        %v505 = vsel %vm400, %v494, %v504
        %v507 = vshrl.u32 %v394, 16
        %v509 = vrot.slane %v507, 7
        %v510 = vshll.u32 %v394, 16
        %v512 = vor.u32 %v509, %v510
        %v514 = vshrl.u32 %v395, 16
        %v516 = vrot.slane %v514, 7
        %v517 = vshll.u32 %v395, 16
        %v519 = vor.u32 %v516, %v517
        %v520 = vsel %vm400, %v509, %v519
        %v522 = vshrl.u32 %v396, 16
        %v524 = vrot.slane %v522, 7
        %v525 = vshll.u32 %v396, 16
        %v527 = vor.u32 %v524, %v525
        %v529 = vshrl.u32 %v397, 16
        %v531 = vrot.slane %v529, 7
        %v532 = vshll.u32 %v397, 16
        %v534 = vor.u32 %v531, %v532
        %v535 = vsel %vm400, %v524, %v534
        %v537 = vshrl.u32 %v398, 16
        %v539 = vrot.slane %v537, 7
        %v540 = vshll.u32 %v398, 16
        %v542 = vor.u32 %v539, %v540
        %v544 = vshrl.u32 %v399, 16
        %v546 = vrot.slane %v544, 7
        %v547 = vshll.u32 %v399, 16
        %v549 = vor.u32 %v546, %v547
        %v550 = vsel %vm400, %v539, %v549
        %vm571 = vcmask 1040384
        %vm572 = vmand %vm571, %vm400
        %v573 = vsel %vm572, 0, %v407
        %v574 = vsel %vm572, 0, %v422
        %v575 = vsel %vm572, 0, %v437
        %v576 = vsel %vm572, 0, %v452
        %v577 = vsel %vm572, 0, %v467
        %v578 = vsel %vm572, 0, %v482
        %v579 = vsel %vm572, 0, %v497
        %v580 = vsel %vm572, 0, %v512
        %v581 = vsel %vm572, 0, %v527
        %v582 = vsel %vm572, 0, %v542
        %vm583 = vcmask 1044480
        %vm584 = vsmask.f32 4352
        %vm585 = vmand %vm583, %vm584
        %v586 = vsel %vm585, %v415, 0
        %v587 = vsel %vm585, %v430, 0
        %v588 = vsel %vm585, %v445, 0
        %v589 = vsel %vm585, %v460, 0
        %v590 = vsel %vm585, %v475, 0
        %v591 = vsel %vm585, %v490, 0
        %v592 = vsel %vm585, %v505, 0
        %v593 = vsel %vm585, %v520, 0
        %v594 = vsel %vm585, %v535, 0
        %v595 = vsel %vm585, %v550, 0
        %vm596 = vsmask.f32 7424
        %v598 = vshrl.u32 %v573, 16
        %v600 = vshll.u32 %v573, 16
        %v602 = vrot.slane %v600, 1
        %v603 = vor.u32 %v598, %v602
        %v605 = vshll.u32 %v586, 16
        %v607 = vrot.slane %v605, 1
        %v608 = vsel %vm596, %v603, %v607
        %v609 = vshrl.u32 %v586, 16
        %v611 = vor.u32 %v609, %v607
        %v613 = vshrl.u32 %v574, 16
        %v615 = vshll.u32 %v574, 16
        %v617 = vrot.slane %v615, 1
        %v618 = vor.u32 %v613, %v617
        %v620 = vshll.u32 %v587, 16
        %v622 = vrot.slane %v620, 1
        %v623 = vsel %vm596, %v618, %v622
        %v624 = vshrl.u32 %v587, 16
        %v626 = vor.u32 %v624, %v622
        %v628 = vshrl.u32 %v575, 16
        %v630 = vshll.u32 %v575, 16
        %v632 = vrot.slane %v630, 1
        %v633 = vor.u32 %v628, %v632
        %v635 = vshll.u32 %v588, 16
        %v637 = vrot.slane %v635, 1
        %v638 = vsel %vm596, %v633, %v637
        %v639 = vshrl.u32 %v588, 16
        %v641 = vor.u32 %v639, %v637
        %v643 = vshrl.u32 %v576, 16
        %v645 = vshll.u32 %v576, 16
        %v647 = vrot.slane %v645, 1
        %v648 = vor.u32 %v643, %v647
        %v650 = vshll.u32 %v589, 16
        %v652 = vrot.slane %v650, 1
        %v653 = vsel %vm596, %v648, %v652
        %v654 = vshrl.u32 %v589, 16
        %v656 = vor.u32 %v654, %v652
        %v658 = vshrl.u32 %v577, 16
        %v660 = vshll.u32 %v577, 16
        %v662 = vrot.slane %v660, 1
        %v663 = vor.u32 %v658, %v662
        %v665 = vshll.u32 %v590, 16
        %v667 = vrot.slane %v665, 1
        %v668 = vsel %vm596, %v663, %v667
        %v669 = vshrl.u32 %v590, 16
        %v671 = vor.u32 %v669, %v667
        %v673 = vshrl.u32 %v578, 16
        %v675 = vshll.u32 %v578, 16
        %v677 = vrot.slane %v675, 1
        %v678 = vor.u32 %v673, %v677
        %v680 = vshll.u32 %v591, 16
        %v682 = vrot.slane %v680, 1
        %v683 = vsel %vm596, %v678, %v682
        %v684 = vshrl.u32 %v591, 16
        %v686 = vor.u32 %v684, %v682
        %v688 = vshrl.u32 %v579, 16
        %v690 = vshll.u32 %v579, 16
        %v692 = vrot.slane %v690, 1
        %v693 = vor.u32 %v688, %v692
        %v695 = vshll.u32 %v592, 16
        %v697 = vrot.slane %v695, 1
        %v698 = vsel %vm596, %v693, %v697
        %v699 = vshrl.u32 %v592, 16
        %v701 = vor.u32 %v699, %v697
        %v703 = vshrl.u32 %v580, 16
        %v705 = vshll.u32 %v580, 16
        %v707 = vrot.slane %v705, 1
        %v708 = vor.u32 %v703, %v707
        %v710 = vshll.u32 %v593, 16
        %v712 = vrot.slane %v710, 1
        %v713 = vsel %vm596, %v708, %v712
        %v714 = vshrl.u32 %v593, 16
        %v716 = vor.u32 %v714, %v712
        %717 = vrot.lane.b32.xlu0 %v608, 8
        %v718 = vpop.permute.xlu0 %717
        %719 = vrot.lane.b32.xlu0 %v611, 8
        %v720 = vpop.permute.xlu0 %719
        %721 = vrot.lane.b32.xlu0 %v623, 8
        %v722 = vpop.permute.xlu0 %721
        %723 = vrot.lane.b32.xlu0 %v626, 8
        %v724 = vpop.permute.xlu0 %723
        %725 = vrot.lane.b32.xlu0 %v638, 8
        %v726 = vpop.permute.xlu0 %725
        %727 = vrot.lane.b32.xlu0 %v641, 8
        %v728 = vpop.permute.xlu0 %727
        %729 = vrot.lane.b32.xlu0 %v653, 8
        %v730 = vpop.permute.xlu0 %729
        %731 = vrot.lane.b32.xlu0 %v656, 8
        %v732 = vpop.permute.xlu0 %731
        %733 = vrot.lane.b32.xlu0 %v668, 8
        %v734 = vpop.permute.xlu0 %733
        %735 = vrot.lane.b32.xlu0 %v671, 8
        %v736 = vpop.permute.xlu0 %735
        %737 = vrot.lane.b32.xlu0 %v683, 8
        %v738 = vpop.permute.xlu0 %737
        %739 = vrot.lane.b32.xlu0 %v686, 8
        %v740 = vpop.permute.xlu0 %739
        %741 = vrot.lane.b32.xlu0 %v698, 8
        %v742 = vpop.permute.xlu0 %741
        %743 = vrot.lane.b32.xlu0 %v701, 8
        %v744 = vpop.permute.xlu0 %743
        %745 = vrot.lane.b32.xlu0 %v713, 8
        %v746 = vpop.permute.xlu0 %745
        %747 = vrot.lane.b32.xlu0 %v716, 8
        %v748 = vpop.permute.xlu0 %747
        %vm765 = vcmask 1046528
        %v766 = vrot.slane %v573, 1
        %v767 = vrot.slane %v586, 1
        %v768 = vsel %vm765, %v766, %v767
        %v769 = vrot.slane %v574, 1
        %v770 = vrot.slane %v587, 1
        %v771 = vsel %vm765, %v769, %v770
        %v772 = vrot.slane %v575, 1
        %v773 = vrot.slane %v588, 1
        %v774 = vsel %vm765, %v772, %v773
        %v775 = vrot.slane %v576, 1
        %v776 = vrot.slane %v589, 1
        %v777 = vsel %vm765, %v775, %v776
        %v778 = vrot.slane %v577, 1
        %v779 = vrot.slane %v590, 1
        %v780 = vsel %vm765, %v778, %v779
        %v781 = vrot.slane %v578, 1
        %v782 = vrot.slane %v591, 1
        %v783 = vsel %vm765, %v781, %v782
        %v784 = vrot.slane %v579, 1
        %v785 = vrot.slane %v592, 1
        %v786 = vsel %vm765, %v784, %v785
        %v787 = vrot.slane %v580, 1
        %v788 = vrot.slane %v593, 1
        %v789 = vsel %vm765, %v787, %v788
        %790 = vrot.lane.b32.xlu0 %v768, 16
        %v791 = vpop.permute.xlu0 %790
        %792 = vrot.lane.b32.xlu0 %v767, 16
        %v793 = vpop.permute.xlu0 %792
        %794 = vrot.lane.b32.xlu0 %v771, 16
        %v795 = vpop.permute.xlu0 %794
        %796 = vrot.lane.b32.xlu0 %v770, 16
        %v797 = vpop.permute.xlu0 %796
        %798 = vrot.lane.b32.xlu0 %v774, 16
        %v799 = vpop.permute.xlu0 %798
        %800 = vrot.lane.b32.xlu0 %v773, 16
        %v801 = vpop.permute.xlu0 %800
        %802 = vrot.lane.b32.xlu0 %v777, 16
        %v803 = vpop.permute.xlu0 %802
        %804 = vrot.lane.b32.xlu0 %v776, 16
        %v805 = vpop.permute.xlu0 %804
        %806 = vrot.lane.b32.xlu0 %v780, 16
        %v807 = vpop.permute.xlu0 %806
        %808 = vrot.lane.b32.xlu0 %v779, 16
        %v809 = vpop.permute.xlu0 %808
        %810 = vrot.lane.b32.xlu0 %v783, 16
        %v811 = vpop.permute.xlu0 %810
        %812 = vrot.lane.b32.xlu0 %v782, 16
        %v813 = vpop.permute.xlu0 %812
        %814 = vrot.lane.b32.xlu0 %v786, 16
        %v815 = vpop.permute.xlu0 %814
        %816 = vrot.lane.b32.xlu0 %v785, 16
        %v817 = vpop.permute.xlu0 %816
        %818 = vrot.lane.b32.xlu0 %v789, 16
        %v819 = vpop.permute.xlu0 %818
        %820 = vrot.lane.b32.xlu0 %v788, 16
        %v821 = vpop.permute.xlu0 %820
        %824 = vrot.lane.b32.xlu0 %v574, 24
        %v825 = vpop.permute.xlu0 %824
        %826 = vrot.lane.b32.xlu0 %v587, 24
        %v827 = vpop.permute.xlu0 %826
        %828 = vrot.lane.b32.xlu0 %v575, 24
        %v829 = vpop.permute.xlu0 %828
        %830 = vrot.lane.b32.xlu0 %v588, 24
        %v831 = vpop.permute.xlu0 %830
        %832 = vrot.lane.b32.xlu0 %v576, 24
        %v833 = vpop.permute.xlu0 %832
        %834 = vrot.lane.b32.xlu0 %v589, 24
        %v835 = vpop.permute.xlu0 %834
        %836 = vrot.lane.b32.xlu0 %v577, 24
        %v837 = vpop.permute.xlu0 %836
        %838 = vrot.lane.b32.xlu0 %v590, 24
        %v839 = vpop.permute.xlu0 %838
        %840 = vrot.lane.b32.xlu0 %v578, 24
        %v841 = vpop.permute.xlu0 %840
        %842 = vrot.lane.b32.xlu0 %v591, 24
        %v843 = vpop.permute.xlu0 %842
        %844 = vrot.lane.b32.xlu0 %v579, 24
        %v845 = vpop.permute.xlu0 %844
        %846 = vrot.lane.b32.xlu0 %v592, 24
        %v847 = vpop.permute.xlu0 %846
        %848 = vrot.lane.b32.xlu0 %v580, 24
        %v849 = vpop.permute.xlu0 %848
        %850 = vrot.lane.b32.xlu0 %v593, 24
        %v851 = vpop.permute.xlu0 %850
        %852 = vrot.lane.b32.xlu0 %v581, 24
        %v853 = vpop.permute.xlu0 %852
        %854 = vrot.lane.b32.xlu0 %v594, 24
        %v855 = vpop.permute.xlu0 %854
        %v857 = vshrl.u32 %v581, 16
        %v859 = vshll.u32 %v581, 16
        %v861 = vrot.slane %v859, 1
        %v862 = vor.u32 %v857, %v861
        %v864 = vshll.u32 %v594, 16
        %v866 = vrot.slane %v864, 1
        %v867 = vsel %vm596, %v862, %v866
        %v868 = vshrl.u32 %v594, 16
        %v870 = vor.u32 %v868, %v866
        %871 = vrot.lane.b32.xlu0 %v623, 32
        %v872 = vpop.permute.xlu0 %871
        %873 = vrot.lane.b32.xlu0 %v626, 32
        %v874 = vpop.permute.xlu0 %873
        %875 = vrot.lane.b32.xlu0 %v638, 32
        %v876 = vpop.permute.xlu0 %875
        %877 = vrot.lane.b32.xlu0 %v641, 32
        %v878 = vpop.permute.xlu0 %877
        %879 = vrot.lane.b32.xlu0 %v653, 32
        %v880 = vpop.permute.xlu0 %879
        %881 = vrot.lane.b32.xlu0 %v656, 32
        %v882 = vpop.permute.xlu0 %881
        %883 = vrot.lane.b32.xlu0 %v668, 32
        %v884 = vpop.permute.xlu0 %883
        %885 = vrot.lane.b32.xlu0 %v671, 32
        %v886 = vpop.permute.xlu0 %885
        %887 = vrot.lane.b32.xlu0 %v683, 32
        %v888 = vpop.permute.xlu0 %887
        %889 = vrot.lane.b32.xlu0 %v686, 32
        %v890 = vpop.permute.xlu0 %889
        %891 = vrot.lane.b32.xlu0 %v698, 32
        %v892 = vpop.permute.xlu0 %891
        %893 = vrot.lane.b32.xlu0 %v701, 32
        %v894 = vpop.permute.xlu0 %893
        %895 = vrot.lane.b32.xlu0 %v713, 32
        %v896 = vpop.permute.xlu0 %895
        %897 = vrot.lane.b32.xlu0 %v716, 32
        %v898 = vpop.permute.xlu0 %897
        %899 = vrot.lane.b32.xlu0 %v867, 32
        %v900 = vpop.permute.xlu0 %899
        %901 = vrot.lane.b32.xlu0 %v870, 32
        %v902 = vpop.permute.xlu0 %901
        %v903 = vrot.slane %v581, 1
        %v904 = vrot.slane %v594, 1
        %v905 = vsel %vm765, %v903, %v904
        %906 = vrot.lane.b32.xlu0 %v771, 40
        %v907 = vpop.permute.xlu0 %906
        %908 = vrot.lane.b32.xlu0 %v770, 40
        %v909 = vpop.permute.xlu0 %908
        %910 = vrot.lane.b32.xlu0 %v774, 40
        %v911 = vpop.permute.xlu0 %910
        %912 = vrot.lane.b32.xlu0 %v773, 40
        %v913 = vpop.permute.xlu0 %912
        %914 = vrot.lane.b32.xlu0 %v777, 40
        %v915 = vpop.permute.xlu0 %914
        %916 = vrot.lane.b32.xlu0 %v776, 40
        %v917 = vpop.permute.xlu0 %916
        %918 = vrot.lane.b32.xlu0 %v780, 40
        %v919 = vpop.permute.xlu0 %918
        %920 = vrot.lane.b32.xlu0 %v779, 40
        %v921 = vpop.permute.xlu0 %920
        %922 = vrot.lane.b32.xlu0 %v783, 40
        %v923 = vpop.permute.xlu0 %922
        %924 = vrot.lane.b32.xlu0 %v782, 40
        %v925 = vpop.permute.xlu0 %924
        %926 = vrot.lane.b32.xlu0 %v786, 40
        %v927 = vpop.permute.xlu0 %926
        %928 = vrot.lane.b32.xlu0 %v785, 40
        %v929 = vpop.permute.xlu0 %928
        %930 = vrot.lane.b32.xlu0 %v789, 40
        %v931 = vpop.permute.xlu0 %930
        %932 = vrot.lane.b32.xlu0 %v788, 40
        %v933 = vpop.permute.xlu0 %932
        %934 = vrot.lane.b32.xlu0 %v905, 40
        %v935 = vpop.permute.xlu0 %934
        %936 = vrot.lane.b32.xlu0 %v904, 40
        %v937 = vpop.permute.xlu0 %936
        %940 = vrot.lane.b32.xlu0 %v575, 48
        %v941 = vpop.permute.xlu0 %940
        %942 = vrot.lane.b32.xlu0 %v588, 48
        %v943 = vpop.permute.xlu0 %942
        %944 = vrot.lane.b32.xlu0 %v576, 48
        %v945 = vpop.permute.xlu0 %944
        %946 = vrot.lane.b32.xlu0 %v589, 48
        %v947 = vpop.permute.xlu0 %946
        %948 = vrot.lane.b32.xlu0 %v577, 48
        %v949 = vpop.permute.xlu0 %948
        %950 = vrot.lane.b32.xlu0 %v590, 48
        %v951 = vpop.permute.xlu0 %950
        %952 = vrot.lane.b32.xlu0 %v578, 48
        %v953 = vpop.permute.xlu0 %952
        %954 = vrot.lane.b32.xlu0 %v591, 48
        %v955 = vpop.permute.xlu0 %954
        %956 = vrot.lane.b32.xlu0 %v579, 48
        %v957 = vpop.permute.xlu0 %956
        %958 = vrot.lane.b32.xlu0 %v592, 48
        %v959 = vpop.permute.xlu0 %958
        %960 = vrot.lane.b32.xlu0 %v580, 48
        %v961 = vpop.permute.xlu0 %960
        %962 = vrot.lane.b32.xlu0 %v593, 48
        %v963 = vpop.permute.xlu0 %962
        %964 = vrot.lane.b32.xlu0 %v581, 48
        %v965 = vpop.permute.xlu0 %964
        %966 = vrot.lane.b32.xlu0 %v594, 48
        %v967 = vpop.permute.xlu0 %966
        %968 = vrot.lane.b32.xlu0 %v582, 48
        %v969 = vpop.permute.xlu0 %968
        %970 = vrot.lane.b32.xlu0 %v595, 48
        %v971 = vpop.permute.xlu0 %970
        %v973 = vshrl.u32 %v582, 16
        %v975 = vshll.u32 %v582, 16
        %v977 = vrot.slane %v975, 1
        %v978 = vor.u32 %v973, %v977
        %v980 = vshll.u32 %v595, 16
        %v982 = vrot.slane %v980, 1
        %v983 = vsel %vm596, %v978, %v982
        %v984 = vshrl.u32 %v595, 16
        %v986 = vor.u32 %v984, %v982
        %987 = vrot.lane.b32.xlu0 %v638, 56
        %v988 = vpop.permute.xlu0 %987
        %989 = vrot.lane.b32.xlu0 %v641, 56
        %v990 = vpop.permute.xlu0 %989
        %991 = vrot.lane.b32.xlu0 %v653, 56
        %v992 = vpop.permute.xlu0 %991
        %993 = vrot.lane.b32.xlu0 %v656, 56
        %v994 = vpop.permute.xlu0 %993
        %995 = vrot.lane.b32.xlu0 %v668, 56
        %v996 = vpop.permute.xlu0 %995
        %997 = vrot.lane.b32.xlu0 %v671, 56
        %v998 = vpop.permute.xlu0 %997
        %999 = vrot.lane.b32.xlu0 %v683, 56
        %v1000 = vpop.permute.xlu0 %999
        %1001 = vrot.lane.b32.xlu0 %v686, 56
        %v1002 = vpop.permute.xlu0 %1001
        %1003 = vrot.lane.b32.xlu0 %v698, 56
        %v1004 = vpop.permute.xlu0 %1003
        %1005 = vrot.lane.b32.xlu0 %v701, 56
        %v1006 = vpop.permute.xlu0 %1005
        %1007 = vrot.lane.b32.xlu0 %v713, 56
        %v1008 = vpop.permute.xlu0 %1007
        %1009 = vrot.lane.b32.xlu0 %v716, 56
        %v1010 = vpop.permute.xlu0 %1009
        %1011 = vrot.lane.b32.xlu0 %v867, 56
        %v1012 = vpop.permute.xlu0 %1011
        %1013 = vrot.lane.b32.xlu0 %v870, 56
        %v1014 = vpop.permute.xlu0 %1013
        %1015 = vrot.lane.b32.xlu0 %v983, 56
        %v1016 = vpop.permute.xlu0 %1015
        %1017 = vrot.lane.b32.xlu0 %v986, 56
        %v1018 = vpop.permute.xlu0 %1017
        %v1019 = vrot.slane %v582, 1
        %v1020 = vrot.slane %v595, 1
        %v1021 = vsel %vm765, %v1019, %v1020
        %1022 = vrot.lane.b32.xlu0 %v774, 64
        %v1023 = vpop.permute.xlu0 %1022
        %1024 = vrot.lane.b32.xlu0 %v773, 64
        %v1025 = vpop.permute.xlu0 %1024
        %1026 = vrot.lane.b32.xlu0 %v777, 64
        %v1027 = vpop.permute.xlu0 %1026
        %1028 = vrot.lane.b32.xlu0 %v776, 64
        %v1029 = vpop.permute.xlu0 %1028
        %1030 = vrot.lane.b32.xlu0 %v780, 64
        %v1031 = vpop.permute.xlu0 %1030
        %1032 = vrot.lane.b32.xlu0 %v779, 64
        %v1033 = vpop.permute.xlu0 %1032
        %1034 = vrot.lane.b32.xlu0 %v783, 64
        %v1035 = vpop.permute.xlu0 %1034
        %1036 = vrot.lane.b32.xlu0 %v782, 64
        %v1037 = vpop.permute.xlu0 %1036
        %1038 = vrot.lane.b32.xlu0 %v786, 64
        %v1039 = vpop.permute.xlu0 %1038
        %1040 = vrot.lane.b32.xlu0 %v785, 64
        %v1041 = vpop.permute.xlu0 %1040
        %1042 = vrot.lane.b32.xlu0 %v789, 64
        %v1043 = vpop.permute.xlu0 %1042
        %1044 = vrot.lane.b32.xlu0 %v788, 64
        %v1045 = vpop.permute.xlu0 %1044
        %1046 = vrot.lane.b32.xlu0 %v905, 64
        %v1047 = vpop.permute.xlu0 %1046
        %1048 = vrot.lane.b32.xlu0 %v904, 64
        %v1049 = vpop.permute.xlu0 %1048
        %1050 = vrot.lane.b32.xlu0 %v1021, 64
        %v1051 = vpop.permute.xlu0 %1050
        %1052 = vrot.lane.b32.xlu0 %v1020, 64
        %v1053 = vpop.permute.xlu0 %1052
        %vm1054 = vcmask 64512
        %v1056 = vsel %vm1054, %v573, %v718
        %v1058 = vsel %vm1054, %v586, %v720
        %v1060 = vsel %vm1054, %v574, %v722
        %v1062 = vsel %vm1054, %v587, %v724
        %v1064 = vsel %vm1054, %v575, %v726
        %v1066 = vsel %vm1054, %v588, %v728
        %v1068 = vsel %vm1054, %v576, %v730
        %v1070 = vsel %vm1054, %v589, %v732
        %v1072 = vsel %vm1054, %v577, %v734
        %v1074 = vsel %vm1054, %v590, %v736
        %v1076 = vsel %vm1054, %v578, %v738
        %v1078 = vsel %vm1054, %v591, %v740
        %v1080 = vsel %vm1054, %v579, %v742
        %v1082 = vsel %vm1054, %v592, %v744
        %v1084 = vsel %vm1054, %v580, %v746
        %v1086 = vsel %vm1054, %v593, %v748
        %vm1087 = vcmask 130048
        %v1089 = vsel %vm1087, %v1056, %v791
        %v1091 = vsel %vm1087, %v1058, %v793
        %v1093 = vsel %vm1087, %v1060, %v795
        %v1095 = vsel %vm1087, %v1062, %v797
        %v1097 = vsel %vm1087, %v1064, %v799
        %v1099 = vsel %vm1087, %v1066, %v801
        %v1101 = vsel %vm1087, %v1068, %v803
        %v1103 = vsel %vm1087, %v1070, %v805
        %v1105 = vsel %vm1087, %v1072, %v807
        %v1107 = vsel %vm1087, %v1074, %v809
        %v1109 = vsel %vm1087, %v1076, %v811
        %v1111 = vsel %vm1087, %v1078, %v813
        %v1113 = vsel %vm1087, %v1080, %v815
        %v1115 = vsel %vm1087, %v1082, %v817
        %v1117 = vsel %vm1087, %v1084, %v819
        %v1119 = vsel %vm1087, %v1086, %v821
        %vm1120 = vcmask 195584
        %v1122 = vsel %vm1120, %v1089, %v825
        %v1124 = vsel %vm1120, %v1091, %v827
        %v1126 = vsel %vm1120, %v1093, %v829
        %v1128 = vsel %vm1120, %v1095, %v831
        %v1130 = vsel %vm1120, %v1097, %v833
        %v1132 = vsel %vm1120, %v1099, %v835
        %v1134 = vsel %vm1120, %v1101, %v837
        %v1136 = vsel %vm1120, %v1103, %v839
        %v1138 = vsel %vm1120, %v1105, %v841
        %v1140 = vsel %vm1120, %v1107, %v843
        %v1142 = vsel %vm1120, %v1109, %v845
        %v1144 = vsel %vm1120, %v1111, %v847
        %v1146 = vsel %vm1120, %v1113, %v849
        %v1148 = vsel %vm1120, %v1115, %v851
        %v1150 = vsel %vm1120, %v1117, %v853
        %v1152 = vsel %vm1120, %v1119, %v855
        %vm1153 = vcmask 261120
        %v1155 = vsel %vm1153, %v1122, %v872
        %v1157 = vsel %vm1153, %v1124, %v874
        %v1159 = vsel %vm1153, %v1126, %v876
        %v1161 = vsel %vm1153, %v1128, %v878
        %v1163 = vsel %vm1153, %v1130, %v880
        %v1165 = vsel %vm1153, %v1132, %v882
        %v1167 = vsel %vm1153, %v1134, %v884
        %v1169 = vsel %vm1153, %v1136, %v886
        %v1171 = vsel %vm1153, %v1138, %v888
        %v1173 = vsel %vm1153, %v1140, %v890
        %v1175 = vsel %vm1153, %v1142, %v892
        %v1177 = vsel %vm1153, %v1144, %v894
        %v1179 = vsel %vm1153, %v1146, %v896
        %v1181 = vsel %vm1153, %v1148, %v898
        %v1183 = vsel %vm1153, %v1150, %v900
        %v1185 = vsel %vm1153, %v1152, %v902
        %vm1186 = vcmask 326656
        %v1188 = vsel %vm1186, %v1155, %v907
        %v1190 = vsel %vm1186, %v1157, %v909
        %v1192 = vsel %vm1186, %v1159, %v911
        %v1194 = vsel %vm1186, %v1161, %v913
        %v1196 = vsel %vm1186, %v1163, %v915
        %v1198 = vsel %vm1186, %v1165, %v917
        %v1200 = vsel %vm1186, %v1167, %v919
        %v1202 = vsel %vm1186, %v1169, %v921
        %v1204 = vsel %vm1186, %v1171, %v923
        %v1206 = vsel %vm1186, %v1173, %v925
        %v1208 = vsel %vm1186, %v1175, %v927
        %v1210 = vsel %vm1186, %v1177, %v929
        %v1212 = vsel %vm1186, %v1179, %v931
        %v1214 = vsel %vm1186, %v1181, %v933
        %v1216 = vsel %vm1186, %v1183, %v935
        %v1218 = vsel %vm1186, %v1185, %v937
        %vm1219 = vcmask 392192
        %v1221 = vsel %vm1219, %v1188, %v941
        %v1223 = vsel %vm1219, %v1190, %v943
        %v1225 = vsel %vm1219, %v1192, %v945
        %v1227 = vsel %vm1219, %v1194, %v947
        %v1229 = vsel %vm1219, %v1196, %v949
        %v1231 = vsel %vm1219, %v1198, %v951
        %v1233 = vsel %vm1219, %v1200, %v953
        %v1235 = vsel %vm1219, %v1202, %v955
        %v1237 = vsel %vm1219, %v1204, %v957
        %v1239 = vsel %vm1219, %v1206, %v959
        %v1241 = vsel %vm1219, %v1208, %v961
        %v1243 = vsel %vm1219, %v1210, %v963
        %v1245 = vsel %vm1219, %v1212, %v965
        %v1247 = vsel %vm1219, %v1214, %v967
        %v1249 = vsel %vm1219, %v1216, %v969
        %v1251 = vsel %vm1219, %v1218, %v971
        %vm1252 = vcmask 457728
        %v1254 = vsel %vm1252, %v1221, %v988
        %v1256 = vsel %vm1252, %v1223, %v990
        %v1258 = vsel %vm1252, %v1225, %v992
        %v1260 = vsel %vm1252, %v1227, %v994
        %v1262 = vsel %vm1252, %v1229, %v996
        %v1264 = vsel %vm1252, %v1231, %v998
        %v1266 = vsel %vm1252, %v1233, %v1000
        %v1268 = vsel %vm1252, %v1235, %v1002
        %v1270 = vsel %vm1252, %v1237, %v1004
        %v1272 = vsel %vm1252, %v1239, %v1006
        %v1274 = vsel %vm1252, %v1241, %v1008
        %v1276 = vsel %vm1252, %v1243, %v1010
        %v1278 = vsel %vm1252, %v1245, %v1012
        %v1280 = vsel %vm1252, %v1247, %v1014
        %v1282 = vsel %vm1252, %v1249, %v1016
        %v1284 = vsel %vm1252, %v1251, %v1018
        %vm1285 = vcmask 523264
        %v1287 = vsel %vm1285, %v1254, %v1023
        %v1289 = vsel %vm1285, %v1256, %v1025
        %v1291 = vsel %vm1285, %v1258, %v1027
        %v1293 = vsel %vm1285, %v1260, %v1029
        %v1295 = vsel %vm1285, %v1262, %v1031
        %v1297 = vsel %vm1285, %v1264, %v1033
        %v1299 = vsel %vm1285, %v1266, %v1035
        %v1301 = vsel %vm1285, %v1268, %v1037
        %v1303 = vsel %vm1285, %v1270, %v1039
        %v1305 = vsel %vm1285, %v1272, %v1041
        %v1307 = vsel %vm1285, %v1274, %v1043
        %v1309 = vsel %vm1285, %v1276, %v1045
        %v1311 = vsel %vm1285, %v1278, %v1047
        %v1313 = vsel %vm1285, %v1280, %v1049
        %v1315 = vsel %vm1285, %v1282, %v1051
        %v1317 = vsel %vm1285, %v1284, %v1053
        %v1334 = vunpack.c.l.b16 %v1287
        %v1335 = vunpack.c.h.b16 %v1287
        %v1336 = vunpack.c.l.b16 %v1289
        %v1337 = vunpack.c.l.b16 %v1291
        %v1338 = vunpack.c.h.b16 %v1291
        %v1339 = vunpack.c.l.b16 %v1293
        %v1340 = vunpack.c.l.b16 %v1295
        %v1341 = vunpack.c.h.b16 %v1295
        %v1342 = vunpack.c.l.b16 %v1297
        %v1343 = vunpack.c.l.b16 %v1299
        %v1344 = vunpack.c.h.b16 %v1299
        %v1345 = vunpack.c.l.b16 %v1301
        %v1346 = vunpack.c.l.b16 %v1303
        %v1347 = vunpack.c.h.b16 %v1303
        %v1348 = vunpack.c.l.b16 %v1305
        %v1349 = vunpack.c.l.b16 %v1307
        %v1350 = vunpack.c.h.b16 %v1307
        %v1351 = vunpack.c.l.b16 %v1309
        %v1352 = vunpack.c.l.b16 %v1311
        %v1353 = vunpack.c.h.b16 %v1311
        %v1354 = vunpack.c.l.b16 %v1313
        %v1355 = vunpack.c.l.b16 %v1315
        %v1356 = vunpack.c.h.b16 %v1315
        %v1357 = vunpack.c.l.b16 %v1317
        %v1358 = vld [vmem:[%s2] sm:$0xf]
        %v1359 = vld [vmem:[%s2 + $0x4] sm:$0xf]
        %v1360 = vld [vmem:[%s2 + $0x8] sm:$0xf]
        %v1361 = vld [vmem:[%s2 + $0xc] sm:$0xf]
        %v1362 = vld [vmem:[%s2 + $0x10] sm:$0xf]
        %v1363 = vld [vmem:[%s2 + $0x14] sm:$0xf]
        %v1364 = vld [vmem:[%s2 + $0x18] sm:$0xf]
        %v1365 = vld [vmem:[%s2 + $0x1c] sm:$0xf]
        %v1366 = vld [vmem:[%s2 + $0x20] sm:$0xf]
        %v1367 = vld [vmem:[#allocation2] sm:$0x1]
        %v1369 = vlaneseq
        %v1370 = vshrl.u32 %v1369, 7
        %v1371 = vsub.s32 0, %v1370
        %v1372 = vrot.slane %v1367, %v1371
        %v1374 = vpack.c.b16 %v1335, %v1334
        %v1375 = vpack.c.b16 %v1337, %v1336
        %v1376 = vpack.c.b16 %v1339, %v1338
        %v1377 = vpack.c.b16 %v1341, %v1340
        %v1378 = vpack.c.b16 %v1343, %v1342
        %v1379 = vpack.c.b16 %v1345, %v1344
        %v1380 = vpack.c.b16 %v1347, %v1346
        %v1381 = vpack.c.b16 %v1349, %v1348
        %v1382 = vpack.c.b16 %v1351, %v1350
        %v1383 = vpack.c.b16 %v1353, %v1352
        %v1384 = vpack.c.b16 %v1355, %v1354
        %v1385 = vpack.c.b16 %v1357, %v1356
        %v1395 = vunpack.c.l.b16 %v1358
        %v1396 = vunpack.c.l.b16 %v1359
        %v1397 = vunpack.c.l.b16 %v1360
        %v1398 = vunpack.c.l.b16 %v1361
        %v1399 = vunpack.c.l.b16 %v1362
        %v1400 = vunpack.c.l.b16 %v1363
        %v1401 = vunpack.c.l.b16 %v1364
        %v1402 = vunpack.c.l.b16 %v1365
        %v1403 = vunpack.c.l.b16 %v1366
        %v1404 = vpack.c.b16 %v1396, %v1395
        %v1405 = vpack.c.b16 %v1398, %v1397
        %v1406 = vpack.c.b16 %v1400, %v1399
        %v1407 = vpack.c.b16 %v1402, %v1401
        %v1408 = vpack.c.b16 %v1403, %v1403
        %vm1413 = vcmask 588800
        %v1415 = vsel %vm1413, %v1374, 0
        %v1418 = vsel %vm1413, %v1375, 0
        %v1421 = vsel %vm1413, %v1376, 0
        %v1424 = vsel %vm1413, %v1377, 0
        %v1427 = vsel %vm1413, %v1378, 0
        %v1430 = vsel %vm1413, %v1379, 0
        %v1433 = vsel %vm1413, %v1380, 0
        %v1436 = vsel %vm1413, %v1381, 0
        %v1439 = vsel %vm1413, %v1382, 0
        %v1442 = vsel %vm1413, %v1383, 0
        %v1445 = vsel %vm1413, %v1384, 0
        %v1448 = vsel %vm1413, %v1385, 0
        %vm1450 = vcmask 1043456
        %v1452 = vsel %vm1450, %v1408, 0
        %1454 = vmatprep.subr.bf16.mxu0 0
        %1455 = vmatpush1.bf16.msra.mxu0 %v1404
        %1456 = vmatprep.subr.bf16.mxu0 0
        %1457 = vmatpush1.bf16.msra.mxu0 %v1405
        %1458 = vmatprep.subr.bf16.mxu0 0
        %1459 = vmatpush1.bf16.msra.mxu0 %v1406
        %1460 = vmatprep.subr.bf16.mxu0 0
        %1461 = vmatpush1.bf16.msra.mxu0 %v1407
        %1462 = vmatprep.subr.bf16.mxu0 0
        %1463 = vmatpush1.bf16.msra.mxu0 %v1452
        %1464 = vmatprep.subr.bf16.mxu0 0
        %1465 = vmatpush1.bf16.msra.mxu0 0
        %1466 = vmatprep.subr.bf16.mxu0 0
        %1467 = vmatpush1.bf16.msra.mxu0 0
        %1468 = vmatprep.subr.bf16.mxu0 0
        %1469 = vmatpush1.bf16.msra.mxu0 0
        %1470 = vmatprep.subr.bf16.mxu0 0
        %1471 = vmatpush1.bf16.msra.mxu0 0
        %1472 = vmatprep.subr.bf16.mxu0 0
        %1473 = vmatpush1.bf16.msra.mxu0 0
        %1474 = vmatprep.subr.bf16.mxu0 0
        %1475 = vmatpush1.bf16.msra.mxu0 0
        %1476 = vmatprep.subr.bf16.mxu0 0
        %1477 = vmatpush1.bf16.msra.mxu0 0
        %1478 = vmatprep.subr.bf16.mxu0 0
        %1479 = vmatpush1.bf16.msra.mxu0 0
        %1480 = vmatprep.subr.bf16.mxu0 0
        %1481 = vmatpush1.bf16.msra.mxu0 0
        %1482 = vmatprep.subr.bf16.mxu0 0
        %1483 = vmatpush1.bf16.msra.mxu0 0
        %1484 = vmatprep.subr.bf16.mxu0 0
        %1485 = vmatpush1.bf16.msra.mxu0 0
        %1486 = vmatprep.mubr.bf16.mxu0 0
        %1487 = vmatmul.mubr.bf16.gmra.mrb[0].mxu0 %v1415
        %v1488 = vpop.f32.mrb[0].mxu0
        %v1489 = vadd.f32 %v1372, %v1488
        %v1490 = vpop.f32.mrb[0].mxu0
        %v1491 = vpop.f32.mrb[0].mxu0
        %v1492 = vadd.f32 %v1372, %v1491
        %v1493 = vpop.f32.mrb[0].mxu0
        %1494 = vmatprep.mubr.bf16.mxu0 0
        %1495 = vmatmul.mubr.bf16.gmra.mrb[0].mxu0 %v1418
        %v1496 = vpop.f32.mrb[0].mxu0
        %v1497 = vadd.f32 %v1372, %v1496
        %v1498 = vpop.f32.mrb[0].mxu0
        %v1499 = vpop.f32.mrb[0].mxu0
        %v1500 = vadd.f32 %v1372, %v1499
        %v1501 = vpop.f32.mrb[0].mxu0
        %1502 = vmatprep.mubr.bf16.mxu0 0
        %1503 = vmatmul.mubr.bf16.gmra.mrb[0].mxu0 %v1421
        %v1504 = vpop.f32.mrb[0].mxu0
        %v1505 = vadd.f32 %v1372, %v1504
        %v1506 = vpop.f32.mrb[0].mxu0
        %v1507 = vpop.f32.mrb[0].mxu0
        %v1508 = vadd.f32 %v1372, %v1507
        %v1509 = vpop.f32.mrb[0].mxu0
        %1510 = vmatprep.mubr.bf16.mxu0 0
        %1511 = vmatmul.mubr.bf16.gmra.mrb[0].mxu0 %v1424
        %v1512 = vpop.f32.mrb[0].mxu0
        %v1513 = vadd.f32 %v1372, %v1512
        %v1514 = vpop.f32.mrb[0].mxu0
        %v1515 = vpop.f32.mrb[0].mxu0
        %v1516 = vadd.f32 %v1372, %v1515
        %v1517 = vpop.f32.mrb[0].mxu0
        %1518 = vmatprep.mubr.bf16.mxu0 0
        %1519 = vmatmul.mubr.bf16.gmra.mrb[0].mxu0 %v1427
        %v1520 = vpop.f32.mrb[0].mxu0
        %v1521 = vadd.f32 %v1372, %v1520
        %v1522 = vpop.f32.mrb[0].mxu0
        %v1523 = vpop.f32.mrb[0].mxu0
        %v1524 = vadd.f32 %v1372, %v1523
        %v1525 = vpop.f32.mrb[0].mxu0
        %1526 = vmatprep.mubr.bf16.mxu0 0
        %1527 = vmatmul.mubr.bf16.gmra.mrb[0].mxu0 %v1430
        %v1528 = vpop.f32.mrb[0].mxu0
        %v1529 = vadd.f32 %v1372, %v1528
        %v1530 = vpop.f32.mrb[0].mxu0
        %v1531 = vpop.f32.mrb[0].mxu0
        %v1532 = vadd.f32 %v1372, %v1531
        %v1533 = vpop.f32.mrb[0].mxu0
        %1534 = vmatprep.mubr.bf16.mxu0 0
        %1535 = vmatmul.mubr.bf16.gmra.mrb[0].mxu0 %v1433
        %v1536 = vpop.f32.mrb[0].mxu0
        %v1537 = vadd.f32 %v1372, %v1536
        %v1538 = vpop.f32.mrb[0].mxu0
        %v1539 = vpop.f32.mrb[0].mxu0
        %v1540 = vadd.f32 %v1372, %v1539
        %v1541 = vpop.f32.mrb[0].mxu0
        %1542 = vmatprep.mubr.bf16.mxu0 0
        %1543 = vmatmul.mubr.bf16.gmra.mrb[0].mxu0 %v1436
        %v1544 = vpop.f32.mrb[0].mxu0
        %v1545 = vadd.f32 %v1372, %v1544
        %v1546 = vpop.f32.mrb[0].mxu0
        %v1547 = vpop.f32.mrb[0].mxu0
        %v1548 = vadd.f32 %v1372, %v1547
        %v1549 = vpop.f32.mrb[0].mxu0
        %1550 = vmatprep.mubr.bf16.mxu0 0
        %1551 = vmatmul.mubr.bf16.gmra.mrb[0].mxu0 %v1439
        %v1552 = vpop.f32.mrb[0].mxu0
        %v1553 = vadd.f32 %v1372, %v1552
        %v1554 = vpop.f32.mrb[0].mxu0
        %v1555 = vpop.f32.mrb[0].mxu0
        %v1556 = vadd.f32 %v1372, %v1555
        %v1557 = vpop.f32.mrb[0].mxu0
        %1558 = vmatprep.mubr.bf16.mxu0 0
        %1559 = vmatmul.mubr.bf16.gmra.mrb[0].mxu0 %v1442
        %v1560 = vpop.f32.mrb[0].mxu0
        %v1561 = vadd.f32 %v1372, %v1560
        %v1562 = vpop.f32.mrb[0].mxu0
        %v1563 = vpop.f32.mrb[0].mxu0
        %v1564 = vadd.f32 %v1372, %v1563
        %v1565 = vpop.f32.mrb[0].mxu0
        %1566 = vmatprep.mubr.bf16.mxu0 0
        %1567 = vmatmul.mubr.bf16.gmra.mrb[0].mxu0 %v1445
        %v1568 = vpop.f32.mrb[0].mxu0
        %v1569 = vadd.f32 %v1372, %v1568
        %v1570 = vpop.f32.mrb[0].mxu0
        %v1571 = vpop.f32.mrb[0].mxu0
        %v1572 = vadd.f32 %v1372, %v1571
        %v1573 = vpop.f32.mrb[0].mxu0
        %1574 = vmatprep.mubr.bf16.mxu0 0
        %1575 = vmatmul.mubr.bf16.gmra.mrb[0].mxu0 %v1448
        %v1576 = vpop.f32.mrb[0].mxu0
        %v1577 = vadd.f32 %v1372, %v1576
        %v1578 = vpop.f32.mrb[0].mxu0
        %v1579 = vpop.f32.mrb[0].mxu0
        %v1580 = vadd.f32 %v1372, %v1579
        %v1581 = vpop.f32.mrb[0].mxu0
        %1582 = vdwg.mxu0
        %v1583 = vpack.c.bf16 %v1492, %v1489
        %v1584 = vpack.c.bf16 %v1497, %v1497
        %v1585 = vpack.c.bf16 %v1505, %v1500
        %v1586 = vpack.c.bf16 %v1508, %v1508
        %v1587 = vpack.c.bf16 %v1516, %v1513
        %v1588 = vpack.c.bf16 %v1521, %v1521
        %v1589 = vpack.c.bf16 %v1529, %v1524
        %v1590 = vpack.c.bf16 %v1532, %v1532
        %v1591 = vpack.c.bf16 %v1540, %v1537
        %v1592 = vpack.c.bf16 %v1545, %v1545
        %v1593 = vpack.c.bf16 %v1553, %v1548
        %v1594 = vpack.c.bf16 %v1556, %v1556
        %v1595 = vpack.c.bf16 %v1564, %v1561
        %v1596 = vpack.c.bf16 %v1569, %v1569
        %v1597 = vpack.c.bf16 %v1577, %v1572
        %v1598 = vpack.c.bf16 %v1580, %v1580
        %v1615 = vunpack.c.l.b16 %v1583
        %v1616 = vunpack.c.h.b16 %v1583
        %v1617 = vunpack.c.l.b16 %v1584
        %v1618 = vunpack.c.l.b16 %v1585
        %v1619 = vunpack.c.h.b16 %v1585
        %v1620 = vunpack.c.l.b16 %v1586
        %v1621 = vunpack.c.l.b16 %v1587
        %v1622 = vunpack.c.h.b16 %v1587
        %v1623 = vunpack.c.l.b16 %v1588
        %v1624 = vunpack.c.l.b16 %v1589
        %v1625 = vunpack.c.h.b16 %v1589
        %v1626 = vunpack.c.l.b16 %v1590
        %v1627 = vunpack.c.l.b16 %v1591
        %v1628 = vunpack.c.h.b16 %v1591
        %v1629 = vunpack.c.l.b16 %v1592
        %v1630 = vunpack.c.l.b16 %v1593
        %v1631 = vunpack.c.h.b16 %v1593
        %v1632 = vunpack.c.l.b16 %v1594
        %v1633 = vunpack.c.l.b16 %v1595
        %v1634 = vunpack.c.h.b16 %v1595
        %v1635 = vunpack.c.l.b16 %v1596
        %v1636 = vunpack.c.l.b16 %v1597
        %v1637 = vunpack.c.h.b16 %v1597
        %v1638 = vunpack.c.l.b16 %v1598
        %v1639 = vpack.c.b16 %v1615, %v1615
        %v1640 = vpack.c.b16 %v1616, %v1616
        %v1641 = vpack.c.b16 %v1617, %v1617
        %v1642 = vpack.c.b16 %v1618, %v1618
        %v1643 = vpack.c.b16 %v1619, %v1619
        %v1644 = vpack.c.b16 %v1620, %v1620
        %v1645 = vpack.c.b16 %v1621, %v1621
        %v1646 = vpack.c.b16 %v1622, %v1622
        %v1647 = vpack.c.b16 %v1623, %v1623
        %v1648 = vpack.c.b16 %v1624, %v1624
        %v1649 = vpack.c.b16 %v1625, %v1625
        %v1650 = vpack.c.b16 %v1626, %v1626
        %v1651 = vpack.c.b16 %v1627, %v1627
        %v1652 = vpack.c.b16 %v1628, %v1628
        %v1653 = vpack.c.b16 %v1629, %v1629
        %v1654 = vpack.c.b16 %v1630, %v1630
        %v1655 = vpack.c.b16 %v1631, %v1631
        %v1656 = vpack.c.b16 %v1632, %v1632
        %v1657 = vpack.c.b16 %v1633, %v1633
        %v1658 = vpack.c.b16 %v1634, %v1634
        %v1659 = vpack.c.b16 %v1635, %v1635
        %v1660 = vpack.c.b16 %v1636, %v1636
        %v1661 = vpack.c.b16 %v1637, %v1637
        %v1662 = vpack.c.b16 %v1638, %v1638
        %vm1687 = vcmask 257024
        %1688 = vst.msk [vmem:[%s287] sm:$0xf] %vm1687, %v1639
        %1689 = vst.msk [vmem:[%s287 + $0x4] sm:$0xf] %vm1687, %v1640
        %1690 = vst.msk [vmem:[%s287 + $0x8] sm:$0xf] %vm1687, %v1641
        %1691 = vst.msk [vmem:[%s287 + $0xc] sm:$0xf] %vm1687, %v1642
        %1692 = vst.msk [vmem:[%s287 + $0x10] sm:$0xf] %vm1687, %v1643
        %1693 = vst.msk [vmem:[%s287 + $0x14] sm:$0xf] %vm1687, %v1644
        %1694 = vst.msk [vmem:[%s287 + $0x18] sm:$0xf] %vm1687, %v1645
        %1695 = vst.msk [vmem:[%s287 + $0x1c] sm:$0xf] %vm1687, %v1646
        %1696 = vst.msk [vmem:[%s287 + $0x20] sm:$0xf] %vm1687, %v1647
        %1697 = vst.msk [vmem:[%s287 + $0x24] sm:$0xf] %vm1687, %v1648
        %1698 = vst.msk [vmem:[%s287 + $0x28] sm:$0xf] %vm1687, %v1649
        %1699 = vst.msk [vmem:[%s287 + $0x2c] sm:$0xf] %vm1687, %v1650
        %1700 = vst.msk [vmem:[%s287 + $0x30] sm:$0xf] %vm1687, %v1651
        %1701 = vst.msk [vmem:[%s287 + $0x34] sm:$0xf] %vm1687, %v1652
        %1702 = vst.msk [vmem:[%s287 + $0x38] sm:$0xf] %vm1687, %v1653
        %1703 = vst.msk [vmem:[%s287 + $0x3c] sm:$0xf] %vm1687, %v1654
        %1704 = vst.msk [vmem:[%s287 + $0x40] sm:$0xf] %vm1687, %v1655
        %1705 = vst.msk [vmem:[%s287 + $0x44] sm:$0xf] %vm1687, %v1656
        %1706 = vst.msk [vmem:[%s287 + $0x48] sm:$0xf] %vm1687, %v1657
        %1707 = vst.msk [vmem:[%s287 + $0x4c] sm:$0xf] %vm1687, %v1658
        %1708 = vst.msk [vmem:[%s287 + $0x50] sm:$0xf] %vm1687, %v1659
        %1709 = vst.msk [vmem:[%s287 + $0x54] sm:$0xf] %vm1687, %v1660
        %1710 = vst.msk [vmem:[%s287 + $0x58] sm:$0xf] %vm1687, %v1661
        %1711 = vst.msk [vmem:[%s287 + $0x5c] sm:$0xf] %vm1687, %v1662
        %s1712 = smul.u32 8, %s21
        %p1713 = scmp.lt.s32.totalorder %s20, 1
        %s1714 = scalar_select %p1713, %s20, 1
        %p1715 = scmp.lt.s32.totalorder %s1712, 23
        %s1716 = scalar_select %p1715, %s1712, 23
        %s1717 = smul.addr %s1716, 3
        %s1718 = smul.addr %s1714, 72
        %s1719 = sadd.s32 %s1717, %s1718
        %s1720 = smul.addr %s1719, 4
        %s1721 = scalar_lea.vmem %s4, %s1720
        // Predicated region
        $region41: #{edsr_ig_forward.5} parent=35 // pred_check
          %p1722 = pneg %p146
        $region42: #{edsr_ig_forward.5} parent=35 // pred_check_branch
          %1724 = sbr.rel (%p1722) target = $region44
        $region43: #{edsr_ig_forward.5} parent=35 // pred_region
          %s1725 = smul.u32 8, %s21
        $region44: #{edsr_ig_forward.5} parent=35 // pred_fallthru
          _
      $region36: #{edsr_ig_forward.5} parent=5 // pred_fallthru
        _
      %p1726 = scmp.le.s32.totalorder 2, %s11
      // Predicated region
      $region45: #{edsr_ig_forward.5} parent=5 // pred_check
        %p1727 = pneg %p1726
      $region46: #{edsr_ig_forward.5} parent=5 // pred_check_branch
        %1729 = sbr.rel (%p1727) target = $region48
      $region47: #{edsr_ig_forward.5} parent=5 // pred_region
        %s1730 = ssub.s32 %s11, 2
        // Predicated region
        $region49: #{edsr_ig_forward.5} parent=47 // pred_check
          %p1731 = pneg %p152
        $region50: #{edsr_ig_forward.5} parent=47 // pred_check_branch
          %1733 = sbr.rel (%p1731) target = $region52
        $region51: #{edsr_ig_forward.5} parent=47 // pred_region
          %s1734 = smul.u32 8, %s23
          %p1735 = scmp.lt.s32.totalorder %s22, 1
          %s1736 = scalar_select %p1735, %s22, 1
          %p1737 = scmp.lt.s32.totalorder %s1734, 23
          %s1738 = scalar_select %p1737, %s1734, 23
          %s1739 = smul.addr %s1738, 3
          %s1740 = smul.addr %s1736, 72
          %s1741 = sadd.s32 %s1739, %s1740
          %s1742 = smul.addr %s1741, 4
          %s1743 = scalar_lea.vmem %s4, %s1742
        $region52: #{edsr_ig_forward.5} parent=47 // pred_fallthru
          _
      $region48: #{edsr_ig_forward.5} parent=5 // pred_fallthru
        _
    $region6: #{edsr_ig_forward.5} parent=1 // loop_footer
      %s15 = sadd.s32 1, %s11
    $region7: #{edsr_ig_forward.5} parent=1 // loop_footer_branch
      %10 = sbr.rel target = $region3
    $region8: #{edsr_ig_forward.5} parent=1 // loop_exit
      _
    %1744 = vsyncpa [#allocation3], 1
    %s1745 = scalar_lea.sflag [#allocation3], 1
    %1746 = vsyncpa %s1745, 1

// kernel: edsr_ig_forward.8
$region0: #{edsr_ig_forward.8}
  #allocation0 [shape = 'u32[]', space=smem, size = 0x4, offset = 0x4, fixed_abs, tag = 'smem constant byte address 0x4 - core index']
  #allocation1 [shape = 'u32[144,128]{1,0:T(1,128)}', space=vmem, size = 0x12000, scoped, tag = 'internal scratch']
  %s0 = inlined_call_operand.vmem [shape: bf16[2,24,24,32], index: 0, kind: input, shape index: {}]
  %s1 = inlined_call_operand.vmem [shape: bf16[2,3,2,24,32], index: 1, kind: input, shape index: {}]
  %s2 = inlined_call_operand.vmem [shape: bf16[288,32], index: 2, kind: input, shape index: {}]
  %s3 = inlined_call_operand.vmem [shape: f32[1,32], index: 3, kind: input, shape index: {}]
  %s4 = inlined_call_operand.vmem [shape: bf16[2,24,24,32], index: 4, kind: input, shape index: {}]
  %s5 = inlined_call_operand.vmem [shape: bf16[2,24,24,32], index: 5, kind: output, shape index: {}]
  %s6 = sld [smem:[#allocation0]]
  $region53: #{edsr_ig_forward.8} parent=0
    _
  %s8 = ssub.s32 1, %s6
  %s9 = scalar_select 0, %s8, %s6
  loop: start=0, step=1, limit=8
  $region2: #{edsr_ig_forward.8} parent=0 // loop_pre_header
    _
  $region3: #{edsr_ig_forward.8} parent=0 // loop_header
    %s11 = sphi 0, %s15
    %p12 = scmp.ge.s32.totalorder %s11, 8
    %s18 = sphi 0, %s30
    %s19 = sphi 0, %s26
    %s20 = sphi 0, %s18
    %s21 = sphi 0, %s19
    %s22 = sphi 0, %s20
    %s23 = sphi 0, %s21
    %s35 = sphi 0, %s37
    %s38 = sphi 0, %s35
    %s39 = sphi 0, %s38
    %s55 = sphi 0, %s39
    %s63 = sphi 0, %s65
    %s66 = sphi 0, %s63
    %s67 = sphi 0, %s66
    %s83 = sphi 0, %s67
    %s87 = sphi 0, %s87
    %s89 = sphi 0, %s87
    %s90 = sphi 0, %s89
    %s104 = sphi 0, %s90
    %s108 = sphi 0, %s108
    %s110 = sphi 0, %s108
    %s111 = sphi 0, %s110
    %s125 = sphi 0, %s111
    %s133 = sphi 0, %s135
    %s136 = sphi 0, %s133
    %s137 = sphi 0, %s136
    %s153 = sphi 0, %s137
    %s161 = sphi 0, %s163
    %s164 = sphi 0, %s161
    %s165 = sphi 0, %s164
    %s181 = sphi 0, %s165
  $region4: #{edsr_ig_forward.8} parent=0 // loop_header_branch
    %14 = sbr.rel (%p12) target = $region8
  $region5: #{edsr_ig_forward.8} parent=0 // loop_body
    %s16 = ssub.s32 %s11, 1
    %s17 = ssub.s32 %s11, 2
    %s24 = sadd.s32 1, %s19
    %p25 = scmp.ge.s32.totalorder %s24, 3
    %s26 = scalar_select %p25, 0, %s24
    %s27 = sadd.s32 1, %s18
    %s28 = scalar_select %p25, %s27, %s18
    %p29 = scmp.ge.s32.totalorder %s28, 2
    %s30 = scalar_select %p29, 0, %s28
    %s31 = ssub.s32 %s18, %s30
    %s32 = ssub.s32 %s19, %s26
    %s33 = sor.u32 %s31, %s32
    %p34 = scmp.eq.s32.totalorder %s33, 0
    %s36 = sadd.s32 %s35, 1
    %s37 = scalar_select %p34, %s35, %s36
    %p40 = pneg %p34
    %p41 = scmp.eq.s32.totalorder %s11, 5
    %p42 = por %p40, %p41
    %p43 = scmp.ne.s32.totalorder %s35, %s38
    %p44 = scmp.eq.s32.totalorder %s11, 0
    %p45 = por %p43, %p44
    %p46 = scmp.ne.s32.totalorder %s35, %s38
    %p47 = scmp.eq.s32.totalorder %s16, 5
    %p48 = por %p46, %p47
    %p49 = scmp.ne.s32.totalorder %s38, %s39
    %p50 = scmp.eq.s32.totalorder %s16, 0
    %p51 = por %p49, %p50
    %p52 = scmp.ne.s32.totalorder %s38, %s39
    %p53 = scmp.eq.s32.totalorder %s17, 5
    %p54 = por %p52, %p53
    %p56 = scmp.ne.s32.totalorder %s39, %s55
    %p57 = scmp.eq.s32.totalorder %s17, 0
    %p58 = por %p56, %p57
    %s59 = ssub.s32 %s18, %s30
    %s60 = ssub.s32 %s19, %s26
    %s61 = sor.u32 %s59, %s60
    %p62 = scmp.eq.s32.totalorder %s61, 0
    %s64 = sadd.s32 %s63, 1
    %s65 = scalar_select %p62, %s63, %s64
    %p68 = pneg %p62
    %p69 = scmp.eq.s32.totalorder %s11, 5
    %p70 = por %p68, %p69
    %p71 = scmp.ne.s32.totalorder %s63, %s66
    %p72 = scmp.eq.s32.totalorder %s11, 0
    %p73 = por %p71, %p72
    %p74 = scmp.ne.s32.totalorder %s63, %s66
    %p75 = scmp.eq.s32.totalorder %s16, 5
    %p76 = por %p74, %p75
    %p77 = scmp.ne.s32.totalorder %s66, %s67
    %p78 = scmp.eq.s32.totalorder %s16, 0
    %p79 = por %p77, %p78
    %p80 = scmp.ne.s32.totalorder %s66, %s67
    %p81 = scmp.eq.s32.totalorder %s17, 5
    %p82 = por %p80, %p81
    %p84 = scmp.ne.s32.totalorder %s67, %s83
    %p85 = scmp.eq.s32.totalorder %s17, 0
    %p86 = por %p84, %p85
    %s88 = sadd.s32 %s87, 1
    %p91 = scmp.eq.s32.totalorder %s11, 5
    %p92 = scmp.ne.s32.totalorder %s87, %s89
    %p93 = scmp.eq.s32.totalorder %s11, 0
    %p94 = por %p92, %p93
    %p95 = scmp.ne.s32.totalorder %s87, %s89
    %p96 = scmp.eq.s32.totalorder %s16, 5
    %p97 = por %p95, %p96
    %p98 = scmp.ne.s32.totalorder %s89, %s90
    %p99 = scmp.eq.s32.totalorder %s16, 0
    %p100 = por %p98, %p99
    %p101 = scmp.ne.s32.totalorder %s89, %s90
    %p102 = scmp.eq.s32.totalorder %s17, 5
    %p103 = por %p101, %p102
    %p105 = scmp.ne.s32.totalorder %s90, %s104
    %p106 = scmp.eq.s32.totalorder %s17, 0
    %p107 = por %p105, %p106
    %s109 = sadd.s32 %s108, 1
    %p112 = scmp.eq.s32.totalorder %s11, 5
    %p113 = scmp.ne.s32.totalorder %s108, %s110
    %p114 = scmp.eq.s32.totalorder %s11, 0
    %p115 = por %p113, %p114
    %p116 = scmp.ne.s32.totalorder %s108, %s110
    %p117 = scmp.eq.s32.totalorder %s16, 5
    %p118 = por %p116, %p117
    %p119 = scmp.ne.s32.totalorder %s110, %s111
    %p120 = scmp.eq.s32.totalorder %s16, 0
    %p121 = por %p119, %p120
    %p122 = scmp.ne.s32.totalorder %s110, %s111
    %p123 = scmp.eq.s32.totalorder %s17, 5
    %p124 = por %p122, %p123
    %p126 = scmp.ne.s32.totalorder %s111, %s125
    %p127 = scmp.eq.s32.totalorder %s17, 0
    %p128 = por %p126, %p127
    %s129 = ssub.s32 %s18, %s30
    %s130 = ssub.s32 %s19, %s26
    %s131 = sor.u32 %s129, %s130
    %p132 = scmp.eq.s32.totalorder %s131, 0
    %s134 = sadd.s32 %s133, 1
    %s135 = scalar_select %p132, %s133, %s134
    %p138 = pneg %p132
    %p139 = scmp.eq.s32.totalorder %s11, 5
    %p140 = por %p138, %p139
    %p141 = scmp.ne.s32.totalorder %s133, %s136
    %p142 = scmp.eq.s32.totalorder %s11, 0
    %p143 = por %p141, %p142
    %p144 = scmp.ne.s32.totalorder %s133, %s136
    %p145 = scmp.eq.s32.totalorder %s16, 5
    %p146 = por %p144, %p145
    %p147 = scmp.ne.s32.totalorder %s136, %s137
    %p148 = scmp.eq.s32.totalorder %s16, 0
    %p149 = por %p147, %p148
    %p150 = scmp.ne.s32.totalorder %s136, %s137
    %p151 = scmp.eq.s32.totalorder %s17, 5
    %p152 = por %p150, %p151
    %p154 = scmp.ne.s32.totalorder %s137, %s153
    %p155 = scmp.eq.s32.totalorder %s17, 0
    %p156 = por %p154, %p155
    %s157 = ssub.s32 %s18, %s30
    %s158 = ssub.s32 %s19, %s26
    %s159 = sor.u32 %s157, %s158
    %p160 = scmp.eq.s32.totalorder %s159, 0
    %s162 = sadd.s32 %s161, 1
    %s163 = scalar_select %p160, %s161, %s162
    %p166 = pneg %p160
    %p167 = scmp.eq.s32.totalorder %s11, 5
    %p168 = por %p166, %p167
    %p169 = scmp.ne.s32.totalorder %s161, %s164
    %p170 = scmp.eq.s32.totalorder %s11, 0
    %p171 = por %p169, %p170
    %p172 = scmp.ne.s32.totalorder %s161, %s164
    %p173 = scmp.eq.s32.totalorder %s16, 5
    %p174 = por %p172, %p173
    %p175 = scmp.ne.s32.totalorder %s164, %s165
    %p176 = scmp.eq.s32.totalorder %s16, 0
    %p177 = por %p175, %p176
    %p178 = scmp.ne.s32.totalorder %s164, %s165
    %p179 = scmp.eq.s32.totalorder %s17, 5
    %p180 = por %p178, %p179
    %p182 = scmp.ne.s32.totalorder %s165, %s181
    %p183 = scmp.eq.s32.totalorder %s17, 0
    %p184 = por %p182, %p183
    %p185 = scmp.le.s32.totalorder 1, %s11
    %p186 = scmp.lt.s32.totalorder %s11, 7
    %p187 = pnand %p185, %p186
    %p188 = pneg %p187
    // Predicated region
    $region9: #{edsr_ig_forward.8} parent=5 // pred_check
      _
    $region10: #{edsr_ig_forward.8} parent=5 // pred_check_branch
      %190 = sbr.rel (%p187) target = $region12
    $region11: #{edsr_ig_forward.8} parent=5 // pred_region
      %s191 = ssub.s32 %s11, 1
      // Predicated region
      $region13: #{edsr_ig_forward.8} parent=11 // pred_check
        %p192 = pneg %p100
      $region14: #{edsr_ig_forward.8} parent=11 // pred_check_branch
        %194 = sbr.rel (%p192) target = $region16
      $region15: #{edsr_ig_forward.8} parent=11 // pred_region
        _
      $region16: #{edsr_ig_forward.8} parent=11 // pred_fallthru
        _
      // Predicated region
      $region17: #{edsr_ig_forward.8} parent=11 // pred_check
        %p195 = pneg %p121
      $region18: #{edsr_ig_forward.8} parent=11 // pred_check_branch
        %197 = sbr.rel (%p195) target = $region20
      $region19: #{edsr_ig_forward.8} parent=11 // pred_region
        _
      $region20: #{edsr_ig_forward.8} parent=11 // pred_fallthru
        _
    $region12: #{edsr_ig_forward.8} parent=5 // pred_fallthru
      _
    %p198 = scmp.lt.s32.totalorder %s11, 6
    // Predicated region
    $region21: #{edsr_ig_forward.8} parent=5 // pred_check
      %p199 = pneg %p198
    $region22: #{edsr_ig_forward.8} parent=5 // pred_check_branch
      %201 = sbr.rel (%p199) target = $region24
    $region23: #{edsr_ig_forward.8} parent=5 // pred_region
      // Predicated region
      $region25: #{edsr_ig_forward.8} parent=23 // pred_check
        %p202 = pneg %p45
      $region26: #{edsr_ig_forward.8} parent=23 // pred_check_branch
        %204 = sbr.rel (%p202) target = $region28
      $region27: #{edsr_ig_forward.8} parent=23 // pred_region
        %s205 = smul.u32 8, %s19
        %p206 = scmp.lt.s32.totalorder %s18, 1
        %s207 = scalar_select %p206, %s18, 1
        %p208 = scmp.lt.s32.totalorder %s205, 23
        %s209 = scalar_select %p208, %s205, 23
        %s210 = smul.addr %s209, 3
        %s211 = smul.addr %s207, 72
        %s212 = sadd.s32 %s210, %s211
        %s213 = smul.addr %s212, 4
        %s214 = scalar_lea.vmem %s0, %s213
        %s215 = smul.u32 8, %s19
      $region28: #{edsr_ig_forward.8} parent=23 // pred_fallthru
        _
      // Predicated region
      $region29: #{edsr_ig_forward.8} parent=23 // pred_check
        %p216 = pneg %p73
      $region30: #{edsr_ig_forward.8} parent=23 // pred_check_branch
        %218 = sbr.rel (%p216) target = $region32
      $region31: #{edsr_ig_forward.8} parent=23 // pred_region
        %p219 = scmp.lt.s32.totalorder %s18, 1
        %s220 = scalar_select %p219, %s18, 1
        %p221 = scmp.lt.s32.totalorder %s19, 2
        %s222 = scalar_select %p221, %s19, 2
        %s223 = smul.addr %s222, 6
        %s224 = smul.addr %s220, 18
        %s225 = sadd.s32 %s223, %s224
        %s226 = smul.addr %s225, 4
        %s227 = scalar_lea.vmem %s1, %s226
      $region32: #{edsr_ig_forward.8} parent=23 // pred_fallthru
        _
      // Predicated region
      $region33: #{edsr_ig_forward.8} parent=23 // pred_check
        %p228 = pneg %p143
      $region34: #{edsr_ig_forward.8} parent=23 // pred_check_branch
        %230 = sbr.rel (%p228) target = $region36
      $region35: #{edsr_ig_forward.8} parent=23 // pred_region
        %s231 = smul.u32 8, %s19
        %p232 = scmp.lt.s32.totalorder %s18, 1
        %s233 = scalar_select %p232, %s18, 1
        %p234 = scmp.lt.s32.totalorder %s231, 23
        %s235 = scalar_select %p234, %s231, 23
        %s236 = smul.addr %s235, 3
        %s237 = smul.addr %s233, 72
        %s238 = sadd.s32 %s236, %s237
        %s239 = smul.addr %s238, 4
        %s240 = scalar_lea.vmem %s4, %s239
        %s241 = smul.u32 8, %s19
      $region36: #{edsr_ig_forward.8} parent=23 // pred_fallthru
        _
    $region24: #{edsr_ig_forward.8} parent=5 // pred_fallthru
      _
    %p242 = scmp.le.s32.totalorder 1, %s11
    %p243 = scmp.lt.s32.totalorder %s11, 7
    %p244 = pnand %p242, %p243
    %p245 = pneg %p244
    // Predicated region
    $region37: #{edsr_ig_forward.8} parent=5 // pred_check
      _
    $region38: #{edsr_ig_forward.8} parent=5 // pred_check_branch
      %247 = sbr.rel (%p244) target = $region40
    $region39: #{edsr_ig_forward.8} parent=5 // pred_region
      %s248 = ssub.s32 %s11, 1
      %s249 = smul.u32 8, %s21
      %p250 = scmp.lt.s32.totalorder %s20, 1
      %s251 = scalar_select %p250, %s20, 1
      %p252 = scmp.lt.s32.totalorder %s249, 23
      %s253 = scalar_select %p252, %s249, 23
      %s254 = smul.addr %s253, 3
      %s255 = smul.addr %s251, 72
      %s256 = sadd.s32 %s254, %s255
      %s257 = smul.addr %s256, 4
      %s258 = scalar_lea.vmem %s0, %s257
      %p259 = pneg %p51
      %p260 = pneg %p48
      %p261 = scmp.lt.s32.totalorder %s20, 1
      %s262 = scalar_select %p261, %s20, 1
      %p263 = scmp.lt.s32.totalorder %s21, 2
      %s264 = scalar_select %p263, %s21, 2
      %s265 = smul.addr %s264, 6
      %s266 = smul.addr %s262, 18
      %s267 = sadd.s32 %s265, %s266
      %s268 = smul.addr %s267, 4
      %s269 = scalar_lea.vmem %s1, %s268
      %p270 = pneg %p79
      %p271 = pneg %p76
      %p272 = pneg %p100
      %p273 = pneg %p97
      %p274 = pneg %p121
      %p275 = pneg %p118
      %s276 = smul.u32 8, %s21
      %p277 = scmp.lt.s32.totalorder %s20, 1
      %s278 = scalar_select %p277, %s20, 1
      %p279 = scmp.lt.s32.totalorder %s276, 23
      %s280 = scalar_select %p279, %s276, 23
      %s281 = smul.addr %s280, 3
      %s282 = smul.addr %s278, 72
      %s283 = sadd.s32 %s281, %s282
      %s284 = smul.addr %s283, 4
      %s285 = scalar_lea.vmem %s4, %s284
      %p286 = pneg %p149
      %p287 = pneg %p146
      %p288 = pneg %p177
      %p289 = pneg %p174
      %s290 = smul.u32 8, %s21
      %p291 = scmp.lt.s32.totalorder %s20, 1
      %s292 = scalar_select %p291, %s20, 1
      %p293 = scmp.lt.s32.totalorder %s290, 23
      %s294 = scalar_select %p293, %s290, 23
      %s295 = smul.addr %s294, 3
      %s296 = smul.addr %s292, 72
      %s297 = sadd.s32 %s295, %s296
      %s298 = smul.addr %s297, 4
      %s299 = scalar_lea.vmem %s5, %s298
      %s300 = smul.u32 8, %s21
      %p301 = scmp.lt.s32.totalorder %s20, 1
      %s302 = scalar_select %p301, %s20, 1
      %p303 = scmp.lt.s32.totalorder %s300, 23
      %s304 = scalar_select %p303, %s300, 23
      %s305 = smul.addr %s304, 3
      %s306 = smul.addr %s302, 72
      %s307 = sadd.s32 %s305, %s306
      %s308 = smul.addr %s307, 4
      %s309 = scalar_lea.vmem %s0, %s308
      %s310 = smul.u32 8, %s21
      %p311 = scmp.lt.s32.totalorder %s20, 1
      %s312 = scalar_select %p311, %s20, 1
      %p313 = scmp.lt.s32.totalorder %s21, 2
      %s314 = scalar_select %p313, %s21, 2
      %s315 = smul.addr %s314, 6
      %s316 = smul.addr %s312, 18
      %s317 = sadd.s32 %s315, %s316
      %s318 = smul.addr %s317, 4
      %s319 = scalar_lea.vmem %s1, %s318
      %s320 = smul.u32 8, %s21
      %p321 = scmp.lt.s32.totalorder %s20, 1
      %s322 = scalar_select %p321, %s20, 1
      %p323 = scmp.lt.s32.totalorder %s320, 23
      %s324 = scalar_select %p323, %s320, 23
      %s325 = smul.addr %s324, 3
      %s326 = smul.addr %s322, 72
      %s327 = sadd.s32 %s325, %s326
      %s328 = smul.addr %s327, 4
      %s329 = scalar_lea.vmem %s4, %s328
      %s330 = smul.u32 8, %s21
      %s331 = smul.u32 8, %s21
      %p332 = scmp.lt.s32.totalorder %s20, 1
      %s333 = scalar_select %p332, %s20, 1
      %p334 = scmp.lt.s32.totalorder %s331, 23
      %s335 = scalar_select %p334, %s331, 23
      %s336 = smul.addr %s335, 3
      %s337 = smul.addr %s333, 72
      %s338 = sadd.s32 %s336, %s337
      %s339 = smul.addr %s338, 4
      %s340 = scalar_lea.vmem %s5, %s339
      %s341 = smul.u32 8, %s21
      %v343 = vld [vmem:[%s309] sm:$0xf]
      %v344 = vld [vmem:[%s309 + $0x4] sm:$0xf]
      %v345 = vld [vmem:[%s309 + $0x8] sm:$0xf]
      %v346 = vld [vmem:[%s309 + $0xc] sm:$0xf]
      %v347 = vld [vmem:[%s309 + $0x10] sm:$0xf]
      %v348 = vld [vmem:[%s309 + $0x14] sm:$0xf]
      %v349 = vld [vmem:[%s309 + $0x18] sm:$0xf]
      %v350 = vld [vmem:[%s309 + $0x1c] sm:$0xf]
      %v351 = vld [vmem:[%s309 + $0x20] sm:$0xf]
      %v352 = vld [vmem:[%s309 + $0x24] sm:$0xf]
      %v353 = vld [vmem:[%s309 + $0x28] sm:$0xf]
      %v354 = vld [vmem:[%s309 + $0x2c] sm:$0xf]
      %v355 = vld [vmem:[%s309 + $0x30] sm:$0xf]
      %v356 = vld [vmem:[%s309 + $0x34] sm:$0xf]
      %v357 = vld [vmem:[%s309 + $0x38] sm:$0xf]
      %v358 = vld [vmem:[%s309 + $0x3c] sm:$0xf]
      %v359 = vld [vmem:[%s309 + $0x40] sm:$0xf]
      %v360 = vld [vmem:[%s309 + $0x44] sm:$0xf]
      %v361 = vld [vmem:[%s309 + $0x48] sm:$0xf]
      %v362 = vld [vmem:[%s309 + $0x4c] sm:$0xf]
      %v363 = vld [vmem:[%s309 + $0x50] sm:$0xf]
      %v364 = vld [vmem:[%s309 + $0x54] sm:$0xf]
      %v365 = vld [vmem:[%s309 + $0x58] sm:$0xf]
      %v366 = vld [vmem:[%s309 + $0x5c] sm:$0xf]
      %v367 = vld [vmem:[%s319] sm:$0xf]
      %v368 = vld [vmem:[%s319 + $0x4] sm:$0xf]
      %v369 = vld [vmem:[%s319 + $0x8] sm:$0xf]
      %v370 = vld [vmem:[%s319 + $0xc] sm:$0xf]
      %v371 = vld [vmem:[%s319 + $0x10] sm:$0xf]
      %v372 = vld [vmem:[%s319 + $0x14] sm:$0xf]
      %v403 = vunpack.c.l.b16 %v367
      %v404 = vunpack.c.l.b16 %v368
      %v405 = vunpack.c.l.b16 %v369
      %v406 = vunpack.c.l.b16 %v343
      %v407 = vunpack.c.l.b16 %v344
      %v408 = vunpack.c.l.b16 %v345
      %v409 = vunpack.c.l.b16 %v346
      %v410 = vunpack.c.l.b16 %v347
      %v411 = vunpack.c.l.b16 %v348
      %v412 = vunpack.c.l.b16 %v349
      %v413 = vunpack.c.l.b16 %v350
      %v414 = vunpack.c.l.b16 %v351
      %v415 = vunpack.c.l.b16 %v352
      %v416 = vunpack.c.l.b16 %v353
      %v417 = vunpack.c.l.b16 %v354
      %v418 = vunpack.c.l.b16 %v355
      %v419 = vunpack.c.l.b16 %v356
      %v420 = vunpack.c.l.b16 %v357
      %v421 = vunpack.c.l.b16 %v358
      %v422 = vunpack.c.l.b16 %v359
      %v423 = vunpack.c.l.b16 %v360
      %v424 = vunpack.c.l.b16 %v361
      %v425 = vunpack.c.l.b16 %v362
      %v426 = vunpack.c.l.b16 %v363
      %v427 = vunpack.c.l.b16 %v364
      %v428 = vunpack.c.l.b16 %v365
      %v429 = vunpack.c.l.b16 %v366
      %v430 = vunpack.c.l.b16 %v370
      %v431 = vunpack.c.l.b16 %v371
      %v432 = vunpack.c.l.b16 %v372
      %v433 = vpack.c.b16 %v404, %v403
      %v434 = vpack.c.b16 %v405, %v405
      %v435 = vpack.c.b16 %v407, %v406
      %v436 = vpack.c.b16 %v408, %v408
      %v437 = vpack.c.b16 %v410, %v409
      %v438 = vpack.c.b16 %v411, %v411
      %v439 = vpack.c.b16 %v413, %v412
      %v440 = vpack.c.b16 %v414, %v414
      %v441 = vpack.c.b16 %v416, %v415
      %v442 = vpack.c.b16 %v417, %v417
      %v443 = vpack.c.b16 %v419, %v418
      %v444 = vpack.c.b16 %v420, %v420
      %v445 = vpack.c.b16 %v422, %v421
      %v446 = vpack.c.b16 %v423, %v423
      %v447 = vpack.c.b16 %v425, %v424
      %v448 = vpack.c.b16 %v426, %v426
      %v449 = vpack.c.b16 %v428, %v427
      %v450 = vpack.c.b16 %v429, %v429
      %v451 = vpack.c.b16 %v431, %v430
      %v452 = vpack.c.b16 %v432, %v432
      %vm453 = vsmask.f32 256
      %v455 = vshrl.u32 %v433, 16
      %v457 = vrot.slane %v455, 7
      %v458 = vshll.u32 %v433, 16
      %v460 = vor.u32 %v457, %v458
      %v462 = vshrl.u32 %v434, 16
      %v464 = vrot.slane %v462, 7
      %v465 = vshll.u32 %v434, 16
      %v467 = vor.u32 %v464, %v465
      %v468 = vsel %vm453, %v457, %v467
      %v470 = vshrl.u32 %v435, 16
      %v472 = vrot.slane %v470, 7
      %v473 = vshll.u32 %v435, 16
      %v475 = vor.u32 %v472, %v473
      %v477 = vshrl.u32 %v436, 16
      %v479 = vrot.slane %v477, 7
      %v480 = vshll.u32 %v436, 16
      %v482 = vor.u32 %v479, %v480
      %v483 = vsel %vm453, %v472, %v482
      %v485 = vshrl.u32 %v437, 16
      %v487 = vrot.slane %v485, 7
      %v488 = vshll.u32 %v437, 16
      %v490 = vor.u32 %v487, %v488
      %v492 = vshrl.u32 %v438, 16
      %v494 = vrot.slane %v492, 7
      %v495 = vshll.u32 %v438, 16
      %v497 = vor.u32 %v494, %v495
      %v498 = vsel %vm453, %v487, %v497
      %v500 = vshrl.u32 %v439, 16
      %v502 = vrot.slane %v500, 7
      %v503 = vshll.u32 %v439, 16
      %v505 = vor.u32 %v502, %v503
      %v507 = vshrl.u32 %v440, 16
      %v509 = vrot.slane %v507, 7
      %v510 = vshll.u32 %v440, 16
      %v512 = vor.u32 %v509, %v510
      %v513 = vsel %vm453, %v502, %v512
      %v515 = vshrl.u32 %v441, 16
      %v517 = vrot.slane %v515, 7
      %v518 = vshll.u32 %v441, 16
      %v520 = vor.u32 %v517, %v518
      %v522 = vshrl.u32 %v442, 16
      %v524 = vrot.slane %v522, 7
      %v525 = vshll.u32 %v442, 16
      %v527 = vor.u32 %v524, %v525
      %v528 = vsel %vm453, %v517, %v527
      %v530 = vshrl.u32 %v443, 16
      %v532 = vrot.slane %v530, 7
      %v533 = vshll.u32 %v443, 16
      %v535 = vor.u32 %v532, %v533
      %v537 = vshrl.u32 %v444, 16
      %v539 = vrot.slane %v537, 7
      %v540 = vshll.u32 %v444, 16
      %v542 = vor.u32 %v539, %v540
      %v543 = vsel %vm453, %v532, %v542
      %v545 = vshrl.u32 %v445, 16
      %v547 = vrot.slane %v545, 7
      %v548 = vshll.u32 %v445, 16
      %v550 = vor.u32 %v547, %v548
      %v552 = vshrl.u32 %v446, 16
      %v554 = vrot.slane %v552, 7
      %v555 = vshll.u32 %v446, 16
      %v557 = vor.u32 %v554, %v555
      %v558 = vsel %vm453, %v547, %v557
      %v560 = vshrl.u32 %v447, 16
      %v562 = vrot.slane %v560, 7
      %v563 = vshll.u32 %v447, 16
      %v565 = vor.u32 %v562, %v563
      %v567 = vshrl.u32 %v448, 16
      %v569 = vrot.slane %v567, 7
      %v570 = vshll.u32 %v448, 16
      %v572 = vor.u32 %v569, %v570
      %v573 = vsel %vm453, %v562, %v572
      %v575 = vshrl.u32 %v449, 16
      %v577 = vrot.slane %v575, 7
      %v578 = vshll.u32 %v449, 16
      %v580 = vor.u32 %v577, %v578
      %v582 = vshrl.u32 %v450, 16
      %v584 = vrot.slane %v582, 7
      %v585 = vshll.u32 %v450, 16
      %v587 = vor.u32 %v584, %v585
      %v588 = vsel %vm453, %v577, %v587
      %v590 = vshrl.u32 %v451, 16
      %v592 = vrot.slane %v590, 7
      %v593 = vshll.u32 %v451, 16
      %v595 = vor.u32 %v592, %v593
      %v597 = vshrl.u32 %v452, 16
      %v599 = vrot.slane %v597, 7
      %v600 = vshll.u32 %v452, 16
      %v602 = vor.u32 %v599, %v600
      %v603 = vsel %vm453, %v592, %v602
      %vm624 = vcmask 1040384
      %vm625 = vmand %vm624, %vm453
      %v626 = vsel %vm625, 0, %v460
      %v627 = vsel %vm625, 0, %v475
      %v628 = vsel %vm625, 0, %v490
      %v629 = vsel %vm625, 0, %v505
      %v630 = vsel %vm625, 0, %v520
      %v631 = vsel %vm625, 0, %v535
      %v632 = vsel %vm625, 0, %v550
      %v633 = vsel %vm625, 0, %v565
      %v634 = vsel %vm625, 0, %v580
      %v635 = vsel %vm625, 0, %v595
      %vm636 = vcmask 1044480
      %vm637 = vsmask.f32 4352
      %vm638 = vmand %vm636, %vm637
      %v639 = vsel %vm638, %v468, 0
      %v640 = vsel %vm638, %v483, 0
      %v641 = vsel %vm638, %v498, 0
      %v642 = vsel %vm638, %v513, 0
      %v643 = vsel %vm638, %v528, 0
      %v644 = vsel %vm638, %v543, 0
      %v645 = vsel %vm638, %v558, 0
      %v646 = vsel %vm638, %v573, 0
      %v647 = vsel %vm638, %v588, 0
      %v648 = vsel %vm638, %v603, 0
      %vm649 = vsmask.f32 7424
      %v651 = vshrl.u32 %v626, 16
      %v653 = vshll.u32 %v626, 16
      %v655 = vrot.slane %v653, 1
      %v656 = vor.u32 %v651, %v655
      %v658 = vshll.u32 %v639, 16
      %v660 = vrot.slane %v658, 1
      %v661 = vsel %vm649, %v656, %v660
      %v662 = vshrl.u32 %v639, 16
      %v664 = vor.u32 %v662, %v660
      %v666 = vshrl.u32 %v627, 16
      %v668 = vshll.u32 %v627, 16
      %v670 = vrot.slane %v668, 1
      %v671 = vor.u32 %v666, %v670
      %v673 = vshll.u32 %v640, 16
      %v675 = vrot.slane %v673, 1
      %v676 = vsel %vm649, %v671, %v675
      %v677 = vshrl.u32 %v640, 16
      %v679 = vor.u32 %v677, %v675
      %v681 = vshrl.u32 %v628, 16
      %v683 = vshll.u32 %v628, 16
      %v685 = vrot.slane %v683, 1
      %v686 = vor.u32 %v681, %v685
      %v688 = vshll.u32 %v641, 16
      %v690 = vrot.slane %v688, 1
      %v691 = vsel %vm649, %v686, %v690
      %v692 = vshrl.u32 %v641, 16
      %v694 = vor.u32 %v692, %v690
      %v696 = vshrl.u32 %v629, 16
      %v698 = vshll.u32 %v629, 16
      %v700 = vrot.slane %v698, 1
      %v701 = vor.u32 %v696, %v700
      %v703 = vshll.u32 %v642, 16
      %v705 = vrot.slane %v703, 1
      %v706 = vsel %vm649, %v701, %v705
      %v707 = vshrl.u32 %v642, 16
      %v709 = vor.u32 %v707, %v705
      %v711 = vshrl.u32 %v630, 16
      %v713 = vshll.u32 %v630, 16
      %v715 = vrot.slane %v713, 1
      %v716 = vor.u32 %v711, %v715
      %v718 = vshll.u32 %v643, 16
      %v720 = vrot.slane %v718, 1
      %v721 = vsel %vm649, %v716, %v720
      %v722 = vshrl.u32 %v643, 16
      %v724 = vor.u32 %v722, %v720
      %v726 = vshrl.u32 %v631, 16
      %v728 = vshll.u32 %v631, 16
      %v730 = vrot.slane %v728, 1
      %v731 = vor.u32 %v726, %v730
      %v733 = vshll.u32 %v644, 16
      %v735 = vrot.slane %v733, 1
      %v736 = vsel %vm649, %v731, %v735
      %v737 = vshrl.u32 %v644, 16
      %v739 = vor.u32 %v737, %v735
      %v741 = vshrl.u32 %v632, 16
      %v743 = vshll.u32 %v632, 16
      %v745 = vrot.slane %v743, 1
      %v746 = vor.u32 %v741, %v745
      %v748 = vshll.u32 %v645, 16
      %v750 = vrot.slane %v748, 1
      %v751 = vsel %vm649, %v746, %v750
      %v752 = vshrl.u32 %v645, 16
      %v754 = vor.u32 %v752, %v750
      %v756 = vshrl.u32 %v633, 16
      %v758 = vshll.u32 %v633, 16
      %v760 = vrot.slane %v758, 1
      %v761 = vor.u32 %v756, %v760
      %v763 = vshll.u32 %v646, 16
      %v765 = vrot.slane %v763, 1
      %v766 = vsel %vm649, %v761, %v765
      %v767 = vshrl.u32 %v646, 16
      %v769 = vor.u32 %v767, %v765
      %770 = vrot.lane.b32.xlu0 %v661, 32
      %v771 = vpop.permute.xlu0 %770
      %772 = vrot.lane.b32.xlu0 %v664, 32
      %v773 = vpop.permute.xlu0 %772
      %774 = vrot.lane.b32.xlu0 %v676, 32
      %v775 = vpop.permute.xlu0 %774
      %776 = vrot.lane.b32.xlu0 %v679, 32
      %v777 = vpop.permute.xlu0 %776
      %778 = vrot.lane.b32.xlu0 %v691, 32
      %v779 = vpop.permute.xlu0 %778
      %780 = vrot.lane.b32.xlu0 %v694, 32
      %v781 = vpop.permute.xlu0 %780
      %782 = vrot.lane.b32.xlu0 %v706, 32
      %v783 = vpop.permute.xlu0 %782
      %784 = vrot.lane.b32.xlu0 %v709, 32
      %v785 = vpop.permute.xlu0 %784
      %786 = vrot.lane.b32.xlu0 %v721, 32
      %v787 = vpop.permute.xlu0 %786
      %788 = vrot.lane.b32.xlu0 %v724, 32
      %v789 = vpop.permute.xlu0 %788
      %790 = vrot.lane.b32.xlu0 %v736, 32
      %v791 = vpop.permute.xlu0 %790
      %792 = vrot.lane.b32.xlu0 %v739, 32
      %v793 = vpop.permute.xlu0 %792
      %794 = vrot.lane.b32.xlu0 %v751, 32
      %v795 = vpop.permute.xlu0 %794
      %796 = vrot.lane.b32.xlu0 %v754, 32
      %v797 = vpop.permute.xlu0 %796
      %798 = vrot.lane.b32.xlu0 %v766, 32
      %v799 = vpop.permute.xlu0 %798
      %800 = vrot.lane.b32.xlu0 %v769, 32
      %v801 = vpop.permute.xlu0 %800
      %vm818 = vcmask 1046528
      %v819 = vrot.slane %v626, 1
      %v820 = vrot.slane %v639, 1
      %v821 = vsel %vm818, %v819, %v820
      %v822 = vrot.slane %v627, 1
      %v823 = vrot.slane %v640, 1
      %v824 = vsel %vm818, %v822, %v823
      %v825 = vrot.slane %v628, 1
      %v826 = vrot.slane %v641, 1
      %v827 = vsel %vm818, %v825, %v826
      %v828 = vrot.slane %v629, 1
      %v829 = vrot.slane %v642, 1
      %v830 = vsel %vm818, %v828, %v829
      %v831 = vrot.slane %v630, 1
      %v832 = vrot.slane %v643, 1
      %v833 = vsel %vm818, %v831, %v832
      %v834 = vrot.slane %v631, 1
      %v835 = vrot.slane %v644, 1
      %v836 = vsel %vm818, %v834, %v835
      %v837 = vrot.slane %v632, 1
      %v838 = vrot.slane %v645, 1
      %v839 = vsel %vm818, %v837, %v838
      %v840 = vrot.slane %v633, 1
      %v841 = vrot.slane %v646, 1
      %v842 = vsel %vm818, %v840, %v841
      %843 = vrot.lane.b32.xlu0 %v821, 64
      %v844 = vpop.permute.xlu0 %843
      %845 = vrot.lane.b32.xlu0 %v820, 64
      %v846 = vpop.permute.xlu0 %845
      %847 = vrot.lane.b32.xlu0 %v824, 64
      %v848 = vpop.permute.xlu0 %847
      %849 = vrot.lane.b32.xlu0 %v823, 64
      %v850 = vpop.permute.xlu0 %849
      %851 = vrot.lane.b32.xlu0 %v827, 64
      %v852 = vpop.permute.xlu0 %851
      %853 = vrot.lane.b32.xlu0 %v826, 64
      %v854 = vpop.permute.xlu0 %853
      %855 = vrot.lane.b32.xlu0 %v830, 64
      %v856 = vpop.permute.xlu0 %855
      %857 = vrot.lane.b32.xlu0 %v829, 64
      %v858 = vpop.permute.xlu0 %857
      %859 = vrot.lane.b32.xlu0 %v833, 64
      %v860 = vpop.permute.xlu0 %859
      %861 = vrot.lane.b32.xlu0 %v832, 64
      %v862 = vpop.permute.xlu0 %861
      %863 = vrot.lane.b32.xlu0 %v836, 64
      %v864 = vpop.permute.xlu0 %863
      %865 = vrot.lane.b32.xlu0 %v835, 64
      %v866 = vpop.permute.xlu0 %865
      %867 = vrot.lane.b32.xlu0 %v839, 64
      %v868 = vpop.permute.xlu0 %867
      %869 = vrot.lane.b32.xlu0 %v838, 64
      %v870 = vpop.permute.xlu0 %869
      %871 = vrot.lane.b32.xlu0 %v842, 64
      %v872 = vpop.permute.xlu0 %871
      %873 = vrot.lane.b32.xlu0 %v841, 64
      %v874 = vpop.permute.xlu0 %873
      %877 = vrot.lane.b32.xlu0 %v627, 96
      %v878 = vpop.permute.xlu0 %877
      %879 = vrot.lane.b32.xlu0 %v640, 96
      %v880 = vpop.permute.xlu0 %879
      %881 = vrot.lane.b32.xlu0 %v628, 96
      %v882 = vpop.permute.xlu0 %881
      %883 = vrot.lane.b32.xlu0 %v641, 96
      %v884 = vpop.permute.xlu0 %883
      %885 = vrot.lane.b32.xlu0 %v629, 96
      %v886 = vpop.permute.xlu0 %885
      %887 = vrot.lane.b32.xlu0 %v642, 96
      %v888 = vpop.permute.xlu0 %887
      %889 = vrot.lane.b32.xlu0 %v630, 96
      %v890 = vpop.permute.xlu0 %889
      %891 = vrot.lane.b32.xlu0 %v643, 96
      %v892 = vpop.permute.xlu0 %891
      %893 = vrot.lane.b32.xlu0 %v631, 96
      %v894 = vpop.permute.xlu0 %893
      %895 = vrot.lane.b32.xlu0 %v644, 96
      %v896 = vpop.permute.xlu0 %895
      %897 = vrot.lane.b32.xlu0 %v632, 96
      %v898 = vpop.permute.xlu0 %897
      %899 = vrot.lane.b32.xlu0 %v645, 96
      %v900 = vpop.permute.xlu0 %899
      %901 = vrot.lane.b32.xlu0 %v633, 96
      %v902 = vpop.permute.xlu0 %901
      %903 = vrot.lane.b32.xlu0 %v646, 96
      %v904 = vpop.permute.xlu0 %903
      %905 = vrot.lane.b32.xlu0 %v634, 96
      %v906 = vpop.permute.xlu0 %905
      %907 = vrot.lane.b32.xlu0 %v647, 96
      %v908 = vpop.permute.xlu0 %907
      %v910 = vshrl.u32 %v634, 16
      %v912 = vshll.u32 %v634, 16
      %v914 = vrot.slane %v912, 1
      %v915 = vor.u32 %v910, %v914
      %v917 = vshll.u32 %v647, 16
      %v919 = vrot.slane %v917, 1
      %v920 = vsel %vm649, %v915, %v919
      %v921 = vshrl.u32 %v647, 16
      %v923 = vor.u32 %v921, %v919
      %v924 = vrot.slane %v634, 1
      %v925 = vrot.slane %v647, 1
      %v926 = vsel %vm818, %v924, %v925
      %927 = vrot.lane.b32.xlu0 %v824, 32
      %v928 = vpop.permute.xlu0 %927
      %929 = vrot.lane.b32.xlu0 %v823, 32
      %v930 = vpop.permute.xlu0 %929
      %931 = vrot.lane.b32.xlu0 %v827, 32
      %v932 = vpop.permute.xlu0 %931
      %933 = vrot.lane.b32.xlu0 %v826, 32
      %v934 = vpop.permute.xlu0 %933
      %935 = vrot.lane.b32.xlu0 %v830, 32
      %v936 = vpop.permute.xlu0 %935
      %937 = vrot.lane.b32.xlu0 %v829, 32
      %v938 = vpop.permute.xlu0 %937
      %939 = vrot.lane.b32.xlu0 %v833, 32
      %v940 = vpop.permute.xlu0 %939
      %941 = vrot.lane.b32.xlu0 %v832, 32
      %v942 = vpop.permute.xlu0 %941
      %943 = vrot.lane.b32.xlu0 %v836, 32
      %v944 = vpop.permute.xlu0 %943
      %945 = vrot.lane.b32.xlu0 %v835, 32
      %v946 = vpop.permute.xlu0 %945
      %947 = vrot.lane.b32.xlu0 %v839, 32
      %v948 = vpop.permute.xlu0 %947
      %949 = vrot.lane.b32.xlu0 %v838, 32
      %v950 = vpop.permute.xlu0 %949
      %951 = vrot.lane.b32.xlu0 %v842, 32
      %v952 = vpop.permute.xlu0 %951
      %953 = vrot.lane.b32.xlu0 %v841, 32
      %v954 = vpop.permute.xlu0 %953
      %955 = vrot.lane.b32.xlu0 %v926, 32
      %v956 = vpop.permute.xlu0 %955
      %957 = vrot.lane.b32.xlu0 %v925, 32
      %v958 = vpop.permute.xlu0 %957
      %961 = vrot.lane.b32.xlu0 %v628, 64
      %v962 = vpop.permute.xlu0 %961
      %963 = vrot.lane.b32.xlu0 %v641, 64
      %v964 = vpop.permute.xlu0 %963
      %965 = vrot.lane.b32.xlu0 %v629, 64
      %v966 = vpop.permute.xlu0 %965
      %967 = vrot.lane.b32.xlu0 %v642, 64
      %v968 = vpop.permute.xlu0 %967
      %969 = vrot.lane.b32.xlu0 %v630, 64
      %v970 = vpop.permute.xlu0 %969
      %971 = vrot.lane.b32.xlu0 %v643, 64
      %v972 = vpop.permute.xlu0 %971
      %973 = vrot.lane.b32.xlu0 %v631, 64
      %v974 = vpop.permute.xlu0 %973
      %975 = vrot.lane.b32.xlu0 %v644, 64
      %v976 = vpop.permute.xlu0 %975
      %977 = vrot.lane.b32.xlu0 %v632, 64
      %v978 = vpop.permute.xlu0 %977
      %979 = vrot.lane.b32.xlu0 %v645, 64
      %v980 = vpop.permute.xlu0 %979
      %981 = vrot.lane.b32.xlu0 %v633, 64
      %v982 = vpop.permute.xlu0 %981
      %983 = vrot.lane.b32.xlu0 %v646, 64
      %v984 = vpop.permute.xlu0 %983
      %985 = vrot.lane.b32.xlu0 %v634, 64
      %v986 = vpop.permute.xlu0 %985
      %987 = vrot.lane.b32.xlu0 %v647, 64
      %v988 = vpop.permute.xlu0 %987
      %989 = vrot.lane.b32.xlu0 %v635, 64
      %v990 = vpop.permute.xlu0 %989
      %991 = vrot.lane.b32.xlu0 %v648, 64
      %v992 = vpop.permute.xlu0 %991
      %v994 = vshrl.u32 %v635, 16
      %v996 = vshll.u32 %v635, 16
      %v998 = vrot.slane %v996, 1
      %v999 = vor.u32 %v994, %v998
      %v1001 = vshll.u32 %v648, 16
      %v1003 = vrot.slane %v1001, 1
      %v1004 = vsel %vm649, %v999, %v1003
      %v1005 = vshrl.u32 %v648, 16
      %v1007 = vor.u32 %v1005, %v1003
      %1008 = vrot.lane.b32.xlu0 %v691, 96
      %v1009 = vpop.permute.xlu0 %1008
      %1010 = vrot.lane.b32.xlu0 %v694, 96
      %v1011 = vpop.permute.xlu0 %1010
      %1012 = vrot.lane.b32.xlu0 %v706, 96
      %v1013 = vpop.permute.xlu0 %1012
      %1014 = vrot.lane.b32.xlu0 %v709, 96
      %v1015 = vpop.permute.xlu0 %1014
      %1016 = vrot.lane.b32.xlu0 %v721, 96
      %v1017 = vpop.permute.xlu0 %1016
      %1018 = vrot.lane.b32.xlu0 %v724, 96
      %v1019 = vpop.permute.xlu0 %1018
      %1020 = vrot.lane.b32.xlu0 %v736, 96
      %v1021 = vpop.permute.xlu0 %1020
      %1022 = vrot.lane.b32.xlu0 %v739, 96
      %v1023 = vpop.permute.xlu0 %1022
      %1024 = vrot.lane.b32.xlu0 %v751, 96
      %v1025 = vpop.permute.xlu0 %1024
      %1026 = vrot.lane.b32.xlu0 %v754, 96
      %v1027 = vpop.permute.xlu0 %1026
      %1028 = vrot.lane.b32.xlu0 %v766, 96
      %v1029 = vpop.permute.xlu0 %1028
      %1030 = vrot.lane.b32.xlu0 %v769, 96
      %v1031 = vpop.permute.xlu0 %1030
      %1032 = vrot.lane.b32.xlu0 %v920, 96
      %v1033 = vpop.permute.xlu0 %1032
      %1034 = vrot.lane.b32.xlu0 %v923, 96
      %v1035 = vpop.permute.xlu0 %1034
      %1036 = vrot.lane.b32.xlu0 %v1004, 96
      %v1037 = vpop.permute.xlu0 %1036
      %1038 = vrot.lane.b32.xlu0 %v1007, 96
      %v1039 = vpop.permute.xlu0 %1038
      %v1040 = vrot.slane %v635, 1
      %v1041 = vrot.slane %v648, 1
      %v1042 = vsel %vm818, %v1040, %v1041
      %vm1043 = vcmask 261120
      %v1045 = vsel %vm1043, %v626, %v771
      %v1047 = vsel %vm1043, %v639, %v773
      %v1049 = vsel %vm1043, %v627, %v775
      %v1051 = vsel %vm1043, %v640, %v777
      %v1053 = vsel %vm1043, %v628, %v779
      %v1055 = vsel %vm1043, %v641, %v781
      %v1057 = vsel %vm1043, %v629, %v783
      %v1059 = vsel %vm1043, %v642, %v785
      %v1061 = vsel %vm1043, %v630, %v787
      %v1063 = vsel %vm1043, %v643, %v789
      %v1065 = vsel %vm1043, %v631, %v791
      %v1067 = vsel %vm1043, %v644, %v793
      %v1069 = vsel %vm1043, %v632, %v795
      %v1071 = vsel %vm1043, %v645, %v797
      %v1073 = vsel %vm1043, %v633, %v799
      %v1075 = vsel %vm1043, %v646, %v801
      %vm1076 = vcmask 523264
      %v1078 = vsel %vm1076, %v1045, %v844
      %v1080 = vsel %vm1076, %v1047, %v846
      %v1082 = vsel %vm1076, %v1049, %v848
      %v1084 = vsel %vm1076, %v1051, %v850
      %v1086 = vsel %vm1076, %v1053, %v852
      %v1088 = vsel %vm1076, %v1055, %v854
      %v1090 = vsel %vm1076, %v1057, %v856
      %v1092 = vsel %vm1076, %v1059, %v858
      %v1094 = vsel %vm1076, %v1061, %v860
      %v1096 = vsel %vm1076, %v1063, %v862
      %v1098 = vsel %vm1076, %v1065, %v864
      %v1100 = vsel %vm1076, %v1067, %v866
      %v1102 = vsel %vm1076, %v1069, %v868
      %v1104 = vsel %vm1076, %v1071, %v870
      %v1106 = vsel %vm1076, %v1073, %v872
      %v1108 = vsel %vm1076, %v1075, %v874
      %vm1109 = vcmask 785408
      %v1111 = vsel %vm1109, %v1078, %v878
      %v1113 = vsel %vm1109, %v1080, %v880
      %v1115 = vsel %vm1109, %v1082, %v882
      %v1117 = vsel %vm1109, %v1084, %v884
      %v1119 = vsel %vm1109, %v1086, %v886
      %v1121 = vsel %vm1109, %v1088, %v888
      %v1123 = vsel %vm1109, %v1090, %v890
      %v1125 = vsel %vm1109, %v1092, %v892
      %v1127 = vsel %vm1109, %v1094, %v894
      %v1129 = vsel %vm1109, %v1096, %v896
      %v1131 = vsel %vm1109, %v1098, %v898
      %v1133 = vsel %vm1109, %v1100, %v900
      %v1135 = vsel %vm1109, %v1102, %v902
      %v1137 = vsel %vm1109, %v1104, %v904
      %v1139 = vsel %vm1109, %v1106, %v906
      %v1141 = vsel %vm1109, %v1108, %v908
      %v1144 = vsel %vm1043, %v676, %v928
      %v1147 = vsel %vm1043, %v679, %v930
      %v1150 = vsel %vm1043, %v691, %v932
      %v1153 = vsel %vm1043, %v694, %v934
      %v1156 = vsel %vm1043, %v706, %v936
      %v1159 = vsel %vm1043, %v709, %v938
      %v1162 = vsel %vm1043, %v721, %v940
      %v1165 = vsel %vm1043, %v724, %v942
      %v1168 = vsel %vm1043, %v736, %v944
      %v1171 = vsel %vm1043, %v739, %v946
      %v1174 = vsel %vm1043, %v751, %v948
      %v1177 = vsel %vm1043, %v754, %v950
      %v1180 = vsel %vm1043, %v766, %v952
      %v1183 = vsel %vm1043, %v769, %v954
      %v1186 = vsel %vm1043, %v920, %v956
      %v1189 = vsel %vm1043, %v923, %v958
      %v1191 = vsel %vm1076, %v1144, %v962
      %v1193 = vsel %vm1076, %v1147, %v964
      %v1195 = vsel %vm1076, %v1150, %v966
      %v1197 = vsel %vm1076, %v1153, %v968
      %v1199 = vsel %vm1076, %v1156, %v970
      %v1201 = vsel %vm1076, %v1159, %v972
      %v1203 = vsel %vm1076, %v1162, %v974
      %v1205 = vsel %vm1076, %v1165, %v976
      %v1207 = vsel %vm1076, %v1168, %v978
      %v1209 = vsel %vm1076, %v1171, %v980
      %v1211 = vsel %vm1076, %v1174, %v982
      %v1213 = vsel %vm1076, %v1177, %v984
      %v1215 = vsel %vm1076, %v1180, %v986
      %v1217 = vsel %vm1076, %v1183, %v988
      %v1219 = vsel %vm1076, %v1186, %v990
      %v1221 = vsel %vm1076, %v1189, %v992
      %v1223 = vsel %vm1109, %v1191, %v1009
      %v1225 = vsel %vm1109, %v1193, %v1011
      %v1227 = vsel %vm1109, %v1195, %v1013
      %v1229 = vsel %vm1109, %v1197, %v1015
      %v1231 = vsel %vm1109, %v1199, %v1017
      %v1233 = vsel %vm1109, %v1201, %v1019
      %v1235 = vsel %vm1109, %v1203, %v1021
      %v1237 = vsel %vm1109, %v1205, %v1023
      %v1239 = vsel %vm1109, %v1207, %v1025
      %v1241 = vsel %vm1109, %v1209, %v1027
      %v1243 = vsel %vm1109, %v1211, %v1029
      %v1245 = vsel %vm1109, %v1213, %v1031
      %v1247 = vsel %vm1109, %v1215, %v1033
      %v1249 = vsel %vm1109, %v1217, %v1035
      %v1251 = vsel %vm1109, %v1219, %v1037
      %v1253 = vsel %vm1109, %v1221, %v1039
      %v1286 = vunpack.c.l.b16 %v1111
      %v1287 = vunpack.c.l.b16 %v1223
      %v1288 = vunpack.c.l.b16 %v827
      %v1289 = vunpack.c.h.b16 %v1111
      %v1290 = vunpack.c.h.b16 %v1223
      %v1291 = vunpack.c.h.b16 %v827
      %v1292 = vunpack.c.l.b16 %v1113
      %v1293 = vunpack.c.l.b16 %v1225
      %v1294 = vunpack.c.l.b16 %v826
      %v1295 = vunpack.c.l.b16 %v1115
      %v1296 = vunpack.c.l.b16 %v1227
      %v1297 = vunpack.c.l.b16 %v830
      %v1298 = vunpack.c.h.b16 %v1115
      %v1299 = vunpack.c.h.b16 %v1227
      %v1300 = vunpack.c.h.b16 %v830
      %v1301 = vunpack.c.l.b16 %v1117
      %v1302 = vunpack.c.l.b16 %v1229
      %v1303 = vunpack.c.l.b16 %v829
      %v1304 = vunpack.c.l.b16 %v1119
      %v1305 = vunpack.c.l.b16 %v1231
      %v1306 = vunpack.c.l.b16 %v833
      %v1307 = vunpack.c.h.b16 %v1119
      %v1308 = vunpack.c.h.b16 %v1231
      %v1309 = vunpack.c.h.b16 %v833
      %v1310 = vunpack.c.l.b16 %v1121
      %v1311 = vunpack.c.l.b16 %v1233
      %v1312 = vunpack.c.l.b16 %v832
      %v1313 = vunpack.c.l.b16 %v1123
      %v1314 = vunpack.c.l.b16 %v1235
      %v1315 = vunpack.c.l.b16 %v836
      %v1316 = vunpack.c.h.b16 %v1123
      %v1317 = vunpack.c.h.b16 %v1235
      %v1318 = vunpack.c.h.b16 %v836
      %v1319 = vunpack.c.l.b16 %v1125
      %v1320 = vunpack.c.l.b16 %v1237
      %v1321 = vunpack.c.l.b16 %v835
      %v1322 = vunpack.c.l.b16 %v1127
      %v1323 = vunpack.c.l.b16 %v1239
      %v1324 = vunpack.c.l.b16 %v839
      %v1325 = vunpack.c.h.b16 %v1127
      %v1326 = vunpack.c.h.b16 %v1239
      %v1327 = vunpack.c.h.b16 %v839
      %v1328 = vunpack.c.l.b16 %v1129
      %v1329 = vunpack.c.l.b16 %v1241
      %v1330 = vunpack.c.l.b16 %v838
      %v1331 = vunpack.c.l.b16 %v1131
      %v1332 = vunpack.c.l.b16 %v1243
      %v1333 = vunpack.c.l.b16 %v842
      %v1334 = vunpack.c.h.b16 %v1131
      %v1335 = vunpack.c.h.b16 %v1243
      %v1336 = vunpack.c.h.b16 %v842
      %v1337 = vunpack.c.l.b16 %v1133
      %v1338 = vunpack.c.l.b16 %v1245
      %v1339 = vunpack.c.l.b16 %v841
      %v1340 = vunpack.c.l.b16 %v1135
      %v1341 = vunpack.c.l.b16 %v1247
      %v1342 = vunpack.c.l.b16 %v926
      %v1343 = vunpack.c.h.b16 %v1135
      %v1344 = vunpack.c.h.b16 %v1247
      %v1345 = vunpack.c.h.b16 %v926
      %v1346 = vunpack.c.l.b16 %v1137
      %v1347 = vunpack.c.l.b16 %v1249
      %v1348 = vunpack.c.l.b16 %v925
      %v1349 = vunpack.c.l.b16 %v1139
      %v1350 = vunpack.c.l.b16 %v1251
      %v1351 = vunpack.c.l.b16 %v1042
      %v1352 = vunpack.c.h.b16 %v1139
      %v1353 = vunpack.c.h.b16 %v1251
      %v1354 = vunpack.c.h.b16 %v1042
      %v1355 = vunpack.c.l.b16 %v1141
      %v1356 = vunpack.c.l.b16 %v1253
      %v1357 = vunpack.c.l.b16 %v1041
      %v1358 = vld [vmem:[%s2] sm:$0xf]
      %v1359 = vld [vmem:[%s2 + $0x4] sm:$0xf]
      %v1360 = vld [vmem:[%s2 + $0x8] sm:$0xf]
      %v1361 = vld [vmem:[%s2 + $0xc] sm:$0xf]
      %v1362 = vld [vmem:[%s2 + $0x10] sm:$0xf]
      %v1363 = vld [vmem:[%s2 + $0x14] sm:$0xf]
      %v1364 = vld [vmem:[%s2 + $0x18] sm:$0xf]
      %v1365 = vld [vmem:[%s2 + $0x1c] sm:$0xf]
      %v1366 = vld [vmem:[%s2 + $0x20] sm:$0xf]
      %v1367 = vld [vmem:[%s2 + $0x24] sm:$0xf]
      %v1368 = vld [vmem:[%s2 + $0x28] sm:$0xf]
      %v1369 = vld [vmem:[%s2 + $0x2c] sm:$0xf]
      %v1370 = vld [vmem:[%s2 + $0x30] sm:$0xf]
      %v1371 = vld [vmem:[%s2 + $0x34] sm:$0xf]
      %v1372 = vld [vmem:[%s2 + $0x38] sm:$0xf]
      %v1373 = vld [vmem:[%s2 + $0x3c] sm:$0xf]
      %v1374 = vld [vmem:[%s2 + $0x40] sm:$0xf]
      %v1375 = vld [vmem:[%s2 + $0x44] sm:$0xf]
      %v1376 = vld [vmem:[%s2 + $0x48] sm:$0xf]
      %v1377 = vld [vmem:[%s2 + $0x4c] sm:$0xf]
      %v1378 = vld [vmem:[%s2 + $0x50] sm:$0xf]
      %v1379 = vld [vmem:[%s2 + $0x54] sm:$0xf]
      %v1380 = vld [vmem:[%s2 + $0x58] sm:$0xf]
      %v1381 = vld [vmem:[%s2 + $0x5c] sm:$0xf]
      %v1382 = vld [vmem:[%s2 + $0x60] sm:$0xf]
      %v1383 = vld [vmem:[%s2 + $0x64] sm:$0xf]
      %v1384 = vld [vmem:[%s2 + $0x68] sm:$0xf]
      %v1385 = vld [vmem:[%s2 + $0x6c] sm:$0xf]
      %v1386 = vld [vmem:[%s2 + $0x70] sm:$0xf]
      %v1387 = vld [vmem:[%s2 + $0x74] sm:$0xf]
      %v1388 = vld [vmem:[%s2 + $0x78] sm:$0xf]
      %v1389 = vld [vmem:[%s2 + $0x7c] sm:$0xf]
      %v1390 = vld [vmem:[%s2 + $0x80] sm:$0xf]
      %v1391 = vld [vmem:[%s2 + $0x84] sm:$0xf]
      %v1392 = vld [vmem:[%s2 + $0x88] sm:$0xf]
      %v1393 = vld [vmem:[%s2 + $0x8c] sm:$0xf]
      %v1394 = vld [vmem:[%s3] sm:$0x1]
      %v1396 = vlaneseq
      %v1397 = vshrl.u32 %v1396, 7
      %v1398 = vsub.s32 0, %v1397
      %v1399 = vrot.slane %v1394, %v1398
      %v1401 = vpack.c.b16 %v1289, %v1286
      %v1402 = vpack.c.b16 %v1290, %v1287
      %v1403 = vpack.c.b16 %v1291, %v1288
      %v1404 = vpack.c.b16 %v1295, %v1292
      %v1405 = vpack.c.b16 %v1296, %v1293
      %v1406 = vpack.c.b16 %v1297, %v1294
      %v1407 = vpack.c.b16 %v1301, %v1298
      %v1408 = vpack.c.b16 %v1302, %v1299
      %v1409 = vpack.c.b16 %v1303, %v1300
      %v1410 = vpack.c.b16 %v1307, %v1304
      %v1411 = vpack.c.b16 %v1308, %v1305
      %v1412 = vpack.c.b16 %v1309, %v1306
      %v1413 = vpack.c.b16 %v1313, %v1310
      %v1414 = vpack.c.b16 %v1314, %v1311
      %v1415 = vpack.c.b16 %v1315, %v1312
      %v1416 = vpack.c.b16 %v1319, %v1316
      %v1417 = vpack.c.b16 %v1320, %v1317
      %v1418 = vpack.c.b16 %v1321, %v1318
      %v1419 = vpack.c.b16 %v1325, %v1322
      %v1420 = vpack.c.b16 %v1326, %v1323
      %v1421 = vpack.c.b16 %v1327, %v1324
      %v1422 = vpack.c.b16 %v1331, %v1328
      %v1423 = vpack.c.b16 %v1332, %v1329
      %v1424 = vpack.c.b16 %v1333, %v1330
      %v1425 = vpack.c.b16 %v1337, %v1334
      %v1426 = vpack.c.b16 %v1338, %v1335
      %v1427 = vpack.c.b16 %v1339, %v1336
      %v1428 = vpack.c.b16 %v1343, %v1340
      %v1429 = vpack.c.b16 %v1344, %v1341
      %v1430 = vpack.c.b16 %v1345, %v1342
      %v1431 = vpack.c.b16 %v1349, %v1346
      %v1432 = vpack.c.b16 %v1350, %v1347
      %v1433 = vpack.c.b16 %v1351, %v1348
      %v1434 = vpack.c.b16 %v1355, %v1352
      %v1435 = vpack.c.b16 %v1356, %v1353
      %v1436 = vpack.c.b16 %v1357, %v1354
      %v1497 = vunpack.c.l.b16 %v1358
      %v1498 = vunpack.c.l.b16 %v1359
      %v1499 = vunpack.c.l.b16 %v1360
      %v1500 = vunpack.c.l.b16 %v1361
      %v1501 = vunpack.c.l.b16 %v1362
      %v1502 = vunpack.c.l.b16 %v1363
      %v1503 = vunpack.c.l.b16 %v1364
      %v1504 = vunpack.c.l.b16 %v1365
      %v1505 = vunpack.c.l.b16 %v1366
      %v1506 = vunpack.c.l.b16 %v1367
      %v1507 = vunpack.c.l.b16 %v1368
      %v1508 = vunpack.c.l.b16 %v1369
      %v1509 = vunpack.c.l.b16 %v1370
      %v1510 = vunpack.c.l.b16 %v1371
      %v1511 = vunpack.c.l.b16 %v1372
      %v1512 = vunpack.c.l.b16 %v1373
      %v1513 = vunpack.c.l.b16 %v1374
      %v1514 = vunpack.c.l.b16 %v1375
      %v1515 = vunpack.c.l.b16 %v1376
      %v1516 = vunpack.c.l.b16 %v1377
      %v1517 = vunpack.c.l.b16 %v1378
      %v1518 = vunpack.c.l.b16 %v1379
      %v1519 = vunpack.c.l.b16 %v1380
      %v1520 = vunpack.c.l.b16 %v1381
      %v1521 = vunpack.c.l.b16 %v1382
      %v1522 = vunpack.c.l.b16 %v1383
      %v1523 = vunpack.c.l.b16 %v1384
      %v1524 = vunpack.c.l.b16 %v1385
      %v1525 = vunpack.c.l.b16 %v1386
      %v1526 = vunpack.c.l.b16 %v1387
      %v1527 = vunpack.c.l.b16 %v1388
      %v1528 = vunpack.c.l.b16 %v1389
      %v1529 = vunpack.c.l.b16 %v1390
      %v1530 = vunpack.c.l.b16 %v1391
      %v1531 = vunpack.c.l.b16 %v1392
      %v1532 = vunpack.c.l.b16 %v1393
      %v1533 = vpack.c.b16 %v1498, %v1497
      %v1534 = vpack.c.b16 %v1500, %v1499
      %v1535 = vpack.c.b16 %v1502, %v1501
      %v1536 = vpack.c.b16 %v1504, %v1503
      %v1537 = vpack.c.b16 %v1506, %v1505
      %v1538 = vpack.c.b16 %v1508, %v1507
      %v1539 = vpack.c.b16 %v1510, %v1509
      %v1540 = vpack.c.b16 %v1512, %v1511
      %v1541 = vpack.c.b16 %v1514, %v1513
      %v1542 = vpack.c.b16 %v1516, %v1515
      %v1543 = vpack.c.b16 %v1518, %v1517
      %v1544 = vpack.c.b16 %v1520, %v1519
      %v1545 = vpack.c.b16 %v1522, %v1521
      %v1546 = vpack.c.b16 %v1524, %v1523
      %v1547 = vpack.c.b16 %v1526, %v1525
      %v1548 = vpack.c.b16 %v1528, %v1527
      %v1549 = vpack.c.b16 %v1530, %v1529
      %v1550 = vpack.c.b16 %v1532, %v1531
      %v1570 = vsel %vm1043, %v1403, 0
      %v1573 = vsel %vm1043, %v1406, 0
      %v1576 = vsel %vm1043, %v1409, 0
      %v1579 = vsel %vm1043, %v1412, 0
      %v1582 = vsel %vm1043, %v1415, 0
      %v1585 = vsel %vm1043, %v1418, 0
      %v1588 = vsel %vm1043, %v1421, 0
      %v1591 = vsel %vm1043, %v1424, 0
      %v1594 = vsel %vm1043, %v1427, 0
      %v1597 = vsel %vm1043, %v1430, 0
      %v1600 = vsel %vm1043, %v1433, 0
      %v1603 = vsel %vm1043, %v1436, 0
      %1605 = vmatprep.subr.bf16.mxu0 0
      %1606 = vmatpush1.bf16.msra.mxu0 %v1533
      %1607 = vmatprep.subr.bf16.mxu0 0
      %1608 = vmatpush1.bf16.msra.mxu0 %v1534
      %1609 = vmatprep.subr.bf16.mxu0 0
      %1610 = vmatpush1.bf16.msra.mxu0 %v1535
      %1611 = vmatprep.subr.bf16.mxu0 0
      %1612 = vmatpush1.bf16.msra.mxu0 %v1536
      %1613 = vmatprep.subr.bf16.mxu0 0
      %1614 = vmatpush1.bf16.msra.mxu0 %v1537
      %1615 = vmatprep.subr.bf16.mxu0 0
      %1616 = vmatpush1.bf16.msra.mxu0 %v1538
      %1617 = vmatprep.subr.bf16.mxu0 0
      %1618 = vmatpush1.bf16.msra.mxu0 %v1539
      %1619 = vmatprep.subr.bf16.mxu0 0
      %1620 = vmatpush1.bf16.msra.mxu0 %v1540
      %1621 = vmatprep.subr.bf16.mxu0 0
      %1622 = vmatpush1.bf16.msra.mxu0 %v1541
      %1623 = vmatprep.subr.bf16.mxu0 0
      %1624 = vmatpush1.bf16.msra.mxu0 %v1542
      %1625 = vmatprep.subr.bf16.mxu0 0
      %1626 = vmatpush1.bf16.msra.mxu0 %v1543
      %1627 = vmatprep.subr.bf16.mxu0 0
      %1628 = vmatpush1.bf16.msra.mxu0 %v1544
      %1629 = vmatprep.subr.bf16.mxu0 0
      %1630 = vmatpush1.bf16.msra.mxu0 %v1545
      %1631 = vmatprep.subr.bf16.mxu0 0
      %1632 = vmatpush1.bf16.msra.mxu0 %v1546
      %1633 = vmatprep.subr.bf16.mxu0 0
      %1634 = vmatpush1.bf16.msra.mxu0 %v1547
      %1635 = vmatprep.subr.bf16.mxu0 0
      %1636 = vmatpush1.bf16.msra.mxu0 %v1548
      %1637 = vmatprep.mubr.bf16.mxu0 %v1402
      %1638 = vmatmul.mubr.bf16.gmra.mrb[0].mxu0 %v1401
      %v1639 = vpop.f32.mrb[0].mxu0
      %v1640 = vadd.f32 %v1399, %v1639
      %v1641 = vpop.f32.mrb[0].mxu0
      %v1642 = vpop.f32.mrb[0].mxu0
      %v1643 = vadd.f32 %v1399, %v1642
      %v1644 = vpop.f32.mrb[0].mxu0
      %1645 = vmatprep.mubr.bf16.mxu0 %v1405
      %1646 = vmatmul.mubr.bf16.gmra.mrb[0].mxu0 %v1404
      %v1647 = vpop.f32.mrb[0].mxu0
      %v1648 = vadd.f32 %v1399, %v1647
      %v1649 = vpop.f32.mrb[0].mxu0
      %v1650 = vpop.f32.mrb[0].mxu0
      %v1651 = vadd.f32 %v1399, %v1650
      %v1652 = vpop.f32.mrb[0].mxu0
      %1653 = vmatprep.mubr.bf16.mxu0 %v1408
      %1654 = vmatmul.mubr.bf16.gmra.mrb[0].mxu0 %v1407
      %v1655 = vpop.f32.mrb[0].mxu0
      %v1656 = vadd.f32 %v1399, %v1655
      %v1657 = vpop.f32.mrb[0].mxu0
      %v1658 = vpop.f32.mrb[0].mxu0
      %v1659 = vadd.f32 %v1399, %v1658
      %v1660 = vpop.f32.mrb[0].mxu0
      %1661 = vmatprep.mubr.bf16.mxu0 %v1411
      %1662 = vmatmul.mubr.bf16.gmra.mrb[0].mxu0 %v1410
      %v1663 = vpop.f32.mrb[0].mxu0
      %v1664 = vadd.f32 %v1399, %v1663
      %v1665 = vpop.f32.mrb[0].mxu0
      %v1666 = vpop.f32.mrb[0].mxu0
      %v1667 = vadd.f32 %v1399, %v1666
      %v1668 = vpop.f32.mrb[0].mxu0
      %1669 = vmatprep.mubr.bf16.mxu0 %v1414
      %1670 = vmatmul.mubr.bf16.gmra.mrb[0].mxu0 %v1413
      %v1671 = vpop.f32.mrb[0].mxu0
      %v1672 = vadd.f32 %v1399, %v1671
      %v1673 = vpop.f32.mrb[0].mxu0
      %v1674 = vpop.f32.mrb[0].mxu0
      %v1675 = vadd.f32 %v1399, %v1674
      %v1676 = vpop.f32.mrb[0].mxu0
      %1677 = vmatprep.mubr.bf16.mxu0 %v1417
      %1678 = vmatmul.mubr.bf16.gmra.mrb[0].mxu0 %v1416
      %v1679 = vpop.f32.mrb[0].mxu0
      %v1680 = vadd.f32 %v1399, %v1679
      %v1681 = vpop.f32.mrb[0].mxu0
      %v1682 = vpop.f32.mrb[0].mxu0
      %v1683 = vadd.f32 %v1399, %v1682
      %v1684 = vpop.f32.mrb[0].mxu0
      %1685 = vmatprep.mubr.bf16.mxu0 %v1420
      %1686 = vmatmul.mubr.bf16.gmra.mrb[0].mxu0 %v1419
      %v1687 = vpop.f32.mrb[0].mxu0
      %v1688 = vadd.f32 %v1399, %v1687
      %v1689 = vpop.f32.mrb[0].mxu0
      %v1690 = vpop.f32.mrb[0].mxu0
      %v1691 = vadd.f32 %v1399, %v1690
      %v1692 = vpop.f32.mrb[0].mxu0
      %1693 = vmatprep.mubr.bf16.mxu0 %v1423
      %1694 = vmatmul.mubr.bf16.gmra.mrb[0].mxu0 %v1422
      %v1695 = vpop.f32.mrb[0].mxu0
      %v1696 = vadd.f32 %v1399, %v1695
      %v1697 = vpop.f32.mrb[0].mxu0
      %v1698 = vpop.f32.mrb[0].mxu0
      %v1699 = vadd.f32 %v1399, %v1698
      %v1700 = vpop.f32.mrb[0].mxu0
      %1701 = vmatprep.mubr.bf16.mxu0 %v1426
      %1702 = vmatmul.mubr.bf16.gmra.mrb[0].mxu0 %v1425
      %v1703 = vpop.f32.mrb[0].mxu0
      %v1704 = vadd.f32 %v1399, %v1703
      %v1705 = vpop.f32.mrb[0].mxu0
      %v1706 = vpop.f32.mrb[0].mxu0
      %v1707 = vadd.f32 %v1399, %v1706
      %v1708 = vpop.f32.mrb[0].mxu0
      %1709 = vmatprep.mubr.bf16.mxu0 %v1429
      %1710 = vmatmul.mubr.bf16.gmra.mrb[0].mxu0 %v1428
      %v1711 = vpop.f32.mrb[0].mxu0
      %v1712 = vadd.f32 %v1399, %v1711
      %v1713 = vpop.f32.mrb[0].mxu0
      %v1714 = vpop.f32.mrb[0].mxu0
      %v1715 = vadd.f32 %v1399, %v1714
      %v1716 = vpop.f32.mrb[0].mxu0
      %1717 = vmatprep.mubr.bf16.mxu0 %v1432
      %1718 = vmatmul.mubr.bf16.gmra.mrb[0].mxu0 %v1431
      %v1719 = vpop.f32.mrb[0].mxu0
      %v1720 = vadd.f32 %v1399, %v1719
      %v1721 = vpop.f32.mrb[0].mxu0
      %v1722 = vpop.f32.mrb[0].mxu0
      %v1723 = vadd.f32 %v1399, %v1722
      %v1724 = vpop.f32.mrb[0].mxu0
      %1725 = vmatprep.mubr.bf16.mxu0 %v1435
      %1726 = vmatmul.mubr.bf16.gmra.mrb[0].mxu0 %v1434
      %v1727 = vpop.f32.mrb[0].mxu0
      %v1728 = vadd.f32 %v1399, %v1727
      %v1729 = vpop.f32.mrb[0].mxu0
      %v1730 = vpop.f32.mrb[0].mxu0
      %v1731 = vadd.f32 %v1399, %v1730
      %v1732 = vpop.f32.mrb[0].mxu0
      %1733 = vdwg.mxu0
      %1734 = vmatprep.subr.bf16.mxu0 0
      %1735 = vmatpush1.bf16.msra.mxu0 %v1549
      %1736 = vmatprep.subr.bf16.mxu0 0
      %1737 = vmatpush1.bf16.msra.mxu0 %v1550
      %1738 = vmatprep.subr.bf16.mxu0 0
      %1739 = vmatpush1.bf16.msra.mxu0 0
      %1740 = vmatprep.subr.bf16.mxu0 0
      %1741 = vmatpush1.bf16.msra.mxu0 0
      %1742 = vmatprep.subr.bf16.mxu0 0
      %1743 = vmatpush1.bf16.msra.mxu0 0
      %1744 = vmatprep.subr.bf16.mxu0 0
      %1745 = vmatpush1.bf16.msra.mxu0 0
      %1746 = vmatprep.subr.bf16.mxu0 0
      %1747 = vmatpush1.bf16.msra.mxu0 0
      %1748 = vmatprep.subr.bf16.mxu0 0
      %1749 = vmatpush1.bf16.msra.mxu0 0
      %1750 = vmatprep.subr.bf16.mxu0 0
      %1751 = vmatpush1.bf16.msra.mxu0 0
      %1752 = vmatprep.subr.bf16.mxu0 0
      %1753 = vmatpush1.bf16.msra.mxu0 0
      %1754 = vmatprep.subr.bf16.mxu0 0
      %1755 = vmatpush1.bf16.msra.mxu0 0
      %1756 = vmatprep.subr.bf16.mxu0 0
      %1757 = vmatpush1.bf16.msra.mxu0 0
      %1758 = vmatprep.subr.bf16.mxu0 0
      %1759 = vmatpush1.bf16.msra.mxu0 0
      %1760 = vmatprep.subr.bf16.mxu0 0
      %1761 = vmatpush1.bf16.msra.mxu0 0
      %1762 = vmatprep.subr.bf16.mxu0 0
      %1763 = vmatpush1.bf16.msra.mxu0 0
      %1764 = vmatprep.subr.bf16.mxu0 0
      %1765 = vmatpush1.bf16.msra.mxu0 0
      %1766 = vmatprep.mubr.bf16.mxu0 0
      %1767 = vmatmul.mubr.bf16.gmra.mrb[0].mxu0 %v1570
      %v1768 = vpop.f32.mrb[0].mxu0
      %v1769 = vadd.f32 %v1640, %v1768
      %v1770 = vpop.f32.mrb[0].mxu0
      %v1771 = vpop.f32.mrb[0].mxu0
      %v1772 = vadd.f32 %v1643, %v1771
      %v1773 = vpop.f32.mrb[0].mxu0
      %1774 = vmatprep.mubr.bf16.mxu0 0
      %1775 = vmatmul.mubr.bf16.gmra.mrb[0].mxu0 %v1573
      %v1776 = vpop.f32.mrb[0].mxu0
      %v1777 = vadd.f32 %v1648, %v1776
      %v1778 = vpop.f32.mrb[0].mxu0
      %v1779 = vpop.f32.mrb[0].mxu0
      %v1780 = vadd.f32 %v1651, %v1779
      %v1781 = vpop.f32.mrb[0].mxu0
      %1782 = vmatprep.mubr.bf16.mxu0 0
      %1783 = vmatmul.mubr.bf16.gmra.mrb[0].mxu0 %v1576
      %v1784 = vpop.f32.mrb[0].mxu0
      %v1785 = vadd.f32 %v1656, %v1784
      %v1786 = vpop.f32.mrb[0].mxu0
      %v1787 = vpop.f32.mrb[0].mxu0
      %v1788 = vadd.f32 %v1659, %v1787
      %v1789 = vpop.f32.mrb[0].mxu0
      %1790 = vmatprep.mubr.bf16.mxu0 0
      %1791 = vmatmul.mubr.bf16.gmra.mrb[0].mxu0 %v1579
      %v1792 = vpop.f32.mrb[0].mxu0
      %v1793 = vadd.f32 %v1664, %v1792
      %v1794 = vpop.f32.mrb[0].mxu0
      %v1795 = vpop.f32.mrb[0].mxu0
      %v1796 = vadd.f32 %v1667, %v1795
      %v1797 = vpop.f32.mrb[0].mxu0
      %1798 = vmatprep.mubr.bf16.mxu0 0
      %1799 = vmatmul.mubr.bf16.gmra.mrb[0].mxu0 %v1582
      %v1800 = vpop.f32.mrb[0].mxu0
      %v1801 = vadd.f32 %v1672, %v1800
      %v1802 = vpop.f32.mrb[0].mxu0
      %v1803 = vpop.f32.mrb[0].mxu0
      %v1804 = vadd.f32 %v1675, %v1803
      %v1805 = vpop.f32.mrb[0].mxu0
      %1806 = vmatprep.mubr.bf16.mxu0 0
      %1807 = vmatmul.mubr.bf16.gmra.mrb[0].mxu0 %v1585
      %v1808 = vpop.f32.mrb[0].mxu0
      %v1809 = vadd.f32 %v1680, %v1808
      %v1810 = vpop.f32.mrb[0].mxu0
      %v1811 = vpop.f32.mrb[0].mxu0
      %v1812 = vadd.f32 %v1683, %v1811
      %v1813 = vpop.f32.mrb[0].mxu0
      %1814 = vmatprep.mubr.bf16.mxu0 0
      %1815 = vmatmul.mubr.bf16.gmra.mrb[0].mxu0 %v1588
      %v1816 = vpop.f32.mrb[0].mxu0
      %v1817 = vadd.f32 %v1688, %v1816
      %v1818 = vpop.f32.mrb[0].mxu0
      %v1819 = vpop.f32.mrb[0].mxu0
      %v1820 = vadd.f32 %v1691, %v1819
      %v1821 = vpop.f32.mrb[0].mxu0
      %1822 = vmatprep.mubr.bf16.mxu0 0
      %1823 = vmatmul.mubr.bf16.gmra.mrb[0].mxu0 %v1591
      %v1824 = vpop.f32.mrb[0].mxu0
      %v1825 = vadd.f32 %v1696, %v1824
      %v1826 = vpop.f32.mrb[0].mxu0
      %v1827 = vpop.f32.mrb[0].mxu0
      %v1828 = vadd.f32 %v1699, %v1827
      %v1829 = vpop.f32.mrb[0].mxu0
      %1830 = vmatprep.mubr.bf16.mxu0 0
      %1831 = vmatmul.mubr.bf16.gmra.mrb[0].mxu0 %v1594
      %v1832 = vpop.f32.mrb[0].mxu0
      %v1833 = vadd.f32 %v1704, %v1832
      %v1834 = vpop.f32.mrb[0].mxu0
      %v1835 = vpop.f32.mrb[0].mxu0
      %v1836 = vadd.f32 %v1707, %v1835
      %v1837 = vpop.f32.mrb[0].mxu0
      %1838 = vmatprep.mubr.bf16.mxu0 0
      %1839 = vmatmul.mubr.bf16.gmra.mrb[0].mxu0 %v1597
      %v1840 = vpop.f32.mrb[0].mxu0
      %v1841 = vadd.f32 %v1712, %v1840
      %v1842 = vpop.f32.mrb[0].mxu0
      %v1843 = vpop.f32.mrb[0].mxu0
      %v1844 = vadd.f32 %v1715, %v1843
      %v1845 = vpop.f32.mrb[0].mxu0
      %1846 = vmatprep.mubr.bf16.mxu0 0
      %1847 = vmatmul.mubr.bf16.gmra.mrb[0].mxu0 %v1600
      %v1848 = vpop.f32.mrb[0].mxu0
      %v1849 = vadd.f32 %v1720, %v1848
      %v1850 = vpop.f32.mrb[0].mxu0
      %v1851 = vpop.f32.mrb[0].mxu0
      %v1852 = vadd.f32 %v1723, %v1851
      %v1853 = vpop.f32.mrb[0].mxu0
      %1854 = vmatprep.mubr.bf16.mxu0 0
      %1855 = vmatmul.mubr.bf16.gmra.mrb[0].mxu0 %v1603
      %v1856 = vpop.f32.mrb[0].mxu0
      %v1857 = vadd.f32 %v1728, %v1856
      %v1858 = vpop.f32.mrb[0].mxu0
      %v1859 = vpop.f32.mrb[0].mxu0
      %v1860 = vadd.f32 %v1731, %v1859
      %v1861 = vpop.f32.mrb[0].mxu0
      %1862 = vdwg.mxu0
      %v1863 = vld [vmem:[%s329] sm:$0xf]
      %v1864 = vld [vmem:[%s329 + $0x4] sm:$0xf]
      %v1865 = vld [vmem:[%s329 + $0x8] sm:$0xf]
      %v1866 = vld [vmem:[%s329 + $0xc] sm:$0xf]
      %v1867 = vld [vmem:[%s329 + $0x10] sm:$0xf]
      %v1868 = vld [vmem:[%s329 + $0x14] sm:$0xf]
      %v1869 = vld [vmem:[%s329 + $0x18] sm:$0xf]
      %v1870 = vld [vmem:[%s329 + $0x1c] sm:$0xf]
      %v1871 = vld [vmem:[%s329 + $0x20] sm:$0xf]
      %v1872 = vld [vmem:[%s329 + $0x24] sm:$0xf]
      %v1873 = vld [vmem:[%s329 + $0x28] sm:$0xf]
      %v1874 = vld [vmem:[%s329 + $0x2c] sm:$0xf]
      %v1875 = vld [vmem:[%s329 + $0x30] sm:$0xf]
      %v1876 = vld [vmem:[%s329 + $0x34] sm:$0xf]
      %v1877 = vld [vmem:[%s329 + $0x38] sm:$0xf]
      %v1878 = vld [vmem:[%s329 + $0x3c] sm:$0xf]
      %v1879 = vld [vmem:[%s329 + $0x40] sm:$0xf]
      %v1880 = vld [vmem:[%s329 + $0x44] sm:$0xf]
      %v1881 = vld [vmem:[%s329 + $0x48] sm:$0xf]
      %v1882 = vld [vmem:[%s329 + $0x4c] sm:$0xf]
      %v1883 = vld [vmem:[%s329 + $0x50] sm:$0xf]
      %v1884 = vld [vmem:[%s329 + $0x54] sm:$0xf]
      %v1885 = vld [vmem:[%s329 + $0x58] sm:$0xf]
      %v1886 = vld [vmem:[%s329 + $0x5c] sm:$0xf]
      %v1887 = vunpack.c.l.bf16 %v1863
      %v1888 = vunpack.c.l.bf16 %v1864
      %v1889 = vunpack.c.l.bf16 %v1865
      %v1890 = vunpack.c.l.bf16 %v1866
      %v1891 = vunpack.c.l.bf16 %v1867
      %v1892 = vunpack.c.l.bf16 %v1868
      %v1893 = vunpack.c.l.bf16 %v1869
      %v1894 = vunpack.c.l.bf16 %v1870
      %v1895 = vunpack.c.l.bf16 %v1871
      %v1896 = vunpack.c.l.bf16 %v1872
      %v1897 = vunpack.c.l.bf16 %v1873
      %v1898 = vunpack.c.l.bf16 %v1874
      %v1899 = vunpack.c.l.bf16 %v1875
      %v1900 = vunpack.c.l.bf16 %v1876
      %v1901 = vunpack.c.l.bf16 %v1877
      %v1902 = vunpack.c.l.bf16 %v1878
      %v1903 = vunpack.c.l.bf16 %v1879
      %v1904 = vunpack.c.l.bf16 %v1880
      %v1905 = vunpack.c.l.bf16 %v1881
      %v1906 = vunpack.c.l.bf16 %v1882
      %v1907 = vunpack.c.l.bf16 %v1883
      %v1908 = vunpack.c.l.bf16 %v1884
      %v1909 = vunpack.c.l.bf16 %v1885
      %v1910 = vunpack.c.l.bf16 %v1886
      %v1911 = vadd.f32 %v1887, %v1769
      %v1912 = vadd.f32 %v1888, %v1772
      %v1913 = vadd.f32 %v1889, %v1777
      %v1914 = vadd.f32 %v1890, %v1780
      %v1915 = vadd.f32 %v1891, %v1785
      %v1916 = vadd.f32 %v1892, %v1788
      %v1917 = vadd.f32 %v1893, %v1793
      %v1918 = vadd.f32 %v1894, %v1796
      %v1919 = vadd.f32 %v1895, %v1801
      %v1920 = vadd.f32 %v1896, %v1804
      %v1921 = vadd.f32 %v1897, %v1809
      %v1922 = vadd.f32 %v1898, %v1812
      %v1923 = vadd.f32 %v1899, %v1817
      %v1924 = vadd.f32 %v1900, %v1820
      %v1925 = vadd.f32 %v1901, %v1825
      %v1926 = vadd.f32 %v1902, %v1828
      %v1927 = vadd.f32 %v1903, %v1833
      %v1928 = vadd.f32 %v1904, %v1836
      %v1929 = vadd.f32 %v1905, %v1841
      %v1930 = vadd.f32 %v1906, %v1844
      %v1931 = vadd.f32 %v1907, %v1849
      %v1932 = vadd.f32 %v1908, %v1852
      %v1933 = vadd.f32 %v1909, %v1857
      %v1934 = vadd.f32 %v1910, %v1860
      %v1935 = vpack.c.bf16 %v1912, %v1911
      %v1936 = vpack.c.bf16 %v1913, %v1913
      %v1937 = vpack.c.bf16 %v1915, %v1914
      %v1938 = vpack.c.bf16 %v1916, %v1916
      %v1939 = vpack.c.bf16 %v1918, %v1917
      %v1940 = vpack.c.bf16 %v1919, %v1919
      %v1941 = vpack.c.bf16 %v1921, %v1920
      %v1942 = vpack.c.bf16 %v1922, %v1922
      %v1943 = vpack.c.bf16 %v1924, %v1923
      %v1944 = vpack.c.bf16 %v1925, %v1925
      %v1945 = vpack.c.bf16 %v1927, %v1926
      %v1946 = vpack.c.bf16 %v1928, %v1928
      %v1947 = vpack.c.bf16 %v1930, %v1929
      %v1948 = vpack.c.bf16 %v1931, %v1931
      %v1949 = vpack.c.bf16 %v1933, %v1932
      %v1950 = vpack.c.bf16 %v1934, %v1934
      %v1967 = vunpack.c.l.b16 %v1935
      %v1968 = vunpack.c.h.b16 %v1935
      %v1969 = vunpack.c.l.b16 %v1936
      %v1970 = vunpack.c.l.b16 %v1937
      %v1971 = vunpack.c.h.b16 %v1937
      %v1972 = vunpack.c.l.b16 %v1938
      %v1973 = vunpack.c.l.b16 %v1939
      %v1974 = vunpack.c.h.b16 %v1939
      %v1975 = vunpack.c.l.b16 %v1940
      %v1976 = vunpack.c.l.b16 %v1941
      %v1977 = vunpack.c.h.b16 %v1941
      %v1978 = vunpack.c.l.b16 %v1942
      %v1979 = vunpack.c.l.b16 %v1943
      %v1980 = vunpack.c.h.b16 %v1943
      %v1981 = vunpack.c.l.b16 %v1944
      %v1982 = vunpack.c.l.b16 %v1945
      %v1983 = vunpack.c.h.b16 %v1945
      %v1984 = vunpack.c.l.b16 %v1946
      %v1985 = vunpack.c.l.b16 %v1947
      %v1986 = vunpack.c.h.b16 %v1947
      %v1987 = vunpack.c.l.b16 %v1948
      %v1988 = vunpack.c.l.b16 %v1949
      %v1989 = vunpack.c.h.b16 %v1949
      %v1990 = vunpack.c.l.b16 %v1950
      %v1991 = vpack.c.b16 %v1967, %v1967
      %v1992 = vpack.c.b16 %v1968, %v1968
      %v1993 = vpack.c.b16 %v1969, %v1969
      %v1994 = vpack.c.b16 %v1970, %v1970
      %v1995 = vpack.c.b16 %v1971, %v1971
      %v1996 = vpack.c.b16 %v1972, %v1972
      %v1997 = vpack.c.b16 %v1973, %v1973
      %v1998 = vpack.c.b16 %v1974, %v1974
      %v1999 = vpack.c.b16 %v1975, %v1975
      %v2000 = vpack.c.b16 %v1976, %v1976
      %v2001 = vpack.c.b16 %v1977, %v1977
      %v2002 = vpack.c.b16 %v1978, %v1978
      %v2003 = vpack.c.b16 %v1979, %v1979
      %v2004 = vpack.c.b16 %v1980, %v1980
      %v2005 = vpack.c.b16 %v1981, %v1981
      %v2006 = vpack.c.b16 %v1982, %v1982
      %v2007 = vpack.c.b16 %v1983, %v1983
      %v2008 = vpack.c.b16 %v1984, %v1984
      %v2009 = vpack.c.b16 %v1985, %v1985
      %v2010 = vpack.c.b16 %v1986, %v1986
      %v2011 = vpack.c.b16 %v1987, %v1987
      %v2012 = vpack.c.b16 %v1988, %v1988
      %v2013 = vpack.c.b16 %v1989, %v1989
      %v2014 = vpack.c.b16 %v1990, %v1990
      %vm2039 = vcmask 257024
      %2040 = vst.msk [vmem:[%s340] sm:$0xf] %vm2039, %v1991
      %2041 = vst.msk [vmem:[%s340 + $0x4] sm:$0xf] %vm2039, %v1992
      %2042 = vst.msk [vmem:[%s340 + $0x8] sm:$0xf] %vm2039, %v1993
      %2043 = vst.msk [vmem:[%s340 + $0xc] sm:$0xf] %vm2039, %v1994
      %2044 = vst.msk [vmem:[%s340 + $0x10] sm:$0xf] %vm2039, %v1995
      %2045 = vst.msk [vmem:[%s340 + $0x14] sm:$0xf] %vm2039, %v1996
      %2046 = vst.msk [vmem:[%s340 + $0x18] sm:$0xf] %vm2039, %v1997
      %2047 = vst.msk [vmem:[%s340 + $0x1c] sm:$0xf] %vm2039, %v1998
      %2048 = vst.msk [vmem:[%s340 + $0x20] sm:$0xf] %vm2039, %v1999
      %2049 = vst.msk [vmem:[%s340 + $0x24] sm:$0xf] %vm2039, %v2000
      %2050 = vst.msk [vmem:[%s340 + $0x28] sm:$0xf] %vm2039, %v2001
      %2051 = vst.msk [vmem:[%s340 + $0x2c] sm:$0xf] %vm2039, %v2002
      %2052 = vst.msk [vmem:[%s340 + $0x30] sm:$0xf] %vm2039, %v2003
      %2053 = vst.msk [vmem:[%s340 + $0x34] sm:$0xf] %vm2039, %v2004
      %2054 = vst.msk [vmem:[%s340 + $0x38] sm:$0xf] %vm2039, %v2005
      %2055 = vst.msk [vmem:[%s340 + $0x3c] sm:$0xf] %vm2039, %v2006
      %2056 = vst.msk [vmem:[%s340 + $0x40] sm:$0xf] %vm2039, %v2007
      %2057 = vst.msk [vmem:[%s340 + $0x44] sm:$0xf] %vm2039, %v2008
      %2058 = vst.msk [vmem:[%s340 + $0x48] sm:$0xf] %vm2039, %v2009
      %2059 = vst.msk [vmem:[%s340 + $0x4c] sm:$0xf] %vm2039, %v2010
      %2060 = vst.msk [vmem:[%s340 + $0x50] sm:$0xf] %vm2039, %v2011
      %2061 = vst.msk [vmem:[%s340 + $0x54] sm:$0xf] %vm2039, %v2012
      %2062 = vst.msk [vmem:[%s340 + $0x58] sm:$0xf] %vm2039, %v2013
      %2063 = vst.msk [vmem:[%s340 + $0x5c] sm:$0xf] %vm2039, %v2014
      %s2064 = smul.u32 8, %s21
      %p2065 = scmp.lt.s32.totalorder %s20, 1
      %s2066 = scalar_select %p2065, %s20, 1
      %p2067 = scmp.lt.s32.totalorder %s2064, 23
      %s2068 = scalar_select %p2067, %s2064, 23
      %s2069 = smul.addr %s2068, 3
      %s2070 = smul.addr %s2066, 72
      %s2071 = sadd.s32 %s2069, %s2070
      %s2072 = smul.addr %s2071, 4
      %s2073 = scalar_lea.vmem %s5, %s2072
      // Predicated region
      $region41: #{edsr_ig_forward.8} parent=39 // pred_check
        %p2074 = pneg %p174
      $region42: #{edsr_ig_forward.8} parent=39 // pred_check_branch
        %2076 = sbr.rel (%p2074) target = $region44
      $region43: #{edsr_ig_forward.8} parent=39 // pred_region
        %s2077 = smul.u32 8, %s21
      $region44: #{edsr_ig_forward.8} parent=39 // pred_fallthru
        _
    $region40: #{edsr_ig_forward.8} parent=5 // pred_fallthru
      _
    %p2078 = scmp.le.s32.totalorder 2, %s11
    // Predicated region
    $region45: #{edsr_ig_forward.8} parent=5 // pred_check
      %p2079 = pneg %p2078
    $region46: #{edsr_ig_forward.8} parent=5 // pred_check_branch
      %2081 = sbr.rel (%p2079) target = $region48
    $region47: #{edsr_ig_forward.8} parent=5 // pred_region
      %s2082 = ssub.s32 %s11, 2
      // Predicated region
      $region49: #{edsr_ig_forward.8} parent=47 // pred_check
        %p2083 = pneg %p180
      $region50: #{edsr_ig_forward.8} parent=47 // pred_check_branch
        %2085 = sbr.rel (%p2083) target = $region52
      $region51: #{edsr_ig_forward.8} parent=47 // pred_region
        %s2086 = smul.u32 8, %s23
        %p2087 = scmp.lt.s32.totalorder %s22, 1
        %s2088 = scalar_select %p2087, %s22, 1
        %p2089 = scmp.lt.s32.totalorder %s2086, 23
        %s2090 = scalar_select %p2089, %s2086, 23
        %s2091 = smul.addr %s2090, 3
        %s2092 = smul.addr %s2088, 72
        %s2093 = sadd.s32 %s2091, %s2092
        %s2094 = smul.addr %s2093, 4
        %s2095 = scalar_lea.vmem %s5, %s2094
      $region52: #{edsr_ig_forward.8} parent=47 // pred_fallthru
        _
    $region48: #{edsr_ig_forward.8} parent=5 // pred_fallthru
      _
  $region6: #{edsr_ig_forward.8} parent=0 // loop_footer
    %s15 = sadd.s32 1, %s11
  $region7: #{edsr_ig_forward.8} parent=0 // loop_footer_branch
    %10 = sbr.rel target = $region3
  $region8: #{edsr_ig_forward.8} parent=0 // loop_exit
    _

// kernel: edsr_ig_forward.6
$region0: #{edsr_ig_forward.6}
  #allocation0 [shape = 'u32[]', space=smem, size = 0x4, offset = 0x4, fixed_abs, tag = 'smem constant byte address 0x4 - core index']
  #allocation1 [shape = 'u32[144,128]{1,0:T(1,128)}', space=vmem, size = 0x12000, scoped, tag = 'internal scratch']
  %s0 = inlined_call_operand.vmem [shape: bf16[2,24,24,32], index: 0, kind: input, shape index: {}]
  %s1 = inlined_call_operand.vmem [shape: bf16[2,3,4,24,32], index: 1, kind: input, shape index: {}]
  %s2 = inlined_call_operand.vmem [shape: bf16[288,32], index: 2, kind: input, shape index: {}]
  %s3 = inlined_call_operand.vmem [shape: f32[1,32], index: 3, kind: input, shape index: {}]
  %s4 = inlined_call_operand.vmem [shape: bf16[288,32], index: 4, kind: input, shape index: {}]
  %s5 = inlined_call_operand.vmem [shape: f32[1,32], index: 5, kind: input, shape index: {}]
  %s6 = inlined_call_operand.vmem [shape: bf16[2,24,24,32], index: 6, kind: output, shape index: {}]
  %s7 = sld [smem:[#allocation0]]
  $region57: #{edsr_ig_forward.6} parent=0
    _
  %s9 = ssub.s32 1, %s7
  %s10 = scalar_select 0, %s9, %s7
  loop: start=0, step=1, limit=8
  $region2: #{edsr_ig_forward.6} parent=0 // loop_pre_header
    _
  $region3: #{edsr_ig_forward.6} parent=0 // loop_header
    %s12 = sphi 0, %s16
    %p13 = scmp.ge.s32.totalorder %s12, 8
    %s19 = sphi 0, %s31
    %s20 = sphi 0, %s27
    %s21 = sphi 0, %s19
    %s22 = sphi 0, %s20
    %s23 = sphi 0, %s21
    %s24 = sphi 0, %s22
    %s36 = sphi 0, %s38
    %s39 = sphi 0, %s36
    %s40 = sphi 0, %s39
    %s56 = sphi 0, %s40
    %s64 = sphi 0, %s66
    %s67 = sphi 0, %s64
    %s68 = sphi 0, %s67
    %s84 = sphi 0, %s68
    %s88 = sphi 0, %s88
    %s90 = sphi 0, %s88
    %s91 = sphi 0, %s90
    %s105 = sphi 0, %s91
    %s109 = sphi 0, %s109
    %s111 = sphi 0, %s109
    %s112 = sphi 0, %s111
    %s126 = sphi 0, %s112
    %s130 = sphi 0, %s130
    %s132 = sphi 0, %s130
    %s133 = sphi 0, %s132
    %s147 = sphi 0, %s133
    %s151 = sphi 0, %s151
    %s153 = sphi 0, %s151
    %s154 = sphi 0, %s153
    %s168 = sphi 0, %s154
    %s176 = sphi 0, %s178
    %s179 = sphi 0, %s176
    %s180 = sphi 0, %s179
    %s196 = sphi 0, %s180
  $region4: #{edsr_ig_forward.6} parent=0 // loop_header_branch
    %15 = sbr.rel (%p13) target = $region8
  $region5: #{edsr_ig_forward.6} parent=0 // loop_body
    %s17 = ssub.s32 %s12, 1
    %s18 = ssub.s32 %s12, 2
    %s25 = sadd.s32 1, %s20
    %p26 = scmp.ge.s32.totalorder %s25, 3
    %s27 = scalar_select %p26, 0, %s25
    %s28 = sadd.s32 1, %s19
    %s29 = scalar_select %p26, %s28, %s19
    %p30 = scmp.ge.s32.totalorder %s29, 2
    %s31 = scalar_select %p30, 0, %s29
    %s32 = ssub.s32 %s19, %s31
    %s33 = ssub.s32 %s20, %s27
    %s34 = sor.u32 %s32, %s33
    %p35 = scmp.eq.s32.totalorder %s34, 0
    %s37 = sadd.s32 %s36, 1
    %s38 = scalar_select %p35, %s36, %s37
    %p41 = pneg %p35
    %p42 = scmp.eq.s32.totalorder %s12, 5
    %p43 = por %p41, %p42
    %p44 = scmp.ne.s32.totalorder %s36, %s39
    %p45 = scmp.eq.s32.totalorder %s12, 0
    %p46 = por %p44, %p45
    %p47 = scmp.ne.s32.totalorder %s36, %s39
    %p48 = scmp.eq.s32.totalorder %s17, 5
    %p49 = por %p47, %p48
    %p50 = scmp.ne.s32.totalorder %s39, %s40
    %p51 = scmp.eq.s32.totalorder %s17, 0
    %p52 = por %p50, %p51
    %p53 = scmp.ne.s32.totalorder %s39, %s40
    %p54 = scmp.eq.s32.totalorder %s18, 5
    %p55 = por %p53, %p54
    %p57 = scmp.ne.s32.totalorder %s40, %s56
    %p58 = scmp.eq.s32.totalorder %s18, 0
    %p59 = por %p57, %p58
    %s60 = ssub.s32 %s19, %s31
    %s61 = ssub.s32 %s20, %s27
    %s62 = sor.u32 %s60, %s61
    %p63 = scmp.eq.s32.totalorder %s62, 0
    %s65 = sadd.s32 %s64, 1
    %s66 = scalar_select %p63, %s64, %s65
    %p69 = pneg %p63
    %p70 = scmp.eq.s32.totalorder %s12, 5
    %p71 = por %p69, %p70
    %p72 = scmp.ne.s32.totalorder %s64, %s67
    %p73 = scmp.eq.s32.totalorder %s12, 0
    %p74 = por %p72, %p73
    %p75 = scmp.ne.s32.totalorder %s64, %s67
    %p76 = scmp.eq.s32.totalorder %s17, 5
    %p77 = por %p75, %p76
    %p78 = scmp.ne.s32.totalorder %s67, %s68
    %p79 = scmp.eq.s32.totalorder %s17, 0
    %p80 = por %p78, %p79
    %p81 = scmp.ne.s32.totalorder %s67, %s68
    %p82 = scmp.eq.s32.totalorder %s18, 5
    %p83 = por %p81, %p82
    %p85 = scmp.ne.s32.totalorder %s68, %s84
    %p86 = scmp.eq.s32.totalorder %s18, 0
    %p87 = por %p85, %p86
    %s89 = sadd.s32 %s88, 1
    %p92 = scmp.eq.s32.totalorder %s12, 5
    %p93 = scmp.ne.s32.totalorder %s88, %s90
    %p94 = scmp.eq.s32.totalorder %s12, 0
    %p95 = por %p93, %p94
    %p96 = scmp.ne.s32.totalorder %s88, %s90
    %p97 = scmp.eq.s32.totalorder %s17, 5
    %p98 = por %p96, %p97
    %p99 = scmp.ne.s32.totalorder %s90, %s91
    %p100 = scmp.eq.s32.totalorder %s17, 0
    %p101 = por %p99, %p100
    %p102 = scmp.ne.s32.totalorder %s90, %s91
    %p103 = scmp.eq.s32.totalorder %s18, 5
    %p104 = por %p102, %p103
    %p106 = scmp.ne.s32.totalorder %s91, %s105
    %p107 = scmp.eq.s32.totalorder %s18, 0
    %p108 = por %p106, %p107
    %s110 = sadd.s32 %s109, 1
    %p113 = scmp.eq.s32.totalorder %s12, 5
    %p114 = scmp.ne.s32.totalorder %s109, %s111
    %p115 = scmp.eq.s32.totalorder %s12, 0
    %p116 = por %p114, %p115
    %p117 = scmp.ne.s32.totalorder %s109, %s111
    %p118 = scmp.eq.s32.totalorder %s17, 5
    %p119 = por %p117, %p118
    %p120 = scmp.ne.s32.totalorder %s111, %s112
    %p121 = scmp.eq.s32.totalorder %s17, 0
    %p122 = por %p120, %p121
    %p123 = scmp.ne.s32.totalorder %s111, %s112
    %p124 = scmp.eq.s32.totalorder %s18, 5
    %p125 = por %p123, %p124
    %p127 = scmp.ne.s32.totalorder %s112, %s126
    %p128 = scmp.eq.s32.totalorder %s18, 0
    %p129 = por %p127, %p128
    %s131 = sadd.s32 %s130, 1
    %p134 = scmp.eq.s32.totalorder %s12, 5
    %p135 = scmp.ne.s32.totalorder %s130, %s132
    %p136 = scmp.eq.s32.totalorder %s12, 0
    %p137 = por %p135, %p136
    %p138 = scmp.ne.s32.totalorder %s130, %s132
    %p139 = scmp.eq.s32.totalorder %s17, 5
    %p140 = por %p138, %p139
    %p141 = scmp.ne.s32.totalorder %s132, %s133
    %p142 = scmp.eq.s32.totalorder %s17, 0
    %p143 = por %p141, %p142
    %p144 = scmp.ne.s32.totalorder %s132, %s133
    %p145 = scmp.eq.s32.totalorder %s18, 5
    %p146 = por %p144, %p145
    %p148 = scmp.ne.s32.totalorder %s133, %s147
    %p149 = scmp.eq.s32.totalorder %s18, 0
    %p150 = por %p148, %p149
    %s152 = sadd.s32 %s151, 1
    %p155 = scmp.eq.s32.totalorder %s12, 5
    %p156 = scmp.ne.s32.totalorder %s151, %s153
    %p157 = scmp.eq.s32.totalorder %s12, 0
    %p158 = por %p156, %p157
    %p159 = scmp.ne.s32.totalorder %s151, %s153
    %p160 = scmp.eq.s32.totalorder %s17, 5
    %p161 = por %p159, %p160
    %p162 = scmp.ne.s32.totalorder %s153, %s154
    %p163 = scmp.eq.s32.totalorder %s17, 0
    %p164 = por %p162, %p163
    %p165 = scmp.ne.s32.totalorder %s153, %s154
    %p166 = scmp.eq.s32.totalorder %s18, 5
    %p167 = por %p165, %p166
    %p169 = scmp.ne.s32.totalorder %s154, %s168
    %p170 = scmp.eq.s32.totalorder %s18, 0
    %p171 = por %p169, %p170
    %s172 = ssub.s32 %s19, %s31
    %s173 = ssub.s32 %s20, %s27
    %s174 = sor.u32 %s172, %s173
    %p175 = scmp.eq.s32.totalorder %s174, 0
    %s177 = sadd.s32 %s176, 1
    %s178 = scalar_select %p175, %s176, %s177
    %p181 = pneg %p175
    %p182 = scmp.eq.s32.totalorder %s12, 5
    %p183 = por %p181, %p182
    %p184 = scmp.ne.s32.totalorder %s176, %s179
    %p185 = scmp.eq.s32.totalorder %s12, 0
    %p186 = por %p184, %p185
    %p187 = scmp.ne.s32.totalorder %s176, %s179
    %p188 = scmp.eq.s32.totalorder %s17, 5
    %p189 = por %p187, %p188
    %p190 = scmp.ne.s32.totalorder %s179, %s180
    %p191 = scmp.eq.s32.totalorder %s17, 0
    %p192 = por %p190, %p191
    %p193 = scmp.ne.s32.totalorder %s179, %s180
    %p194 = scmp.eq.s32.totalorder %s18, 5
    %p195 = por %p193, %p194
    %p197 = scmp.ne.s32.totalorder %s180, %s196
    %p198 = scmp.eq.s32.totalorder %s18, 0
    %p199 = por %p197, %p198
    %p200 = scmp.le.s32.totalorder 1, %s12
    %p201 = scmp.lt.s32.totalorder %s12, 7
    %p202 = pnand %p200, %p201
    %p203 = pneg %p202
    // Predicated region
    $region9: #{edsr_ig_forward.6} parent=5 // pred_check
      _
    $region10: #{edsr_ig_forward.6} parent=5 // pred_check_branch
      %205 = sbr.rel (%p202) target = $region12
    $region11: #{edsr_ig_forward.6} parent=5 // pred_region
      %s206 = ssub.s32 %s12, 1
      // Predicated region
      $region13: #{edsr_ig_forward.6} parent=11 // pred_check
        %p207 = pneg %p101
      $region14: #{edsr_ig_forward.6} parent=11 // pred_check_branch
        %209 = sbr.rel (%p207) target = $region16
      $region15: #{edsr_ig_forward.6} parent=11 // pred_region
        _
      $region16: #{edsr_ig_forward.6} parent=11 // pred_fallthru
        _
      // Predicated region
      $region17: #{edsr_ig_forward.6} parent=11 // pred_check
        %p210 = pneg %p122
      $region18: #{edsr_ig_forward.6} parent=11 // pred_check_branch
        %212 = sbr.rel (%p210) target = $region20
      $region19: #{edsr_ig_forward.6} parent=11 // pred_region
        _
      $region20: #{edsr_ig_forward.6} parent=11 // pred_fallthru
        _
      // Predicated region
      $region21: #{edsr_ig_forward.6} parent=11 // pred_check
        %p213 = pneg %p143
      $region22: #{edsr_ig_forward.6} parent=11 // pred_check_branch
        %215 = sbr.rel (%p213) target = $region24
      $region23: #{edsr_ig_forward.6} parent=11 // pred_region
        _
      $region24: #{edsr_ig_forward.6} parent=11 // pred_fallthru
        _
      // Predicated region
      $region25: #{edsr_ig_forward.6} parent=11 // pred_check
        %p216 = pneg %p164
      $region26: #{edsr_ig_forward.6} parent=11 // pred_check_branch
        %218 = sbr.rel (%p216) target = $region28
      $region27: #{edsr_ig_forward.6} parent=11 // pred_region
        _
      $region28: #{edsr_ig_forward.6} parent=11 // pred_fallthru
        _
    $region12: #{edsr_ig_forward.6} parent=5 // pred_fallthru
      _
    %p219 = scmp.lt.s32.totalorder %s12, 6
    // Predicated region
    $region29: #{edsr_ig_forward.6} parent=5 // pred_check
      %p220 = pneg %p219
    $region30: #{edsr_ig_forward.6} parent=5 // pred_check_branch
      %222 = sbr.rel (%p220) target = $region32
    $region31: #{edsr_ig_forward.6} parent=5 // pred_region
      // Predicated region
      $region33: #{edsr_ig_forward.6} parent=31 // pred_check
        %p223 = pneg %p46
      $region34: #{edsr_ig_forward.6} parent=31 // pred_check_branch
        %225 = sbr.rel (%p223) target = $region36
      $region35: #{edsr_ig_forward.6} parent=31 // pred_region
        %s226 = smul.u32 8, %s20
        %p227 = scmp.lt.s32.totalorder %s19, 1
        %s228 = scalar_select %p227, %s19, 1
        %p229 = scmp.lt.s32.totalorder %s226, 23
        %s230 = scalar_select %p229, %s226, 23
        %s231 = smul.addr %s230, 3
        %s232 = smul.addr %s228, 72
        %s233 = sadd.s32 %s231, %s232
        %s234 = smul.addr %s233, 4
        %s235 = scalar_lea.vmem %s0, %s234
        %s236 = smul.u32 8, %s20
      $region36: #{edsr_ig_forward.6} parent=31 // pred_fallthru
        _
      // Predicated region
      $region37: #{edsr_ig_forward.6} parent=31 // pred_check
        %p237 = pneg %p74
      $region38: #{edsr_ig_forward.6} parent=31 // pred_check_branch
        %239 = sbr.rel (%p237) target = $region40
      $region39: #{edsr_ig_forward.6} parent=31 // pred_region
        %p240 = scmp.lt.s32.totalorder %s19, 1
        %s241 = scalar_select %p240, %s19, 1
        %p242 = scmp.lt.s32.totalorder %s20, 2
        %s243 = scalar_select %p242, %s20, 2
        %s244 = smul.addr %s243, 12
        %s245 = smul.addr %s241, 36
        %s246 = sadd.s32 %s244, %s245
        %s247 = smul.addr %s246, 4
        %s248 = scalar_lea.vmem %s1, %s247
      $region40: #{edsr_ig_forward.6} parent=31 // pred_fallthru
        _
    $region32: #{edsr_ig_forward.6} parent=5 // pred_fallthru
      _
    %p249 = scmp.le.s32.totalorder 1, %s12
    %p250 = scmp.lt.s32.totalorder %s12, 7
    %p251 = pnand %p249, %p250
    %p252 = pneg %p251
    // Predicated region
    $region41: #{edsr_ig_forward.6} parent=5 // pred_check
      _
    $region42: #{edsr_ig_forward.6} parent=5 // pred_check_branch
      %254 = sbr.rel (%p251) target = $region44
    $region43: #{edsr_ig_forward.6} parent=5 // pred_region
      %s255 = ssub.s32 %s12, 1
      %s256 = smul.u32 8, %s22
      %p257 = scmp.lt.s32.totalorder %s21, 1
      %s258 = scalar_select %p257, %s21, 1
      %p259 = scmp.lt.s32.totalorder %s256, 23
      %s260 = scalar_select %p259, %s256, 23
      %s261 = smul.addr %s260, 3
      %s262 = smul.addr %s258, 72
      %s263 = sadd.s32 %s261, %s262
      %s264 = smul.addr %s263, 4
      %s265 = scalar_lea.vmem %s0, %s264
      %p266 = pneg %p52
      %p267 = pneg %p49
      %p268 = scmp.lt.s32.totalorder %s21, 1
      %s269 = scalar_select %p268, %s21, 1
      %p270 = scmp.lt.s32.totalorder %s22, 2
      %s271 = scalar_select %p270, %s22, 2
      %s272 = smul.addr %s271, 12
      %s273 = smul.addr %s269, 36
      %s274 = sadd.s32 %s272, %s273
      %s275 = smul.addr %s274, 4
      %s276 = scalar_lea.vmem %s1, %s275
      %p277 = pneg %p80
      %p278 = pneg %p77
      %p279 = pneg %p101
      %p280 = pneg %p98
      %p281 = pneg %p122
      %p282 = pneg %p119
      %p283 = pneg %p143
      %p284 = pneg %p140
      %p285 = pneg %p164
      %p286 = pneg %p161
      %p287 = pneg %p192
      %p288 = pneg %p189
      %s289 = smul.u32 8, %s22
      %p290 = scmp.lt.s32.totalorder %s21, 1
      %s291 = scalar_select %p290, %s21, 1
      %p292 = scmp.lt.s32.totalorder %s289, 23
      %s293 = scalar_select %p292, %s289, 23
      %s294 = smul.addr %s293, 3
      %s295 = smul.addr %s291, 72
      %s296 = sadd.s32 %s294, %s295
      %s297 = smul.addr %s296, 4
      %s298 = scalar_lea.vmem %s6, %s297
      %s299 = smul.u32 8, %s22
      %p300 = scmp.lt.s32.totalorder %s21, 1
      %s301 = scalar_select %p300, %s21, 1
      %p302 = scmp.lt.s32.totalorder %s299, 23
      %s303 = scalar_select %p302, %s299, 23
      %s304 = smul.addr %s303, 3
      %s305 = smul.addr %s301, 72
      %s306 = sadd.s32 %s304, %s305
      %s307 = smul.addr %s306, 4
      %s308 = scalar_lea.vmem %s0, %s307
      %s309 = smul.u32 8, %s22
      %p310 = scmp.lt.s32.totalorder %s21, 1
      %s311 = scalar_select %p310, %s21, 1
      %p312 = scmp.lt.s32.totalorder %s22, 2
      %s313 = scalar_select %p312, %s22, 2
      %s314 = smul.addr %s313, 12
      %s315 = smul.addr %s311, 36
      %s316 = sadd.s32 %s314, %s315
      %s317 = smul.addr %s316, 4
      %s318 = scalar_lea.vmem %s1, %s317
      %s319 = smul.u32 8, %s22
      %p320 = scmp.lt.s32.totalorder %s21, 1
      %s321 = scalar_select %p320, %s21, 1
      %p322 = scmp.lt.s32.totalorder %s319, 23
      %s323 = scalar_select %p322, %s319, 23
      %s324 = smul.addr %s323, 3
      %s325 = smul.addr %s321, 72
      %s326 = sadd.s32 %s324, %s325
      %s327 = smul.addr %s326, 4
      %s328 = scalar_lea.vmem %s6, %s327
      %s329 = smul.u32 8, %s22
      %v331 = vld [vmem:[%s308] sm:$0xf]
      %v332 = vld [vmem:[%s308 + $0x4] sm:$0xf]
      %v333 = vld [vmem:[%s308 + $0x8] sm:$0xf]
      %v334 = vld [vmem:[%s308 + $0xc] sm:$0xf]
      %v335 = vld [vmem:[%s308 + $0x10] sm:$0xf]
      %v336 = vld [vmem:[%s308 + $0x14] sm:$0xf]
      %v337 = vld [vmem:[%s308 + $0x18] sm:$0xf]
      %v338 = vld [vmem:[%s308 + $0x1c] sm:$0xf]
      %v339 = vld [vmem:[%s308 + $0x20] sm:$0xf]
      %v340 = vld [vmem:[%s308 + $0x24] sm:$0xf]
      %v341 = vld [vmem:[%s308 + $0x28] sm:$0xf]
      %v342 = vld [vmem:[%s308 + $0x2c] sm:$0xf]
      %v343 = vld [vmem:[%s308 + $0x30] sm:$0xf]
      %v344 = vld [vmem:[%s308 + $0x34] sm:$0xf]
      %v345 = vld [vmem:[%s308 + $0x38] sm:$0xf]
      %v346 = vld [vmem:[%s308 + $0x3c] sm:$0xf]
      %v347 = vld [vmem:[%s308 + $0x40] sm:$0xf]
      %v348 = vld [vmem:[%s308 + $0x44] sm:$0xf]
      %v349 = vld [vmem:[%s308 + $0x48] sm:$0xf]
      %v350 = vld [vmem:[%s308 + $0x4c] sm:$0xf]
      %v351 = vld [vmem:[%s308 + $0x50] sm:$0xf]
      %v352 = vld [vmem:[%s308 + $0x54] sm:$0xf]
      %v353 = vld [vmem:[%s308 + $0x58] sm:$0xf]
      %v354 = vld [vmem:[%s308 + $0x5c] sm:$0xf]
      %v355 = vld [vmem:[%s318] sm:$0xf]
      %v356 = vld [vmem:[%s318 + $0x4] sm:$0xf]
      %v357 = vld [vmem:[%s318 + $0x8] sm:$0xf]
      %v358 = vld [vmem:[%s318 + $0xc] sm:$0xf]
      %v359 = vld [vmem:[%s318 + $0x10] sm:$0xf]
      %v360 = vld [vmem:[%s318 + $0x14] sm:$0xf]
      %v361 = vld [vmem:[%s318 + $0x18] sm:$0xf]
      %v362 = vld [vmem:[%s318 + $0x1c] sm:$0xf]
      %v363 = vld [vmem:[%s318 + $0x20] sm:$0xf]
      %v364 = vld [vmem:[%s318 + $0x24] sm:$0xf]
      %v365 = vld [vmem:[%s318 + $0x28] sm:$0xf]
      %v366 = vld [vmem:[%s318 + $0x2c] sm:$0xf]
      %v403 = vunpack.c.l.b16 %v355
      %v404 = vunpack.c.l.b16 %v356
      %v405 = vunpack.c.l.b16 %v357
      %v406 = vunpack.c.l.b16 %v358
      %v407 = vunpack.c.l.b16 %v359
      %v408 = vunpack.c.l.b16 %v360
      %v409 = vunpack.c.l.b16 %v331
      %v410 = vunpack.c.l.b16 %v332
      %v411 = vunpack.c.l.b16 %v333
      %v412 = vunpack.c.l.b16 %v334
      %v413 = vunpack.c.l.b16 %v335
      %v414 = vunpack.c.l.b16 %v336
      %v415 = vunpack.c.l.b16 %v337
      %v416 = vunpack.c.l.b16 %v338
      %v417 = vunpack.c.l.b16 %v339
      %v418 = vunpack.c.l.b16 %v340
      %v419 = vunpack.c.l.b16 %v341
      %v420 = vunpack.c.l.b16 %v342
      %v421 = vunpack.c.l.b16 %v343
      %v422 = vunpack.c.l.b16 %v344
      %v423 = vunpack.c.l.b16 %v345
      %v424 = vunpack.c.l.b16 %v346
      %v425 = vunpack.c.l.b16 %v347
      %v426 = vunpack.c.l.b16 %v348
      %v427 = vunpack.c.l.b16 %v349
      %v428 = vunpack.c.l.b16 %v350
      %v429 = vunpack.c.l.b16 %v351
      %v430 = vunpack.c.l.b16 %v352
      %v431 = vunpack.c.l.b16 %v353
      %v432 = vunpack.c.l.b16 %v354
      %v433 = vunpack.c.l.b16 %v361
      %v434 = vunpack.c.l.b16 %v362
      %v435 = vunpack.c.l.b16 %v363
      %v436 = vunpack.c.l.b16 %v364
      %v437 = vunpack.c.l.b16 %v365
      %v438 = vunpack.c.l.b16 %v366
      %v439 = vpack.c.b16 %v404, %v403
      %v440 = vpack.c.b16 %v405, %v405
      %v441 = vpack.c.b16 %v407, %v406
      %v442 = vpack.c.b16 %v408, %v408
      %v443 = vpack.c.b16 %v410, %v409
      %v444 = vpack.c.b16 %v411, %v411
      %v445 = vpack.c.b16 %v413, %v412
      %v446 = vpack.c.b16 %v414, %v414
      %v447 = vpack.c.b16 %v416, %v415
      %v448 = vpack.c.b16 %v417, %v417
      %v449 = vpack.c.b16 %v419, %v418
      %v450 = vpack.c.b16 %v420, %v420
      %v451 = vpack.c.b16 %v422, %v421
      %v452 = vpack.c.b16 %v423, %v423
      %v453 = vpack.c.b16 %v425, %v424
      %v454 = vpack.c.b16 %v426, %v426
      %v455 = vpack.c.b16 %v428, %v427
      %v456 = vpack.c.b16 %v429, %v429
      %v457 = vpack.c.b16 %v431, %v430
      %v458 = vpack.c.b16 %v432, %v432
      %v459 = vpack.c.b16 %v434, %v433
      %v460 = vpack.c.b16 %v435, %v435
      %v461 = vpack.c.b16 %v437, %v436
      %v462 = vpack.c.b16 %v438, %v438
      %vm463 = vsmask.f32 256
      %v465 = vshrl.u32 %v439, 16
      %v467 = vrot.slane %v465, 7
      %v468 = vshll.u32 %v439, 16
      %v470 = vor.u32 %v467, %v468
      %v472 = vshrl.u32 %v440, 16
      %v474 = vrot.slane %v472, 7
      %v475 = vshll.u32 %v440, 16
      %v477 = vor.u32 %v474, %v475
      %v478 = vsel %vm463, %v467, %v477
      %v480 = vshrl.u32 %v441, 16
      %v482 = vrot.slane %v480, 7
      %v483 = vshll.u32 %v441, 16
      %v485 = vor.u32 %v482, %v483
      %v487 = vshrl.u32 %v442, 16
      %v489 = vrot.slane %v487, 7
      %v490 = vshll.u32 %v442, 16
      %v492 = vor.u32 %v489, %v490
      %v493 = vsel %vm463, %v482, %v492
      %v495 = vshrl.u32 %v443, 16
      %v497 = vrot.slane %v495, 7
      %v498 = vshll.u32 %v443, 16
      %v500 = vor.u32 %v497, %v498
      %v502 = vshrl.u32 %v444, 16
      %v504 = vrot.slane %v502, 7
      %v505 = vshll.u32 %v444, 16
      %v507 = vor.u32 %v504, %v505
      %v508 = vsel %vm463, %v497, %v507
      %v510 = vshrl.u32 %v445, 16
      %v512 = vrot.slane %v510, 7
      %v513 = vshll.u32 %v445, 16
      %v515 = vor.u32 %v512, %v513
      %v517 = vshrl.u32 %v446, 16
      %v519 = vrot.slane %v517, 7
      %v520 = vshll.u32 %v446, 16
      %v522 = vor.u32 %v519, %v520
      %v523 = vsel %vm463, %v512, %v522
      %v525 = vshrl.u32 %v447, 16
      %v527 = vrot.slane %v525, 7
      %v528 = vshll.u32 %v447, 16
      %v530 = vor.u32 %v527, %v528
      %v532 = vshrl.u32 %v448, 16
      %v534 = vrot.slane %v532, 7
      %v535 = vshll.u32 %v448, 16
      %v537 = vor.u32 %v534, %v535
      %v538 = vsel %vm463, %v527, %v537
      %v540 = vshrl.u32 %v449, 16
      %v542 = vrot.slane %v540, 7
      %v543 = vshll.u32 %v449, 16
      %v545 = vor.u32 %v542, %v543
      %v547 = vshrl.u32 %v450, 16
      %v549 = vrot.slane %v547, 7
      %v550 = vshll.u32 %v450, 16
      %v552 = vor.u32 %v549, %v550
      %v553 = vsel %vm463, %v542, %v552
      %v555 = vshrl.u32 %v451, 16
      %v557 = vrot.slane %v555, 7
      %v558 = vshll.u32 %v451, 16
      %v560 = vor.u32 %v557, %v558
      %v562 = vshrl.u32 %v452, 16
      %v564 = vrot.slane %v562, 7
      %v565 = vshll.u32 %v452, 16
      %v567 = vor.u32 %v564, %v565
      %v568 = vsel %vm463, %v557, %v567
      %v570 = vshrl.u32 %v453, 16
      %v572 = vrot.slane %v570, 7
      %v573 = vshll.u32 %v453, 16
      %v575 = vor.u32 %v572, %v573
      %v577 = vshrl.u32 %v454, 16
      %v579 = vrot.slane %v577, 7
      %v580 = vshll.u32 %v454, 16
      %v582 = vor.u32 %v579, %v580
      %v583 = vsel %vm463, %v572, %v582
      %v585 = vshrl.u32 %v455, 16
      %v587 = vrot.slane %v585, 7
      %v588 = vshll.u32 %v455, 16
      %v590 = vor.u32 %v587, %v588
      %v592 = vshrl.u32 %v456, 16
      %v594 = vrot.slane %v592, 7
      %v595 = vshll.u32 %v456, 16
      %v597 = vor.u32 %v594, %v595
      %v598 = vsel %vm463, %v587, %v597
      %v600 = vshrl.u32 %v457, 16
      %v602 = vrot.slane %v600, 7
      %v603 = vshll.u32 %v457, 16
      %v605 = vor.u32 %v602, %v603
      %v607 = vshrl.u32 %v458, 16
      %v609 = vrot.slane %v607, 7
      %v610 = vshll.u32 %v458, 16
      %v612 = vor.u32 %v609, %v610
      %v613 = vsel %vm463, %v602, %v612
      %v615 = vshrl.u32 %v459, 16
      %v617 = vrot.slane %v615, 7
      %v618 = vshll.u32 %v459, 16
      %v620 = vor.u32 %v617, %v618
      %v622 = vshrl.u32 %v460, 16
      %v624 = vrot.slane %v622, 7
      %v625 = vshll.u32 %v460, 16
      %v627 = vor.u32 %v624, %v625
      %v628 = vsel %vm463, %v617, %v627
      %v630 = vshrl.u32 %v461, 16
      %v632 = vrot.slane %v630, 7
      %v633 = vshll.u32 %v461, 16
      %v635 = vor.u32 %v632, %v633
      %v637 = vshrl.u32 %v462, 16
      %v639 = vrot.slane %v637, 7
      %v640 = vshll.u32 %v462, 16
      %v642 = vor.u32 %v639, %v640
      %v643 = vsel %vm463, %v632, %v642
      %vm668 = vcmask 1040384
      %vm669 = vmand %vm668, %vm463
      %v670 = vsel %vm669, 0, %v470
      %v671 = vsel %vm669, 0, %v485
      %v672 = vsel %vm669, 0, %v500
      %v673 = vsel %vm669, 0, %v515
      %v674 = vsel %vm669, 0, %v530
      %v675 = vsel %vm669, 0, %v545
      %v676 = vsel %vm669, 0, %v560
      %v677 = vsel %vm669, 0, %v575
      %v678 = vsel %vm669, 0, %v590
      %v679 = vsel %vm669, 0, %v605
      %v680 = vsel %vm669, 0, %v620
      %v681 = vsel %vm669, 0, %v635
      %vm682 = vcmask 1044480
      %vm683 = vsmask.f32 4352
      %vm684 = vmand %vm682, %vm683
      %v685 = vsel %vm684, %v478, 0
      %v686 = vsel %vm684, %v493, 0
      %v687 = vsel %vm684, %v508, 0
      %v688 = vsel %vm684, %v523, 0
      %v689 = vsel %vm684, %v538, 0
      %v690 = vsel %vm684, %v553, 0
      %v691 = vsel %vm684, %v568, 0
      %v692 = vsel %vm684, %v583, 0
      %v693 = vsel %vm684, %v598, 0
      %v694 = vsel %vm684, %v613, 0
      %v695 = vsel %vm684, %v628, 0
      %v696 = vsel %vm684, %v643, 0
      %vm697 = vsmask.f32 7424
      %v699 = vshrl.u32 %v670, 16
      %v701 = vshll.u32 %v670, 16
      %v703 = vrot.slane %v701, 1
      %v704 = vor.u32 %v699, %v703
      %v706 = vshll.u32 %v685, 16
      %v708 = vrot.slane %v706, 1
      %v709 = vsel %vm697, %v704, %v708
      %v710 = vshrl.u32 %v685, 16
      %v712 = vor.u32 %v710, %v708
      %v714 = vshrl.u32 %v671, 16
      %v716 = vshll.u32 %v671, 16
      %v718 = vrot.slane %v716, 1
      %v719 = vor.u32 %v714, %v718
      %v721 = vshll.u32 %v686, 16
      %v723 = vrot.slane %v721, 1
      %v724 = vsel %vm697, %v719, %v723
      %v725 = vshrl.u32 %v686, 16
      %v727 = vor.u32 %v725, %v723
      %v729 = vshrl.u32 %v672, 16
      %v731 = vshll.u32 %v672, 16
      %v733 = vrot.slane %v731, 1
      %v734 = vor.u32 %v729, %v733
      %v736 = vshll.u32 %v687, 16
      %v738 = vrot.slane %v736, 1
      %v739 = vsel %vm697, %v734, %v738
      %v740 = vshrl.u32 %v687, 16
      %v742 = vor.u32 %v740, %v738
      %v744 = vshrl.u32 %v673, 16
      %v746 = vshll.u32 %v673, 16
      %v748 = vrot.slane %v746, 1
      %v749 = vor.u32 %v744, %v748
      %v751 = vshll.u32 %v688, 16
      %v753 = vrot.slane %v751, 1
      %v754 = vsel %vm697, %v749, %v753
      %v755 = vshrl.u32 %v688, 16
      %v757 = vor.u32 %v755, %v753
      %v759 = vshrl.u32 %v674, 16
      %v761 = vshll.u32 %v674, 16
      %v763 = vrot.slane %v761, 1
      %v764 = vor.u32 %v759, %v763
      %v766 = vshll.u32 %v689, 16
      %v768 = vrot.slane %v766, 1
      %v769 = vsel %vm697, %v764, %v768
      %v770 = vshrl.u32 %v689, 16
      %v772 = vor.u32 %v770, %v768
      %v774 = vshrl.u32 %v675, 16
      %v776 = vshll.u32 %v675, 16
      %v778 = vrot.slane %v776, 1
      %v779 = vor.u32 %v774, %v778
      %v781 = vshll.u32 %v690, 16
      %v783 = vrot.slane %v781, 1
      %v784 = vsel %vm697, %v779, %v783
      %v785 = vshrl.u32 %v690, 16
      %v787 = vor.u32 %v785, %v783
      %v789 = vshrl.u32 %v676, 16
      %v791 = vshll.u32 %v676, 16
      %v793 = vrot.slane %v791, 1
      %v794 = vor.u32 %v789, %v793
      %v796 = vshll.u32 %v691, 16
      %v798 = vrot.slane %v796, 1
      %v799 = vsel %vm697, %v794, %v798
      %v800 = vshrl.u32 %v691, 16
      %v802 = vor.u32 %v800, %v798
      %v804 = vshrl.u32 %v677, 16
      %v806 = vshll.u32 %v677, 16
      %v808 = vrot.slane %v806, 1
      %v809 = vor.u32 %v804, %v808
      %v811 = vshll.u32 %v692, 16
      %v813 = vrot.slane %v811, 1
      %v814 = vsel %vm697, %v809, %v813
      %v815 = vshrl.u32 %v692, 16
      %v817 = vor.u32 %v815, %v813
      %v819 = vshrl.u32 %v678, 16
      %v821 = vshll.u32 %v678, 16
      %v823 = vrot.slane %v821, 1
      %v824 = vor.u32 %v819, %v823
      %v826 = vshll.u32 %v693, 16
      %v828 = vrot.slane %v826, 1
      %v829 = vsel %vm697, %v824, %v828
      %v830 = vshrl.u32 %v693, 16
      %v832 = vor.u32 %v830, %v828
      %v834 = vshrl.u32 %v679, 16
      %v836 = vshll.u32 %v679, 16
      %v838 = vrot.slane %v836, 1
      %v839 = vor.u32 %v834, %v838
      %v841 = vshll.u32 %v694, 16
      %v843 = vrot.slane %v841, 1
      %v844 = vsel %vm697, %v839, %v843
      %v845 = vshrl.u32 %v694, 16
      %v847 = vor.u32 %v845, %v843
      %848 = vrot.lane.b32.xlu0 %v709, 32
      %v849 = vpop.permute.xlu0 %848
      %850 = vrot.lane.b32.xlu0 %v712, 32
      %v851 = vpop.permute.xlu0 %850
      %852 = vrot.lane.b32.xlu0 %v724, 32
      %v853 = vpop.permute.xlu0 %852
      %854 = vrot.lane.b32.xlu0 %v727, 32
      %v855 = vpop.permute.xlu0 %854
      %856 = vrot.lane.b32.xlu0 %v739, 32
      %v857 = vpop.permute.xlu0 %856
      %858 = vrot.lane.b32.xlu0 %v742, 32
      %v859 = vpop.permute.xlu0 %858
      %860 = vrot.lane.b32.xlu0 %v754, 32
      %v861 = vpop.permute.xlu0 %860
      %862 = vrot.lane.b32.xlu0 %v757, 32
      %v863 = vpop.permute.xlu0 %862
      %864 = vrot.lane.b32.xlu0 %v769, 32
      %v865 = vpop.permute.xlu0 %864
      %866 = vrot.lane.b32.xlu0 %v772, 32
      %v867 = vpop.permute.xlu0 %866
      %868 = vrot.lane.b32.xlu0 %v784, 32
      %v869 = vpop.permute.xlu0 %868
      %870 = vrot.lane.b32.xlu0 %v787, 32
      %v871 = vpop.permute.xlu0 %870
      %872 = vrot.lane.b32.xlu0 %v799, 32
      %v873 = vpop.permute.xlu0 %872
      %874 = vrot.lane.b32.xlu0 %v802, 32
      %v875 = vpop.permute.xlu0 %874
      %876 = vrot.lane.b32.xlu0 %v814, 32
      %v877 = vpop.permute.xlu0 %876
      %878 = vrot.lane.b32.xlu0 %v817, 32
      %v879 = vpop.permute.xlu0 %878
      %880 = vrot.lane.b32.xlu0 %v829, 32
      %v881 = vpop.permute.xlu0 %880
      %882 = vrot.lane.b32.xlu0 %v832, 32
      %v883 = vpop.permute.xlu0 %882
      %884 = vrot.lane.b32.xlu0 %v844, 32
      %v885 = vpop.permute.xlu0 %884
      %886 = vrot.lane.b32.xlu0 %v847, 32
      %v887 = vpop.permute.xlu0 %886
      %vm908 = vcmask 1046528
      %v909 = vrot.slane %v670, 1
      %v910 = vrot.slane %v685, 1
      %v911 = vsel %vm908, %v909, %v910
      %v912 = vrot.slane %v671, 1
      %v913 = vrot.slane %v686, 1
      %v914 = vsel %vm908, %v912, %v913
      %v915 = vrot.slane %v672, 1
      %v916 = vrot.slane %v687, 1
      %v917 = vsel %vm908, %v915, %v916
      %v918 = vrot.slane %v673, 1
      %v919 = vrot.slane %v688, 1
      %v920 = vsel %vm908, %v918, %v919
      %v921 = vrot.slane %v674, 1
      %v922 = vrot.slane %v689, 1
      %v923 = vsel %vm908, %v921, %v922
      %v924 = vrot.slane %v675, 1
      %v925 = vrot.slane %v690, 1
      %v926 = vsel %vm908, %v924, %v925
      %v927 = vrot.slane %v676, 1
      %v928 = vrot.slane %v691, 1
      %v929 = vsel %vm908, %v927, %v928
      %v930 = vrot.slane %v677, 1
      %v931 = vrot.slane %v692, 1
      %v932 = vsel %vm908, %v930, %v931
      %v933 = vrot.slane %v678, 1
      %v934 = vrot.slane %v693, 1
      %v935 = vsel %vm908, %v933, %v934
      %v936 = vrot.slane %v679, 1
      %v937 = vrot.slane %v694, 1
      %v938 = vsel %vm908, %v936, %v937
      %939 = vrot.lane.b32.xlu0 %v911, 64
      %v940 = vpop.permute.xlu0 %939
      %941 = vrot.lane.b32.xlu0 %v910, 64
      %v942 = vpop.permute.xlu0 %941
      %943 = vrot.lane.b32.xlu0 %v914, 64
      %v944 = vpop.permute.xlu0 %943
      %945 = vrot.lane.b32.xlu0 %v913, 64
      %v946 = vpop.permute.xlu0 %945
      %947 = vrot.lane.b32.xlu0 %v917, 64
      %v948 = vpop.permute.xlu0 %947
      %949 = vrot.lane.b32.xlu0 %v916, 64
      %v950 = vpop.permute.xlu0 %949
      %951 = vrot.lane.b32.xlu0 %v920, 64
      %v952 = vpop.permute.xlu0 %951
      %953 = vrot.lane.b32.xlu0 %v919, 64
      %v954 = vpop.permute.xlu0 %953
      %955 = vrot.lane.b32.xlu0 %v923, 64
      %v956 = vpop.permute.xlu0 %955
      %957 = vrot.lane.b32.xlu0 %v922, 64
      %v958 = vpop.permute.xlu0 %957
      %959 = vrot.lane.b32.xlu0 %v926, 64
      %v960 = vpop.permute.xlu0 %959
      %961 = vrot.lane.b32.xlu0 %v925, 64
      %v962 = vpop.permute.xlu0 %961
      %963 = vrot.lane.b32.xlu0 %v929, 64
      %v964 = vpop.permute.xlu0 %963
      %965 = vrot.lane.b32.xlu0 %v928, 64
      %v966 = vpop.permute.xlu0 %965
      %967 = vrot.lane.b32.xlu0 %v932, 64
      %v968 = vpop.permute.xlu0 %967
      %969 = vrot.lane.b32.xlu0 %v931, 64
      %v970 = vpop.permute.xlu0 %969
      %971 = vrot.lane.b32.xlu0 %v935, 64
      %v972 = vpop.permute.xlu0 %971
      %973 = vrot.lane.b32.xlu0 %v934, 64
      %v974 = vpop.permute.xlu0 %973
      %975 = vrot.lane.b32.xlu0 %v938, 64
      %v976 = vpop.permute.xlu0 %975
      %977 = vrot.lane.b32.xlu0 %v937, 64
      %v978 = vpop.permute.xlu0 %977
      %981 = vrot.lane.b32.xlu0 %v671, 96
      %v982 = vpop.permute.xlu0 %981
      %983 = vrot.lane.b32.xlu0 %v686, 96
      %v984 = vpop.permute.xlu0 %983
      %985 = vrot.lane.b32.xlu0 %v672, 96
      %v986 = vpop.permute.xlu0 %985
      %987 = vrot.lane.b32.xlu0 %v687, 96
      %v988 = vpop.permute.xlu0 %987
      %989 = vrot.lane.b32.xlu0 %v673, 96
      %v990 = vpop.permute.xlu0 %989
      %991 = vrot.lane.b32.xlu0 %v688, 96
      %v992 = vpop.permute.xlu0 %991
      %993 = vrot.lane.b32.xlu0 %v674, 96
      %v994 = vpop.permute.xlu0 %993
      %995 = vrot.lane.b32.xlu0 %v689, 96
      %v996 = vpop.permute.xlu0 %995
      %997 = vrot.lane.b32.xlu0 %v675, 96
      %v998 = vpop.permute.xlu0 %997
      %999 = vrot.lane.b32.xlu0 %v690, 96
      %v1000 = vpop.permute.xlu0 %999
      %1001 = vrot.lane.b32.xlu0 %v676, 96
      %v1002 = vpop.permute.xlu0 %1001
      %1003 = vrot.lane.b32.xlu0 %v691, 96
      %v1004 = vpop.permute.xlu0 %1003
      %1005 = vrot.lane.b32.xlu0 %v677, 96
      %v1006 = vpop.permute.xlu0 %1005
      %1007 = vrot.lane.b32.xlu0 %v692, 96
      %v1008 = vpop.permute.xlu0 %1007
      %1009 = vrot.lane.b32.xlu0 %v678, 96
      %v1010 = vpop.permute.xlu0 %1009
      %1011 = vrot.lane.b32.xlu0 %v693, 96
      %v1012 = vpop.permute.xlu0 %1011
      %1013 = vrot.lane.b32.xlu0 %v679, 96
      %v1014 = vpop.permute.xlu0 %1013
      %1015 = vrot.lane.b32.xlu0 %v694, 96
      %v1016 = vpop.permute.xlu0 %1015
      %1017 = vrot.lane.b32.xlu0 %v680, 96
      %v1018 = vpop.permute.xlu0 %1017
      %1019 = vrot.lane.b32.xlu0 %v695, 96
      %v1020 = vpop.permute.xlu0 %1019
      %v1022 = vshrl.u32 %v680, 16
      %v1024 = vshll.u32 %v680, 16
      %v1026 = vrot.slane %v1024, 1
      %v1027 = vor.u32 %v1022, %v1026
      %v1029 = vshll.u32 %v695, 16
      %v1031 = vrot.slane %v1029, 1
      %v1032 = vsel %vm697, %v1027, %v1031
      %v1033 = vshrl.u32 %v695, 16
      %v1035 = vor.u32 %v1033, %v1031
      %v1036 = vrot.slane %v680, 1
      %v1037 = vrot.slane %v695, 1
      %v1038 = vsel %vm908, %v1036, %v1037
      %1039 = vrot.lane.b32.xlu0 %v914, 32
      %v1040 = vpop.permute.xlu0 %1039
      %1041 = vrot.lane.b32.xlu0 %v913, 32
      %v1042 = vpop.permute.xlu0 %1041
      %1043 = vrot.lane.b32.xlu0 %v917, 32
      %v1044 = vpop.permute.xlu0 %1043
      %1045 = vrot.lane.b32.xlu0 %v916, 32
      %v1046 = vpop.permute.xlu0 %1045
      %1047 = vrot.lane.b32.xlu0 %v920, 32
      %v1048 = vpop.permute.xlu0 %1047
      %1049 = vrot.lane.b32.xlu0 %v919, 32
      %v1050 = vpop.permute.xlu0 %1049
      %1051 = vrot.lane.b32.xlu0 %v923, 32
      %v1052 = vpop.permute.xlu0 %1051
      %1053 = vrot.lane.b32.xlu0 %v922, 32
      %v1054 = vpop.permute.xlu0 %1053
      %1055 = vrot.lane.b32.xlu0 %v926, 32
      %v1056 = vpop.permute.xlu0 %1055
      %1057 = vrot.lane.b32.xlu0 %v925, 32
      %v1058 = vpop.permute.xlu0 %1057
      %1059 = vrot.lane.b32.xlu0 %v929, 32
      %v1060 = vpop.permute.xlu0 %1059
      %1061 = vrot.lane.b32.xlu0 %v928, 32
      %v1062 = vpop.permute.xlu0 %1061
      %1063 = vrot.lane.b32.xlu0 %v932, 32
      %v1064 = vpop.permute.xlu0 %1063
      %1065 = vrot.lane.b32.xlu0 %v931, 32
      %v1066 = vpop.permute.xlu0 %1065
      %1067 = vrot.lane.b32.xlu0 %v935, 32
      %v1068 = vpop.permute.xlu0 %1067
      %1069 = vrot.lane.b32.xlu0 %v934, 32
      %v1070 = vpop.permute.xlu0 %1069
      %1071 = vrot.lane.b32.xlu0 %v938, 32
      %v1072 = vpop.permute.xlu0 %1071
      %1073 = vrot.lane.b32.xlu0 %v937, 32
      %v1074 = vpop.permute.xlu0 %1073
      %1075 = vrot.lane.b32.xlu0 %v1038, 32
      %v1076 = vpop.permute.xlu0 %1075
      %1077 = vrot.lane.b32.xlu0 %v1037, 32
      %v1078 = vpop.permute.xlu0 %1077
      %1081 = vrot.lane.b32.xlu0 %v672, 64
      %v1082 = vpop.permute.xlu0 %1081
      %1083 = vrot.lane.b32.xlu0 %v687, 64
      %v1084 = vpop.permute.xlu0 %1083
      %1085 = vrot.lane.b32.xlu0 %v673, 64
      %v1086 = vpop.permute.xlu0 %1085
      %1087 = vrot.lane.b32.xlu0 %v688, 64
      %v1088 = vpop.permute.xlu0 %1087
      %1089 = vrot.lane.b32.xlu0 %v674, 64
      %v1090 = vpop.permute.xlu0 %1089
      %1091 = vrot.lane.b32.xlu0 %v689, 64
      %v1092 = vpop.permute.xlu0 %1091
      %1093 = vrot.lane.b32.xlu0 %v675, 64
      %v1094 = vpop.permute.xlu0 %1093
      %1095 = vrot.lane.b32.xlu0 %v690, 64
      %v1096 = vpop.permute.xlu0 %1095
      %1097 = vrot.lane.b32.xlu0 %v676, 64
      %v1098 = vpop.permute.xlu0 %1097
      %1099 = vrot.lane.b32.xlu0 %v691, 64
      %v1100 = vpop.permute.xlu0 %1099
      %1101 = vrot.lane.b32.xlu0 %v677, 64
      %v1102 = vpop.permute.xlu0 %1101
      %1103 = vrot.lane.b32.xlu0 %v692, 64
      %v1104 = vpop.permute.xlu0 %1103
      %1105 = vrot.lane.b32.xlu0 %v678, 64
      %v1106 = vpop.permute.xlu0 %1105
      %1107 = vrot.lane.b32.xlu0 %v693, 64
      %v1108 = vpop.permute.xlu0 %1107
      %1109 = vrot.lane.b32.xlu0 %v679, 64
      %v1110 = vpop.permute.xlu0 %1109
      %1111 = vrot.lane.b32.xlu0 %v694, 64
      %v1112 = vpop.permute.xlu0 %1111
      %1113 = vrot.lane.b32.xlu0 %v680, 64
      %v1114 = vpop.permute.xlu0 %1113
      %1115 = vrot.lane.b32.xlu0 %v695, 64
      %v1116 = vpop.permute.xlu0 %1115
      %1117 = vrot.lane.b32.xlu0 %v681, 64
      %v1118 = vpop.permute.xlu0 %1117
      %1119 = vrot.lane.b32.xlu0 %v696, 64
      %v1120 = vpop.permute.xlu0 %1119
      %v1122 = vshrl.u32 %v681, 16
      %v1124 = vshll.u32 %v681, 16
      %v1126 = vrot.slane %v1124, 1
      %v1127 = vor.u32 %v1122, %v1126
      %v1129 = vshll.u32 %v696, 16
      %v1131 = vrot.slane %v1129, 1
      %v1132 = vsel %vm697, %v1127, %v1131
      %v1133 = vshrl.u32 %v696, 16
      %v1135 = vor.u32 %v1133, %v1131
      %1136 = vrot.lane.b32.xlu0 %v739, 96
      %v1137 = vpop.permute.xlu0 %1136
      %1138 = vrot.lane.b32.xlu0 %v742, 96
      %v1139 = vpop.permute.xlu0 %1138
      %1140 = vrot.lane.b32.xlu0 %v754, 96
      %v1141 = vpop.permute.xlu0 %1140
      %1142 = vrot.lane.b32.xlu0 %v757, 96
      %v1143 = vpop.permute.xlu0 %1142
      %1144 = vrot.lane.b32.xlu0 %v769, 96
      %v1145 = vpop.permute.xlu0 %1144
      %1146 = vrot.lane.b32.xlu0 %v772, 96
      %v1147 = vpop.permute.xlu0 %1146
      %1148 = vrot.lane.b32.xlu0 %v784, 96
      %v1149 = vpop.permute.xlu0 %1148
      %1150 = vrot.lane.b32.xlu0 %v787, 96
      %v1151 = vpop.permute.xlu0 %1150
      %1152 = vrot.lane.b32.xlu0 %v799, 96
      %v1153 = vpop.permute.xlu0 %1152
      %1154 = vrot.lane.b32.xlu0 %v802, 96
      %v1155 = vpop.permute.xlu0 %1154
      %1156 = vrot.lane.b32.xlu0 %v814, 96
      %v1157 = vpop.permute.xlu0 %1156
      %1158 = vrot.lane.b32.xlu0 %v817, 96
      %v1159 = vpop.permute.xlu0 %1158
      %1160 = vrot.lane.b32.xlu0 %v829, 96
      %v1161 = vpop.permute.xlu0 %1160
      %1162 = vrot.lane.b32.xlu0 %v832, 96
      %v1163 = vpop.permute.xlu0 %1162
      %1164 = vrot.lane.b32.xlu0 %v844, 96
      %v1165 = vpop.permute.xlu0 %1164
      %1166 = vrot.lane.b32.xlu0 %v847, 96
      %v1167 = vpop.permute.xlu0 %1166
      %1168 = vrot.lane.b32.xlu0 %v1032, 96
      %v1169 = vpop.permute.xlu0 %1168
      %1170 = vrot.lane.b32.xlu0 %v1035, 96
      %v1171 = vpop.permute.xlu0 %1170
      %1172 = vrot.lane.b32.xlu0 %v1132, 96
      %v1173 = vpop.permute.xlu0 %1172
      %1174 = vrot.lane.b32.xlu0 %v1135, 96
      %v1175 = vpop.permute.xlu0 %1174
      %v1176 = vrot.slane %v681, 1
      %v1177 = vrot.slane %v696, 1
      %v1178 = vsel %vm908, %v1176, %v1177
      %vm1179 = vcmask 261120
      %v1181 = vsel %vm1179, %v670, %v849
      %v1183 = vsel %vm1179, %v685, %v851
      %v1185 = vsel %vm1179, %v671, %v853
      %v1187 = vsel %vm1179, %v686, %v855
      %v1189 = vsel %vm1179, %v672, %v857
      %v1191 = vsel %vm1179, %v687, %v859
      %v1193 = vsel %vm1179, %v673, %v861
      %v1195 = vsel %vm1179, %v688, %v863
      %v1197 = vsel %vm1179, %v674, %v865
      %v1199 = vsel %vm1179, %v689, %v867
      %v1201 = vsel %vm1179, %v675, %v869
      %v1203 = vsel %vm1179, %v690, %v871
      %v1205 = vsel %vm1179, %v676, %v873
      %v1207 = vsel %vm1179, %v691, %v875
      %v1209 = vsel %vm1179, %v677, %v877
      %v1211 = vsel %vm1179, %v692, %v879
      %v1213 = vsel %vm1179, %v678, %v881
      %v1215 = vsel %vm1179, %v693, %v883
      %v1217 = vsel %vm1179, %v679, %v885
      %v1219 = vsel %vm1179, %v694, %v887
      %vm1220 = vcmask 523264
      %v1222 = vsel %vm1220, %v1181, %v940
      %v1224 = vsel %vm1220, %v1183, %v942
      %v1226 = vsel %vm1220, %v1185, %v944
      %v1228 = vsel %vm1220, %v1187, %v946
      %v1230 = vsel %vm1220, %v1189, %v948
      %v1232 = vsel %vm1220, %v1191, %v950
      %v1234 = vsel %vm1220, %v1193, %v952
      %v1236 = vsel %vm1220, %v1195, %v954
      %v1238 = vsel %vm1220, %v1197, %v956
      %v1240 = vsel %vm1220, %v1199, %v958
      %v1242 = vsel %vm1220, %v1201, %v960
      %v1244 = vsel %vm1220, %v1203, %v962
      %v1246 = vsel %vm1220, %v1205, %v964
      %v1248 = vsel %vm1220, %v1207, %v966
      %v1250 = vsel %vm1220, %v1209, %v968
      %v1252 = vsel %vm1220, %v1211, %v970
      %v1254 = vsel %vm1220, %v1213, %v972
      %v1256 = vsel %vm1220, %v1215, %v974
      %v1258 = vsel %vm1220, %v1217, %v976
      %v1260 = vsel %vm1220, %v1219, %v978
      %vm1261 = vcmask 785408
      %v1263 = vsel %vm1261, %v1222, %v982
      %v1265 = vsel %vm1261, %v1224, %v984
      %v1267 = vsel %vm1261, %v1226, %v986
      %v1269 = vsel %vm1261, %v1228, %v988
      %v1271 = vsel %vm1261, %v1230, %v990
      %v1273 = vsel %vm1261, %v1232, %v992
      %v1275 = vsel %vm1261, %v1234, %v994
      %v1277 = vsel %vm1261, %v1236, %v996
      %v1279 = vsel %vm1261, %v1238, %v998
      %v1281 = vsel %vm1261, %v1240, %v1000
      %v1283 = vsel %vm1261, %v1242, %v1002
      %v1285 = vsel %vm1261, %v1244, %v1004
      %v1287 = vsel %vm1261, %v1246, %v1006
      %v1289 = vsel %vm1261, %v1248, %v1008
      %v1291 = vsel %vm1261, %v1250, %v1010
      %v1293 = vsel %vm1261, %v1252, %v1012
      %v1295 = vsel %vm1261, %v1254, %v1014
      %v1297 = vsel %vm1261, %v1256, %v1016
      %v1299 = vsel %vm1261, %v1258, %v1018
      %v1301 = vsel %vm1261, %v1260, %v1020
      %v1304 = vsel %vm1179, %v724, %v1040
      %v1307 = vsel %vm1179, %v727, %v1042
      %v1310 = vsel %vm1179, %v739, %v1044
      %v1313 = vsel %vm1179, %v742, %v1046
      %v1316 = vsel %vm1179, %v754, %v1048
      %v1319 = vsel %vm1179, %v757, %v1050
      %v1322 = vsel %vm1179, %v769, %v1052
      %v1325 = vsel %vm1179, %v772, %v1054
      %v1328 = vsel %vm1179, %v784, %v1056
      %v1331 = vsel %vm1179, %v787, %v1058
      %v1334 = vsel %vm1179, %v799, %v1060
      %v1337 = vsel %vm1179, %v802, %v1062
      %v1340 = vsel %vm1179, %v814, %v1064
      %v1343 = vsel %vm1179, %v817, %v1066
      %v1346 = vsel %vm1179, %v829, %v1068
      %v1349 = vsel %vm1179, %v832, %v1070
      %v1352 = vsel %vm1179, %v844, %v1072
      %v1355 = vsel %vm1179, %v847, %v1074
      %v1358 = vsel %vm1179, %v1032, %v1076
      %v1361 = vsel %vm1179, %v1035, %v1078
      %v1363 = vsel %vm1220, %v1304, %v1082
      %v1365 = vsel %vm1220, %v1307, %v1084
      %v1367 = vsel %vm1220, %v1310, %v1086
      %v1369 = vsel %vm1220, %v1313, %v1088
      %v1371 = vsel %vm1220, %v1316, %v1090
      %v1373 = vsel %vm1220, %v1319, %v1092
      %v1375 = vsel %vm1220, %v1322, %v1094
      %v1377 = vsel %vm1220, %v1325, %v1096
      %v1379 = vsel %vm1220, %v1328, %v1098
      %v1381 = vsel %vm1220, %v1331, %v1100
      %v1383 = vsel %vm1220, %v1334, %v1102
      %v1385 = vsel %vm1220, %v1337, %v1104
      %v1387 = vsel %vm1220, %v1340, %v1106
      %v1389 = vsel %vm1220, %v1343, %v1108
      %v1391 = vsel %vm1220, %v1346, %v1110
      %v1393 = vsel %vm1220, %v1349, %v1112
      %v1395 = vsel %vm1220, %v1352, %v1114
      %v1397 = vsel %vm1220, %v1355, %v1116
      %v1399 = vsel %vm1220, %v1358, %v1118
      %v1401 = vsel %vm1220, %v1361, %v1120
      %v1403 = vsel %vm1261, %v1363, %v1137
      %v1405 = vsel %vm1261, %v1365, %v1139
      %v1407 = vsel %vm1261, %v1367, %v1141
      %v1409 = vsel %vm1261, %v1369, %v1143
      %v1411 = vsel %vm1261, %v1371, %v1145
      %v1413 = vsel %vm1261, %v1373, %v1147
      %v1415 = vsel %vm1261, %v1375, %v1149
      %v1417 = vsel %vm1261, %v1377, %v1151
      %v1419 = vsel %vm1261, %v1379, %v1153
      %v1421 = vsel %vm1261, %v1381, %v1155
      %v1423 = vsel %vm1261, %v1383, %v1157
      %v1425 = vsel %vm1261, %v1385, %v1159
      %v1427 = vsel %vm1261, %v1387, %v1161
      %v1429 = vsel %vm1261, %v1389, %v1163
      %v1431 = vsel %vm1261, %v1391, %v1165
      %v1433 = vsel %vm1261, %v1393, %v1167
      %v1435 = vsel %vm1261, %v1395, %v1169
      %v1437 = vsel %vm1261, %v1397, %v1171
      %v1439 = vsel %vm1261, %v1399, %v1173
      %v1441 = vsel %vm1261, %v1401, %v1175
      %v1482 = vunpack.c.l.b16 %v1263
      %v1483 = vunpack.c.l.b16 %v1403
      %v1484 = vunpack.c.l.b16 %v917
      %v1485 = vunpack.c.h.b16 %v1263
      %v1486 = vunpack.c.h.b16 %v1403
      %v1487 = vunpack.c.h.b16 %v917
      %v1488 = vunpack.c.l.b16 %v1265
      %v1489 = vunpack.c.l.b16 %v1405
      %v1490 = vunpack.c.l.b16 %v916
      %v1491 = vunpack.c.l.b16 %v1267
      %v1492 = vunpack.c.l.b16 %v1407
      %v1493 = vunpack.c.l.b16 %v920
      %v1494 = vunpack.c.h.b16 %v1267
      %v1495 = vunpack.c.h.b16 %v1407
      %v1496 = vunpack.c.h.b16 %v920
      %v1497 = vunpack.c.l.b16 %v1269
      %v1498 = vunpack.c.l.b16 %v1409
      %v1499 = vunpack.c.l.b16 %v919
      %v1500 = vunpack.c.l.b16 %v1271
      %v1501 = vunpack.c.l.b16 %v1411
      %v1502 = vunpack.c.l.b16 %v923
      %v1503 = vunpack.c.h.b16 %v1271
      %v1504 = vunpack.c.h.b16 %v1411
      %v1505 = vunpack.c.h.b16 %v923
      %v1506 = vunpack.c.l.b16 %v1273
      %v1507 = vunpack.c.l.b16 %v1413
      %v1508 = vunpack.c.l.b16 %v922
      %v1509 = vunpack.c.l.b16 %v1275
      %v1510 = vunpack.c.l.b16 %v1415
      %v1511 = vunpack.c.l.b16 %v926
      %v1512 = vunpack.c.h.b16 %v1275
      %v1513 = vunpack.c.h.b16 %v1415
      %v1514 = vunpack.c.h.b16 %v926
      %v1515 = vunpack.c.l.b16 %v1277
      %v1516 = vunpack.c.l.b16 %v1417
      %v1517 = vunpack.c.l.b16 %v925
      %v1518 = vunpack.c.l.b16 %v1279
      %v1519 = vunpack.c.l.b16 %v1419
      %v1520 = vunpack.c.l.b16 %v929
      %v1521 = vunpack.c.h.b16 %v1279
      %v1522 = vunpack.c.h.b16 %v1419
      %v1523 = vunpack.c.h.b16 %v929
      %v1524 = vunpack.c.l.b16 %v1281
      %v1525 = vunpack.c.l.b16 %v1421
      %v1526 = vunpack.c.l.b16 %v928
      %v1527 = vunpack.c.l.b16 %v1283
      %v1528 = vunpack.c.l.b16 %v1423
      %v1529 = vunpack.c.l.b16 %v932
      %v1530 = vunpack.c.h.b16 %v1283
      %v1531 = vunpack.c.h.b16 %v1423
      %v1532 = vunpack.c.h.b16 %v932
      %v1533 = vunpack.c.l.b16 %v1285
      %v1534 = vunpack.c.l.b16 %v1425
      %v1535 = vunpack.c.l.b16 %v931
      %v1536 = vunpack.c.l.b16 %v1287
      %v1537 = vunpack.c.l.b16 %v1427
      %v1538 = vunpack.c.l.b16 %v935
      %v1539 = vunpack.c.h.b16 %v1287
      %v1540 = vunpack.c.h.b16 %v1427
      %v1541 = vunpack.c.h.b16 %v935
      %v1542 = vunpack.c.l.b16 %v1289
      %v1543 = vunpack.c.l.b16 %v1429
      %v1544 = vunpack.c.l.b16 %v934
      %v1545 = vunpack.c.l.b16 %v1291
      %v1546 = vunpack.c.l.b16 %v1431
      %v1547 = vunpack.c.l.b16 %v938
      %v1548 = vunpack.c.h.b16 %v1291
      %v1549 = vunpack.c.h.b16 %v1431
      %v1550 = vunpack.c.h.b16 %v938
      %v1551 = vunpack.c.l.b16 %v1293
      %v1552 = vunpack.c.l.b16 %v1433
      %v1553 = vunpack.c.l.b16 %v937
      %v1554 = vunpack.c.l.b16 %v1295
      %v1555 = vunpack.c.l.b16 %v1435
      %v1556 = vunpack.c.l.b16 %v1038
      %v1557 = vunpack.c.h.b16 %v1295
      %v1558 = vunpack.c.h.b16 %v1435
      %v1559 = vunpack.c.h.b16 %v1038
      %v1560 = vunpack.c.l.b16 %v1297
      %v1561 = vunpack.c.l.b16 %v1437
      %v1562 = vunpack.c.l.b16 %v1037
      %v1563 = vunpack.c.l.b16 %v1299
      %v1564 = vunpack.c.l.b16 %v1439
      %v1565 = vunpack.c.l.b16 %v1178
      %v1566 = vunpack.c.h.b16 %v1299
      %v1567 = vunpack.c.h.b16 %v1439
      %v1568 = vunpack.c.h.b16 %v1178
      %v1569 = vunpack.c.l.b16 %v1301
      %v1570 = vunpack.c.l.b16 %v1441
      %v1571 = vunpack.c.l.b16 %v1177
      %v1572 = vld [vmem:[%s2] sm:$0xf]
      %v1573 = vld [vmem:[%s2 + $0x4] sm:$0xf]
      %v1574 = vld [vmem:[%s2 + $0x8] sm:$0xf]
      %v1575 = vld [vmem:[%s2 + $0xc] sm:$0xf]
      %v1576 = vld [vmem:[%s2 + $0x10] sm:$0xf]
      %v1577 = vld [vmem:[%s2 + $0x14] sm:$0xf]
      %v1578 = vld [vmem:[%s2 + $0x18] sm:$0xf]
      %v1579 = vld [vmem:[%s2 + $0x1c] sm:$0xf]
      %v1580 = vld [vmem:[%s2 + $0x20] sm:$0xf]
      %v1581 = vld [vmem:[%s2 + $0x24] sm:$0xf]
      %v1582 = vld [vmem:[%s2 + $0x28] sm:$0xf]
      %v1583 = vld [vmem:[%s2 + $0x2c] sm:$0xf]
      %v1584 = vld [vmem:[%s2 + $0x30] sm:$0xf]
      %v1585 = vld [vmem:[%s2 + $0x34] sm:$0xf]
      %v1586 = vld [vmem:[%s2 + $0x38] sm:$0xf]
      %v1587 = vld [vmem:[%s2 + $0x3c] sm:$0xf]
      %v1588 = vld [vmem:[%s2 + $0x40] sm:$0xf]
      %v1589 = vld [vmem:[%s2 + $0x44] sm:$0xf]
      %v1590 = vld [vmem:[%s2 + $0x48] sm:$0xf]
      %v1591 = vld [vmem:[%s2 + $0x4c] sm:$0xf]
      %v1592 = vld [vmem:[%s2 + $0x50] sm:$0xf]
      %v1593 = vld [vmem:[%s2 + $0x54] sm:$0xf]
      %v1594 = vld [vmem:[%s2 + $0x58] sm:$0xf]
      %v1595 = vld [vmem:[%s2 + $0x5c] sm:$0xf]
      %v1596 = vld [vmem:[%s2 + $0x60] sm:$0xf]
      %v1597 = vld [vmem:[%s2 + $0x64] sm:$0xf]
      %v1598 = vld [vmem:[%s2 + $0x68] sm:$0xf]
      %v1599 = vld [vmem:[%s2 + $0x6c] sm:$0xf]
      %v1600 = vld [vmem:[%s2 + $0x70] sm:$0xf]
      %v1601 = vld [vmem:[%s2 + $0x74] sm:$0xf]
      %v1602 = vld [vmem:[%s2 + $0x78] sm:$0xf]
      %v1603 = vld [vmem:[%s2 + $0x7c] sm:$0xf]
      %v1604 = vld [vmem:[%s2 + $0x80] sm:$0xf]
      %v1605 = vld [vmem:[%s2 + $0x84] sm:$0xf]
      %v1606 = vld [vmem:[%s2 + $0x88] sm:$0xf]
      %v1607 = vld [vmem:[%s2 + $0x8c] sm:$0xf]
      %v1608 = vld [vmem:[%s3] sm:$0x1]
      %v1610 = vlaneseq
      %v1611 = vshrl.u32 %v1610, 7
      %v1612 = vsub.s32 0, %v1611
      %v1613 = vrot.slane %v1608, %v1612
      %v1615 = vpack.c.b16 %v1485, %v1482
      %v1616 = vpack.c.b16 %v1486, %v1483
      %v1617 = vpack.c.b16 %v1487, %v1484
      %v1618 = vpack.c.b16 %v1491, %v1488
      %v1619 = vpack.c.b16 %v1492, %v1489
      %v1620 = vpack.c.b16 %v1493, %v1490
      %v1621 = vpack.c.b16 %v1497, %v1494
      %v1622 = vpack.c.b16 %v1498, %v1495
      %v1623 = vpack.c.b16 %v1499, %v1496
      %v1624 = vpack.c.b16 %v1503, %v1500
      %v1625 = vpack.c.b16 %v1504, %v1501
      %v1626 = vpack.c.b16 %v1505, %v1502
      %v1627 = vpack.c.b16 %v1509, %v1506
      %v1628 = vpack.c.b16 %v1510, %v1507
      %v1629 = vpack.c.b16 %v1511, %v1508
      %v1630 = vpack.c.b16 %v1515, %v1512
      %v1631 = vpack.c.b16 %v1516, %v1513
      %v1632 = vpack.c.b16 %v1517, %v1514
      %v1633 = vpack.c.b16 %v1521, %v1518
      %v1634 = vpack.c.b16 %v1522, %v1519
      %v1635 = vpack.c.b16 %v1523, %v1520
      %v1636 = vpack.c.b16 %v1527, %v1524
      %v1637 = vpack.c.b16 %v1528, %v1525
      %v1638 = vpack.c.b16 %v1529, %v1526
      %v1639 = vpack.c.b16 %v1533, %v1530
      %v1640 = vpack.c.b16 %v1534, %v1531
      %v1641 = vpack.c.b16 %v1535, %v1532
      %v1642 = vpack.c.b16 %v1539, %v1536
      %v1643 = vpack.c.b16 %v1540, %v1537
      %v1644 = vpack.c.b16 %v1541, %v1538
      %v1645 = vpack.c.b16 %v1545, %v1542
      %v1646 = vpack.c.b16 %v1546, %v1543
      %v1647 = vpack.c.b16 %v1547, %v1544
      %v1648 = vpack.c.b16 %v1551, %v1548
      %v1649 = vpack.c.b16 %v1552, %v1549
      %v1650 = vpack.c.b16 %v1553, %v1550
      %v1651 = vpack.c.b16 %v1557, %v1554
      %v1652 = vpack.c.b16 %v1558, %v1555
      %v1653 = vpack.c.b16 %v1559, %v1556
      %v1654 = vpack.c.b16 %v1563, %v1560
      %v1655 = vpack.c.b16 %v1564, %v1561
      %v1656 = vpack.c.b16 %v1565, %v1562
      %v1657 = vpack.c.b16 %v1569, %v1566
      %v1658 = vpack.c.b16 %v1570, %v1567
      %v1659 = vpack.c.b16 %v1571, %v1568
      %v1726 = vunpack.c.l.b16 %v1572
      %v1727 = vunpack.c.l.b16 %v1573
      %v1728 = vunpack.c.l.b16 %v1574
      %v1729 = vunpack.c.l.b16 %v1575
      %v1730 = vunpack.c.l.b16 %v1576
      %v1731 = vunpack.c.l.b16 %v1577
      %v1732 = vunpack.c.l.b16 %v1578
      %v1733 = vunpack.c.l.b16 %v1579
      %v1734 = vunpack.c.l.b16 %v1580
      %v1735 = vunpack.c.l.b16 %v1581
      %v1736 = vunpack.c.l.b16 %v1582
      %v1737 = vunpack.c.l.b16 %v1583
      %v1738 = vunpack.c.l.b16 %v1584
      %v1739 = vunpack.c.l.b16 %v1585
      %v1740 = vunpack.c.l.b16 %v1586
      %v1741 = vunpack.c.l.b16 %v1587
      %v1742 = vunpack.c.l.b16 %v1588
      %v1743 = vunpack.c.l.b16 %v1589
      %v1744 = vunpack.c.l.b16 %v1590
      %v1745 = vunpack.c.l.b16 %v1591
      %v1746 = vunpack.c.l.b16 %v1592
      %v1747 = vunpack.c.l.b16 %v1593
      %v1748 = vunpack.c.l.b16 %v1594
      %v1749 = vunpack.c.l.b16 %v1595
      %v1750 = vunpack.c.l.b16 %v1596
      %v1751 = vunpack.c.l.b16 %v1597
      %v1752 = vunpack.c.l.b16 %v1598
      %v1753 = vunpack.c.l.b16 %v1599
      %v1754 = vunpack.c.l.b16 %v1600
      %v1755 = vunpack.c.l.b16 %v1601
      %v1756 = vunpack.c.l.b16 %v1602
      %v1757 = vunpack.c.l.b16 %v1603
      %v1758 = vunpack.c.l.b16 %v1604
      %v1759 = vunpack.c.l.b16 %v1605
      %v1760 = vunpack.c.l.b16 %v1606
      %v1761 = vunpack.c.l.b16 %v1607
      %v1762 = vpack.c.b16 %v1727, %v1726
      %v1763 = vpack.c.b16 %v1729, %v1728
      %v1764 = vpack.c.b16 %v1731, %v1730
      %v1765 = vpack.c.b16 %v1733, %v1732
      %v1766 = vpack.c.b16 %v1735, %v1734
      %v1767 = vpack.c.b16 %v1737, %v1736
      %v1768 = vpack.c.b16 %v1739, %v1738
      %v1769 = vpack.c.b16 %v1741, %v1740
      %v1770 = vpack.c.b16 %v1743, %v1742
      %v1771 = vpack.c.b16 %v1745, %v1744
      %v1772 = vpack.c.b16 %v1747, %v1746
      %v1773 = vpack.c.b16 %v1749, %v1748
      %v1774 = vpack.c.b16 %v1751, %v1750
      %v1775 = vpack.c.b16 %v1753, %v1752
      %v1776 = vpack.c.b16 %v1755, %v1754
      %v1777 = vpack.c.b16 %v1757, %v1756
      %v1778 = vpack.c.b16 %v1759, %v1758
      %v1779 = vpack.c.b16 %v1761, %v1760
      %v1799 = vsel %vm1179, %v1617, 0
      %v1802 = vsel %vm1179, %v1620, 0
      %v1805 = vsel %vm1179, %v1623, 0
      %v1808 = vsel %vm1179, %v1626, 0
      %v1811 = vsel %vm1179, %v1629, 0
      %v1814 = vsel %vm1179, %v1632, 0
      %v1817 = vsel %vm1179, %v1635, 0
      %v1820 = vsel %vm1179, %v1638, 0
      %v1823 = vsel %vm1179, %v1641, 0
      %v1826 = vsel %vm1179, %v1644, 0
      %v1829 = vsel %vm1179, %v1647, 0
      %v1832 = vsel %vm1179, %v1650, 0
      %v1835 = vsel %vm1179, %v1653, 0
      %v1838 = vsel %vm1179, %v1656, 0
      %v1841 = vsel %vm1179, %v1659, 0
      %1843 = vmatprep.subr.bf16.mxu0 0
      %1844 = vmatpush1.bf16.msra.mxu0 %v1762
      %1845 = vmatprep.subr.bf16.mxu0 0
      %1846 = vmatpush1.bf16.msra.mxu0 %v1763
      %1847 = vmatprep.subr.bf16.mxu0 0
      %1848 = vmatpush1.bf16.msra.mxu0 %v1764
      %1849 = vmatprep.subr.bf16.mxu0 0
      %1850 = vmatpush1.bf16.msra.mxu0 %v1765
      %1851 = vmatprep.subr.bf16.mxu0 0
      %1852 = vmatpush1.bf16.msra.mxu0 %v1766
      %1853 = vmatprep.subr.bf16.mxu0 0
      %1854 = vmatpush1.bf16.msra.mxu0 %v1767
      %1855 = vmatprep.subr.bf16.mxu0 0
      %1856 = vmatpush1.bf16.msra.mxu0 %v1768
      %1857 = vmatprep.subr.bf16.mxu0 0
      %1858 = vmatpush1.bf16.msra.mxu0 %v1769
      %1859 = vmatprep.subr.bf16.mxu0 0
      %1860 = vmatpush1.bf16.msra.mxu0 %v1770
      %1861 = vmatprep.subr.bf16.mxu0 0
      %1862 = vmatpush1.bf16.msra.mxu0 %v1771
      %1863 = vmatprep.subr.bf16.mxu0 0
      %1864 = vmatpush1.bf16.msra.mxu0 %v1772
      %1865 = vmatprep.subr.bf16.mxu0 0
      %1866 = vmatpush1.bf16.msra.mxu0 %v1773
      %1867 = vmatprep.subr.bf16.mxu0 0
      %1868 = vmatpush1.bf16.msra.mxu0 %v1774
      %1869 = vmatprep.subr.bf16.mxu0 0
      %1870 = vmatpush1.bf16.msra.mxu0 %v1775
      %1871 = vmatprep.subr.bf16.mxu0 0
      %1872 = vmatpush1.bf16.msra.mxu0 %v1776
      %1873 = vmatprep.subr.bf16.mxu0 0
      %1874 = vmatpush1.bf16.msra.mxu0 %v1777
      %1875 = vmatprep.mubr.bf16.mxu0 %v1616
      %1876 = vmatmul.mubr.bf16.gmra.mrb[0].mxu0 %v1615
      %v1877 = vpop.f32.mrb[0].mxu0
      %v1878 = vadd.f32 %v1613, %v1877
      %v1879 = vpop.f32.mrb[0].mxu0
      %v1880 = vpop.f32.mrb[0].mxu0
      %v1881 = vadd.f32 %v1613, %v1880
      %v1882 = vpop.f32.mrb[0].mxu0
      %1883 = vmatprep.mubr.bf16.mxu0 %v1619
      %1884 = vmatmul.mubr.bf16.gmra.mrb[0].mxu0 %v1618
      %v1885 = vpop.f32.mrb[0].mxu0
      %v1886 = vadd.f32 %v1613, %v1885
      %v1887 = vpop.f32.mrb[0].mxu0
      %v1888 = vpop.f32.mrb[0].mxu0
      %v1889 = vadd.f32 %v1613, %v1888
      %v1890 = vpop.f32.mrb[0].mxu0
      %1891 = vmatprep.mubr.bf16.mxu0 %v1622
      %1892 = vmatmul.mubr.bf16.gmra.mrb[0].mxu0 %v1621
      %v1893 = vpop.f32.mrb[0].mxu0
      %v1894 = vadd.f32 %v1613, %v1893
      %v1895 = vpop.f32.mrb[0].mxu0
      %v1896 = vpop.f32.mrb[0].mxu0
      %v1897 = vadd.f32 %v1613, %v1896
      %v1898 = vpop.f32.mrb[0].mxu0
      %1899 = vmatprep.mubr.bf16.mxu0 %v1625
      %1900 = vmatmul.mubr.bf16.gmra.mrb[0].mxu0 %v1624
      %v1901 = vpop.f32.mrb[0].mxu0
      %v1902 = vadd.f32 %v1613, %v1901
      %v1903 = vpop.f32.mrb[0].mxu0
      %v1904 = vpop.f32.mrb[0].mxu0
      %v1905 = vadd.f32 %v1613, %v1904
      %v1906 = vpop.f32.mrb[0].mxu0
      %1907 = vmatprep.mubr.bf16.mxu0 %v1628
      %1908 = vmatmul.mubr.bf16.gmra.mrb[0].mxu0 %v1627
      %v1909 = vpop.f32.mrb[0].mxu0
      %v1910 = vadd.f32 %v1613, %v1909
      %v1911 = vpop.f32.mrb[0].mxu0
      %v1912 = vpop.f32.mrb[0].mxu0
      %v1913 = vadd.f32 %v1613, %v1912
      %v1914 = vpop.f32.mrb[0].mxu0
      %1915 = vmatprep.mubr.bf16.mxu0 %v1631
      %1916 = vmatmul.mubr.bf16.gmra.mrb[0].mxu0 %v1630
      %v1917 = vpop.f32.mrb[0].mxu0
      %v1918 = vadd.f32 %v1613, %v1917
      %v1919 = vpop.f32.mrb[0].mxu0
      %v1920 = vpop.f32.mrb[0].mxu0
      %v1921 = vadd.f32 %v1613, %v1920
      %v1922 = vpop.f32.mrb[0].mxu0
      %1923 = vmatprep.mubr.bf16.mxu0 %v1634
      %1924 = vmatmul.mubr.bf16.gmra.mrb[0].mxu0 %v1633
      %v1925 = vpop.f32.mrb[0].mxu0
      %v1926 = vadd.f32 %v1613, %v1925
      %v1927 = vpop.f32.mrb[0].mxu0
      %v1928 = vpop.f32.mrb[0].mxu0
      %v1929 = vadd.f32 %v1613, %v1928
      %v1930 = vpop.f32.mrb[0].mxu0
      %1931 = vmatprep.mubr.bf16.mxu0 %v1637
      %1932 = vmatmul.mubr.bf16.gmra.mrb[0].mxu0 %v1636
      %v1933 = vpop.f32.mrb[0].mxu0
      %v1934 = vadd.f32 %v1613, %v1933
      %v1935 = vpop.f32.mrb[0].mxu0
      %v1936 = vpop.f32.mrb[0].mxu0
      %v1937 = vadd.f32 %v1613, %v1936
      %v1938 = vpop.f32.mrb[0].mxu0
      %1939 = vmatprep.mubr.bf16.mxu0 %v1640
      %1940 = vmatmul.mubr.bf16.gmra.mrb[0].mxu0 %v1639
      %v1941 = vpop.f32.mrb[0].mxu0
      %v1942 = vadd.f32 %v1613, %v1941
      %v1943 = vpop.f32.mrb[0].mxu0
      %v1944 = vpop.f32.mrb[0].mxu0
      %v1945 = vadd.f32 %v1613, %v1944
      %v1946 = vpop.f32.mrb[0].mxu0
      %1947 = vmatprep.mubr.bf16.mxu0 %v1643
      %1948 = vmatmul.mubr.bf16.gmra.mrb[0].mxu0 %v1642
      %v1949 = vpop.f32.mrb[0].mxu0
      %v1950 = vadd.f32 %v1613, %v1949
      %v1951 = vpop.f32.mrb[0].mxu0
      %v1952 = vpop.f32.mrb[0].mxu0
      %v1953 = vadd.f32 %v1613, %v1952
      %v1954 = vpop.f32.mrb[0].mxu0
      %1955 = vmatprep.mubr.bf16.mxu0 %v1646
      %1956 = vmatmul.mubr.bf16.gmra.mrb[0].mxu0 %v1645
      %v1957 = vpop.f32.mrb[0].mxu0
      %v1958 = vadd.f32 %v1613, %v1957
      %v1959 = vpop.f32.mrb[0].mxu0
      %v1960 = vpop.f32.mrb[0].mxu0
      %v1961 = vadd.f32 %v1613, %v1960
      %v1962 = vpop.f32.mrb[0].mxu0
      %1963 = vmatprep.mubr.bf16.mxu0 %v1649
      %1964 = vmatmul.mubr.bf16.gmra.mrb[0].mxu0 %v1648
      %v1965 = vpop.f32.mrb[0].mxu0
      %v1966 = vadd.f32 %v1613, %v1965
      %v1967 = vpop.f32.mrb[0].mxu0
      %v1968 = vpop.f32.mrb[0].mxu0
      %v1969 = vadd.f32 %v1613, %v1968
      %v1970 = vpop.f32.mrb[0].mxu0
      %1971 = vmatprep.mubr.bf16.mxu0 %v1652
      %1972 = vmatmul.mubr.bf16.gmra.mrb[0].mxu0 %v1651
      %v1973 = vpop.f32.mrb[0].mxu0
      %v1974 = vadd.f32 %v1613, %v1973
      %v1975 = vpop.f32.mrb[0].mxu0
      %v1976 = vpop.f32.mrb[0].mxu0
      %v1977 = vadd.f32 %v1613, %v1976
      %v1978 = vpop.f32.mrb[0].mxu0
      %1979 = vmatprep.mubr.bf16.mxu0 %v1655
      %1980 = vmatmul.mubr.bf16.gmra.mrb[0].mxu0 %v1654
      %v1981 = vpop.f32.mrb[0].mxu0
      %v1982 = vadd.f32 %v1613, %v1981
      %v1983 = vpop.f32.mrb[0].mxu0
      %v1984 = vpop.f32.mrb[0].mxu0
      %v1985 = vadd.f32 %v1613, %v1984
      %v1986 = vpop.f32.mrb[0].mxu0
      %1987 = vmatprep.mubr.bf16.mxu0 %v1658
      %1988 = vmatmul.mubr.bf16.gmra.mrb[0].mxu0 %v1657
      %v1989 = vpop.f32.mrb[0].mxu0
      %v1990 = vadd.f32 %v1613, %v1989
      %v1991 = vpop.f32.mrb[0].mxu0
      %v1992 = vpop.f32.mrb[0].mxu0
      %v1993 = vadd.f32 %v1613, %v1992
      %v1994 = vpop.f32.mrb[0].mxu0
      %1995 = vdwg.mxu0
      %1996 = vmatprep.subr.bf16.mxu0 0
      %1997 = vmatpush1.bf16.msra.mxu0 %v1778
      %1998 = vmatprep.subr.bf16.mxu0 0
      %1999 = vmatpush1.bf16.msra.mxu0 %v1779
      %2000 = vmatprep.subr.bf16.mxu0 0
      %2001 = vmatpush1.bf16.msra.mxu0 0
      %2002 = vmatprep.subr.bf16.mxu0 0
      %2003 = vmatpush1.bf16.msra.mxu0 0
      %2004 = vmatprep.subr.bf16.mxu0 0
      %2005 = vmatpush1.bf16.msra.mxu0 0
      %2006 = vmatprep.subr.bf16.mxu0 0
      %2007 = vmatpush1.bf16.msra.mxu0 0
      %2008 = vmatprep.subr.bf16.mxu0 0
      %2009 = vmatpush1.bf16.msra.mxu0 0
      %2010 = vmatprep.subr.bf16.mxu0 0
      %2011 = vmatpush1.bf16.msra.mxu0 0
      %2012 = vmatprep.subr.bf16.mxu0 0
      %2013 = vmatpush1.bf16.msra.mxu0 0
      %2014 = vmatprep.subr.bf16.mxu0 0
      %2015 = vmatpush1.bf16.msra.mxu0 0
      %2016 = vmatprep.subr.bf16.mxu0 0
      %2017 = vmatpush1.bf16.msra.mxu0 0
      %2018 = vmatprep.subr.bf16.mxu0 0
      %2019 = vmatpush1.bf16.msra.mxu0 0
      %2020 = vmatprep.subr.bf16.mxu0 0
      %2021 = vmatpush1.bf16.msra.mxu0 0
      %2022 = vmatprep.subr.bf16.mxu0 0
      %2023 = vmatpush1.bf16.msra.mxu0 0
      %2024 = vmatprep.subr.bf16.mxu0 0
      %2025 = vmatpush1.bf16.msra.mxu0 0
      %2026 = vmatprep.subr.bf16.mxu0 0
      %2027 = vmatpush1.bf16.msra.mxu0 0
      %2028 = vmatprep.mubr.bf16.mxu0 0
      %2029 = vmatmul.mubr.bf16.gmra.mrb[0].mxu0 %v1799
      %v2030 = vpop.f32.mrb[0].mxu0
      %v2031 = vadd.f32 %v1878, %v2030
      %v2032 = vpop.f32.mrb[0].mxu0
      %v2033 = vpop.f32.mrb[0].mxu0
      %v2034 = vadd.f32 %v1881, %v2033
      %v2035 = vpop.f32.mrb[0].mxu0
      %2036 = vmatprep.mubr.bf16.mxu0 0
      %2037 = vmatmul.mubr.bf16.gmra.mrb[0].mxu0 %v1802
      %v2038 = vpop.f32.mrb[0].mxu0
      %v2039 = vadd.f32 %v1886, %v2038
      %v2040 = vpop.f32.mrb[0].mxu0
      %v2041 = vpop.f32.mrb[0].mxu0
      %v2042 = vadd.f32 %v1889, %v2041
      %v2043 = vpop.f32.mrb[0].mxu0
      %2044 = vmatprep.mubr.bf16.mxu0 0
      %2045 = vmatmul.mubr.bf16.gmra.mrb[0].mxu0 %v1805
      %v2046 = vpop.f32.mrb[0].mxu0
      %v2047 = vadd.f32 %v1894, %v2046
      %v2048 = vpop.f32.mrb[0].mxu0
      %v2049 = vpop.f32.mrb[0].mxu0
      %v2050 = vadd.f32 %v1897, %v2049
      %v2051 = vpop.f32.mrb[0].mxu0
      %2052 = vmatprep.mubr.bf16.mxu0 0
      %2053 = vmatmul.mubr.bf16.gmra.mrb[0].mxu0 %v1808
      %v2054 = vpop.f32.mrb[0].mxu0
      %v2055 = vadd.f32 %v1902, %v2054
      %v2056 = vpop.f32.mrb[0].mxu0
      %v2057 = vpop.f32.mrb[0].mxu0
      %v2058 = vadd.f32 %v1905, %v2057
      %v2059 = vpop.f32.mrb[0].mxu0
      %2060 = vmatprep.mubr.bf16.mxu0 0
      %2061 = vmatmul.mubr.bf16.gmra.mrb[0].mxu0 %v1811
      %v2062 = vpop.f32.mrb[0].mxu0
      %v2063 = vadd.f32 %v1910, %v2062
      %v2064 = vpop.f32.mrb[0].mxu0
      %v2065 = vpop.f32.mrb[0].mxu0
      %v2066 = vadd.f32 %v1913, %v2065
      %v2067 = vpop.f32.mrb[0].mxu0
      %2068 = vmatprep.mubr.bf16.mxu0 0
      %2069 = vmatmul.mubr.bf16.gmra.mrb[0].mxu0 %v1814
      %v2070 = vpop.f32.mrb[0].mxu0
      %v2071 = vadd.f32 %v1918, %v2070
      %v2072 = vpop.f32.mrb[0].mxu0
      %v2073 = vpop.f32.mrb[0].mxu0
      %v2074 = vadd.f32 %v1921, %v2073
      %v2075 = vpop.f32.mrb[0].mxu0
      %2076 = vmatprep.mubr.bf16.mxu0 0
      %2077 = vmatmul.mubr.bf16.gmra.mrb[0].mxu0 %v1817
      %v2078 = vpop.f32.mrb[0].mxu0
      %v2079 = vadd.f32 %v1926, %v2078
      %v2080 = vpop.f32.mrb[0].mxu0
      %v2081 = vpop.f32.mrb[0].mxu0
      %v2082 = vadd.f32 %v1929, %v2081
      %v2083 = vpop.f32.mrb[0].mxu0
      %2084 = vmatprep.mubr.bf16.mxu0 0
      %2085 = vmatmul.mubr.bf16.gmra.mrb[0].mxu0 %v1820
      %v2086 = vpop.f32.mrb[0].mxu0
      %v2087 = vadd.f32 %v1934, %v2086
      %v2088 = vpop.f32.mrb[0].mxu0
      %v2089 = vpop.f32.mrb[0].mxu0
      %v2090 = vadd.f32 %v1937, %v2089
      %v2091 = vpop.f32.mrb[0].mxu0
      %2092 = vmatprep.mubr.bf16.mxu0 0
      %2093 = vmatmul.mubr.bf16.gmra.mrb[0].mxu0 %v1823
      %v2094 = vpop.f32.mrb[0].mxu0
      %v2095 = vadd.f32 %v1942, %v2094
      %v2096 = vpop.f32.mrb[0].mxu0
      %v2097 = vpop.f32.mrb[0].mxu0
      %v2098 = vadd.f32 %v1945, %v2097
      %v2099 = vpop.f32.mrb[0].mxu0
      %2100 = vmatprep.mubr.bf16.mxu0 0
      %2101 = vmatmul.mubr.bf16.gmra.mrb[0].mxu0 %v1826
      %v2102 = vpop.f32.mrb[0].mxu0
      %v2103 = vadd.f32 %v1950, %v2102
      %v2104 = vpop.f32.mrb[0].mxu0
      %v2105 = vpop.f32.mrb[0].mxu0
      %v2106 = vadd.f32 %v1953, %v2105
      %v2107 = vpop.f32.mrb[0].mxu0
      %2108 = vmatprep.mubr.bf16.mxu0 0
      %2109 = vmatmul.mubr.bf16.gmra.mrb[0].mxu0 %v1829
      %v2110 = vpop.f32.mrb[0].mxu0
      %v2111 = vadd.f32 %v1958, %v2110
      %v2112 = vpop.f32.mrb[0].mxu0
      %v2113 = vpop.f32.mrb[0].mxu0
      %v2114 = vadd.f32 %v1961, %v2113
      %v2115 = vpop.f32.mrb[0].mxu0
      %2116 = vmatprep.mubr.bf16.mxu0 0
      %2117 = vmatmul.mubr.bf16.gmra.mrb[0].mxu0 %v1832
      %v2118 = vpop.f32.mrb[0].mxu0
      %v2119 = vadd.f32 %v1966, %v2118
      %v2120 = vpop.f32.mrb[0].mxu0
      %v2121 = vpop.f32.mrb[0].mxu0
      %v2122 = vadd.f32 %v1969, %v2121
      %v2123 = vpop.f32.mrb[0].mxu0
      %2124 = vmatprep.mubr.bf16.mxu0 0
      %2125 = vmatmul.mubr.bf16.gmra.mrb[0].mxu0 %v1835
      %v2126 = vpop.f32.mrb[0].mxu0
      %v2127 = vadd.f32 %v1974, %v2126
      %v2128 = vpop.f32.mrb[0].mxu0
      %v2129 = vpop.f32.mrb[0].mxu0
      %v2130 = vadd.f32 %v1977, %v2129
      %v2131 = vpop.f32.mrb[0].mxu0
      %2132 = vmatprep.mubr.bf16.mxu0 0
      %2133 = vmatmul.mubr.bf16.gmra.mrb[0].mxu0 %v1838
      %v2134 = vpop.f32.mrb[0].mxu0
      %v2135 = vadd.f32 %v1982, %v2134
      %v2136 = vpop.f32.mrb[0].mxu0
      %v2137 = vpop.f32.mrb[0].mxu0
      %v2138 = vadd.f32 %v1985, %v2137
      %v2139 = vpop.f32.mrb[0].mxu0
      %2140 = vmatprep.mubr.bf16.mxu0 0
      %2141 = vmatmul.mubr.bf16.gmra.mrb[0].mxu0 %v1841
      %v2142 = vpop.f32.mrb[0].mxu0
      %v2143 = vadd.f32 %v1990, %v2142
      %v2144 = vpop.f32.mrb[0].mxu0
      %v2145 = vpop.f32.mrb[0].mxu0
      %v2146 = vadd.f32 %v1993, %v2145
      %v2147 = vpop.f32.mrb[0].mxu0
      %2148 = vdwg.mxu0
      %v2149 = vmax.f32 %v2031, 0.0
      %v2150 = vmax.f32 %v2034, 0.0
      %v2151 = vmax.f32 %v2039, 0.0
      %v2152 = vmax.f32 %v2042, 0.0
      %v2153 = vmax.f32 %v2047, 0.0
      %v2154 = vmax.f32 %v2050, 0.0
      %v2155 = vmax.f32 %v2055, 0.0
      %v2156 = vmax.f32 %v2058, 0.0
      %v2157 = vmax.f32 %v2063, 0.0
      %v2158 = vmax.f32 %v2066, 0.0
      %v2159 = vmax.f32 %v2071, 0.0
      %v2160 = vmax.f32 %v2074, 0.0
      %v2161 = vmax.f32 %v2079, 0.0
      %v2162 = vmax.f32 %v2082, 0.0
      %v2163 = vmax.f32 %v2087, 0.0
      %v2164 = vmax.f32 %v2090, 0.0
      %v2165 = vmax.f32 %v2095, 0.0
      %v2166 = vmax.f32 %v2098, 0.0
      %v2167 = vmax.f32 %v2103, 0.0
      %v2168 = vmax.f32 %v2106, 0.0
      %v2169 = vmax.f32 %v2111, 0.0
      %v2170 = vmax.f32 %v2114, 0.0
      %v2171 = vmax.f32 %v2119, 0.0
      %v2172 = vmax.f32 %v2122, 0.0
      %v2173 = vmax.f32 %v2127, 0.0
      %v2174 = vmax.f32 %v2130, 0.0
      %v2175 = vmax.f32 %v2135, 0.0
      %v2176 = vmax.f32 %v2138, 0.0
      %v2177 = vmax.f32 %v2143, 0.0
      %v2178 = vmax.f32 %v2146, 0.0
      %p2179 = scmp.gt.s32.totalorder %s22, 0
      %s2180 = scalar_select %p2179, 1, 0
      %v2181 = vstv %s2180
      %vm2182 = vcmp.eq.s32.totalorder %v2181, 1
      %p2183 = scmp.lt.s32.totalorder %s22, 2
      %s2184 = scalar_select %p2183, 1, 0
      %v2185 = vstv %s2184
      %vm2186 = vcmp.eq.s32.totalorder %v2185, 1
      %v2187 = vsel %vm2182, 1, 0
      %v2188 = vsel %vm2186, 1, 0
      %vm2189 = vcmp.eq.s32.totalorder %v2187, 1
      %vm2190 = vcmp.eq.s32.totalorder %v2188, 1
      %v2191 = vsel %vm2189, %v2149, 0.0
      %v2192 = vsel %vm2189, %v2150, 0.0
      %v2193 = vsel %vm2189, %v2151, 0.0
      %v2194 = vsel 1, %v2152, 0.0
      %v2195 = vsel 1, %v2153, 0.0
      %v2196 = vsel 1, %v2154, 0.0
      %v2197 = vsel 1, %v2155, 0.0
      %v2198 = vsel 1, %v2156, 0.0
      %v2199 = vsel 1, %v2157, 0.0
      %v2200 = vsel 1, %v2158, 0.0
      %v2201 = vsel 1, %v2159, 0.0
      %v2202 = vsel 1, %v2160, 0.0
      %v2203 = vsel 1, %v2161, 0.0
      %v2204 = vsel 1, %v2162, 0.0
      %v2205 = vsel 1, %v2163, 0.0
      %v2206 = vsel 1, %v2164, 0.0
      %v2207 = vsel 1, %v2165, 0.0
      %v2208 = vsel 1, %v2166, 0.0
      %v2209 = vsel 1, %v2167, 0.0
      %v2210 = vsel 1, %v2168, 0.0
      %v2211 = vsel 1, %v2169, 0.0
      %v2212 = vsel 1, %v2170, 0.0
      %v2213 = vsel 1, %v2171, 0.0
      %v2214 = vsel 1, %v2172, 0.0
      %v2215 = vsel 1, %v2173, 0.0
      %v2216 = vsel 1, %v2174, 0.0
      %v2217 = vsel 1, %v2175, 0.0
      %v2218 = vsel %vm2190, %v2176, 0.0
      %v2219 = vsel %vm2190, %v2177, 0.0
      %v2220 = vsel %vm2190, %v2178, 0.0
      %v2221 = vpack.c.bf16 %v2192, %v2191
      %v2222 = vpack.c.bf16 %v2193, %v2193
      %v2223 = vpack.c.bf16 %v2195, %v2194
      %v2224 = vpack.c.bf16 %v2196, %v2196
      %v2225 = vpack.c.bf16 %v2198, %v2197
      %v2226 = vpack.c.bf16 %v2199, %v2199
      %v2227 = vpack.c.bf16 %v2201, %v2200
      %v2228 = vpack.c.bf16 %v2202, %v2202
      %v2229 = vpack.c.bf16 %v2204, %v2203
      %v2230 = vpack.c.bf16 %v2205, %v2205
      %v2231 = vpack.c.bf16 %v2207, %v2206
      %v2232 = vpack.c.bf16 %v2208, %v2208
      %v2233 = vpack.c.bf16 %v2210, %v2209
      %v2234 = vpack.c.bf16 %v2211, %v2211
      %v2235 = vpack.c.bf16 %v2213, %v2212
      %v2236 = vpack.c.bf16 %v2214, %v2214
      %v2237 = vpack.c.bf16 %v2216, %v2215
      %v2238 = vpack.c.bf16 %v2217, %v2217
      %v2239 = vpack.c.bf16 %v2219, %v2218
      %v2240 = vpack.c.bf16 %v2220, %v2220
      %v2242 = vshrl.u32 %v2221, 16
      %v2244 = vrot.slane %v2242, 7
      %v2245 = vshll.u32 %v2221, 16
      %v2247 = vor.u32 %v2244, %v2245
      %v2249 = vshrl.u32 %v2222, 16
      %v2251 = vrot.slane %v2249, 7
      %v2252 = vshll.u32 %v2222, 16
      %v2254 = vor.u32 %v2251, %v2252
      %v2255 = vsel %vm463, %v2244, %v2254
      %v2257 = vshrl.u32 %v2223, 16
      %v2259 = vrot.slane %v2257, 7
      %v2260 = vshll.u32 %v2223, 16
      %v2262 = vor.u32 %v2259, %v2260
      %v2264 = vshrl.u32 %v2224, 16
      %v2266 = vrot.slane %v2264, 7
      %v2267 = vshll.u32 %v2224, 16
      %v2269 = vor.u32 %v2266, %v2267
      %v2270 = vsel %vm463, %v2259, %v2269
      %v2272 = vshrl.u32 %v2225, 16
      %v2274 = vrot.slane %v2272, 7
      %v2275 = vshll.u32 %v2225, 16
      %v2277 = vor.u32 %v2274, %v2275
      %v2279 = vshrl.u32 %v2226, 16
      %v2281 = vrot.slane %v2279, 7
      %v2282 = vshll.u32 %v2226, 16
      %v2284 = vor.u32 %v2281, %v2282
      %v2285 = vsel %vm463, %v2274, %v2284
      %v2287 = vshrl.u32 %v2227, 16
      %v2289 = vrot.slane %v2287, 7
      %v2290 = vshll.u32 %v2227, 16
      %v2292 = vor.u32 %v2289, %v2290
      %v2294 = vshrl.u32 %v2228, 16
      %v2296 = vrot.slane %v2294, 7
      %v2297 = vshll.u32 %v2228, 16
      %v2299 = vor.u32 %v2296, %v2297
      %v2300 = vsel %vm463, %v2289, %v2299
      %v2302 = vshrl.u32 %v2229, 16
      %v2304 = vrot.slane %v2302, 7
      %v2305 = vshll.u32 %v2229, 16
      %v2307 = vor.u32 %v2304, %v2305
      %v2309 = vshrl.u32 %v2230, 16
      %v2311 = vrot.slane %v2309, 7
      %v2312 = vshll.u32 %v2230, 16
      %v2314 = vor.u32 %v2311, %v2312
      %v2315 = vsel %vm463, %v2304, %v2314
      %v2317 = vshrl.u32 %v2231, 16
      %v2319 = vrot.slane %v2317, 7
      %v2320 = vshll.u32 %v2231, 16
      %v2322 = vor.u32 %v2319, %v2320
      %v2324 = vshrl.u32 %v2232, 16
      %v2326 = vrot.slane %v2324, 7
      %v2327 = vshll.u32 %v2232, 16
      %v2329 = vor.u32 %v2326, %v2327
      %v2330 = vsel %vm463, %v2319, %v2329
      %v2332 = vshrl.u32 %v2233, 16
      %v2334 = vrot.slane %v2332, 7
      %v2335 = vshll.u32 %v2233, 16
      %v2337 = vor.u32 %v2334, %v2335
      %v2339 = vshrl.u32 %v2234, 16
      %v2341 = vrot.slane %v2339, 7
      %v2342 = vshll.u32 %v2234, 16
      %v2344 = vor.u32 %v2341, %v2342
      %v2345 = vsel %vm463, %v2334, %v2344
      %v2347 = vshrl.u32 %v2235, 16
      %v2349 = vrot.slane %v2347, 7
      %v2350 = vshll.u32 %v2235, 16
      %v2352 = vor.u32 %v2349, %v2350
      %v2354 = vshrl.u32 %v2236, 16
      %v2356 = vrot.slane %v2354, 7
      %v2357 = vshll.u32 %v2236, 16
      %v2359 = vor.u32 %v2356, %v2357
      %v2360 = vsel %vm463, %v2349, %v2359
      %v2362 = vshrl.u32 %v2237, 16
      %v2364 = vrot.slane %v2362, 7
      %v2365 = vshll.u32 %v2237, 16
      %v2367 = vor.u32 %v2364, %v2365
      %v2369 = vshrl.u32 %v2238, 16
      %v2371 = vrot.slane %v2369, 7
      %v2372 = vshll.u32 %v2238, 16
      %v2374 = vor.u32 %v2371, %v2372
      %v2375 = vsel %vm463, %v2364, %v2374
      %v2377 = vshrl.u32 %v2239, 16
      %v2379 = vrot.slane %v2377, 7
      %v2380 = vshll.u32 %v2239, 16
      %v2382 = vor.u32 %v2379, %v2380
      %v2384 = vshrl.u32 %v2240, 16
      %v2386 = vrot.slane %v2384, 7
      %v2387 = vshll.u32 %v2240, 16
      %v2389 = vor.u32 %v2386, %v2387
      %v2390 = vsel %vm463, %v2379, %v2389
      %v2411 = vsel %vm669, 0, %v2247
      %v2412 = vsel %vm669, 0, %v2262
      %v2413 = vsel %vm669, 0, %v2277
      %v2414 = vsel %vm669, 0, %v2292
      %v2415 = vsel %vm669, 0, %v2307
      %v2416 = vsel %vm669, 0, %v2322
      %v2417 = vsel %vm669, 0, %v2337
      %v2418 = vsel %vm669, 0, %v2352
      %v2419 = vsel %vm669, 0, %v2367
      %v2420 = vsel %vm669, 0, %v2382
      %v2421 = vsel %vm684, %v2255, 0
      %v2422 = vsel %vm684, %v2270, 0
      %v2423 = vsel %vm684, %v2285, 0
      %v2424 = vsel %vm684, %v2300, 0
      %v2425 = vsel %vm684, %v2315, 0
      %v2426 = vsel %vm684, %v2330, 0
      %v2427 = vsel %vm684, %v2345, 0
      %v2428 = vsel %vm684, %v2360, 0
      %v2429 = vsel %vm684, %v2375, 0
      %v2430 = vsel %vm684, %v2390, 0
      %v2432 = vshrl.u32 %v2411, 16
      %v2434 = vshll.u32 %v2411, 16
      %v2436 = vrot.slane %v2434, 1
      %v2437 = vor.u32 %v2432, %v2436
      %v2439 = vshll.u32 %v2421, 16
      %v2441 = vrot.slane %v2439, 1
      %v2442 = vsel %vm697, %v2437, %v2441
      %v2443 = vshrl.u32 %v2421, 16
      %v2445 = vor.u32 %v2443, %v2441
      %v2447 = vshrl.u32 %v2412, 16
      %v2449 = vshll.u32 %v2412, 16
      %v2451 = vrot.slane %v2449, 1
      %v2452 = vor.u32 %v2447, %v2451
      %v2454 = vshll.u32 %v2422, 16
      %v2456 = vrot.slane %v2454, 1
      %v2457 = vsel %vm697, %v2452, %v2456
      %v2458 = vshrl.u32 %v2422, 16
      %v2460 = vor.u32 %v2458, %v2456
      %v2462 = vshrl.u32 %v2413, 16
      %v2464 = vshll.u32 %v2413, 16
      %v2466 = vrot.slane %v2464, 1
      %v2467 = vor.u32 %v2462, %v2466
      %v2469 = vshll.u32 %v2423, 16
      %v2471 = vrot.slane %v2469, 1
      %v2472 = vsel %vm697, %v2467, %v2471
      %v2473 = vshrl.u32 %v2423, 16
      %v2475 = vor.u32 %v2473, %v2471
      %v2477 = vshrl.u32 %v2414, 16
      %v2479 = vshll.u32 %v2414, 16
      %v2481 = vrot.slane %v2479, 1
      %v2482 = vor.u32 %v2477, %v2481
      %v2484 = vshll.u32 %v2424, 16
      %v2486 = vrot.slane %v2484, 1
      %v2487 = vsel %vm697, %v2482, %v2486
      %v2488 = vshrl.u32 %v2424, 16
      %v2490 = vor.u32 %v2488, %v2486
      %v2492 = vshrl.u32 %v2415, 16
      %v2494 = vshll.u32 %v2415, 16
      %v2496 = vrot.slane %v2494, 1
      %v2497 = vor.u32 %v2492, %v2496
      %v2499 = vshll.u32 %v2425, 16
      %v2501 = vrot.slane %v2499, 1
      %v2502 = vsel %vm697, %v2497, %v2501
      %v2503 = vshrl.u32 %v2425, 16
      %v2505 = vor.u32 %v2503, %v2501
      %v2507 = vshrl.u32 %v2416, 16
      %v2509 = vshll.u32 %v2416, 16
      %v2511 = vrot.slane %v2509, 1
      %v2512 = vor.u32 %v2507, %v2511
      %v2514 = vshll.u32 %v2426, 16
      %v2516 = vrot.slane %v2514, 1
      %v2517 = vsel %vm697, %v2512, %v2516
      %v2518 = vshrl.u32 %v2426, 16
      %v2520 = vor.u32 %v2518, %v2516
      %v2522 = vshrl.u32 %v2417, 16
      %v2524 = vshll.u32 %v2417, 16
      %v2526 = vrot.slane %v2524, 1
      %v2527 = vor.u32 %v2522, %v2526
      %v2529 = vshll.u32 %v2427, 16
      %v2531 = vrot.slane %v2529, 1
      %v2532 = vsel %vm697, %v2527, %v2531
      %v2533 = vshrl.u32 %v2427, 16
      %v2535 = vor.u32 %v2533, %v2531
      %v2537 = vshrl.u32 %v2418, 16
      %v2539 = vshll.u32 %v2418, 16
      %v2541 = vrot.slane %v2539, 1
      %v2542 = vor.u32 %v2537, %v2541
      %v2544 = vshll.u32 %v2428, 16
      %v2546 = vrot.slane %v2544, 1
      %v2547 = vsel %vm697, %v2542, %v2546
      %v2548 = vshrl.u32 %v2428, 16
      %v2550 = vor.u32 %v2548, %v2546
      %2551 = vrot.lane.b32.xlu0 %v2442, 32
      %v2552 = vpop.permute.xlu0 %2551
      %2553 = vrot.lane.b32.xlu0 %v2445, 32
      %v2554 = vpop.permute.xlu0 %2553
      %2555 = vrot.lane.b32.xlu0 %v2457, 32
      %v2556 = vpop.permute.xlu0 %2555
      %2557 = vrot.lane.b32.xlu0 %v2460, 32
      %v2558 = vpop.permute.xlu0 %2557
      %2559 = vrot.lane.b32.xlu0 %v2472, 32
      %v2560 = vpop.permute.xlu0 %2559
      %2561 = vrot.lane.b32.xlu0 %v2475, 32
      %v2562 = vpop.permute.xlu0 %2561
      %2563 = vrot.lane.b32.xlu0 %v2487, 32
      %v2564 = vpop.permute.xlu0 %2563
      %2565 = vrot.lane.b32.xlu0 %v2490, 32
      %v2566 = vpop.permute.xlu0 %2565
      %2567 = vrot.lane.b32.xlu0 %v2502, 32
      %v2568 = vpop.permute.xlu0 %2567
      %2569 = vrot.lane.b32.xlu0 %v2505, 32
      %v2570 = vpop.permute.xlu0 %2569
      %2571 = vrot.lane.b32.xlu0 %v2517, 32
      %v2572 = vpop.permute.xlu0 %2571
      %2573 = vrot.lane.b32.xlu0 %v2520, 32
      %v2574 = vpop.permute.xlu0 %2573
      %2575 = vrot.lane.b32.xlu0 %v2532, 32
      %v2576 = vpop.permute.xlu0 %2575
      %2577 = vrot.lane.b32.xlu0 %v2535, 32
      %v2578 = vpop.permute.xlu0 %2577
      %2579 = vrot.lane.b32.xlu0 %v2547, 32
      %v2580 = vpop.permute.xlu0 %2579
      %2581 = vrot.lane.b32.xlu0 %v2550, 32
      %v2582 = vpop.permute.xlu0 %2581
      %v2599 = vrot.slane %v2411, 1
      %v2600 = vrot.slane %v2421, 1
      %v2601 = vsel %vm908, %v2599, %v2600
      %v2602 = vrot.slane %v2412, 1
      %v2603 = vrot.slane %v2422, 1
      %v2604 = vsel %vm908, %v2602, %v2603
      %v2605 = vrot.slane %v2413, 1
      %v2606 = vrot.slane %v2423, 1
      %v2607 = vsel %vm908, %v2605, %v2606
      %v2608 = vrot.slane %v2414, 1
      %v2609 = vrot.slane %v2424, 1
      %v2610 = vsel %vm908, %v2608, %v2609
      %v2611 = vrot.slane %v2415, 1
      %v2612 = vrot.slane %v2425, 1
      %v2613 = vsel %vm908, %v2611, %v2612
      %v2614 = vrot.slane %v2416, 1
      %v2615 = vrot.slane %v2426, 1
      %v2616 = vsel %vm908, %v2614, %v2615
      %v2617 = vrot.slane %v2417, 1
      %v2618 = vrot.slane %v2427, 1
      %v2619 = vsel %vm908, %v2617, %v2618
      %v2620 = vrot.slane %v2418, 1
      %v2621 = vrot.slane %v2428, 1
      %v2622 = vsel %vm908, %v2620, %v2621
      %2623 = vrot.lane.b32.xlu0 %v2601, 64
      %v2624 = vpop.permute.xlu0 %2623
      %2625 = vrot.lane.b32.xlu0 %v2600, 64
      %v2626 = vpop.permute.xlu0 %2625
      %2627 = vrot.lane.b32.xlu0 %v2604, 64
      %v2628 = vpop.permute.xlu0 %2627
      %2629 = vrot.lane.b32.xlu0 %v2603, 64
      %v2630 = vpop.permute.xlu0 %2629
      %2631 = vrot.lane.b32.xlu0 %v2607, 64
      %v2632 = vpop.permute.xlu0 %2631
      %2633 = vrot.lane.b32.xlu0 %v2606, 64
      %v2634 = vpop.permute.xlu0 %2633
      %2635 = vrot.lane.b32.xlu0 %v2610, 64
      %v2636 = vpop.permute.xlu0 %2635
      %2637 = vrot.lane.b32.xlu0 %v2609, 64
      %v2638 = vpop.permute.xlu0 %2637
      %2639 = vrot.lane.b32.xlu0 %v2613, 64
      %v2640 = vpop.permute.xlu0 %2639
      %2641 = vrot.lane.b32.xlu0 %v2612, 64
      %v2642 = vpop.permute.xlu0 %2641
      %2643 = vrot.lane.b32.xlu0 %v2616, 64
      %v2644 = vpop.permute.xlu0 %2643
      %2645 = vrot.lane.b32.xlu0 %v2615, 64
      %v2646 = vpop.permute.xlu0 %2645
      %2647 = vrot.lane.b32.xlu0 %v2619, 64
      %v2648 = vpop.permute.xlu0 %2647
      %2649 = vrot.lane.b32.xlu0 %v2618, 64
      %v2650 = vpop.permute.xlu0 %2649
      %2651 = vrot.lane.b32.xlu0 %v2622, 64
      %v2652 = vpop.permute.xlu0 %2651
      %2653 = vrot.lane.b32.xlu0 %v2621, 64
      %v2654 = vpop.permute.xlu0 %2653
      %2657 = vrot.lane.b32.xlu0 %v2412, 96
      %v2658 = vpop.permute.xlu0 %2657
      %2659 = vrot.lane.b32.xlu0 %v2422, 96
      %v2660 = vpop.permute.xlu0 %2659
      %2661 = vrot.lane.b32.xlu0 %v2413, 96
      %v2662 = vpop.permute.xlu0 %2661
      %2663 = vrot.lane.b32.xlu0 %v2423, 96
      %v2664 = vpop.permute.xlu0 %2663
      %2665 = vrot.lane.b32.xlu0 %v2414, 96
      %v2666 = vpop.permute.xlu0 %2665
      %2667 = vrot.lane.b32.xlu0 %v2424, 96
      %v2668 = vpop.permute.xlu0 %2667
      %2669 = vrot.lane.b32.xlu0 %v2415, 96
      %v2670 = vpop.permute.xlu0 %2669
      %2671 = vrot.lane.b32.xlu0 %v2425, 96
      %v2672 = vpop.permute.xlu0 %2671
      %2673 = vrot.lane.b32.xlu0 %v2416, 96
      %v2674 = vpop.permute.xlu0 %2673
      %2675 = vrot.lane.b32.xlu0 %v2426, 96
      %v2676 = vpop.permute.xlu0 %2675
      %2677 = vrot.lane.b32.xlu0 %v2417, 96
      %v2678 = vpop.permute.xlu0 %2677
      %2679 = vrot.lane.b32.xlu0 %v2427, 96
      %v2680 = vpop.permute.xlu0 %2679
      %2681 = vrot.lane.b32.xlu0 %v2418, 96
      %v2682 = vpop.permute.xlu0 %2681
      %2683 = vrot.lane.b32.xlu0 %v2428, 96
      %v2684 = vpop.permute.xlu0 %2683
      %2685 = vrot.lane.b32.xlu0 %v2419, 96
      %v2686 = vpop.permute.xlu0 %2685
      %2687 = vrot.lane.b32.xlu0 %v2429, 96
      %v2688 = vpop.permute.xlu0 %2687
      %v2690 = vshrl.u32 %v2419, 16
      %v2692 = vshll.u32 %v2419, 16
      %v2694 = vrot.slane %v2692, 1
      %v2695 = vor.u32 %v2690, %v2694
      %v2697 = vshll.u32 %v2429, 16
      %v2699 = vrot.slane %v2697, 1
      %v2700 = vsel %vm697, %v2695, %v2699
      %v2701 = vshrl.u32 %v2429, 16
      %v2703 = vor.u32 %v2701, %v2699
      %v2704 = vrot.slane %v2419, 1
      %v2705 = vrot.slane %v2429, 1
      %v2706 = vsel %vm908, %v2704, %v2705
      %2707 = vrot.lane.b32.xlu0 %v2604, 32
      %v2708 = vpop.permute.xlu0 %2707
      %2709 = vrot.lane.b32.xlu0 %v2603, 32
      %v2710 = vpop.permute.xlu0 %2709
      %2711 = vrot.lane.b32.xlu0 %v2607, 32
      %v2712 = vpop.permute.xlu0 %2711
      %2713 = vrot.lane.b32.xlu0 %v2606, 32
      %v2714 = vpop.permute.xlu0 %2713
      %2715 = vrot.lane.b32.xlu0 %v2610, 32
      %v2716 = vpop.permute.xlu0 %2715
      %2717 = vrot.lane.b32.xlu0 %v2609, 32
      %v2718 = vpop.permute.xlu0 %2717
      %2719 = vrot.lane.b32.xlu0 %v2613, 32
      %v2720 = vpop.permute.xlu0 %2719
      %2721 = vrot.lane.b32.xlu0 %v2612, 32
      %v2722 = vpop.permute.xlu0 %2721
      %2723 = vrot.lane.b32.xlu0 %v2616, 32
      %v2724 = vpop.permute.xlu0 %2723
      %2725 = vrot.lane.b32.xlu0 %v2615, 32
      %v2726 = vpop.permute.xlu0 %2725
      %2727 = vrot.lane.b32.xlu0 %v2619, 32
      %v2728 = vpop.permute.xlu0 %2727
      %2729 = vrot.lane.b32.xlu0 %v2618, 32
      %v2730 = vpop.permute.xlu0 %2729
      %2731 = vrot.lane.b32.xlu0 %v2622, 32
      %v2732 = vpop.permute.xlu0 %2731
      %2733 = vrot.lane.b32.xlu0 %v2621, 32
      %v2734 = vpop.permute.xlu0 %2733
      %2735 = vrot.lane.b32.xlu0 %v2706, 32
      %v2736 = vpop.permute.xlu0 %2735
      %2737 = vrot.lane.b32.xlu0 %v2705, 32
      %v2738 = vpop.permute.xlu0 %2737
      %2741 = vrot.lane.b32.xlu0 %v2413, 64
      %v2742 = vpop.permute.xlu0 %2741
      %2743 = vrot.lane.b32.xlu0 %v2423, 64
      %v2744 = vpop.permute.xlu0 %2743
      %2745 = vrot.lane.b32.xlu0 %v2414, 64
      %v2746 = vpop.permute.xlu0 %2745
      %2747 = vrot.lane.b32.xlu0 %v2424, 64
      %v2748 = vpop.permute.xlu0 %2747
      %2749 = vrot.lane.b32.xlu0 %v2415, 64
      %v2750 = vpop.permute.xlu0 %2749
      %2751 = vrot.lane.b32.xlu0 %v2425, 64
      %v2752 = vpop.permute.xlu0 %2751
      %2753 = vrot.lane.b32.xlu0 %v2416, 64
      %v2754 = vpop.permute.xlu0 %2753
      %2755 = vrot.lane.b32.xlu0 %v2426, 64
      %v2756 = vpop.permute.xlu0 %2755
      %2757 = vrot.lane.b32.xlu0 %v2417, 64
      %v2758 = vpop.permute.xlu0 %2757
      %2759 = vrot.lane.b32.xlu0 %v2427, 64
      %v2760 = vpop.permute.xlu0 %2759
      %2761 = vrot.lane.b32.xlu0 %v2418, 64
      %v2762 = vpop.permute.xlu0 %2761
      %2763 = vrot.lane.b32.xlu0 %v2428, 64
      %v2764 = vpop.permute.xlu0 %2763
      %2765 = vrot.lane.b32.xlu0 %v2419, 64
      %v2766 = vpop.permute.xlu0 %2765
      %2767 = vrot.lane.b32.xlu0 %v2429, 64
      %v2768 = vpop.permute.xlu0 %2767
      %2769 = vrot.lane.b32.xlu0 %v2420, 64
      %v2770 = vpop.permute.xlu0 %2769
      %2771 = vrot.lane.b32.xlu0 %v2430, 64
      %v2772 = vpop.permute.xlu0 %2771
      %v2774 = vshrl.u32 %v2420, 16
      %v2776 = vshll.u32 %v2420, 16
      %v2778 = vrot.slane %v2776, 1
      %v2779 = vor.u32 %v2774, %v2778
      %v2781 = vshll.u32 %v2430, 16
      %v2783 = vrot.slane %v2781, 1
      %v2784 = vsel %vm697, %v2779, %v2783
      %v2785 = vshrl.u32 %v2430, 16
      %v2787 = vor.u32 %v2785, %v2783
      %2788 = vrot.lane.b32.xlu0 %v2472, 96
      %v2789 = vpop.permute.xlu0 %2788
      %2790 = vrot.lane.b32.xlu0 %v2475, 96
      %v2791 = vpop.permute.xlu0 %2790
      %2792 = vrot.lane.b32.xlu0 %v2487, 96
      %v2793 = vpop.permute.xlu0 %2792
      %2794 = vrot.lane.b32.xlu0 %v2490, 96
      %v2795 = vpop.permute.xlu0 %2794
      %2796 = vrot.lane.b32.xlu0 %v2502, 96
      %v2797 = vpop.permute.xlu0 %2796
      %2798 = vrot.lane.b32.xlu0 %v2505, 96
      %v2799 = vpop.permute.xlu0 %2798
      %2800 = vrot.lane.b32.xlu0 %v2517, 96
      %v2801 = vpop.permute.xlu0 %2800
      %2802 = vrot.lane.b32.xlu0 %v2520, 96
      %v2803 = vpop.permute.xlu0 %2802
      %2804 = vrot.lane.b32.xlu0 %v2532, 96
      %v2805 = vpop.permute.xlu0 %2804
      %2806 = vrot.lane.b32.xlu0 %v2535, 96
      %v2807 = vpop.permute.xlu0 %2806
      %2808 = vrot.lane.b32.xlu0 %v2547, 96
      %v2809 = vpop.permute.xlu0 %2808
      %2810 = vrot.lane.b32.xlu0 %v2550, 96
      %v2811 = vpop.permute.xlu0 %2810
      %2812 = vrot.lane.b32.xlu0 %v2700, 96
      %v2813 = vpop.permute.xlu0 %2812
      %2814 = vrot.lane.b32.xlu0 %v2703, 96
      %v2815 = vpop.permute.xlu0 %2814
      %2816 = vrot.lane.b32.xlu0 %v2784, 96
      %v2817 = vpop.permute.xlu0 %2816
      %2818 = vrot.lane.b32.xlu0 %v2787, 96
      %v2819 = vpop.permute.xlu0 %2818
      %v2820 = vrot.slane %v2420, 1
      %v2821 = vrot.slane %v2430, 1
      %v2822 = vsel %vm908, %v2820, %v2821
      %v2824 = vsel %vm1179, %v2411, %v2552
      %v2826 = vsel %vm1179, %v2421, %v2554
      %v2828 = vsel %vm1179, %v2412, %v2556
      %v2830 = vsel %vm1179, %v2422, %v2558
      %v2832 = vsel %vm1179, %v2413, %v2560
      %v2834 = vsel %vm1179, %v2423, %v2562
      %v2836 = vsel %vm1179, %v2414, %v2564
      %v2838 = vsel %vm1179, %v2424, %v2566
      %v2840 = vsel %vm1179, %v2415, %v2568
      %v2842 = vsel %vm1179, %v2425, %v2570
      %v2844 = vsel %vm1179, %v2416, %v2572
      %v2846 = vsel %vm1179, %v2426, %v2574
      %v2848 = vsel %vm1179, %v2417, %v2576
      %v2850 = vsel %vm1179, %v2427, %v2578
      %v2852 = vsel %vm1179, %v2418, %v2580
      %v2854 = vsel %vm1179, %v2428, %v2582
      %v2856 = vsel %vm1220, %v2824, %v2624
      %v2858 = vsel %vm1220, %v2826, %v2626
      %v2860 = vsel %vm1220, %v2828, %v2628
      %v2862 = vsel %vm1220, %v2830, %v2630
      %v2864 = vsel %vm1220, %v2832, %v2632
      %v2866 = vsel %vm1220, %v2834, %v2634
      %v2868 = vsel %vm1220, %v2836, %v2636
      %v2870 = vsel %vm1220, %v2838, %v2638
      %v2872 = vsel %vm1220, %v2840, %v2640
      %v2874 = vsel %vm1220, %v2842, %v2642
      %v2876 = vsel %vm1220, %v2844, %v2644
      %v2878 = vsel %vm1220, %v2846, %v2646
      %v2880 = vsel %vm1220, %v2848, %v2648
      %v2882 = vsel %vm1220, %v2850, %v2650
      %v2884 = vsel %vm1220, %v2852, %v2652
      %v2886 = vsel %vm1220, %v2854, %v2654
      %v2888 = vsel %vm1261, %v2856, %v2658
      %v2890 = vsel %vm1261, %v2858, %v2660
      %v2892 = vsel %vm1261, %v2860, %v2662
      %v2894 = vsel %vm1261, %v2862, %v2664
      %v2896 = vsel %vm1261, %v2864, %v2666
      %v2898 = vsel %vm1261, %v2866, %v2668
      %v2900 = vsel %vm1261, %v2868, %v2670
      %v2902 = vsel %vm1261, %v2870, %v2672
      %v2904 = vsel %vm1261, %v2872, %v2674
      %v2906 = vsel %vm1261, %v2874, %v2676
      %v2908 = vsel %vm1261, %v2876, %v2678
      %v2910 = vsel %vm1261, %v2878, %v2680
      %v2912 = vsel %vm1261, %v2880, %v2682
      %v2914 = vsel %vm1261, %v2882, %v2684
      %v2916 = vsel %vm1261, %v2884, %v2686
      %v2918 = vsel %vm1261, %v2886, %v2688
      %v2921 = vsel %vm1179, %v2457, %v2708
      %v2924 = vsel %vm1179, %v2460, %v2710
      %v2927 = vsel %vm1179, %v2472, %v2712
      %v2930 = vsel %vm1179, %v2475, %v2714
      %v2933 = vsel %vm1179, %v2487, %v2716
      %v2936 = vsel %vm1179, %v2490, %v2718
      %v2939 = vsel %vm1179, %v2502, %v2720
      %v2942 = vsel %vm1179, %v2505, %v2722
      %v2945 = vsel %vm1179, %v2517, %v2724
      %v2948 = vsel %vm1179, %v2520, %v2726
      %v2951 = vsel %vm1179, %v2532, %v2728
      %v2954 = vsel %vm1179, %v2535, %v2730
      %v2957 = vsel %vm1179, %v2547, %v2732
      %v2960 = vsel %vm1179, %v2550, %v2734
      %v2963 = vsel %vm1179, %v2700, %v2736
      %v2966 = vsel %vm1179, %v2703, %v2738
      %v2968 = vsel %vm1220, %v2921, %v2742
      %v2970 = vsel %vm1220, %v2924, %v2744
      %v2972 = vsel %vm1220, %v2927, %v2746
      %v2974 = vsel %vm1220, %v2930, %v2748
      %v2976 = vsel %vm1220, %v2933, %v2750
      %v2978 = vsel %vm1220, %v2936, %v2752
      %v2980 = vsel %vm1220, %v2939, %v2754
      %v2982 = vsel %vm1220, %v2942, %v2756
      %v2984 = vsel %vm1220, %v2945, %v2758
      %v2986 = vsel %vm1220, %v2948, %v2760
      %v2988 = vsel %vm1220, %v2951, %v2762
      %v2990 = vsel %vm1220, %v2954, %v2764
      %v2992 = vsel %vm1220, %v2957, %v2766
      %v2994 = vsel %vm1220, %v2960, %v2768
      %v2996 = vsel %vm1220, %v2963, %v2770
      %v2998 = vsel %vm1220, %v2966, %v2772
      %v3000 = vsel %vm1261, %v2968, %v2789
      %v3002 = vsel %vm1261, %v2970, %v2791
      %v3004 = vsel %vm1261, %v2972, %v2793
      %v3006 = vsel %vm1261, %v2974, %v2795
      %v3008 = vsel %vm1261, %v2976, %v2797
      %v3010 = vsel %vm1261, %v2978, %v2799
      %v3012 = vsel %vm1261, %v2980, %v2801
      %v3014 = vsel %vm1261, %v2982, %v2803
      %v3016 = vsel %vm1261, %v2984, %v2805
      %v3018 = vsel %vm1261, %v2986, %v2807
      %v3020 = vsel %vm1261, %v2988, %v2809
      %v3022 = vsel %vm1261, %v2990, %v2811
      %v3024 = vsel %vm1261, %v2992, %v2813
      %v3026 = vsel %vm1261, %v2994, %v2815
      %v3028 = vsel %vm1261, %v2996, %v2817
      %v3030 = vsel %vm1261, %v2998, %v2819
      %v3063 = vunpack.c.l.b16 %v2888
      %v3064 = vunpack.c.l.b16 %v3000
      %v3065 = vunpack.c.l.b16 %v2607
      %v3066 = vunpack.c.h.b16 %v2888
      %v3067 = vunpack.c.h.b16 %v3000
      %v3068 = vunpack.c.h.b16 %v2607
      %v3069 = vunpack.c.l.b16 %v2890
      %v3070 = vunpack.c.l.b16 %v3002
      %v3071 = vunpack.c.l.b16 %v2606
      %v3072 = vunpack.c.l.b16 %v2892
      %v3073 = vunpack.c.l.b16 %v3004
      %v3074 = vunpack.c.l.b16 %v2610
      %v3075 = vunpack.c.h.b16 %v2892
      %v3076 = vunpack.c.h.b16 %v3004
      %v3077 = vunpack.c.h.b16 %v2610
      %v3078 = vunpack.c.l.b16 %v2894
      %v3079 = vunpack.c.l.b16 %v3006
      %v3080 = vunpack.c.l.b16 %v2609
      %v3081 = vunpack.c.l.b16 %v2896
      %v3082 = vunpack.c.l.b16 %v3008
      %v3083 = vunpack.c.l.b16 %v2613
      %v3084 = vunpack.c.h.b16 %v2896
      %v3085 = vunpack.c.h.b16 %v3008
      %v3086 = vunpack.c.h.b16 %v2613
      %v3087 = vunpack.c.l.b16 %v2898
      %v3088 = vunpack.c.l.b16 %v3010
      %v3089 = vunpack.c.l.b16 %v2612
      %v3090 = vunpack.c.l.b16 %v2900
      %v3091 = vunpack.c.l.b16 %v3012
      %v3092 = vunpack.c.l.b16 %v2616
      %v3093 = vunpack.c.h.b16 %v2900
      %v3094 = vunpack.c.h.b16 %v3012
      %v3095 = vunpack.c.h.b16 %v2616
      %v3096 = vunpack.c.l.b16 %v2902
      %v3097 = vunpack.c.l.b16 %v3014
      %v3098 = vunpack.c.l.b16 %v2615
      %v3099 = vunpack.c.l.b16 %v2904
      %v3100 = vunpack.c.l.b16 %v3016
      %v3101 = vunpack.c.l.b16 %v2619
      %v3102 = vunpack.c.h.b16 %v2904
      %v3103 = vunpack.c.h.b16 %v3016
      %v3104 = vunpack.c.h.b16 %v2619
      %v3105 = vunpack.c.l.b16 %v2906
      %v3106 = vunpack.c.l.b16 %v3018
      %v3107 = vunpack.c.l.b16 %v2618
      %v3108 = vunpack.c.l.b16 %v2908
      %v3109 = vunpack.c.l.b16 %v3020
      %v3110 = vunpack.c.l.b16 %v2622
      %v3111 = vunpack.c.h.b16 %v2908
      %v3112 = vunpack.c.h.b16 %v3020
      %v3113 = vunpack.c.h.b16 %v2622
      %v3114 = vunpack.c.l.b16 %v2910
      %v3115 = vunpack.c.l.b16 %v3022
      %v3116 = vunpack.c.l.b16 %v2621
      %v3117 = vunpack.c.l.b16 %v2912
      %v3118 = vunpack.c.l.b16 %v3024
      %v3119 = vunpack.c.l.b16 %v2706
      %v3120 = vunpack.c.h.b16 %v2912
      %v3121 = vunpack.c.h.b16 %v3024
      %v3122 = vunpack.c.h.b16 %v2706
      %v3123 = vunpack.c.l.b16 %v2914
      %v3124 = vunpack.c.l.b16 %v3026
      %v3125 = vunpack.c.l.b16 %v2705
      %v3126 = vunpack.c.l.b16 %v2916
      %v3127 = vunpack.c.l.b16 %v3028
      %v3128 = vunpack.c.l.b16 %v2822
      %v3129 = vunpack.c.h.b16 %v2916
      %v3130 = vunpack.c.h.b16 %v3028
      %v3131 = vunpack.c.h.b16 %v2822
      %v3132 = vunpack.c.l.b16 %v2918
      %v3133 = vunpack.c.l.b16 %v3030
      %v3134 = vunpack.c.l.b16 %v2821
      %v3135 = vld [vmem:[%s4] sm:$0xf]
      %v3136 = vld [vmem:[%s4 + $0x4] sm:$0xf]
      %v3137 = vld [vmem:[%s4 + $0x8] sm:$0xf]
      %v3138 = vld [vmem:[%s4 + $0xc] sm:$0xf]
      %v3139 = vld [vmem:[%s4 + $0x10] sm:$0xf]
      %v3140 = vld [vmem:[%s4 + $0x14] sm:$0xf]
      %v3141 = vld [vmem:[%s4 + $0x18] sm:$0xf]
      %v3142 = vld [vmem:[%s4 + $0x1c] sm:$0xf]
      %v3143 = vld [vmem:[%s4 + $0x20] sm:$0xf]
      %v3144 = vld [vmem:[%s4 + $0x24] sm:$0xf]
      %v3145 = vld [vmem:[%s4 + $0x28] sm:$0xf]
      %v3146 = vld [vmem:[%s4 + $0x2c] sm:$0xf]
      %v3147 = vld [vmem:[%s4 + $0x30] sm:$0xf]
      %v3148 = vld [vmem:[%s4 + $0x34] sm:$0xf]
      %v3149 = vld [vmem:[%s4 + $0x38] sm:$0xf]
      %v3150 = vld [vmem:[%s4 + $0x3c] sm:$0xf]
      %v3151 = vld [vmem:[%s4 + $0x40] sm:$0xf]
      %v3152 = vld [vmem:[%s4 + $0x44] sm:$0xf]
      %v3153 = vld [vmem:[%s4 + $0x48] sm:$0xf]
      %v3154 = vld [vmem:[%s4 + $0x4c] sm:$0xf]
      %v3155 = vld [vmem:[%s4 + $0x50] sm:$0xf]
      %v3156 = vld [vmem:[%s4 + $0x54] sm:$0xf]
      %v3157 = vld [vmem:[%s4 + $0x58] sm:$0xf]
      %v3158 = vld [vmem:[%s4 + $0x5c] sm:$0xf]
      %v3159 = vld [vmem:[%s4 + $0x60] sm:$0xf]
      %v3160 = vld [vmem:[%s4 + $0x64] sm:$0xf]
      %v3161 = vld [vmem:[%s4 + $0x68] sm:$0xf]
      %v3162 = vld [vmem:[%s4 + $0x6c] sm:$0xf]
      %v3163 = vld [vmem:[%s4 + $0x70] sm:$0xf]
      %v3164 = vld [vmem:[%s4 + $0x74] sm:$0xf]
      %v3165 = vld [vmem:[%s4 + $0x78] sm:$0xf]
      %v3166 = vld [vmem:[%s4 + $0x7c] sm:$0xf]
      %v3167 = vld [vmem:[%s4 + $0x80] sm:$0xf]
      %v3168 = vld [vmem:[%s4 + $0x84] sm:$0xf]
      %v3169 = vld [vmem:[%s4 + $0x88] sm:$0xf]
      %v3170 = vld [vmem:[%s4 + $0x8c] sm:$0xf]
      %v3171 = vld [vmem:[%s5] sm:$0x1]
      %v3173 = vlaneseq
      %v3174 = vshrl.u32 %v3173, 7
      %v3175 = vsub.s32 0, %v3174
      %v3176 = vrot.slane %v3171, %v3175
      %v3178 = vpack.c.b16 %v3066, %v3063
      %v3179 = vpack.c.b16 %v3067, %v3064
      %v3180 = vpack.c.b16 %v3068, %v3065
      %v3181 = vpack.c.b16 %v3072, %v3069
      %v3182 = vpack.c.b16 %v3073, %v3070
      %v3183 = vpack.c.b16 %v3074, %v3071
      %v3184 = vpack.c.b16 %v3078, %v3075
      %v3185 = vpack.c.b16 %v3079, %v3076
      %v3186 = vpack.c.b16 %v3080, %v3077
      %v3187 = vpack.c.b16 %v3084, %v3081
      %v3188 = vpack.c.b16 %v3085, %v3082
      %v3189 = vpack.c.b16 %v3086, %v3083
      %v3190 = vpack.c.b16 %v3090, %v3087
      %v3191 = vpack.c.b16 %v3091, %v3088
      %v3192 = vpack.c.b16 %v3092, %v3089
      %v3193 = vpack.c.b16 %v3096, %v3093
      %v3194 = vpack.c.b16 %v3097, %v3094
      %v3195 = vpack.c.b16 %v3098, %v3095
      %v3196 = vpack.c.b16 %v3102, %v3099
      %v3197 = vpack.c.b16 %v3103, %v3100
      %v3198 = vpack.c.b16 %v3104, %v3101
      %v3199 = vpack.c.b16 %v3108, %v3105
      %v3200 = vpack.c.b16 %v3109, %v3106
      %v3201 = vpack.c.b16 %v3110, %v3107
      %v3202 = vpack.c.b16 %v3114, %v3111
      %v3203 = vpack.c.b16 %v3115, %v3112
      %v3204 = vpack.c.b16 %v3116, %v3113
      %v3205 = vpack.c.b16 %v3120, %v3117
      %v3206 = vpack.c.b16 %v3121, %v3118
      %v3207 = vpack.c.b16 %v3122, %v3119
      %v3208 = vpack.c.b16 %v3126, %v3123
      %v3209 = vpack.c.b16 %v3127, %v3124
      %v3210 = vpack.c.b16 %v3128, %v3125
      %v3211 = vpack.c.b16 %v3132, %v3129
      %v3212 = vpack.c.b16 %v3133, %v3130
      %v3213 = vpack.c.b16 %v3134, %v3131
      %v3274 = vunpack.c.l.b16 %v3135
      %v3275 = vunpack.c.l.b16 %v3136
      %v3276 = vunpack.c.l.b16 %v3137
      %v3277 = vunpack.c.l.b16 %v3138
      %v3278 = vunpack.c.l.b16 %v3139
      %v3279 = vunpack.c.l.b16 %v3140
      %v3280 = vunpack.c.l.b16 %v3141
      %v3281 = vunpack.c.l.b16 %v3142
      %v3282 = vunpack.c.l.b16 %v3143
      %v3283 = vunpack.c.l.b16 %v3144
      %v3284 = vunpack.c.l.b16 %v3145
      %v3285 = vunpack.c.l.b16 %v3146
      %v3286 = vunpack.c.l.b16 %v3147
      %v3287 = vunpack.c.l.b16 %v3148
      %v3288 = vunpack.c.l.b16 %v3149
      %v3289 = vunpack.c.l.b16 %v3150
      %v3290 = vunpack.c.l.b16 %v3151
      %v3291 = vunpack.c.l.b16 %v3152
      %v3292 = vunpack.c.l.b16 %v3153
      %v3293 = vunpack.c.l.b16 %v3154
      %v3294 = vunpack.c.l.b16 %v3155
      %v3295 = vunpack.c.l.b16 %v3156
      %v3296 = vunpack.c.l.b16 %v3157
      %v3297 = vunpack.c.l.b16 %v3158
      %v3298 = vunpack.c.l.b16 %v3159
      %v3299 = vunpack.c.l.b16 %v3160
      %v3300 = vunpack.c.l.b16 %v3161
      %v3301 = vunpack.c.l.b16 %v3162
      %v3302 = vunpack.c.l.b16 %v3163
      %v3303 = vunpack.c.l.b16 %v3164
      %v3304 = vunpack.c.l.b16 %v3165
      %v3305 = vunpack.c.l.b16 %v3166
      %v3306 = vunpack.c.l.b16 %v3167
      %v3307 = vunpack.c.l.b16 %v3168
      %v3308 = vunpack.c.l.b16 %v3169
      %v3309 = vunpack.c.l.b16 %v3170
      %v3310 = vpack.c.b16 %v3275, %v3274
      %v3311 = vpack.c.b16 %v3277, %v3276
      %v3312 = vpack.c.b16 %v3279, %v3278
      %v3313 = vpack.c.b16 %v3281, %v3280
      %v3314 = vpack.c.b16 %v3283, %v3282
      %v3315 = vpack.c.b16 %v3285, %v3284
      %v3316 = vpack.c.b16 %v3287, %v3286
      %v3317 = vpack.c.b16 %v3289, %v3288
      %v3318 = vpack.c.b16 %v3291, %v3290
      %v3319 = vpack.c.b16 %v3293, %v3292
      %v3320 = vpack.c.b16 %v3295, %v3294
      %v3321 = vpack.c.b16 %v3297, %v3296
      %v3322 = vpack.c.b16 %v3299, %v3298
      %v3323 = vpack.c.b16 %v3301, %v3300
      %v3324 = vpack.c.b16 %v3303, %v3302
      %v3325 = vpack.c.b16 %v3305, %v3304
      %v3326 = vpack.c.b16 %v3307, %v3306
      %v3327 = vpack.c.b16 %v3309, %v3308
      %v3347 = vsel %vm1179, %v3180, 0
      %v3350 = vsel %vm1179, %v3183, 0
      %v3353 = vsel %vm1179, %v3186, 0
      %v3356 = vsel %vm1179, %v3189, 0
      %v3359 = vsel %vm1179, %v3192, 0
      %v3362 = vsel %vm1179, %v3195, 0
      %v3365 = vsel %vm1179, %v3198, 0
      %v3368 = vsel %vm1179, %v3201, 0
      %v3371 = vsel %vm1179, %v3204, 0
      %v3374 = vsel %vm1179, %v3207, 0
      %v3377 = vsel %vm1179, %v3210, 0
      %v3380 = vsel %vm1179, %v3213, 0
      %3382 = vmatprep.subr.bf16.mxu0 0
      %3383 = vmatpush1.bf16.msra.mxu0 %v3310
      %3384 = vmatprep.subr.bf16.mxu0 0
      %3385 = vmatpush1.bf16.msra.mxu0 %v3311
      %3386 = vmatprep.subr.bf16.mxu0 0
      %3387 = vmatpush1.bf16.msra.mxu0 %v3312
      %3388 = vmatprep.subr.bf16.mxu0 0
      %3389 = vmatpush1.bf16.msra.mxu0 %v3313
      %3390 = vmatprep.subr.bf16.mxu0 0
      %3391 = vmatpush1.bf16.msra.mxu0 %v3314
      %3392 = vmatprep.subr.bf16.mxu0 0
      %3393 = vmatpush1.bf16.msra.mxu0 %v3315
      %3394 = vmatprep.subr.bf16.mxu0 0
      %3395 = vmatpush1.bf16.msra.mxu0 %v3316
      %3396 = vmatprep.subr.bf16.mxu0 0
      %3397 = vmatpush1.bf16.msra.mxu0 %v3317
      %3398 = vmatprep.subr.bf16.mxu0 0
      %3399 = vmatpush1.bf16.msra.mxu0 %v3318
      %3400 = vmatprep.subr.bf16.mxu0 0
      %3401 = vmatpush1.bf16.msra.mxu0 %v3319
      %3402 = vmatprep.subr.bf16.mxu0 0
      %3403 = vmatpush1.bf16.msra.mxu0 %v3320
      %3404 = vmatprep.subr.bf16.mxu0 0
      %3405 = vmatpush1.bf16.msra.mxu0 %v3321
      %3406 = vmatprep.subr.bf16.mxu0 0
      %3407 = vmatpush1.bf16.msra.mxu0 %v3322
      %3408 = vmatprep.subr.bf16.mxu0 0
      %3409 = vmatpush1.bf16.msra.mxu0 %v3323
      %3410 = vmatprep.subr.bf16.mxu0 0
      %3411 = vmatpush1.bf16.msra.mxu0 %v3324
      %3412 = vmatprep.subr.bf16.mxu0 0
      %3413 = vmatpush1.bf16.msra.mxu0 %v3325
      %3414 = vmatprep.mubr.bf16.mxu0 %v3179
      %3415 = vmatmul.mubr.bf16.gmra.mrb[0].mxu0 %v3178
      %v3416 = vpop.f32.mrb[0].mxu0
      %v3417 = vadd.f32 %v3176, %v3416
      %v3418 = vpop.f32.mrb[0].mxu0
      %v3419 = vpop.f32.mrb[0].mxu0
      %v3420 = vadd.f32 %v3176, %v3419
      %v3421 = vpop.f32.mrb[0].mxu0
      %3422 = vmatprep.mubr.bf16.mxu0 %v3182
      %3423 = vmatmul.mubr.bf16.gmra.mrb[0].mxu0 %v3181
      %v3424 = vpop.f32.mrb[0].mxu0
      %v3425 = vadd.f32 %v3176, %v3424
      %v3426 = vpop.f32.mrb[0].mxu0
      %v3427 = vpop.f32.mrb[0].mxu0
      %v3428 = vadd.f32 %v3176, %v3427
      %v3429 = vpop.f32.mrb[0].mxu0
      %3430 = vmatprep.mubr.bf16.mxu0 %v3185
      %3431 = vmatmul.mubr.bf16.gmra.mrb[0].mxu0 %v3184
      %v3432 = vpop.f32.mrb[0].mxu0
      %v3433 = vadd.f32 %v3176, %v3432
      %v3434 = vpop.f32.mrb[0].mxu0
      %v3435 = vpop.f32.mrb[0].mxu0
      %v3436 = vadd.f32 %v3176, %v3435
      %v3437 = vpop.f32.mrb[0].mxu0
      %3438 = vmatprep.mubr.bf16.mxu0 %v3188
      %3439 = vmatmul.mubr.bf16.gmra.mrb[0].mxu0 %v3187
      %v3440 = vpop.f32.mrb[0].mxu0
      %v3441 = vadd.f32 %v3176, %v3440
      %v3442 = vpop.f32.mrb[0].mxu0
      %v3443 = vpop.f32.mrb[0].mxu0
      %v3444 = vadd.f32 %v3176, %v3443
      %v3445 = vpop.f32.mrb[0].mxu0
      %3446 = vmatprep.mubr.bf16.mxu0 %v3191
      %3447 = vmatmul.mubr.bf16.gmra.mrb[0].mxu0 %v3190
      %v3448 = vpop.f32.mrb[0].mxu0
      %v3449 = vadd.f32 %v3176, %v3448
      %v3450 = vpop.f32.mrb[0].mxu0
      %v3451 = vpop.f32.mrb[0].mxu0
      %v3452 = vadd.f32 %v3176, %v3451
      %v3453 = vpop.f32.mrb[0].mxu0
      %3454 = vmatprep.mubr.bf16.mxu0 %v3194
      %3455 = vmatmul.mubr.bf16.gmra.mrb[0].mxu0 %v3193
      %v3456 = vpop.f32.mrb[0].mxu0
      %v3457 = vadd.f32 %v3176, %v3456
      %v3458 = vpop.f32.mrb[0].mxu0
      %v3459 = vpop.f32.mrb[0].mxu0
      %v3460 = vadd.f32 %v3176, %v3459
      %v3461 = vpop.f32.mrb[0].mxu0
      %3462 = vmatprep.mubr.bf16.mxu0 %v3197
      %3463 = vmatmul.mubr.bf16.gmra.mrb[0].mxu0 %v3196
      %v3464 = vpop.f32.mrb[0].mxu0
      %v3465 = vadd.f32 %v3176, %v3464
      %v3466 = vpop.f32.mrb[0].mxu0
      %v3467 = vpop.f32.mrb[0].mxu0
      %v3468 = vadd.f32 %v3176, %v3467
      %v3469 = vpop.f32.mrb[0].mxu0
      %3470 = vmatprep.mubr.bf16.mxu0 %v3200
      %3471 = vmatmul.mubr.bf16.gmra.mrb[0].mxu0 %v3199
      %v3472 = vpop.f32.mrb[0].mxu0
      %v3473 = vadd.f32 %v3176, %v3472
      %v3474 = vpop.f32.mrb[0].mxu0
      %v3475 = vpop.f32.mrb[0].mxu0
      %v3476 = vadd.f32 %v3176, %v3475
      %v3477 = vpop.f32.mrb[0].mxu0
      %3478 = vmatprep.mubr.bf16.mxu0 %v3203
      %3479 = vmatmul.mubr.bf16.gmra.mrb[0].mxu0 %v3202
      %v3480 = vpop.f32.mrb[0].mxu0
      %v3481 = vadd.f32 %v3176, %v3480
      %v3482 = vpop.f32.mrb[0].mxu0
      %v3483 = vpop.f32.mrb[0].mxu0
      %v3484 = vadd.f32 %v3176, %v3483
      %v3485 = vpop.f32.mrb[0].mxu0
      %3486 = vmatprep.mubr.bf16.mxu0 %v3206
      %3487 = vmatmul.mubr.bf16.gmra.mrb[0].mxu0 %v3205
      %v3488 = vpop.f32.mrb[0].mxu0
      %v3489 = vadd.f32 %v3176, %v3488
      %v3490 = vpop.f32.mrb[0].mxu0
      %v3491 = vpop.f32.mrb[0].mxu0
      %v3492 = vadd.f32 %v3176, %v3491
      %v3493 = vpop.f32.mrb[0].mxu0
      %3494 = vmatprep.mubr.bf16.mxu0 %v3209
      %3495 = vmatmul.mubr.bf16.gmra.mrb[0].mxu0 %v3208
      %v3496 = vpop.f32.mrb[0].mxu0
      %v3497 = vadd.f32 %v3176, %v3496
      %v3498 = vpop.f32.mrb[0].mxu0
      %v3499 = vpop.f32.mrb[0].mxu0
      %v3500 = vadd.f32 %v3176, %v3499
      %v3501 = vpop.f32.mrb[0].mxu0
      %3502 = vmatprep.mubr.bf16.mxu0 %v3212
      %3503 = vmatmul.mubr.bf16.gmra.mrb[0].mxu0 %v3211
      %v3504 = vpop.f32.mrb[0].mxu0
      %v3505 = vadd.f32 %v3176, %v3504
      %v3506 = vpop.f32.mrb[0].mxu0
      %v3507 = vpop.f32.mrb[0].mxu0
      %v3508 = vadd.f32 %v3176, %v3507
      %v3509 = vpop.f32.mrb[0].mxu0
      %3510 = vdwg.mxu0
      %3511 = vmatprep.subr.bf16.mxu0 0
      %3512 = vmatpush1.bf16.msra.mxu0 %v3326
      %3513 = vmatprep.subr.bf16.mxu0 0
      %3514 = vmatpush1.bf16.msra.mxu0 %v3327
      %3515 = vmatprep.subr.bf16.mxu0 0
      %3516 = vmatpush1.bf16.msra.mxu0 0
      %3517 = vmatprep.subr.bf16.mxu0 0
      %3518 = vmatpush1.bf16.msra.mxu0 0
      %3519 = vmatprep.subr.bf16.mxu0 0
      %3520 = vmatpush1.bf16.msra.mxu0 0
      %3521 = vmatprep.subr.bf16.mxu0 0
      %3522 = vmatpush1.bf16.msra.mxu0 0
      %3523 = vmatprep.subr.bf16.mxu0 0
      %3524 = vmatpush1.bf16.msra.mxu0 0
      %3525 = vmatprep.subr.bf16.mxu0 0
      %3526 = vmatpush1.bf16.msra.mxu0 0
      %3527 = vmatprep.subr.bf16.mxu0 0
      %3528 = vmatpush1.bf16.msra.mxu0 0
      %3529 = vmatprep.subr.bf16.mxu0 0
      %3530 = vmatpush1.bf16.msra.mxu0 0
      %3531 = vmatprep.subr.bf16.mxu0 0
      %3532 = vmatpush1.bf16.msra.mxu0 0
      %3533 = vmatprep.subr.bf16.mxu0 0
      %3534 = vmatpush1.bf16.msra.mxu0 0
      %3535 = vmatprep.subr.bf16.mxu0 0
      %3536 = vmatpush1.bf16.msra.mxu0 0
      %3537 = vmatprep.subr.bf16.mxu0 0
      %3538 = vmatpush1.bf16.msra.mxu0 0
      %3539 = vmatprep.subr.bf16.mxu0 0
      %3540 = vmatpush1.bf16.msra.mxu0 0
      %3541 = vmatprep.subr.bf16.mxu0 0
      %3542 = vmatpush1.bf16.msra.mxu0 0
      %3543 = vmatprep.mubr.bf16.mxu0 0
      %3544 = vmatmul.mubr.bf16.gmra.mrb[0].mxu0 %v3347
      %v3545 = vpop.f32.mrb[0].mxu0
      %v3546 = vadd.f32 %v3417, %v3545
      %v3547 = vpop.f32.mrb[0].mxu0
      %v3548 = vpop.f32.mrb[0].mxu0
      %v3549 = vadd.f32 %v3420, %v3548
      %v3550 = vpop.f32.mrb[0].mxu0
      %3551 = vmatprep.mubr.bf16.mxu0 0
      %3552 = vmatmul.mubr.bf16.gmra.mrb[0].mxu0 %v3350
      %v3553 = vpop.f32.mrb[0].mxu0
      %v3554 = vadd.f32 %v3425, %v3553
      %v3555 = vpop.f32.mrb[0].mxu0
      %v3556 = vpop.f32.mrb[0].mxu0
      %v3557 = vadd.f32 %v3428, %v3556
      %v3558 = vpop.f32.mrb[0].mxu0
      %3559 = vmatprep.mubr.bf16.mxu0 0
      %3560 = vmatmul.mubr.bf16.gmra.mrb[0].mxu0 %v3353
      %v3561 = vpop.f32.mrb[0].mxu0
      %v3562 = vadd.f32 %v3433, %v3561
      %v3563 = vpop.f32.mrb[0].mxu0
      %v3564 = vpop.f32.mrb[0].mxu0
      %v3565 = vadd.f32 %v3436, %v3564
      %v3566 = vpop.f32.mrb[0].mxu0
      %3567 = vmatprep.mubr.bf16.mxu0 0
      %3568 = vmatmul.mubr.bf16.gmra.mrb[0].mxu0 %v3356
      %v3569 = vpop.f32.mrb[0].mxu0
      %v3570 = vadd.f32 %v3441, %v3569
      %v3571 = vpop.f32.mrb[0].mxu0
      %v3572 = vpop.f32.mrb[0].mxu0
      %v3573 = vadd.f32 %v3444, %v3572
      %v3574 = vpop.f32.mrb[0].mxu0
      %3575 = vmatprep.mubr.bf16.mxu0 0
      %3576 = vmatmul.mubr.bf16.gmra.mrb[0].mxu0 %v3359
      %v3577 = vpop.f32.mrb[0].mxu0
      %v3578 = vadd.f32 %v3449, %v3577
      %v3579 = vpop.f32.mrb[0].mxu0
      %v3580 = vpop.f32.mrb[0].mxu0
      %v3581 = vadd.f32 %v3452, %v3580
      %v3582 = vpop.f32.mrb[0].mxu0
      %3583 = vmatprep.mubr.bf16.mxu0 0
      %3584 = vmatmul.mubr.bf16.gmra.mrb[0].mxu0 %v3362
      %v3585 = vpop.f32.mrb[0].mxu0
      %v3586 = vadd.f32 %v3457, %v3585
      %v3587 = vpop.f32.mrb[0].mxu0
      %v3588 = vpop.f32.mrb[0].mxu0
      %v3589 = vadd.f32 %v3460, %v3588
      %v3590 = vpop.f32.mrb[0].mxu0
      %3591 = vmatprep.mubr.bf16.mxu0 0
      %3592 = vmatmul.mubr.bf16.gmra.mrb[0].mxu0 %v3365
      %v3593 = vpop.f32.mrb[0].mxu0
      %v3594 = vadd.f32 %v3465, %v3593
      %v3595 = vpop.f32.mrb[0].mxu0
      %v3596 = vpop.f32.mrb[0].mxu0
      %v3597 = vadd.f32 %v3468, %v3596
      %v3598 = vpop.f32.mrb[0].mxu0
      %3599 = vmatprep.mubr.bf16.mxu0 0
      %3600 = vmatmul.mubr.bf16.gmra.mrb[0].mxu0 %v3368
      %v3601 = vpop.f32.mrb[0].mxu0
      %v3602 = vadd.f32 %v3473, %v3601
      %v3603 = vpop.f32.mrb[0].mxu0
      %v3604 = vpop.f32.mrb[0].mxu0
      %v3605 = vadd.f32 %v3476, %v3604
      %v3606 = vpop.f32.mrb[0].mxu0
      %3607 = vmatprep.mubr.bf16.mxu0 0
      %3608 = vmatmul.mubr.bf16.gmra.mrb[0].mxu0 %v3371
      %v3609 = vpop.f32.mrb[0].mxu0
      %v3610 = vadd.f32 %v3481, %v3609
      %v3611 = vpop.f32.mrb[0].mxu0
      %v3612 = vpop.f32.mrb[0].mxu0
      %v3613 = vadd.f32 %v3484, %v3612
      %v3614 = vpop.f32.mrb[0].mxu0
      %3615 = vmatprep.mubr.bf16.mxu0 0
      %3616 = vmatmul.mubr.bf16.gmra.mrb[0].mxu0 %v3374
      %v3617 = vpop.f32.mrb[0].mxu0
      %v3618 = vadd.f32 %v3489, %v3617
      %v3619 = vpop.f32.mrb[0].mxu0
      %v3620 = vpop.f32.mrb[0].mxu0
      %v3621 = vadd.f32 %v3492, %v3620
      %v3622 = vpop.f32.mrb[0].mxu0
      %3623 = vmatprep.mubr.bf16.mxu0 0
      %3624 = vmatmul.mubr.bf16.gmra.mrb[0].mxu0 %v3377
      %v3625 = vpop.f32.mrb[0].mxu0
      %v3626 = vadd.f32 %v3497, %v3625
      %v3627 = vpop.f32.mrb[0].mxu0
      %v3628 = vpop.f32.mrb[0].mxu0
      %v3629 = vadd.f32 %v3500, %v3628
      %v3630 = vpop.f32.mrb[0].mxu0
      %3631 = vmatprep.mubr.bf16.mxu0 0
      %3632 = vmatmul.mubr.bf16.gmra.mrb[0].mxu0 %v3380
      %v3633 = vpop.f32.mrb[0].mxu0
      %v3634 = vadd.f32 %v3505, %v3633
      %v3635 = vpop.f32.mrb[0].mxu0
      %v3636 = vpop.f32.mrb[0].mxu0
      %v3637 = vadd.f32 %v3508, %v3636
      %v3638 = vpop.f32.mrb[0].mxu0
      %3639 = vdwg.mxu0
      %v3640 = vunpack.c.l.bf16 %v331
      %v3641 = vunpack.c.l.bf16 %v332
      %v3642 = vunpack.c.l.bf16 %v333
      %v3643 = vunpack.c.l.bf16 %v334
      %v3644 = vunpack.c.l.bf16 %v335
      %v3645 = vunpack.c.l.bf16 %v336
      %v3646 = vunpack.c.l.bf16 %v337
      %v3647 = vunpack.c.l.bf16 %v338
      %v3648 = vunpack.c.l.bf16 %v339
      %v3649 = vunpack.c.l.bf16 %v340
      %v3650 = vunpack.c.l.bf16 %v341
      %v3651 = vunpack.c.l.bf16 %v342
      %v3652 = vunpack.c.l.bf16 %v343
      %v3653 = vunpack.c.l.bf16 %v344
      %v3654 = vunpack.c.l.bf16 %v345
      %v3655 = vunpack.c.l.bf16 %v346
      %v3656 = vunpack.c.l.bf16 %v347
      %v3657 = vunpack.c.l.bf16 %v348
      %v3658 = vunpack.c.l.bf16 %v349
      %v3659 = vunpack.c.l.bf16 %v350
      %v3660 = vunpack.c.l.bf16 %v351
      %v3661 = vunpack.c.l.bf16 %v352
      %v3662 = vunpack.c.l.bf16 %v353
      %v3663 = vunpack.c.l.bf16 %v354
      %v3664 = vadd.f32 %v3640, %v3546
      %v3665 = vadd.f32 %v3641, %v3549
      %v3666 = vadd.f32 %v3642, %v3554
      %v3667 = vadd.f32 %v3643, %v3557
      %v3668 = vadd.f32 %v3644, %v3562
      %v3669 = vadd.f32 %v3645, %v3565
      %v3670 = vadd.f32 %v3646, %v3570
      %v3671 = vadd.f32 %v3647, %v3573
      %v3672 = vadd.f32 %v3648, %v3578
      %v3673 = vadd.f32 %v3649, %v3581
      %v3674 = vadd.f32 %v3650, %v3586
      %v3675 = vadd.f32 %v3651, %v3589
      %v3676 = vadd.f32 %v3652, %v3594
      %v3677 = vadd.f32 %v3653, %v3597
      %v3678 = vadd.f32 %v3654, %v3602
      %v3679 = vadd.f32 %v3655, %v3605
      %v3680 = vadd.f32 %v3656, %v3610
      %v3681 = vadd.f32 %v3657, %v3613
      %v3682 = vadd.f32 %v3658, %v3618
      %v3683 = vadd.f32 %v3659, %v3621
      %v3684 = vadd.f32 %v3660, %v3626
      %v3685 = vadd.f32 %v3661, %v3629
      %v3686 = vadd.f32 %v3662, %v3634
      %v3687 = vadd.f32 %v3663, %v3637
      %v3688 = vpack.c.bf16 %v3665, %v3664
      %v3689 = vpack.c.bf16 %v3666, %v3666
      %v3690 = vpack.c.bf16 %v3668, %v3667
      %v3691 = vpack.c.bf16 %v3669, %v3669
      %v3692 = vpack.c.bf16 %v3671, %v3670
      %v3693 = vpack.c.bf16 %v3672, %v3672
      %v3694 = vpack.c.bf16 %v3674, %v3673
      %v3695 = vpack.c.bf16 %v3675, %v3675
      %v3696 = vpack.c.bf16 %v3677, %v3676
      %v3697 = vpack.c.bf16 %v3678, %v3678
      %v3698 = vpack.c.bf16 %v3680, %v3679
      %v3699 = vpack.c.bf16 %v3681, %v3681
      %v3700 = vpack.c.bf16 %v3683, %v3682
      %v3701 = vpack.c.bf16 %v3684, %v3684
      %v3702 = vpack.c.bf16 %v3686, %v3685
      %v3703 = vpack.c.bf16 %v3687, %v3687
      %v3720 = vunpack.c.l.b16 %v3688
      %v3721 = vunpack.c.h.b16 %v3688
      %v3722 = vunpack.c.l.b16 %v3689
      %v3723 = vunpack.c.l.b16 %v3690
      %v3724 = vunpack.c.h.b16 %v3690
      %v3725 = vunpack.c.l.b16 %v3691
      %v3726 = vunpack.c.l.b16 %v3692
      %v3727 = vunpack.c.h.b16 %v3692
      %v3728 = vunpack.c.l.b16 %v3693
      %v3729 = vunpack.c.l.b16 %v3694
      %v3730 = vunpack.c.h.b16 %v3694
      %v3731 = vunpack.c.l.b16 %v3695
      %v3732 = vunpack.c.l.b16 %v3696
      %v3733 = vunpack.c.h.b16 %v3696
      %v3734 = vunpack.c.l.b16 %v3697
      %v3735 = vunpack.c.l.b16 %v3698
      %v3736 = vunpack.c.h.b16 %v3698
      %v3737 = vunpack.c.l.b16 %v3699
      %v3738 = vunpack.c.l.b16 %v3700
      %v3739 = vunpack.c.h.b16 %v3700
      %v3740 = vunpack.c.l.b16 %v3701
      %v3741 = vunpack.c.l.b16 %v3702
      %v3742 = vunpack.c.h.b16 %v3702
      %v3743 = vunpack.c.l.b16 %v3703
      %v3744 = vpack.c.b16 %v3720, %v3720
      %v3745 = vpack.c.b16 %v3721, %v3721
      %v3746 = vpack.c.b16 %v3722, %v3722
      %v3747 = vpack.c.b16 %v3723, %v3723
      %v3748 = vpack.c.b16 %v3724, %v3724
      %v3749 = vpack.c.b16 %v3725, %v3725
      %v3750 = vpack.c.b16 %v3726, %v3726
      %v3751 = vpack.c.b16 %v3727, %v3727
      %v3752 = vpack.c.b16 %v3728, %v3728
      %v3753 = vpack.c.b16 %v3729, %v3729
      %v3754 = vpack.c.b16 %v3730, %v3730
      %v3755 = vpack.c.b16 %v3731, %v3731
      %v3756 = vpack.c.b16 %v3732, %v3732
      %v3757 = vpack.c.b16 %v3733, %v3733
      %v3758 = vpack.c.b16 %v3734, %v3734
      %v3759 = vpack.c.b16 %v3735, %v3735
      %v3760 = vpack.c.b16 %v3736, %v3736
      %v3761 = vpack.c.b16 %v3737, %v3737
      %v3762 = vpack.c.b16 %v3738, %v3738
      %v3763 = vpack.c.b16 %v3739, %v3739
      %v3764 = vpack.c.b16 %v3740, %v3740
      %v3765 = vpack.c.b16 %v3741, %v3741
      %v3766 = vpack.c.b16 %v3742, %v3742
      %v3767 = vpack.c.b16 %v3743, %v3743
      %vm3792 = vcmask 257024
      %3793 = vst.msk [vmem:[%s328] sm:$0xf] %vm3792, %v3744
      %3794 = vst.msk [vmem:[%s328 + $0x4] sm:$0xf] %vm3792, %v3745
      %3795 = vst.msk [vmem:[%s328 + $0x8] sm:$0xf] %vm3792, %v3746
      %3796 = vst.msk [vmem:[%s328 + $0xc] sm:$0xf] %vm3792, %v3747
      %3797 = vst.msk [vmem:[%s328 + $0x10] sm:$0xf] %vm3792, %v3748
      %3798 = vst.msk [vmem:[%s328 + $0x14] sm:$0xf] %vm3792, %v3749
      %3799 = vst.msk [vmem:[%s328 + $0x18] sm:$0xf] %vm3792, %v3750
      %3800 = vst.msk [vmem:[%s328 + $0x1c] sm:$0xf] %vm3792, %v3751
      %3801 = vst.msk [vmem:[%s328 + $0x20] sm:$0xf] %vm3792, %v3752
      %3802 = vst.msk [vmem:[%s328 + $0x24] sm:$0xf] %vm3792, %v3753
      %3803 = vst.msk [vmem:[%s328 + $0x28] sm:$0xf] %vm3792, %v3754
      %3804 = vst.msk [vmem:[%s328 + $0x2c] sm:$0xf] %vm3792, %v3755
      %3805 = vst.msk [vmem:[%s328 + $0x30] sm:$0xf] %vm3792, %v3756
      %3806 = vst.msk [vmem:[%s328 + $0x34] sm:$0xf] %vm3792, %v3757
      %3807 = vst.msk [vmem:[%s328 + $0x38] sm:$0xf] %vm3792, %v3758
      %3808 = vst.msk [vmem:[%s328 + $0x3c] sm:$0xf] %vm3792, %v3759
      %3809 = vst.msk [vmem:[%s328 + $0x40] sm:$0xf] %vm3792, %v3760
      %3810 = vst.msk [vmem:[%s328 + $0x44] sm:$0xf] %vm3792, %v3761
      %3811 = vst.msk [vmem:[%s328 + $0x48] sm:$0xf] %vm3792, %v3762
      %3812 = vst.msk [vmem:[%s328 + $0x4c] sm:$0xf] %vm3792, %v3763
      %3813 = vst.msk [vmem:[%s328 + $0x50] sm:$0xf] %vm3792, %v3764
      %3814 = vst.msk [vmem:[%s328 + $0x54] sm:$0xf] %vm3792, %v3765
      %3815 = vst.msk [vmem:[%s328 + $0x58] sm:$0xf] %vm3792, %v3766
      %3816 = vst.msk [vmem:[%s328 + $0x5c] sm:$0xf] %vm3792, %v3767
      %s3817 = smul.u32 8, %s22
      %p3818 = scmp.lt.s32.totalorder %s21, 1
      %s3819 = scalar_select %p3818, %s21, 1
      %p3820 = scmp.lt.s32.totalorder %s3817, 23
      %s3821 = scalar_select %p3820, %s3817, 23
      %s3822 = smul.addr %s3821, 3
      %s3823 = smul.addr %s3819, 72
      %s3824 = sadd.s32 %s3822, %s3823
      %s3825 = smul.addr %s3824, 4
      %s3826 = scalar_lea.vmem %s6, %s3825
      // Predicated region
      $region45: #{edsr_ig_forward.6} parent=43 // pred_check
        %p3827 = pneg %p189
      $region46: #{edsr_ig_forward.6} parent=43 // pred_check_branch
        %3829 = sbr.rel (%p3827) target = $region48
      $region47: #{edsr_ig_forward.6} parent=43 // pred_region
        %s3830 = smul.u32 8, %s22
      $region48: #{edsr_ig_forward.6} parent=43 // pred_fallthru
        _
    $region44: #{edsr_ig_forward.6} parent=5 // pred_fallthru
      _
    %p3831 = scmp.le.s32.totalorder 2, %s12
    // Predicated region
    $region49: #{edsr_ig_forward.6} parent=5 // pred_check
      %p3832 = pneg %p3831
    $region50: #{edsr_ig_forward.6} parent=5 // pred_check_branch
      %3834 = sbr.rel (%p3832) target = $region52
    $region51: #{edsr_ig_forward.6} parent=5 // pred_region
      %s3835 = ssub.s32 %s12, 2
      // Predicated region
      $region53: #{edsr_ig_forward.6} parent=51 // pred_check
        %p3836 = pneg %p195
      $region54: #{edsr_ig_forward.6} parent=51 // pred_check_branch
        %3838 = sbr.rel (%p3836) target = $region56
      $region55: #{edsr_ig_forward.6} parent=51 // pred_region
        %s3839 = smul.u32 8, %s24
        %p3840 = scmp.lt.s32.totalorder %s23, 1
        %s3841 = scalar_select %p3840, %s23, 1
        %p3842 = scmp.lt.s32.totalorder %s3839, 23
        %s3843 = scalar_select %p3842, %s3839, 23
        %s3844 = smul.addr %s3843, 3
        %s3845 = smul.addr %s3841, 72
        %s3846 = sadd.s32 %s3844, %s3845
        %s3847 = smul.addr %s3846, 4
        %s3848 = scalar_lea.vmem %s6, %s3847
      $region56: #{edsr_ig_forward.6} parent=51 // pred_fallthru
        _
    $region52: #{edsr_ig_forward.6} parent=5 // pred_fallthru
      _
  $region6: #{edsr_ig_forward.6} parent=0 // loop_footer
    %s16 = sadd.s32 1, %s12
  $region7: #{edsr_ig_forward.6} parent=0 // loop_footer_branch
    %11 = sbr.rel target = $region3
  $region8: #{edsr_ig_forward.6} parent=0 // loop_exit
    _

</llo_original>
